<compile_context>
chip_gen: v7x
topology: tpu7x:2x2x1
jax: 0.10.0
libtpu: 0.0.40
codegen_flags: <defaults>
</compile_context>

<pallas_src>
import jax
import jax.numpy as jnp
from jax.experimental import pallas as pl
from jax.experimental.pallas import tpu as pltpu


# Logical layer widths from the PyTorch module (torch.nn.Linear chain).
DIMS = [1024, 768, 512, 256, 128, 64, 128, 256, 512, 768, 1024]
# Lane-padded widths: the 64-wide bottleneck is zero-padded to 128 so every
# intermediate activation has a lane dimension >= 128 (no masked sub-128 vregs).
PDIMS = [max(d, 128) for d in DIMS]
N_LAYERS = len(DIMS) - 1          # 10 Linear layers
LEAKY_SLOPE = 0.01                # torch.nn.LeakyReLU default negative_slope
TOTAL_PADDED_PARAMS = sum(PDIMS[i] * PDIMS[i + 1] for i in range(N_LAYERS))


def _round_up(x, m):
    return ((x + m - 1) // m) * m


def _leaky_relu(x):
    return jnp.where(x > 0, x, LEAKY_SLOPE * x)


def _chip_config():
    """(batch_tile_cap, min_grid_steps, vmem_limit_bytes) for the local TPU gen."""
    vmem_bytes = None
    try:
        info = pltpu.get_tpu_info()
        for name in ("vmem_capacity_bytes", "vmem_size_bytes", "vmem_bytes"):
            val = getattr(info, name, None)
            if val:
                vmem_bytes = int(val)
                break
    except Exception:
        vmem_bytes = None
    if vmem_bytes is None:
        vmem_bytes = 64 << 20              # conservative: assume v7x-class VMEM
    if vmem_bytes >= (100 << 20):          # v5e / v6e: 128 MiB VMEM, 1 TensorCore
        return 512, 1, 64 << 20
    # v7x-class: 64 MiB VMEM per core, 2 TensorCores -> keep the grid >= 2 steps.
    return 256, 2, 32 << 20


def vanilla_ae_kernel(x_ref, b_ref, *w_refs_and_out):
    """Kernel args: (x_ref[bf16], bias_slab_ref[f32], w0..w9[bf16], o_ref[f32]).

    One batch tile per grid step; the whole 10-layer MLP chain runs in VMEM:
    10 bf16 MXU matmuls with f32 accumulation, f32 VPU/EUP activations, and bf16
    inter-layer activation storage (bit-identical MXU inputs, half the traffic).
    """
    w_refs = w_refs_and_out[:N_LAYERS]
    o_ref = w_refs_and_out[N_LAYERS]

    h = x_ref[...]                                        # (tile_b, 1024) bf16
    for li in range(N_LAYERS):
        out_dim = PDIMS[li + 1]
        acc = jnp.dot(h, w_refs[li][...],                 # bf16 x bf16 -> f32 acc
                      preferred_element_type=jnp.float32)
        acc = acc + b_ref[li, :out_dim]                   # f32 bias (static slice)
        if li < N_LAYERS - 1:
            h = _leaky_relu(acc).astype(jnp.bfloat16)     # f32 act, bf16 storage
        else:
            o_ref[...] = jax.nn.sigmoid(acc).astype(o_ref.dtype)


@jax.jit
def vanilla_ae_forward(x, weights_bf16, bias_slab):
    """x: (B, 1024) f32.  weights_bf16[i]: (PDIMS[i], PDIMS[i+1]) bf16, pre-transposed
    from torch's (out, in) and zero-padded at the 64-wide bottleneck.
    bias_slab: (N_LAYERS, 1024) f32, row li holds layer li's bias (zero padded)."""
    B = x.shape[0]
    tile_cap, min_grid, vmem_limit = _chip_config()

    # Batch tile: multiple of 16 (bf16 packs 2 rows per sublane); on v7x make sure
    # the grid has >= 2 steps so both TensorCores get work.
    tile_b = min(_round_up(pl.cdiv(B, min_grid), 16), tile_cap)
    grid_n = max(min_grid, pl.cdiv(B, tile_b))
    b_pad = grid_n * tile_b

    x_bf16 = x.astype(jnp.bfloat16)
    if b_pad != B:
        x_bf16 = jnp.pad(x_bf16, ((0, b_pad - B), (0, 0)))

    in_specs = [
        # Activations: one batch tile per grid step (default double-buffering).
        pl.BlockSpec((tile_b, PDIMS[0]), lambda i: (i, 0)),
        # Bias slab: constant block index -> VMEM-resident; single-buffered.
        pl.BlockSpec((N_LAYERS, PDIMS[0]), lambda i: (0, 0),
                     pipeline_mode=pl.Buffered(1)),
    ] + [
        # Weights: whole array, constant block index -> DMA'd once, single-buffered.
        pl.BlockSpec((PDIMS[li], PDIMS[li + 1]), lambda i: (0, 0),
                     pipeline_mode=pl.Buffered(1))
        for li in range(N_LAYERS)
    ]
    out_specs = pl.BlockSpec((tile_b, PDIMS[-1]), lambda i: (i, 0))

    weight_bytes = TOTAL_PADDED_PARAMS * 2                    # bf16
    act_bytes = b_pad * PDIMS[0] * (2 + 4)                    # x bf16 in + out f32
    cost = pl.CostEstimate(
        flops=2 * b_pad * TOTAL_PADDED_PARAMS,
        transcendentals=b_pad * PDIMS[-1],                    # sigmoid exps
        bytes_accessed=weight_bytes + N_LAYERS * PDIMS[0] * 4 + act_bytes,
    )

    out = pl.pallas_call(
        vanilla_ae_kernel,
        out_shape=jax.ShapeDtypeStruct((b_pad, PDIMS[-1]), jnp.float32),
        grid=(grid_n,),
        in_specs=in_specs,
        out_specs=out_specs,
        compiler_params=pltpu.CompilerParams(
            dimension_semantics=("parallel",),
            vmem_limit_bytes=vmem_limit,
        ),
        cost_estimate=cost,
    )(x_bf16, bias_slab, *weights_bf16)
    return out[:B]


def init_params(key):
    """Deterministic synthetic parameters (torch nn.Linear default-init shapes).

    Returns bf16 weights pre-transposed to (in, out) and zero-padded to PDIMS,
    plus a packed f32 bias slab of shape (N_LAYERS, 1024)."""
    weights, bias_slab = [], jnp.zeros((N_LAYERS, PDIMS[0]), jnp.float32)
    for li in range(N_LAYERS):
        fan_in, fan_out = DIMS[li], DIMS[li + 1]
        p_in, p_out = PDIMS[li], PDIMS[li + 1]
        key, wk, bk = jax.random.split(key, 3)
        bound = 1.0 / jnp.sqrt(fan_in)
        # torch Linear weight is (out, in); store pre-transposed as (in, out).
        w = jax.random.uniform(wk, (fan_in, fan_out), jnp.float32, -bound, bound)
        b = jax.random.uniform(bk, (fan_out,), jnp.float32, -bound, bound)
        w_pad = jnp.zeros((p_in, p_out), jnp.float32).at[:fan_in, :fan_out].set(w)
        weights.append(w_pad.astype(jnp.bfloat16))
        bias_slab = bias_slab.at[li, :fan_out].set(b)
    return weights, bias_slab


def reference_forward(x, weights_bf16, bias_slab):
    """Pure-JAX reference running the identical bf16-storage / f32-accumulate path."""
    h = x.astype(jnp.bfloat16)
    for li in range(N_LAYERS):
        acc = jnp.dot(h, weights_bf16[li], preferred_element_type=jnp.float32)
        acc = acc + bias_slab[li, :PDIMS[li + 1]]
        if li < N_LAYERS - 1:
            h = _leaky_relu(acc).astype(jnp.bfloat16)
        else:
            h = jax.nn.sigmoid(acc)
    return h


if __name__ == "__main__":
    key = jax.random.PRNGKey(0)
    key, pkey, xkey = jax.random.split(key, 3)
    weights_bf16, bias_slab = init_params(pkey)

    B = 8  # small demo batch; feature width 1024 as the module implies
    x = jax.random.uniform(xkey, (B, DIMS[0]), jnp.float32)

    out = vanilla_ae_forward(x, weights_bf16, bias_slab)
    out = jax.block_until_ready(out)

    ref = reference_forward(x, weights_bf16, bias_slab)
    assert out.shape == (B, DIMS[-1]), out.shape
    assert bool(jnp.all(jnp.isfinite(out)))
    max_err = float(jnp.max(jnp.abs(out - ref)))
    assert max_err < 2e-3, max_err

    print("KERNEL_OK")
</pallas_src>

<mosaic_0001>
module attributes {stable_mosaic.version = 11 : i64} {
  func.func @vanilla_ae_kernel(%arg0: i32, %arg1: memref<16x1024xbf16, #tpu.memory_space<vmem>>, %arg2: memref<10x1024xf32, #tpu.memory_space<vmem>>, %arg3: memref<1024x768xbf16, #tpu.memory_space<vmem>>, %arg4: memref<768x512xbf16, #tpu.memory_space<vmem>>, %arg5: memref<512x256xbf16, #tpu.memory_space<vmem>>, %arg6: memref<256x128xbf16, #tpu.memory_space<vmem>>, %arg7: memref<128x128xbf16, #tpu.memory_space<vmem>>, %arg8: memref<128x128xbf16, #tpu.memory_space<vmem>>, %arg9: memref<128x256xbf16, #tpu.memory_space<vmem>>, %arg10: memref<256x512xbf16, #tpu.memory_space<vmem>>, %arg11: memref<512x768xbf16, #tpu.memory_space<vmem>>, %arg12: memref<768x1024xbf16, #tpu.memory_space<vmem>>, %arg13: memref<16x1024xf32, #tpu.memory_space<vmem>>) attributes {dimension_semantics = [#tpu.dimension_semantics<parallel>], iteration_bounds = array<i64: 2>, scalar_prefetch = 0 : i64, scratch_operands = 0 : i64, tpu.core_type = #tpu.core_type<tc>, window_params = [{transform_indices = @transform_0, window_bounds = array<i64: 16, 1024>}, {pipeline_mode = #tpu.pipeline_mode<synchronous>, transform_indices = @transform_1, window_bounds = array<i64: 10, 1024>}, {pipeline_mode = #tpu.pipeline_mode<synchronous>, transform_indices = @transform_2, window_bounds = array<i64: 1024, 768>}, {pipeline_mode = #tpu.pipeline_mode<synchronous>, transform_indices = @transform_3, window_bounds = array<i64: 768, 512>}, {pipeline_mode = #tpu.pipeline_mode<synchronous>, transform_indices = @transform_4, window_bounds = array<i64: 512, 256>}, {pipeline_mode = #tpu.pipeline_mode<synchronous>, transform_indices = @transform_5, window_bounds = array<i64: 256, 128>}, {pipeline_mode = #tpu.pipeline_mode<synchronous>, transform_indices = @transform_6, window_bounds = array<i64: 128, 128>}, {pipeline_mode = #tpu.pipeline_mode<synchronous>, transform_indices = @transform_7, window_bounds = array<i64: 128, 128>}, {pipeline_mode = #tpu.pipeline_mode<synchronous>, transform_indices = @transform_8, window_bounds = array<i64: 128, 256>}, {pipeline_mode = #tpu.pipeline_mode<synchronous>, transform_indices = @transform_9, window_bounds = array<i64: 256, 512>}, {pipeline_mode = #tpu.pipeline_mode<synchronous>, transform_indices = @transform_10, window_bounds = array<i64: 512, 768>}, {pipeline_mode = #tpu.pipeline_mode<synchronous>, transform_indices = @transform_11, window_bounds = array<i64: 768, 1024>}, {transform_indices = @transform_12, window_bounds = array<i64: 16, 1024>}]} {
    %c0 = arith.constant 0 : index
    %c0_0 = arith.constant 0 : index
    %0 = vector.load %arg1[%c0, %c0_0] : memref<16x1024xbf16, #tpu.memory_space<vmem>>, vector<16x1024xbf16>
    %c0_1 = arith.constant 0 : index
    %c0_2 = arith.constant 0 : index
    %1 = vector.load %arg3[%c0_1, %c0_2] : memref<1024x768xbf16, #tpu.memory_space<vmem>>, vector<1024x768xbf16>
    %cst = arith.constant dense<0.000000e+00> : vector<16x768xf32>
    %2 = tpu.matmul %0, %1, %cst {dimension_numbers = #tpu.dot_dimension_numbers<[1], [0], [0], [1], [0, 0, 1, 1], [], []>} : vector<16x1024xbf16>, vector<1024x768xbf16>, vector<16x768xf32> -> vector<16x768xf32>
    %c0_3 = arith.constant 0 : index
    %c0_4 = arith.constant 0 : index
    %3 = vector.load %arg2[%c0_3, %c0_4] : memref<10x1024xf32, #tpu.memory_space<vmem>>, vector<1x768xf32>
    %4 = vector.shape_cast %3 : vector<1x768xf32> to vector<768xf32>
    %5 = vector.shape_cast %4 : vector<768xf32> to vector<1x768xf32>
    %6 = vector.broadcast %5 : vector<1x768xf32> to vector<16x768xf32>
    %7 = arith.addf %2, %6 : vector<16x768xf32>
    %cst_5 = arith.constant 0.000000e+00 : f32
    %8 = vector.broadcast %cst_5 : f32 to vector<16x768xf32>
    %9 = arith.cmpf ogt, %7, %8 : vector<16x768xf32>
    %cst_6 = arith.constant 0.00999999977 : f32
    %10 = vector.broadcast %cst_6 : f32 to vector<16x768xf32>
    %11 = arith.mulf %10, %7 : vector<16x768xf32>
    %12 = arith.select %9, %7, %11 : vector<16x768xi1>, vector<16x768xf32>
    %13 = arith.truncf %12 : vector<16x768xf32> to vector<16x768xbf16>
    %c0_7 = arith.constant 0 : index
    %c0_8 = arith.constant 0 : index
    %14 = vector.load %arg4[%c0_7, %c0_8] : memref<768x512xbf16, #tpu.memory_space<vmem>>, vector<768x512xbf16>
    %cst_9 = arith.constant dense<0.000000e+00> : vector<16x512xf32>
    %15 = tpu.matmul %13, %14, %cst_9 {dimension_numbers = #tpu.dot_dimension_numbers<[1], [0], [0], [1], [0, 0, 1, 1], [], []>} : vector<16x768xbf16>, vector<768x512xbf16>, vector<16x512xf32> -> vector<16x512xf32>
    %c1 = arith.constant 1 : index
    %c0_10 = arith.constant 0 : index
    %16 = vector.load %arg2[%c1, %c0_10] : memref<10x1024xf32, #tpu.memory_space<vmem>>, vector<1x512xf32>
    %17 = vector.shape_cast %16 : vector<1x512xf32> to vector<512xf32>
    %18 = vector.shape_cast %17 : vector<512xf32> to vector<1x512xf32>
    %19 = vector.broadcast %18 : vector<1x512xf32> to vector<16x512xf32>
    %20 = arith.addf %15, %19 : vector<16x512xf32>
    %cst_11 = arith.constant 0.000000e+00 : f32
    %21 = vector.broadcast %cst_11 : f32 to vector<16x512xf32>
    %22 = arith.cmpf ogt, %20, %21 : vector<16x512xf32>
    %cst_12 = arith.constant 0.00999999977 : f32
    %23 = vector.broadcast %cst_12 : f32 to vector<16x512xf32>
    %24 = arith.mulf %23, %20 : vector<16x512xf32>
    %25 = arith.select %22, %20, %24 : vector<16x512xi1>, vector<16x512xf32>
    %26 = arith.truncf %25 : vector<16x512xf32> to vector<16x512xbf16>
    %c0_13 = arith.constant 0 : index
    %c0_14 = arith.constant 0 : index
    %27 = vector.load %arg5[%c0_13, %c0_14] : memref<512x256xbf16, #tpu.memory_space<vmem>>, vector<512x256xbf16>
    %cst_15 = arith.constant dense<0.000000e+00> : vector<16x256xf32>
    %28 = tpu.matmul %26, %27, %cst_15 {dimension_numbers = #tpu.dot_dimension_numbers<[1], [0], [0], [1], [0, 0, 1, 1], [], []>} : vector<16x512xbf16>, vector<512x256xbf16>, vector<16x256xf32> -> vector<16x256xf32>
    %c2 = arith.constant 2 : index
    %c0_16 = arith.constant 0 : index
    %29 = vector.load %arg2[%c2, %c0_16] : memref<10x1024xf32, #tpu.memory_space<vmem>>, vector<1x256xf32>
    %30 = vector.shape_cast %29 : vector<1x256xf32> to vector<256xf32>
    %31 = vector.shape_cast %30 : vector<256xf32> to vector<1x256xf32>
    %32 = vector.broadcast %31 : vector<1x256xf32> to vector<16x256xf32>
    %33 = arith.addf %28, %32 : vector<16x256xf32>
    %cst_17 = arith.constant 0.000000e+00 : f32
    %34 = vector.broadcast %cst_17 : f32 to vector<16x256xf32>
    %35 = arith.cmpf ogt, %33, %34 : vector<16x256xf32>
    %cst_18 = arith.constant 0.00999999977 : f32
    %36 = vector.broadcast %cst_18 : f32 to vector<16x256xf32>
    %37 = arith.mulf %36, %33 : vector<16x256xf32>
    %38 = arith.select %35, %33, %37 : vector<16x256xi1>, vector<16x256xf32>
    %39 = arith.truncf %38 : vector<16x256xf32> to vector<16x256xbf16>
    %c0_19 = arith.constant 0 : index
    %c0_20 = arith.constant 0 : index
    %40 = vector.load %arg6[%c0_19, %c0_20] : memref<256x128xbf16, #tpu.memory_space<vmem>>, vector<256x128xbf16>
    %cst_21 = arith.constant dense<0.000000e+00> : vector<16x128xf32>
    %41 = tpu.matmul %39, %40, %cst_21 {dimension_numbers = #tpu.dot_dimension_numbers<[1], [0], [0], [1], [0, 0, 1, 1], [], []>} : vector<16x256xbf16>, vector<256x128xbf16>, vector<16x128xf32> -> vector<16x128xf32>
    %c3 = arith.constant 3 : index
    %c0_22 = arith.constant 0 : index
    %42 = vector.load %arg2[%c3, %c0_22] : memref<10x1024xf32, #tpu.memory_space<vmem>>, vector<1x128xf32>
    %43 = vector.shape_cast %42 : vector<1x128xf32> to vector<128xf32>
    %44 = vector.shape_cast %43 : vector<128xf32> to vector<1x128xf32>
    %45 = vector.broadcast %44 : vector<1x128xf32> to vector<16x128xf32>
    %46 = arith.addf %41, %45 : vector<16x128xf32>
    %cst_23 = arith.constant 0.000000e+00 : f32
    %47 = vector.broadcast %cst_23 : f32 to vector<16x128xf32>
    %48 = arith.cmpf ogt, %46, %47 : vector<16x128xf32>
    %cst_24 = arith.constant 0.00999999977 : f32
    %49 = vector.broadcast %cst_24 : f32 to vector<16x128xf32>
    %50 = arith.mulf %49, %46 : vector<16x128xf32>
    %51 = arith.select %48, %46, %50 : vector<16x128xi1>, vector<16x128xf32>
    %52 = arith.truncf %51 : vector<16x128xf32> to vector<16x128xbf16>
    %c0_25 = arith.constant 0 : index
    %c0_26 = arith.constant 0 : index
    %53 = vector.load %arg7[%c0_25, %c0_26] : memref<128x128xbf16, #tpu.memory_space<vmem>>, vector<128x128xbf16>
    %cst_27 = arith.constant dense<0.000000e+00> : vector<16x128xf32>
    %54 = tpu.matmul %52, %53, %cst_27 {dimension_numbers = #tpu.dot_dimension_numbers<[1], [0], [0], [1], [0, 0, 1, 1], [], []>} : vector<16x128xbf16>, vector<128x128xbf16>, vector<16x128xf32> -> vector<16x128xf32>
    %c4 = arith.constant 4 : index
    %c0_28 = arith.constant 0 : index
    %55 = vector.load %arg2[%c4, %c0_28] : memref<10x1024xf32, #tpu.memory_space<vmem>>, vector<1x128xf32>
    %56 = vector.shape_cast %55 : vector<1x128xf32> to vector<128xf32>
    %57 = vector.shape_cast %56 : vector<128xf32> to vector<1x128xf32>
    %58 = vector.broadcast %57 : vector<1x128xf32> to vector<16x128xf32>
    %59 = arith.addf %54, %58 : vector<16x128xf32>
    %cst_29 = arith.constant 0.000000e+00 : f32
    %60 = vector.broadcast %cst_29 : f32 to vector<16x128xf32>
    %61 = arith.cmpf ogt, %59, %60 : vector<16x128xf32>
    %cst_30 = arith.constant 0.00999999977 : f32
    %62 = vector.broadcast %cst_30 : f32 to vector<16x128xf32>
    %63 = arith.mulf %62, %59 : vector<16x128xf32>
    %64 = arith.select %61, %59, %63 : vector<16x128xi1>, vector<16x128xf32>
    %65 = arith.truncf %64 : vector<16x128xf32> to vector<16x128xbf16>
    %c0_31 = arith.constant 0 : index
    %c0_32 = arith.constant 0 : index
    %66 = vector.load %arg8[%c0_31, %c0_32] : memref<128x128xbf16, #tpu.memory_space<vmem>>, vector<128x128xbf16>
    %cst_33 = arith.constant dense<0.000000e+00> : vector<16x128xf32>
    %67 = tpu.matmul %65, %66, %cst_33 {dimension_numbers = #tpu.dot_dimension_numbers<[1], [0], [0], [1], [0, 0, 1, 1], [], []>} : vector<16x128xbf16>, vector<128x128xbf16>, vector<16x128xf32> -> vector<16x128xf32>
    %c5 = arith.constant 5 : index
    %c0_34 = arith.constant 0 : index
    %68 = vector.load %arg2[%c5, %c0_34] : memref<10x1024xf32, #tpu.memory_space<vmem>>, vector<1x128xf32>
    %69 = vector.shape_cast %68 : vector<1x128xf32> to vector<128xf32>
    %70 = vector.shape_cast %69 : vector<128xf32> to vector<1x128xf32>
    %71 = vector.broadcast %70 : vector<1x128xf32> to vector<16x128xf32>
    %72 = arith.addf %67, %71 : vector<16x128xf32>
    %cst_35 = arith.constant 0.000000e+00 : f32
    %73 = vector.broadcast %cst_35 : f32 to vector<16x128xf32>
    %74 = arith.cmpf ogt, %72, %73 : vector<16x128xf32>
    %cst_36 = arith.constant 0.00999999977 : f32
    %75 = vector.broadcast %cst_36 : f32 to vector<16x128xf32>
    %76 = arith.mulf %75, %72 : vector<16x128xf32>
    %77 = arith.select %74, %72, %76 : vector<16x128xi1>, vector<16x128xf32>
    %78 = arith.truncf %77 : vector<16x128xf32> to vector<16x128xbf16>
    %c0_37 = arith.constant 0 : index
    %c0_38 = arith.constant 0 : index
    %79 = vector.load %arg9[%c0_37, %c0_38] : memref<128x256xbf16, #tpu.memory_space<vmem>>, vector<128x256xbf16>
    %cst_39 = arith.constant dense<0.000000e+00> : vector<16x256xf32>
    %80 = tpu.matmul %78, %79, %cst_39 {dimension_numbers = #tpu.dot_dimension_numbers<[1], [0], [0], [1], [0, 0, 1, 1], [], []>} : vector<16x128xbf16>, vector<128x256xbf16>, vector<16x256xf32> -> vector<16x256xf32>
    %c6 = arith.constant 6 : index
    %c0_40 = arith.constant 0 : index
    %81 = vector.load %arg2[%c6, %c0_40] : memref<10x1024xf32, #tpu.memory_space<vmem>>, vector<1x256xf32>
    %82 = vector.shape_cast %81 : vector<1x256xf32> to vector<256xf32>
    %83 = vector.shape_cast %82 : vector<256xf32> to vector<1x256xf32>
    %84 = vector.broadcast %83 : vector<1x256xf32> to vector<16x256xf32>
    %85 = arith.addf %80, %84 : vector<16x256xf32>
    %cst_41 = arith.constant 0.000000e+00 : f32
    %86 = vector.broadcast %cst_41 : f32 to vector<16x256xf32>
    %87 = arith.cmpf ogt, %85, %86 : vector<16x256xf32>
    %cst_42 = arith.constant 0.00999999977 : f32
    %88 = vector.broadcast %cst_42 : f32 to vector<16x256xf32>
    %89 = arith.mulf %88, %85 : vector<16x256xf32>
    %90 = arith.select %87, %85, %89 : vector<16x256xi1>, vector<16x256xf32>
    %91 = arith.truncf %90 : vector<16x256xf32> to vector<16x256xbf16>
    %c0_43 = arith.constant 0 : index
    %c0_44 = arith.constant 0 : index
    %92 = vector.load %arg10[%c0_43, %c0_44] : memref<256x512xbf16, #tpu.memory_space<vmem>>, vector<256x512xbf16>
    %cst_45 = arith.constant dense<0.000000e+00> : vector<16x512xf32>
    %93 = tpu.matmul %91, %92, %cst_45 {dimension_numbers = #tpu.dot_dimension_numbers<[1], [0], [0], [1], [0, 0, 1, 1], [], []>} : vector<16x256xbf16>, vector<256x512xbf16>, vector<16x512xf32> -> vector<16x512xf32>
    %c7 = arith.constant 7 : index
    %c0_46 = arith.constant 0 : index
    %94 = vector.load %arg2[%c7, %c0_46] : memref<10x1024xf32, #tpu.memory_space<vmem>>, vector<1x512xf32>
    %95 = vector.shape_cast %94 : vector<1x512xf32> to vector<512xf32>
    %96 = vector.shape_cast %95 : vector<512xf32> to vector<1x512xf32>
    %97 = vector.broadcast %96 : vector<1x512xf32> to vector<16x512xf32>
    %98 = arith.addf %93, %97 : vector<16x512xf32>
    %cst_47 = arith.constant 0.000000e+00 : f32
    %99 = vector.broadcast %cst_47 : f32 to vector<16x512xf32>
    %100 = arith.cmpf ogt, %98, %99 : vector<16x512xf32>
    %cst_48 = arith.constant 0.00999999977 : f32
    %101 = vector.broadcast %cst_48 : f32 to vector<16x512xf32>
    %102 = arith.mulf %101, %98 : vector<16x512xf32>
    %103 = arith.select %100, %98, %102 : vector<16x512xi1>, vector<16x512xf32>
    %104 = arith.truncf %103 : vector<16x512xf32> to vector<16x512xbf16>
    %c0_49 = arith.constant 0 : index
    %c0_50 = arith.constant 0 : index
    %105 = vector.load %arg11[%c0_49, %c0_50] : memref<512x768xbf16, #tpu.memory_space<vmem>>, vector<512x768xbf16>
    %cst_51 = arith.constant dense<0.000000e+00> : vector<16x768xf32>
    %106 = tpu.matmul %104, %105, %cst_51 {dimension_numbers = #tpu.dot_dimension_numbers<[1], [0], [0], [1], [0, 0, 1, 1], [], []>} : vector<16x512xbf16>, vector<512x768xbf16>, vector<16x768xf32> -> vector<16x768xf32>
    %c8 = arith.constant 8 : index
    %c0_52 = arith.constant 0 : index
    %107 = vector.load %arg2[%c8, %c0_52] : memref<10x1024xf32, #tpu.memory_space<vmem>>, vector<1x768xf32>
    %108 = vector.shape_cast %107 : vector<1x768xf32> to vector<768xf32>
    %109 = vector.shape_cast %108 : vector<768xf32> to vector<1x768xf32>
    %110 = vector.broadcast %109 : vector<1x768xf32> to vector<16x768xf32>
    %111 = arith.addf %106, %110 : vector<16x768xf32>
    %cst_53 = arith.constant 0.000000e+00 : f32
    %112 = vector.broadcast %cst_53 : f32 to vector<16x768xf32>
    %113 = arith.cmpf ogt, %111, %112 : vector<16x768xf32>
    %cst_54 = arith.constant 0.00999999977 : f32
    %114 = vector.broadcast %cst_54 : f32 to vector<16x768xf32>
    %115 = arith.mulf %114, %111 : vector<16x768xf32>
    %116 = arith.select %113, %111, %115 : vector<16x768xi1>, vector<16x768xf32>
    %117 = arith.truncf %116 : vector<16x768xf32> to vector<16x768xbf16>
    %c0_55 = arith.constant 0 : index
    %c0_56 = arith.constant 0 : index
    %118 = vector.load %arg12[%c0_55, %c0_56] : memref<768x1024xbf16, #tpu.memory_space<vmem>>, vector<768x1024xbf16>
    %cst_57 = arith.constant dense<0.000000e+00> : vector<16x1024xf32>
    %119 = tpu.matmul %117, %118, %cst_57 {dimension_numbers = #tpu.dot_dimension_numbers<[1], [0], [0], [1], [0, 0, 1, 1], [], []>} : vector<16x768xbf16>, vector<768x1024xbf16>, vector<16x1024xf32> -> vector<16x1024xf32>
    %c9 = arith.constant 9 : index
    %c0_58 = arith.constant 0 : index
    %120 = vector.load %arg2[%c9, %c0_58] : memref<10x1024xf32, #tpu.memory_space<vmem>>, vector<1x1024xf32>
    %121 = vector.shape_cast %120 : vector<1x1024xf32> to vector<1024xf32>
    %122 = vector.shape_cast %121 : vector<1024xf32> to vector<1x1024xf32>
    %123 = vector.broadcast %122 : vector<1x1024xf32> to vector<16x1024xf32>
    %124 = arith.addf %119, %123 : vector<16x1024xf32>
    %125 = arith.negf %124 : vector<16x1024xf32>
    %126 = math.exp %125 : vector<16x1024xf32>
    %cst_59 = arith.constant 1.000000e+00 : f32
    %127 = vector.broadcast %cst_59 : f32 to vector<16x1024xf32>
    %128 = arith.addf %127, %126 : vector<16x1024xf32>
    %129 = arith.divf %127, %128 : vector<16x1024xf32>
    %c0_60 = arith.constant 0 : index
    %c0_61 = arith.constant 0 : index
    %130 = vector.load %arg13[%c0_60, %c0_61] : memref<16x1024xf32, #tpu.memory_space<vmem>>, vector<16x1024xf32>
    tpu.vector_store %arg13[%c0_60, %c0_61], %129 {strides = array<i32>} : memref<16x1024xf32, #tpu.memory_space<vmem>>, vector<16x1024xf32>,
    return
  }
  func.func @transform_0(%arg0: i32) -> (i32, i32) {
    %c0_i32 = arith.constant 0 : i32
    %c0_i32_0 = arith.constant 0 : i32
    return %arg0, %c0_i32 : i32, i32
  }
  func.func @transform_1(%arg0: i32) -> (i32, i32) {
    %c0_i32 = arith.constant 0 : i32
    %c0_i32_0 = arith.constant 0 : i32
    %c0_i32_1 = arith.constant 0 : i32
    return %c0_i32, %c0_i32_0 : i32, i32
  }
  func.func @transform_2(%arg0: i32) -> (i32, i32) {
    %c0_i32 = arith.constant 0 : i32
    %c0_i32_0 = arith.constant 0 : i32
    %c0_i32_1 = arith.constant 0 : i32
    return %c0_i32, %c0_i32_0 : i32, i32
  }
  func.func @transform_3(%arg0: i32) -> (i32, i32) {
    %c0_i32 = arith.constant 0 : i32
    %c0_i32_0 = arith.constant 0 : i32
    %c0_i32_1 = arith.constant 0 : i32
    return %c0_i32, %c0_i32_0 : i32, i32
  }
  func.func @transform_4(%arg0: i32) -> (i32, i32) {
    %c0_i32 = arith.constant 0 : i32
    %c0_i32_0 = arith.constant 0 : i32
    %c0_i32_1 = arith.constant 0 : i32
    return %c0_i32, %c0_i32_0 : i32, i32
  }
  func.func @transform_5(%arg0: i32) -> (i32, i32) {
    %c0_i32 = arith.constant 0 : i32
    %c0_i32_0 = arith.constant 0 : i32
    %c0_i32_1 = arith.constant 0 : i32
    return %c0_i32, %c0_i32_0 : i32, i32
  }
  func.func @transform_6(%arg0: i32) -> (i32, i32) {
    %c0_i32 = arith.constant 0 : i32
    %c0_i32_0 = arith.constant 0 : i32
    %c0_i32_1 = arith.constant 0 : i32
    return %c0_i32, %c0_i32_0 : i32, i32
  }
  func.func @transform_7(%arg0: i32) -> (i32, i32) {
    %c0_i32 = arith.constant 0 : i32
    %c0_i32_0 = arith.constant 0 : i32
    %c0_i32_1 = arith.constant 0 : i32
    return %c0_i32, %c0_i32_0 : i32, i32
  }
  func.func @transform_8(%arg0: i32) -> (i32, i32) {
    %c0_i32 = arith.constant 0 : i32
    %c0_i32_0 = arith.constant 0 : i32
    %c0_i32_1 = arith.constant 0 : i32
    return %c0_i32, %c0_i32_0 : i32, i32
  }
  func.func @transform_9(%arg0: i32) -> (i32, i32) {
    %c0_i32 = arith.constant 0 : i32
    %c0_i32_0 = arith.constant 0 : i32
    %c0_i32_1 = arith.constant 0 : i32
    return %c0_i32, %c0_i32_0 : i32, i32
  }
  func.func @transform_10(%arg0: i32) -> (i32, i32) {
    %c0_i32 = arith.constant 0 : i32
    %c0_i32_0 = arith.constant 0 : i32
    %c0_i32_1 = arith.constant 0 : i32
    return %c0_i32, %c0_i32_0 : i32, i32
  }
  func.func @transform_11(%arg0: i32) -> (i32, i32) {
    %c0_i32 = arith.constant 0 : i32
    %c0_i32_0 = arith.constant 0 : i32
    %c0_i32_1 = arith.constant 0 : i32
    return %c0_i32, %c0_i32_0 : i32, i32
  }
  func.func @transform_12(%arg0: i32) -> (i32, i32) {
    %c0_i32 = arith.constant 0 : i32
    %c0_i32_0 = arith.constant 0 : i32
    return %arg0, %c0_i32 : i32, i32
  }
}

</mosaic_0001>

<llo_original>
// kernel: vanilla_ae_forward.1
$region0: #{vanilla_ae_forward.1}
  #allocation0 [shape = 'u32[]', space=smem, size = 0x4, offset = 0x4, fixed_abs, tag = 'smem constant byte address 0x4 - core index']
  #allocation1 [shape = 'u32[144,128]{1,0:T(1,128)}', space=vmem, size = 0x12000, scoped, tag = 'internal scratch']
  %s0 = inlined_call_operand.vmem [shape: bf16[32,1024], index: 0, kind: input, shape index: {}]
  %s1 = inlined_call_operand.hbm [shape: f32[10,1024], index: 1, kind: input, shape index: {}]
  %s2 = inlined_call_operand.hbm [shape: bf16[1024,768], index: 2, kind: input, shape index: {}]
  %s3 = inlined_call_operand.hbm [shape: bf16[768,512], index: 3, kind: input, shape index: {}]
  %s4 = inlined_call_operand.hbm [shape: bf16[512,256], index: 4, kind: input, shape index: {}]
  %s5 = inlined_call_operand.hbm [shape: bf16[256,128], index: 5, kind: input, shape index: {}]
  %s6 = inlined_call_operand.hbm [shape: bf16[128,128], index: 6, kind: input, shape index: {}]
  %s7 = inlined_call_operand.hbm [shape: bf16[128,128], index: 7, kind: input, shape index: {}]
  %s8 = inlined_call_operand.hbm [shape: bf16[128,256], index: 8, kind: input, shape index: {}]
  %s9 = inlined_call_operand.hbm [shape: bf16[256,512], index: 9, kind: input, shape index: {}]
  %s10 = inlined_call_operand.hbm [shape: bf16[512,768], index: 10, kind: input, shape index: {}]
  %s11 = inlined_call_operand.hbm [shape: bf16[768,1024], index: 11, kind: input, shape index: {}]
  %s12 = inlined_call_operand.vmem [shape: f32[32,1024], index: 12, kind: output, shape index: {}]
  %s13 = sld [smem:[#allocation0]]
  $region125: #{vanilla_ae_forward.1} parent=0
    _
  %s15 = ssub.s32 1, %s13
  %s16 = scalar_select 0, %s15, %s13
  $region1: #{vanilla_ae_forward.1} parent=0
    #allocation2 [shape = 'u8[65536]{0}', space=vmem, size = 0x10000, scoped, tag = 'input window, operand 1, single buffered']
    #allocation3 [shape = 's32[2]{0}', space=sflag, size = 0x8, scoped, tag = 'scoped memory for vanilla_ae_forward.1']
    #allocation4 [shape = 'u8[1572864]{0}', space=vmem, size = 0x180000, scoped, tag = 'input window, operand 2, single buffered']
    #allocation5 [shape = 's32[1]{0}', space=sflag, size = 0x4, scoped, tag = 'scoped memory for vanilla_ae_forward.1']
    #allocation6 [shape = 'u8[786432]{0}', space=vmem, size = 0xc0000, scoped, tag = 'input window, operand 3, single buffered']
    #allocation7 [shape = 'u8[262144]{0}', space=vmem, size = 0x40000, scoped, tag = 'input window, operand 4, single buffered']
    #allocation8 [shape = 's32[1]{0}', space=sflag, size = 0x4, scoped, tag = 'scoped memory for vanilla_ae_forward.1']
    #allocation9 [shape = 'u8[65536]{0}', space=vmem, size = 0x10000, scoped, tag = 'input window, operand 5, single buffered']
    #allocation10 [shape = 'u8[32768]{0}', space=vmem, size = 0x8000, scoped, tag = 'input window, operand 6, single buffered']
    #allocation11 [shape = 's32[1]{0}', space=sflag, size = 0x4, scoped, tag = 'scoped memory for vanilla_ae_forward.1']
    #allocation12 [shape = 'u8[32768]{0}', space=vmem, size = 0x8000, scoped, tag = 'input window, operand 7, single buffered']
    #allocation13 [shape = 'u8[65536]{0}', space=vmem, size = 0x10000, scoped, tag = 'input window, operand 8, single buffered']
    #allocation14 [shape = 's32[1]{0}', space=sflag, size = 0x4, scoped, tag = 'scoped memory for vanilla_ae_forward.1']
    #allocation15 [shape = 'u8[262144]{0}', space=vmem, size = 0x40000, scoped, tag = 'input window, operand 9, single buffered']
    #allocation16 [shape = 'u8[786432]{0}', space=vmem, size = 0xc0000, scoped, tag = 'input window, operand 10, single buffered']
    #allocation17 [shape = 's32[1]{0}', space=sflag, size = 0x4, scoped, tag = 'scoped memory for vanilla_ae_forward.1']
    #allocation18 [shape = 'u8[1572864]{0}', space=vmem, size = 0x180000, scoped, tag = 'input window, operand 11, single buffered']
    %17 = vsyncpa [#allocation3], 0
    %18 = vsyncpa [#allocation5], 0
    %19 = vsyncpa [#allocation8], 0
    %20 = vsyncpa [#allocation11], 0
    %21 = vsyncpa [#allocation14], 0
    %22 = vsyncpa [#allocation17], 0
    loop: start=0, step=1, limit=4
    $region2: #{vanilla_ae_forward.1} parent=1 // loop_pre_header
      _
    $region3: #{vanilla_ae_forward.1} parent=1 // loop_header
      %s24 = sphi 0, %s28
      %p25 = scmp.ge.s32.totalorder %s24, 4
      %s34 = sphi 0, %s36
      %s37 = sphi 0, %s34
      %s38 = sphi 0, %s37
      %s54 = sphi 0, %s38
      %s58 = sphi 0, %s58
      %s60 = sphi 0, %s58
      %s61 = sphi 0, %s60
      %s75 = sphi 0, %s61
      %s79 = sphi 0, %s79
      %s81 = sphi 0, %s79
      %s82 = sphi 0, %s81
      %s96 = sphi 0, %s82
      %s100 = sphi 0, %s100
      %s102 = sphi 0, %s100
      %s103 = sphi 0, %s102
      %s117 = sphi 0, %s103
      %s121 = sphi 0, %s121
      %s123 = sphi 0, %s121
      %s124 = sphi 0, %s123
      %s138 = sphi 0, %s124
      %s142 = sphi 0, %s142
      %s144 = sphi 0, %s142
      %s145 = sphi 0, %s144
      %s159 = sphi 0, %s145
      %s163 = sphi 0, %s163
      %s165 = sphi 0, %s163
      %s166 = sphi 0, %s165
      %s180 = sphi 0, %s166
      %s184 = sphi 0, %s184
      %s186 = sphi 0, %s184
      %s187 = sphi 0, %s186
      %s201 = sphi 0, %s187
      %s205 = sphi 0, %s205
      %s207 = sphi 0, %s205
      %s208 = sphi 0, %s207
      %s222 = sphi 0, %s208
      %s226 = sphi 0, %s226
      %s228 = sphi 0, %s226
      %s229 = sphi 0, %s228
      %s243 = sphi 0, %s229
      %s247 = sphi 0, %s247
      %s249 = sphi 0, %s247
      %s250 = sphi 0, %s249
      %s264 = sphi 0, %s250
      %s268 = sphi 0, %s268
      %s270 = sphi 0, %s268
      %s271 = sphi 0, %s270
      %s285 = sphi 0, %s271
      %s291 = sphi 0, %s293
      %s294 = sphi 0, %s291
      %s295 = sphi 0, %s294
      %s311 = sphi 0, %s295
    $region4: #{vanilla_ae_forward.1} parent=1 // loop_header_branch
      %27 = sbr.rel (%p25) target = $region8
    $region5: #{vanilla_ae_forward.1} parent=1 // loop_body
      %s29 = ssub.s32 %s24, 1
      %s30 = ssub.s32 %s24, 2
      %s31 = sadd.s32 %s24, 1
      %s32 = ssub.s32 %s24, %s31
      %p33 = scmp.eq.s32.totalorder %s32, 0
      %s35 = sadd.s32 %s34, 1
      %s36 = scalar_select %p33, %s34, %s35
      %p39 = pneg %p33
      %p40 = scmp.eq.s32.totalorder %s24, 1
      %p41 = por %p39, %p40
      %p42 = scmp.ne.s32.totalorder %s34, %s37
      %p43 = scmp.eq.s32.totalorder %s24, 0
      %p44 = por %p42, %p43
      %p45 = scmp.ne.s32.totalorder %s34, %s37
      %p46 = scmp.eq.s32.totalorder %s29, 1
      %p47 = por %p45, %p46
      %p48 = scmp.ne.s32.totalorder %s37, %s38
      %p49 = scmp.eq.s32.totalorder %s29, 0
      %p50 = por %p48, %p49
      %p51 = scmp.ne.s32.totalorder %s37, %s38
      %p52 = scmp.eq.s32.totalorder %s30, 1
      %p53 = por %p51, %p52
      %p55 = scmp.ne.s32.totalorder %s38, %s54
      %p56 = scmp.eq.s32.totalorder %s30, 0
      %p57 = por %p55, %p56
      %s59 = sadd.s32 %s58, 1
      %p62 = scmp.eq.s32.totalorder %s24, 1
      %p63 = scmp.ne.s32.totalorder %s58, %s60
      %p64 = scmp.eq.s32.totalorder %s24, 0
      %p65 = por %p63, %p64
      %p66 = scmp.ne.s32.totalorder %s58, %s60
      %p67 = scmp.eq.s32.totalorder %s29, 1
      %p68 = por %p66, %p67
      %p69 = scmp.ne.s32.totalorder %s60, %s61
      %p70 = scmp.eq.s32.totalorder %s29, 0
      %p71 = por %p69, %p70
      %p72 = scmp.ne.s32.totalorder %s60, %s61
      %p73 = scmp.eq.s32.totalorder %s30, 1
      %p74 = por %p72, %p73
      %p76 = scmp.ne.s32.totalorder %s61, %s75
      %p77 = scmp.eq.s32.totalorder %s30, 0
      %p78 = por %p76, %p77
      %s80 = sadd.s32 %s79, 1
      %p83 = scmp.eq.s32.totalorder %s24, 1
      %p84 = scmp.ne.s32.totalorder %s79, %s81
      %p85 = scmp.eq.s32.totalorder %s24, 0
      %p86 = por %p84, %p85
      %p87 = scmp.ne.s32.totalorder %s79, %s81
      %p88 = scmp.eq.s32.totalorder %s29, 1
      %p89 = por %p87, %p88
      %p90 = scmp.ne.s32.totalorder %s81, %s82
      %p91 = scmp.eq.s32.totalorder %s29, 0
      %p92 = por %p90, %p91
      %p93 = scmp.ne.s32.totalorder %s81, %s82
      %p94 = scmp.eq.s32.totalorder %s30, 1
      %p95 = por %p93, %p94
      %p97 = scmp.ne.s32.totalorder %s82, %s96
      %p98 = scmp.eq.s32.totalorder %s30, 0
      %p99 = por %p97, %p98
      %s101 = sadd.s32 %s100, 1
      %p104 = scmp.eq.s32.totalorder %s24, 1
      %p105 = scmp.ne.s32.totalorder %s100, %s102
      %p106 = scmp.eq.s32.totalorder %s24, 0
      %p107 = por %p105, %p106
      %p108 = scmp.ne.s32.totalorder %s100, %s102
      %p109 = scmp.eq.s32.totalorder %s29, 1
      %p110 = por %p108, %p109
      %p111 = scmp.ne.s32.totalorder %s102, %s103
      %p112 = scmp.eq.s32.totalorder %s29, 0
      %p113 = por %p111, %p112
      %p114 = scmp.ne.s32.totalorder %s102, %s103
      %p115 = scmp.eq.s32.totalorder %s30, 1
      %p116 = por %p114, %p115
      %p118 = scmp.ne.s32.totalorder %s103, %s117
      %p119 = scmp.eq.s32.totalorder %s30, 0
      %p120 = por %p118, %p119
      %s122 = sadd.s32 %s121, 1
      %p125 = scmp.eq.s32.totalorder %s24, 1
      %p126 = scmp.ne.s32.totalorder %s121, %s123
      %p127 = scmp.eq.s32.totalorder %s24, 0
      %p128 = por %p126, %p127
      %p129 = scmp.ne.s32.totalorder %s121, %s123
      %p130 = scmp.eq.s32.totalorder %s29, 1
      %p131 = por %p129, %p130
      %p132 = scmp.ne.s32.totalorder %s123, %s124
      %p133 = scmp.eq.s32.totalorder %s29, 0
      %p134 = por %p132, %p133
      %p135 = scmp.ne.s32.totalorder %s123, %s124
      %p136 = scmp.eq.s32.totalorder %s30, 1
      %p137 = por %p135, %p136
      %p139 = scmp.ne.s32.totalorder %s124, %s138
      %p140 = scmp.eq.s32.totalorder %s30, 0
      %p141 = por %p139, %p140
      %s143 = sadd.s32 %s142, 1
      %p146 = scmp.eq.s32.totalorder %s24, 1
      %p147 = scmp.ne.s32.totalorder %s142, %s144
      %p148 = scmp.eq.s32.totalorder %s24, 0
      %p149 = por %p147, %p148
      %p150 = scmp.ne.s32.totalorder %s142, %s144
      %p151 = scmp.eq.s32.totalorder %s29, 1
      %p152 = por %p150, %p151
      %p153 = scmp.ne.s32.totalorder %s144, %s145
      %p154 = scmp.eq.s32.totalorder %s29, 0
      %p155 = por %p153, %p154
      %p156 = scmp.ne.s32.totalorder %s144, %s145
      %p157 = scmp.eq.s32.totalorder %s30, 1
      %p158 = por %p156, %p157
      %p160 = scmp.ne.s32.totalorder %s145, %s159
      %p161 = scmp.eq.s32.totalorder %s30, 0
      %p162 = por %p160, %p161
      %s164 = sadd.s32 %s163, 1
      %p167 = scmp.eq.s32.totalorder %s24, 1
      %p168 = scmp.ne.s32.totalorder %s163, %s165
      %p169 = scmp.eq.s32.totalorder %s24, 0
      %p170 = por %p168, %p169
      %p171 = scmp.ne.s32.totalorder %s163, %s165
      %p172 = scmp.eq.s32.totalorder %s29, 1
      %p173 = por %p171, %p172
      %p174 = scmp.ne.s32.totalorder %s165, %s166
      %p175 = scmp.eq.s32.totalorder %s29, 0
      %p176 = por %p174, %p175
      %p177 = scmp.ne.s32.totalorder %s165, %s166
      %p178 = scmp.eq.s32.totalorder %s30, 1
      %p179 = por %p177, %p178
      %p181 = scmp.ne.s32.totalorder %s166, %s180
      %p182 = scmp.eq.s32.totalorder %s30, 0
      %p183 = por %p181, %p182
      %s185 = sadd.s32 %s184, 1
      %p188 = scmp.eq.s32.totalorder %s24, 1
      %p189 = scmp.ne.s32.totalorder %s184, %s186
      %p190 = scmp.eq.s32.totalorder %s24, 0
      %p191 = por %p189, %p190
      %p192 = scmp.ne.s32.totalorder %s184, %s186
      %p193 = scmp.eq.s32.totalorder %s29, 1
      %p194 = por %p192, %p193
      %p195 = scmp.ne.s32.totalorder %s186, %s187
      %p196 = scmp.eq.s32.totalorder %s29, 0
      %p197 = por %p195, %p196
      %p198 = scmp.ne.s32.totalorder %s186, %s187
      %p199 = scmp.eq.s32.totalorder %s30, 1
      %p200 = por %p198, %p199
      %p202 = scmp.ne.s32.totalorder %s187, %s201
      %p203 = scmp.eq.s32.totalorder %s30, 0
      %p204 = por %p202, %p203
      %s206 = sadd.s32 %s205, 1
      %p209 = scmp.eq.s32.totalorder %s24, 1
      %p210 = scmp.ne.s32.totalorder %s205, %s207
      %p211 = scmp.eq.s32.totalorder %s24, 0
      %p212 = por %p210, %p211
      %p213 = scmp.ne.s32.totalorder %s205, %s207
      %p214 = scmp.eq.s32.totalorder %s29, 1
      %p215 = por %p213, %p214
      %p216 = scmp.ne.s32.totalorder %s207, %s208
      %p217 = scmp.eq.s32.totalorder %s29, 0
      %p218 = por %p216, %p217
      %p219 = scmp.ne.s32.totalorder %s207, %s208
      %p220 = scmp.eq.s32.totalorder %s30, 1
      %p221 = por %p219, %p220
      %p223 = scmp.ne.s32.totalorder %s208, %s222
      %p224 = scmp.eq.s32.totalorder %s30, 0
      %p225 = por %p223, %p224
      %s227 = sadd.s32 %s226, 1
      %p230 = scmp.eq.s32.totalorder %s24, 1
      %p231 = scmp.ne.s32.totalorder %s226, %s228
      %p232 = scmp.eq.s32.totalorder %s24, 0
      %p233 = por %p231, %p232
      %p234 = scmp.ne.s32.totalorder %s226, %s228
      %p235 = scmp.eq.s32.totalorder %s29, 1
      %p236 = por %p234, %p235
      %p237 = scmp.ne.s32.totalorder %s228, %s229
      %p238 = scmp.eq.s32.totalorder %s29, 0
      %p239 = por %p237, %p238
      %p240 = scmp.ne.s32.totalorder %s228, %s229
      %p241 = scmp.eq.s32.totalorder %s30, 1
      %p242 = por %p240, %p241
      %p244 = scmp.ne.s32.totalorder %s229, %s243
      %p245 = scmp.eq.s32.totalorder %s30, 0
      %p246 = por %p244, %p245
      %s248 = sadd.s32 %s247, 1
      %p251 = scmp.eq.s32.totalorder %s24, 1
      %p252 = scmp.ne.s32.totalorder %s247, %s249
      %p253 = scmp.eq.s32.totalorder %s24, 0
      %p254 = por %p252, %p253
      %p255 = scmp.ne.s32.totalorder %s247, %s249
      %p256 = scmp.eq.s32.totalorder %s29, 1
      %p257 = por %p255, %p256
      %p258 = scmp.ne.s32.totalorder %s249, %s250
      %p259 = scmp.eq.s32.totalorder %s29, 0
      %p260 = por %p258, %p259
      %p261 = scmp.ne.s32.totalorder %s249, %s250
      %p262 = scmp.eq.s32.totalorder %s30, 1
      %p263 = por %p261, %p262
      %p265 = scmp.ne.s32.totalorder %s250, %s264
      %p266 = scmp.eq.s32.totalorder %s30, 0
      %p267 = por %p265, %p266
      %s269 = sadd.s32 %s268, 1
      %p272 = scmp.eq.s32.totalorder %s24, 1
      %p273 = scmp.ne.s32.totalorder %s268, %s270
      %p274 = scmp.eq.s32.totalorder %s24, 0
      %p275 = por %p273, %p274
      %p276 = scmp.ne.s32.totalorder %s268, %s270
      %p277 = scmp.eq.s32.totalorder %s29, 1
      %p278 = por %p276, %p277
      %p279 = scmp.ne.s32.totalorder %s270, %s271
      %p280 = scmp.eq.s32.totalorder %s29, 0
      %p281 = por %p279, %p280
      %p282 = scmp.ne.s32.totalorder %s270, %s271
      %p283 = scmp.eq.s32.totalorder %s30, 1
      %p284 = por %p282, %p283
      %p286 = scmp.ne.s32.totalorder %s271, %s285
      %p287 = scmp.eq.s32.totalorder %s30, 0
      %p288 = por %p286, %p287
      %s289 = ssub.s32 %s24, %s31
      %p290 = scmp.eq.s32.totalorder %s289, 0
      %s292 = sadd.s32 %s291, 1
      %s293 = scalar_select %p290, %s291, %s292
      %p296 = pneg %p290
      %p297 = scmp.eq.s32.totalorder %s24, 1
      %p298 = por %p296, %p297
      %p299 = scmp.ne.s32.totalorder %s291, %s294
      %p300 = scmp.eq.s32.totalorder %s24, 0
      %p301 = por %p299, %p300
      %p302 = scmp.ne.s32.totalorder %s291, %s294
      %p303 = scmp.eq.s32.totalorder %s29, 1
      %p304 = por %p302, %p303
      %p305 = scmp.ne.s32.totalorder %s294, %s295
      %p306 = scmp.eq.s32.totalorder %s29, 0
      %p307 = por %p305, %p306
      %p308 = scmp.ne.s32.totalorder %s294, %s295
      %p309 = scmp.eq.s32.totalorder %s30, 1
      %p310 = por %p308, %p309
      %p312 = scmp.ne.s32.totalorder %s295, %s311
      %p313 = scmp.eq.s32.totalorder %s30, 0
      %p314 = por %p312, %p313
      %p315 = scmp.le.s32.totalorder 1, %s24
      %p316 = scmp.lt.s32.totalorder %s24, 3
      %p317 = pnand %p315, %p316
      %p318 = pneg %p317
      // Predicated region
      $region9: #{vanilla_ae_forward.1} parent=5 // pred_check
        _
      $region10: #{vanilla_ae_forward.1} parent=5 // pred_check_branch
        %320 = sbr.rel (%p317) target = $region12
      $region11: #{vanilla_ae_forward.1} parent=5 // pred_region
        %s321 = ssub.s32 %s24, 1
        // Predicated region
        $region13: #{vanilla_ae_forward.1} parent=11 // pred_check
          %p322 = pneg %p71
        $region14: #{vanilla_ae_forward.1} parent=11 // pred_check_branch
          %324 = sbr.rel (%p322) target = $region16
        $region15: #{vanilla_ae_forward.1} parent=11 // pred_region
          %s326 = ssub.s32 2048, 2048
          %327 = vsyncadd [#allocation3], %s326
          %s328 = sshll.u32 [#allocation2], 4
          %s329 = int_to_ptr.vmem [resolvable:$true] %s328
          %334 = dma.hbm_to_vmem [thread:$0]  %s1, 2048, %s329, [#allocation3], 1024, 1024, 64
        $region16: #{vanilla_ae_forward.1} parent=11 // pred_fallthru
          _
        // Predicated region
        $region17: #{vanilla_ae_forward.1} parent=11 // pred_check
          %p335 = pneg %p92
        $region18: #{vanilla_ae_forward.1} parent=11 // pred_check_branch
          %337 = sbr.rel (%p335) target = $region20
        $region19: #{vanilla_ae_forward.1} parent=11 // pred_region
          %s339 = ssub.s32 49152, 49152
          %340 = vsyncadd [#allocation5], %s339
          %s341 = sshll.u32 [#allocation4], 4
          %s342 = int_to_ptr.vmem [resolvable:$true] %s341
          %347 = dma.hbm_to_vmem [thread:$0]  %s2, 49152, %s342, [#allocation5], 384, 384, 24
        $region20: #{vanilla_ae_forward.1} parent=11 // pred_fallthru
          _
        // Predicated region
        $region21: #{vanilla_ae_forward.1} parent=11 // pred_check
          %p348 = pneg %p113
        $region22: #{vanilla_ae_forward.1} parent=11 // pred_check_branch
          %350 = sbr.rel (%p348) target = $region24
        $region23: #{vanilla_ae_forward.1} parent=11 // pred_region
          %s352 = ssub.s32 24576, 24576
          %353 = vsyncadd [#allocation5], %s352
          %s354 = sshll.u32 [#allocation6], 4
          %s355 = int_to_ptr.vmem [resolvable:$true] %s354
          %360 = dma.hbm_to_vmem [thread:$0]  %s3, 24576, %s355, [#allocation5], 256, 256, 16
        $region24: #{vanilla_ae_forward.1} parent=11 // pred_fallthru
          _
        // Predicated region
        $region25: #{vanilla_ae_forward.1} parent=11 // pred_check
          %p361 = pneg %p134
        $region26: #{vanilla_ae_forward.1} parent=11 // pred_check_branch
          %363 = sbr.rel (%p361) target = $region28
        $region27: #{vanilla_ae_forward.1} parent=11 // pred_region
          %s365 = ssub.s32 8192, 8192
          %366 = vsyncadd [#allocation8], %s365
          %s367 = sshll.u32 [#allocation7], 4
          %s368 = int_to_ptr.vmem [resolvable:$true] %s367
          %373 = dma.hbm_to_vmem [thread:$0]  %s4, 8192, %s368, [#allocation8], 128, 128, 8
        $region28: #{vanilla_ae_forward.1} parent=11 // pred_fallthru
          _
        // Predicated region
        $region29: #{vanilla_ae_forward.1} parent=11 // pred_check
          %p374 = pneg %p155
        $region30: #{vanilla_ae_forward.1} parent=11 // pred_check_branch
          %376 = sbr.rel (%p374) target = $region32
        $region31: #{vanilla_ae_forward.1} parent=11 // pred_region
          %s378 = ssub.s32 2048, 2048
          %379 = vsyncadd [#allocation8], %s378
          %s380 = sshll.u32 [#allocation9], 4
          %s381 = int_to_ptr.vmem [resolvable:$true] %s380
          %386 = dma.hbm_to_vmem [thread:$0]  %s5, 2048, %s381, [#allocation8], 64, 64, 4
        $region32: #{vanilla_ae_forward.1} parent=11 // pred_fallthru
          _
        // Predicated region
        $region33: #{vanilla_ae_forward.1} parent=11 // pred_check
          %p387 = pneg %p176
        $region34: #{vanilla_ae_forward.1} parent=11 // pred_check_branch
          %389 = sbr.rel (%p387) target = $region36
        $region35: #{vanilla_ae_forward.1} parent=11 // pred_region
          %s391 = ssub.s32 1024, 1024
          %392 = vsyncadd [#allocation11], %s391
          %s393 = sshll.u32 [#allocation10], 4
          %s394 = int_to_ptr.vmem [resolvable:$true] %s393
          %399 = dma.hbm_to_vmem [thread:$0]  %s6, 1024, %s394, [#allocation11], 64, 64, 4
        $region36: #{vanilla_ae_forward.1} parent=11 // pred_fallthru
          _
        // Predicated region
        $region37: #{vanilla_ae_forward.1} parent=11 // pred_check
          %p400 = pneg %p197
        $region38: #{vanilla_ae_forward.1} parent=11 // pred_check_branch
          %402 = sbr.rel (%p400) target = $region40
        $region39: #{vanilla_ae_forward.1} parent=11 // pred_region
          %s404 = ssub.s32 1024, 1024
          %405 = vsyncadd [#allocation11], %s404
          %s406 = sshll.u32 [#allocation12], 4
          %s407 = int_to_ptr.vmem [resolvable:$true] %s406
          %412 = dma.hbm_to_vmem [thread:$0]  %s7, 1024, %s407, [#allocation11], 64, 64, 4
        $region40: #{vanilla_ae_forward.1} parent=11 // pred_fallthru
          _
        // Predicated region
        $region41: #{vanilla_ae_forward.1} parent=11 // pred_check
          %p413 = pneg %p218
        $region42: #{vanilla_ae_forward.1} parent=11 // pred_check_branch
          %415 = sbr.rel (%p413) target = $region44
        $region43: #{vanilla_ae_forward.1} parent=11 // pred_region
          %s417 = ssub.s32 2048, 2048
          %418 = vsyncadd [#allocation14], %s417
          %s419 = sshll.u32 [#allocation13], 4
          %s420 = int_to_ptr.vmem [resolvable:$true] %s419
          %425 = dma.hbm_to_vmem [thread:$0]  %s8, 2048, %s420, [#allocation14], 128, 128, 8
        $region44: #{vanilla_ae_forward.1} parent=11 // pred_fallthru
          _
        // Predicated region
        $region45: #{vanilla_ae_forward.1} parent=11 // pred_check
          %p426 = pneg %p239
        $region46: #{vanilla_ae_forward.1} parent=11 // pred_check_branch
          %428 = sbr.rel (%p426) target = $region48
        $region47: #{vanilla_ae_forward.1} parent=11 // pred_region
          %s430 = ssub.s32 8192, 8192
          %431 = vsyncadd [#allocation14], %s430
          %s432 = sshll.u32 [#allocation15], 4
          %s433 = int_to_ptr.vmem [resolvable:$true] %s432
          %438 = dma.hbm_to_vmem [thread:$0]  %s9, 8192, %s433, [#allocation14], 256, 256, 16
        $region48: #{vanilla_ae_forward.1} parent=11 // pred_fallthru
          _
        // Predicated region
        $region49: #{vanilla_ae_forward.1} parent=11 // pred_check
          %p439 = pneg %p260
        $region50: #{vanilla_ae_forward.1} parent=11 // pred_check_branch
          %441 = sbr.rel (%p439) target = $region52
        $region51: #{vanilla_ae_forward.1} parent=11 // pred_region
          %s443 = ssub.s32 24576, 24576
          %444 = vsyncadd [#allocation17], %s443
          %s445 = sshll.u32 [#allocation16], 4
          %s446 = int_to_ptr.vmem [resolvable:$true] %s445
          %451 = dma.hbm_to_vmem [thread:$0]  %s10, 24576, %s446, [#allocation17], 384, 384, 24
        $region52: #{vanilla_ae_forward.1} parent=11 // pred_fallthru
          _
        // Predicated region
        $region53: #{vanilla_ae_forward.1} parent=11 // pred_check
          %p452 = pneg %p281
        $region54: #{vanilla_ae_forward.1} parent=11 // pred_check_branch
          %454 = sbr.rel (%p452) target = $region56
        $region55: #{vanilla_ae_forward.1} parent=11 // pred_region
          %s456 = ssub.s32 49152, 49152
          %457 = vsyncadd [#allocation17], %s456
          %s458 = sshll.u32 [#allocation18], 4
          %s459 = int_to_ptr.vmem [resolvable:$true] %s458
          %464 = dma.hbm_to_vmem [thread:$0]  %s11, 49152, %s459, [#allocation17], 512, 512, 32
        $region56: #{vanilla_ae_forward.1} parent=11 // pred_fallthru
          _
      $region12: #{vanilla_ae_forward.1} parent=5 // pred_fallthru
        _
      %p465 = scmp.lt.s32.totalorder %s24, 2
      // Predicated region
      $region57: #{vanilla_ae_forward.1} parent=5 // pred_check
        %p466 = pneg %p465
      $region58: #{vanilla_ae_forward.1} parent=5 // pred_check_branch
        %468 = sbr.rel (%p466) target = $region60
      $region59: #{vanilla_ae_forward.1} parent=5 // pred_region
        // Predicated region
        $region61: #{vanilla_ae_forward.1} parent=59 // pred_check
          %p469 = pneg %p44
        $region62: #{vanilla_ae_forward.1} parent=59 // pred_check_branch
          %471 = sbr.rel (%p469) target = $region64
        $region63: #{vanilla_ae_forward.1} parent=59 // pred_region
          %s472 = smul.u32 2, %s24
          %p473 = scmp.lt.s32.totalorder %s472, 3
          %s474 = scalar_select %p473, %s472, 3
          %s475 = smul.addr %s474, 8
          %s476 = smul.addr %s475, 4
          %s477 = scalar_lea.vmem %s0, %s476
          %s478 = smul.u32 2, %s24
        $region64: #{vanilla_ae_forward.1} parent=59 // pred_fallthru
          _
      $region60: #{vanilla_ae_forward.1} parent=5 // pred_fallthru
        _
      %p479 = scmp.le.s32.totalorder 1, %s24
      %p480 = scmp.lt.s32.totalorder %s24, 3
      %p481 = pnand %p479, %p480
      %p482 = pneg %p481
      // Predicated region
      $region65: #{vanilla_ae_forward.1} parent=5 // pred_check
        _
      $region66: #{vanilla_ae_forward.1} parent=5 // pred_check_branch
        %484 = sbr.rel (%p481) target = $region68
      $region67: #{vanilla_ae_forward.1} parent=5 // pred_region
        %s485 = ssub.s32 %s24, 1
        // Predicated region
        $region69: #{vanilla_ae_forward.1} parent=67 // pred_check
          %p486 = pneg %p71
        $region70: #{vanilla_ae_forward.1} parent=67 // pred_check_branch
          %488 = sbr.rel (%p486) target = $region72
        $region71: #{vanilla_ae_forward.1} parent=67 // pred_region
          %489 = dma.done [#allocation3], 2048
        $region72: #{vanilla_ae_forward.1} parent=67 // pred_fallthru
          _
        // Predicated region
        $region73: #{vanilla_ae_forward.1} parent=67 // pred_check
          %p490 = pneg %p92
        $region74: #{vanilla_ae_forward.1} parent=67 // pred_check_branch
          %492 = sbr.rel (%p490) target = $region76
        $region75: #{vanilla_ae_forward.1} parent=67 // pred_region
          %493 = dma.done [#allocation5], 49152
        $region76: #{vanilla_ae_forward.1} parent=67 // pred_fallthru
          _
        // Predicated region
        $region77: #{vanilla_ae_forward.1} parent=67 // pred_check
          %p494 = pneg %p113
        $region78: #{vanilla_ae_forward.1} parent=67 // pred_check_branch
          %496 = sbr.rel (%p494) target = $region80
        $region79: #{vanilla_ae_forward.1} parent=67 // pred_region
          %497 = dma.done [#allocation5], 24576
        $region80: #{vanilla_ae_forward.1} parent=67 // pred_fallthru
          _
        // Predicated region
        $region81: #{vanilla_ae_forward.1} parent=67 // pred_check
          %p498 = pneg %p134
        $region82: #{vanilla_ae_forward.1} parent=67 // pred_check_branch
          %500 = sbr.rel (%p498) target = $region84
        $region83: #{vanilla_ae_forward.1} parent=67 // pred_region
          %501 = dma.done [#allocation8], 8192
        $region84: #{vanilla_ae_forward.1} parent=67 // pred_fallthru
          _
        // Predicated region
        $region85: #{vanilla_ae_forward.1} parent=67 // pred_check
          %p502 = pneg %p155
        $region86: #{vanilla_ae_forward.1} parent=67 // pred_check_branch
          %504 = sbr.rel (%p502) target = $region88
        $region87: #{vanilla_ae_forward.1} parent=67 // pred_region
          %505 = dma.done [#allocation8], 2048
        $region88: #{vanilla_ae_forward.1} parent=67 // pred_fallthru
          _
        // Predicated region
        $region89: #{vanilla_ae_forward.1} parent=67 // pred_check
          %p506 = pneg %p176
        $region90: #{vanilla_ae_forward.1} parent=67 // pred_check_branch
          %508 = sbr.rel (%p506) target = $region92
        $region91: #{vanilla_ae_forward.1} parent=67 // pred_region
          %509 = dma.done [#allocation11], 1024
        $region92: #{vanilla_ae_forward.1} parent=67 // pred_fallthru
          _
        // Predicated region
        $region93: #{vanilla_ae_forward.1} parent=67 // pred_check
          %p510 = pneg %p197
        $region94: #{vanilla_ae_forward.1} parent=67 // pred_check_branch
          %512 = sbr.rel (%p510) target = $region96
        $region95: #{vanilla_ae_forward.1} parent=67 // pred_region
          %513 = dma.done [#allocation11], 1024
        $region96: #{vanilla_ae_forward.1} parent=67 // pred_fallthru
          _
        // Predicated region
        $region97: #{vanilla_ae_forward.1} parent=67 // pred_check
          %p514 = pneg %p218
        $region98: #{vanilla_ae_forward.1} parent=67 // pred_check_branch
          %516 = sbr.rel (%p514) target = $region100
        $region99: #{vanilla_ae_forward.1} parent=67 // pred_region
          %517 = dma.done [#allocation14], 2048
        $region100: #{vanilla_ae_forward.1} parent=67 // pred_fallthru
          _
        // Predicated region
        $region101: #{vanilla_ae_forward.1} parent=67 // pred_check
          %p518 = pneg %p239
        $region102: #{vanilla_ae_forward.1} parent=67 // pred_check_branch
          %520 = sbr.rel (%p518) target = $region104
        $region103: #{vanilla_ae_forward.1} parent=67 // pred_region
          %521 = dma.done [#allocation14], 8192
        $region104: #{vanilla_ae_forward.1} parent=67 // pred_fallthru
          _
        // Predicated region
        $region105: #{vanilla_ae_forward.1} parent=67 // pred_check
          %p522 = pneg %p260
        $region106: #{vanilla_ae_forward.1} parent=67 // pred_check_branch
          %524 = sbr.rel (%p522) target = $region108
        $region107: #{vanilla_ae_forward.1} parent=67 // pred_region
          %525 = dma.done [#allocation17], 24576
        $region108: #{vanilla_ae_forward.1} parent=67 // pred_fallthru
          _
        // Predicated region
        $region109: #{vanilla_ae_forward.1} parent=67 // pred_check
          %p526 = pneg %p281
        $region110: #{vanilla_ae_forward.1} parent=67 // pred_check_branch
          %528 = sbr.rel (%p526) target = $region112
        $region111: #{vanilla_ae_forward.1} parent=67 // pred_region
          %529 = dma.done [#allocation17], 49152
        $region112: #{vanilla_ae_forward.1} parent=67 // pred_fallthru
          _
        %s530 = smul.u32 2, %s29
        %p531 = scmp.lt.s32.totalorder %s530, 3
        %s532 = scalar_select %p531, %s530, 3
        %s533 = smul.addr %s532, 8
        %s534 = smul.addr %s533, 4
        %s535 = scalar_lea.vmem %s0, %s534
        %p536 = pneg %p50
        %p537 = pneg %p47
        %p538 = pneg %p71
        %p539 = pneg %p68
        %p540 = pneg %p92
        %p541 = pneg %p89
        %p542 = pneg %p113
        %p543 = pneg %p110
        %p544 = pneg %p134
        %p545 = pneg %p131
        %p546 = pneg %p155
        %p547 = pneg %p152
        %p548 = pneg %p176
        %p549 = pneg %p173
        %p550 = pneg %p197
        %p551 = pneg %p194
        %p552 = pneg %p218
        %p553 = pneg %p215
        %p554 = pneg %p239
        %p555 = pneg %p236
        %p556 = pneg %p260
        %p557 = pneg %p257
        %p558 = pneg %p281
        %p559 = pneg %p278
        %p560 = pneg %p307
        %p561 = pneg %p304
        %s562 = smul.u32 2, %s29
        %p563 = scmp.lt.s32.totalorder %s562, 3
        %s564 = scalar_select %p563, %s562, 3
        %s565 = smul.addr %s564, 8
        %s566 = smul.addr %s565, 8
        %s567 = scalar_lea.vmem %s12, %s566
        %s568 = smul.u32 2, %s29
        %p569 = scmp.lt.s32.totalorder %s568, 3
        %s570 = scalar_select %p569, %s568, 3
        %s571 = smul.addr %s570, 8
        %s572 = smul.addr %s571, 4
        %s573 = scalar_lea.vmem %s0, %s572
        %s574 = smul.u32 2, %s29
        %s575 = smul.u32 2, %s29
        %p576 = scmp.lt.s32.totalorder %s575, 3
        %s577 = scalar_select %p576, %s575, 3
        %s578 = smul.addr %s577, 8
        %s579 = smul.addr %s578, 8
        %s580 = scalar_lea.vmem %s12, %s579
        %s581 = smul.u32 2, %s29
        %v583 = vld [vmem:[%s573] sm:$0xff]
        %v584 = vld [vmem:[%s573 + $0x8] sm:$0xff]
        %v585 = vld [vmem:[%s573 + $0x10] sm:$0xff]
        %v586 = vld [vmem:[%s573 + $0x18] sm:$0xff]
        %v587 = vld [vmem:[%s573 + $0x20] sm:$0xff]
        %v588 = vld [vmem:[%s573 + $0x28] sm:$0xff]
        %v589 = vld [vmem:[%s573 + $0x30] sm:$0xff]
        %v590 = vld [vmem:[%s573 + $0x38] sm:$0xff]
        %v591 = vld [vmem:[#allocation4] sm:$0xff]
        %v592 = vld [vmem:[#allocation4 + $0x8] sm:$0xff]
        %v593 = vld [vmem:[#allocation4 + $0x10] sm:$0xff]
        %v594 = vld [vmem:[#allocation4 + $0x18] sm:$0xff]
        %v595 = vld [vmem:[#allocation4 + $0x20] sm:$0xff]
        %v596 = vld [vmem:[#allocation4 + $0x28] sm:$0xff]
        %v597 = vld [vmem:[#allocation4 + $0x30] sm:$0xff]
        %v598 = vld [vmem:[#allocation4 + $0x38] sm:$0xff]
        %v599 = vld [vmem:[#allocation4 + $0x40] sm:$0xff]
        %v600 = vld [vmem:[#allocation4 + $0x48] sm:$0xff]
        %v601 = vld [vmem:[#allocation4 + $0x50] sm:$0xff]
        %v602 = vld [vmem:[#allocation4 + $0x58] sm:$0xff]
        %v603 = vld [vmem:[#allocation4 + $0x60] sm:$0xff]
        %v604 = vld [vmem:[#allocation4 + $0x68] sm:$0xff]
        %v605 = vld [vmem:[#allocation4 + $0x70] sm:$0xff]
        %v606 = vld [vmem:[#allocation4 + $0x78] sm:$0xff]
        %v607 = vld [vmem:[#allocation4 + $0x80] sm:$0xff]
        %v608 = vld [vmem:[#allocation4 + $0x88] sm:$0xff]
        %v609 = vld [vmem:[#allocation4 + $0x90] sm:$0xff]
        %v610 = vld [vmem:[#allocation4 + $0x98] sm:$0xff]
        %v611 = vld [vmem:[#allocation4 + $0xa0] sm:$0xff]
        %v612 = vld [vmem:[#allocation4 + $0xa8] sm:$0xff]
        %v613 = vld [vmem:[#allocation4 + $0xb0] sm:$0xff]
        %v614 = vld [vmem:[#allocation4 + $0xb8] sm:$0xff]
        %v615 = vld [vmem:[#allocation4 + $0xc0] sm:$0xff]
        %v616 = vld [vmem:[#allocation4 + $0xc8] sm:$0xff]
        %v617 = vld [vmem:[#allocation4 + $0xd0] sm:$0xff]
        %v618 = vld [vmem:[#allocation4 + $0xd8] sm:$0xff]
        %v619 = vld [vmem:[#allocation4 + $0xe0] sm:$0xff]
        %v620 = vld [vmem:[#allocation4 + $0xe8] sm:$0xff]
        %v621 = vld [vmem:[#allocation4 + $0xf0] sm:$0xff]
        %v622 = vld [vmem:[#allocation4 + $0xf8] sm:$0xff]
        %v623 = vld [vmem:[#allocation4 + $0x100] sm:$0xff]
        %v624 = vld [vmem:[#allocation4 + $0x108] sm:$0xff]
        %v625 = vld [vmem:[#allocation4 + $0x110] sm:$0xff]
        %v626 = vld [vmem:[#allocation4 + $0x118] sm:$0xff]
        %v627 = vld [vmem:[#allocation4 + $0x120] sm:$0xff]
        %v628 = vld [vmem:[#allocation4 + $0x128] sm:$0xff]
        %v629 = vld [vmem:[#allocation4 + $0x130] sm:$0xff]
        %v630 = vld [vmem:[#allocation4 + $0x138] sm:$0xff]
        %v631 = vld [vmem:[#allocation4 + $0x140] sm:$0xff]
        %v632 = vld [vmem:[#allocation4 + $0x148] sm:$0xff]
        %v633 = vld [vmem:[#allocation4 + $0x150] sm:$0xff]
        %v634 = vld [vmem:[#allocation4 + $0x158] sm:$0xff]
        %v635 = vld [vmem:[#allocation4 + $0x160] sm:$0xff]
        %v636 = vld [vmem:[#allocation4 + $0x168] sm:$0xff]
        %v637 = vld [vmem:[#allocation4 + $0x170] sm:$0xff]
        %v638 = vld [vmem:[#allocation4 + $0x178] sm:$0xff]
        %v639 = vld [vmem:[#allocation4 + $0x180] sm:$0xff]
        %v640 = vld [vmem:[#allocation4 + $0x188] sm:$0xff]
        %v641 = vld [vmem:[#allocation4 + $0x190] sm:$0xff]
        %v642 = vld [vmem:[#allocation4 + $0x198] sm:$0xff]
        %v643 = vld [vmem:[#allocation4 + $0x1a0] sm:$0xff]
        %v644 = vld [vmem:[#allocation4 + $0x1a8] sm:$0xff]
        %v645 = vld [vmem:[#allocation4 + $0x1b0] sm:$0xff]
        %v646 = vld [vmem:[#allocation4 + $0x1b8] sm:$0xff]
        %v647 = vld [vmem:[#allocation4 + $0x1c0] sm:$0xff]
        %v648 = vld [vmem:[#allocation4 + $0x1c8] sm:$0xff]
        %v649 = vld [vmem:[#allocation4 + $0x1d0] sm:$0xff]
        %v650 = vld [vmem:[#allocation4 + $0x1d8] sm:$0xff]
        %v651 = vld [vmem:[#allocation4 + $0x1e0] sm:$0xff]
        %v652 = vld [vmem:[#allocation4 + $0x1e8] sm:$0xff]
        %v653 = vld [vmem:[#allocation4 + $0x1f0] sm:$0xff]
        %v654 = vld [vmem:[#allocation4 + $0x1f8] sm:$0xff]
        %v655 = vld [vmem:[#allocation4 + $0x200] sm:$0xff]
        %v656 = vld [vmem:[#allocation4 + $0x208] sm:$0xff]
        %v657 = vld [vmem:[#allocation4 + $0x210] sm:$0xff]
        %v658 = vld [vmem:[#allocation4 + $0x218] sm:$0xff]
        %v659 = vld [vmem:[#allocation4 + $0x220] sm:$0xff]
        %v660 = vld [vmem:[#allocation4 + $0x228] sm:$0xff]
        %v661 = vld [vmem:[#allocation4 + $0x230] sm:$0xff]
        %v662 = vld [vmem:[#allocation4 + $0x238] sm:$0xff]
        %v663 = vld [vmem:[#allocation4 + $0x240] sm:$0xff]
        %v664 = vld [vmem:[#allocation4 + $0x248] sm:$0xff]
        %v665 = vld [vmem:[#allocation4 + $0x250] sm:$0xff]
        %v666 = vld [vmem:[#allocation4 + $0x258] sm:$0xff]
        %v667 = vld [vmem:[#allocation4 + $0x260] sm:$0xff]
        %v668 = vld [vmem:[#allocation4 + $0x268] sm:$0xff]
        %v669 = vld [vmem:[#allocation4 + $0x270] sm:$0xff]
        %v670 = vld [vmem:[#allocation4 + $0x278] sm:$0xff]
        %v671 = vld [vmem:[#allocation4 + $0x280] sm:$0xff]
        %v672 = vld [vmem:[#allocation4 + $0x288] sm:$0xff]
        %v673 = vld [vmem:[#allocation4 + $0x290] sm:$0xff]
        %v674 = vld [vmem:[#allocation4 + $0x298] sm:$0xff]
        %v675 = vld [vmem:[#allocation4 + $0x2a0] sm:$0xff]
        %v676 = vld [vmem:[#allocation4 + $0x2a8] sm:$0xff]
        %v677 = vld [vmem:[#allocation4 + $0x2b0] sm:$0xff]
        %v678 = vld [vmem:[#allocation4 + $0x2b8] sm:$0xff]
        %v679 = vld [vmem:[#allocation4 + $0x2c0] sm:$0xff]
        %v680 = vld [vmem:[#allocation4 + $0x2c8] sm:$0xff]
        %v681 = vld [vmem:[#allocation4 + $0x2d0] sm:$0xff]
        %v682 = vld [vmem:[#allocation4 + $0x2d8] sm:$0xff]
        %v683 = vld [vmem:[#allocation4 + $0x2e0] sm:$0xff]
        %v684 = vld [vmem:[#allocation4 + $0x2e8] sm:$0xff]
        %v685 = vld [vmem:[#allocation4 + $0x2f0] sm:$0xff]
        %v686 = vld [vmem:[#allocation4 + $0x2f8] sm:$0xff]
        %v687 = vld [vmem:[#allocation4 + $0x300] sm:$0xff]
        %v688 = vld [vmem:[#allocation4 + $0x308] sm:$0xff]
        %v689 = vld [vmem:[#allocation4 + $0x310] sm:$0xff]
        %v690 = vld [vmem:[#allocation4 + $0x318] sm:$0xff]
        %v691 = vld [vmem:[#allocation4 + $0x320] sm:$0xff]
        %v692 = vld [vmem:[#allocation4 + $0x328] sm:$0xff]
        %v693 = vld [vmem:[#allocation4 + $0x330] sm:$0xff]
        %v694 = vld [vmem:[#allocation4 + $0x338] sm:$0xff]
        %v695 = vld [vmem:[#allocation4 + $0x340] sm:$0xff]
        %v696 = vld [vmem:[#allocation4 + $0x348] sm:$0xff]
        %v697 = vld [vmem:[#allocation4 + $0x350] sm:$0xff]
        %v698 = vld [vmem:[#allocation4 + $0x358] sm:$0xff]
        %v699 = vld [vmem:[#allocation4 + $0x360] sm:$0xff]
        %v700 = vld [vmem:[#allocation4 + $0x368] sm:$0xff]
        %v701 = vld [vmem:[#allocation4 + $0x370] sm:$0xff]
        %v702 = vld [vmem:[#allocation4 + $0x378] sm:$0xff]
        %v703 = vld [vmem:[#allocation4 + $0x380] sm:$0xff]
        %v704 = vld [vmem:[#allocation4 + $0x388] sm:$0xff]
        %v705 = vld [vmem:[#allocation4 + $0x390] sm:$0xff]
        %v706 = vld [vmem:[#allocation4 + $0x398] sm:$0xff]
        %v707 = vld [vmem:[#allocation4 + $0x3a0] sm:$0xff]
        %v708 = vld [vmem:[#allocation4 + $0x3a8] sm:$0xff]
        %v709 = vld [vmem:[#allocation4 + $0x3b0] sm:$0xff]
        %v710 = vld [vmem:[#allocation4 + $0x3b8] sm:$0xff]
        %v711 = vld [vmem:[#allocation4 + $0x3c0] sm:$0xff]
        %v712 = vld [vmem:[#allocation4 + $0x3c8] sm:$0xff]
        %v713 = vld [vmem:[#allocation4 + $0x3d0] sm:$0xff]
        %v714 = vld [vmem:[#allocation4 + $0x3d8] sm:$0xff]
        %v715 = vld [vmem:[#allocation4 + $0x3e0] sm:$0xff]
        %v716 = vld [vmem:[#allocation4 + $0x3e8] sm:$0xff]
        %v717 = vld [vmem:[#allocation4 + $0x3f0] sm:$0xff]
        %v718 = vld [vmem:[#allocation4 + $0x3f8] sm:$0xff]
        %v719 = vld [vmem:[#allocation4 + $0x400] sm:$0xff]
        %v720 = vld [vmem:[#allocation4 + $0x408] sm:$0xff]
        %v721 = vld [vmem:[#allocation4 + $0x410] sm:$0xff]
        %v722 = vld [vmem:[#allocation4 + $0x418] sm:$0xff]
        %v723 = vld [vmem:[#allocation4 + $0x420] sm:$0xff]
        %v724 = vld [vmem:[#allocation4 + $0x428] sm:$0xff]
        %v725 = vld [vmem:[#allocation4 + $0x430] sm:$0xff]
        %v726 = vld [vmem:[#allocation4 + $0x438] sm:$0xff]
        %v727 = vld [vmem:[#allocation4 + $0x440] sm:$0xff]
        %v728 = vld [vmem:[#allocation4 + $0x448] sm:$0xff]
        %v729 = vld [vmem:[#allocation4 + $0x450] sm:$0xff]
        %v730 = vld [vmem:[#allocation4 + $0x458] sm:$0xff]
        %v731 = vld [vmem:[#allocation4 + $0x460] sm:$0xff]
        %v732 = vld [vmem:[#allocation4 + $0x468] sm:$0xff]
        %v733 = vld [vmem:[#allocation4 + $0x470] sm:$0xff]
        %v734 = vld [vmem:[#allocation4 + $0x478] sm:$0xff]
        %v735 = vld [vmem:[#allocation4 + $0x480] sm:$0xff]
        %v736 = vld [vmem:[#allocation4 + $0x488] sm:$0xff]
        %v737 = vld [vmem:[#allocation4 + $0x490] sm:$0xff]
        %v738 = vld [vmem:[#allocation4 + $0x498] sm:$0xff]
        %v739 = vld [vmem:[#allocation4 + $0x4a0] sm:$0xff]
        %v740 = vld [vmem:[#allocation4 + $0x4a8] sm:$0xff]
        %v741 = vld [vmem:[#allocation4 + $0x4b0] sm:$0xff]
        %v742 = vld [vmem:[#allocation4 + $0x4b8] sm:$0xff]
        %v743 = vld [vmem:[#allocation4 + $0x4c0] sm:$0xff]
        %v744 = vld [vmem:[#allocation4 + $0x4c8] sm:$0xff]
        %v745 = vld [vmem:[#allocation4 + $0x4d0] sm:$0xff]
        %v746 = vld [vmem:[#allocation4 + $0x4d8] sm:$0xff]
        %v747 = vld [vmem:[#allocation4 + $0x4e0] sm:$0xff]
        %v748 = vld [vmem:[#allocation4 + $0x4e8] sm:$0xff]
        %v749 = vld [vmem:[#allocation4 + $0x4f0] sm:$0xff]
        %v750 = vld [vmem:[#allocation4 + $0x4f8] sm:$0xff]
        %v751 = vld [vmem:[#allocation4 + $0x500] sm:$0xff]
        %v752 = vld [vmem:[#allocation4 + $0x508] sm:$0xff]
        %v753 = vld [vmem:[#allocation4 + $0x510] sm:$0xff]
        %v754 = vld [vmem:[#allocation4 + $0x518] sm:$0xff]
        %v755 = vld [vmem:[#allocation4 + $0x520] sm:$0xff]
        %v756 = vld [vmem:[#allocation4 + $0x528] sm:$0xff]
        %v757 = vld [vmem:[#allocation4 + $0x530] sm:$0xff]
        %v758 = vld [vmem:[#allocation4 + $0x538] sm:$0xff]
        %v759 = vld [vmem:[#allocation4 + $0x540] sm:$0xff]
        %v760 = vld [vmem:[#allocation4 + $0x548] sm:$0xff]
        %v761 = vld [vmem:[#allocation4 + $0x550] sm:$0xff]
        %v762 = vld [vmem:[#allocation4 + $0x558] sm:$0xff]
        %v763 = vld [vmem:[#allocation4 + $0x560] sm:$0xff]
        %v764 = vld [vmem:[#allocation4 + $0x568] sm:$0xff]
        %v765 = vld [vmem:[#allocation4 + $0x570] sm:$0xff]
        %v766 = vld [vmem:[#allocation4 + $0x578] sm:$0xff]
        %v767 = vld [vmem:[#allocation4 + $0x580] sm:$0xff]
        %v768 = vld [vmem:[#allocation4 + $0x588] sm:$0xff]
        %v769 = vld [vmem:[#allocation4 + $0x590] sm:$0xff]
        %v770 = vld [vmem:[#allocation4 + $0x598] sm:$0xff]
        %v771 = vld [vmem:[#allocation4 + $0x5a0] sm:$0xff]
        %v772 = vld [vmem:[#allocation4 + $0x5a8] sm:$0xff]
        %v773 = vld [vmem:[#allocation4 + $0x5b0] sm:$0xff]
        %v774 = vld [vmem:[#allocation4 + $0x5b8] sm:$0xff]
        %v775 = vld [vmem:[#allocation4 + $0x5c0] sm:$0xff]
        %v776 = vld [vmem:[#allocation4 + $0x5c8] sm:$0xff]
        %v777 = vld [vmem:[#allocation4 + $0x5d0] sm:$0xff]
        %v778 = vld [vmem:[#allocation4 + $0x5d8] sm:$0xff]
        %v779 = vld [vmem:[#allocation4 + $0x5e0] sm:$0xff]
        %v780 = vld [vmem:[#allocation4 + $0x5e8] sm:$0xff]
        %v781 = vld [vmem:[#allocation4 + $0x5f0] sm:$0xff]
        %v782 = vld [vmem:[#allocation4 + $0x5f8] sm:$0xff]
        %v783 = vld [vmem:[#allocation4 + $0x600] sm:$0xff]
        %v784 = vld [vmem:[#allocation4 + $0x608] sm:$0xff]
        %v785 = vld [vmem:[#allocation4 + $0x610] sm:$0xff]
        %v786 = vld [vmem:[#allocation4 + $0x618] sm:$0xff]
        %v787 = vld [vmem:[#allocation4 + $0x620] sm:$0xff]
        %v788 = vld [vmem:[#allocation4 + $0x628] sm:$0xff]
        %v789 = vld [vmem:[#allocation4 + $0x630] sm:$0xff]
        %v790 = vld [vmem:[#allocation4 + $0x638] sm:$0xff]
        %v791 = vld [vmem:[#allocation4 + $0x640] sm:$0xff]
        %v792 = vld [vmem:[#allocation4 + $0x648] sm:$0xff]
        %v793 = vld [vmem:[#allocation4 + $0x650] sm:$0xff]
        %v794 = vld [vmem:[#allocation4 + $0x658] sm:$0xff]
        %v795 = vld [vmem:[#allocation4 + $0x660] sm:$0xff]
        %v796 = vld [vmem:[#allocation4 + $0x668] sm:$0xff]
        %v797 = vld [vmem:[#allocation4 + $0x670] sm:$0xff]
        %v798 = vld [vmem:[#allocation4 + $0x678] sm:$0xff]
        %v799 = vld [vmem:[#allocation4 + $0x680] sm:$0xff]
        %v800 = vld [vmem:[#allocation4 + $0x688] sm:$0xff]
        %v801 = vld [vmem:[#allocation4 + $0x690] sm:$0xff]
        %v802 = vld [vmem:[#allocation4 + $0x698] sm:$0xff]
        %v803 = vld [vmem:[#allocation4 + $0x6a0] sm:$0xff]
        %v804 = vld [vmem:[#allocation4 + $0x6a8] sm:$0xff]
        %v805 = vld [vmem:[#allocation4 + $0x6b0] sm:$0xff]
        %v806 = vld [vmem:[#allocation4 + $0x6b8] sm:$0xff]
        %v807 = vld [vmem:[#allocation4 + $0x6c0] sm:$0xff]
        %v808 = vld [vmem:[#allocation4 + $0x6c8] sm:$0xff]
        %v809 = vld [vmem:[#allocation4 + $0x6d0] sm:$0xff]
        %v810 = vld [vmem:[#allocation4 + $0x6d8] sm:$0xff]
        %v811 = vld [vmem:[#allocation4 + $0x6e0] sm:$0xff]
        %v812 = vld [vmem:[#allocation4 + $0x6e8] sm:$0xff]
        %v813 = vld [vmem:[#allocation4 + $0x6f0] sm:$0xff]
        %v814 = vld [vmem:[#allocation4 + $0x6f8] sm:$0xff]
        %v815 = vld [vmem:[#allocation4 + $0x700] sm:$0xff]
        %v816 = vld [vmem:[#allocation4 + $0x708] sm:$0xff]
        %v817 = vld [vmem:[#allocation4 + $0x710] sm:$0xff]
        %v818 = vld [vmem:[#allocation4 + $0x718] sm:$0xff]
        %v819 = vld [vmem:[#allocation4 + $0x720] sm:$0xff]
        %v820 = vld [vmem:[#allocation4 + $0x728] sm:$0xff]
        %v821 = vld [vmem:[#allocation4 + $0x730] sm:$0xff]
        %v822 = vld [vmem:[#allocation4 + $0x738] sm:$0xff]
        %v823 = vld [vmem:[#allocation4 + $0x740] sm:$0xff]
        %v824 = vld [vmem:[#allocation4 + $0x748] sm:$0xff]
        %v825 = vld [vmem:[#allocation4 + $0x750] sm:$0xff]
        %v826 = vld [vmem:[#allocation4 + $0x758] sm:$0xff]
        %v827 = vld [vmem:[#allocation4 + $0x760] sm:$0xff]
        %v828 = vld [vmem:[#allocation4 + $0x768] sm:$0xff]
        %v829 = vld [vmem:[#allocation4 + $0x770] sm:$0xff]
        %v830 = vld [vmem:[#allocation4 + $0x778] sm:$0xff]
        %v831 = vld [vmem:[#allocation4 + $0x780] sm:$0xff]
        %v832 = vld [vmem:[#allocation4 + $0x788] sm:$0xff]
        %v833 = vld [vmem:[#allocation4 + $0x790] sm:$0xff]
        %v834 = vld [vmem:[#allocation4 + $0x798] sm:$0xff]
        %v835 = vld [vmem:[#allocation4 + $0x7a0] sm:$0xff]
        %v836 = vld [vmem:[#allocation4 + $0x7a8] sm:$0xff]
        %v837 = vld [vmem:[#allocation4 + $0x7b0] sm:$0xff]
        %v838 = vld [vmem:[#allocation4 + $0x7b8] sm:$0xff]
        %v839 = vld [vmem:[#allocation4 + $0x7c0] sm:$0xff]
        %v840 = vld [vmem:[#allocation4 + $0x7c8] sm:$0xff]
        %v841 = vld [vmem:[#allocation4 + $0x7d0] sm:$0xff]
        %v842 = vld [vmem:[#allocation4 + $0x7d8] sm:$0xff]
        %v843 = vld [vmem:[#allocation4 + $0x7e0] sm:$0xff]
        %v844 = vld [vmem:[#allocation4 + $0x7e8] sm:$0xff]
        %v845 = vld [vmem:[#allocation4 + $0x7f0] sm:$0xff]
        %v846 = vld [vmem:[#allocation4 + $0x7f8] sm:$0xff]
        %v847 = vld [vmem:[#allocation4 + $0x800] sm:$0xff]
        %v848 = vld [vmem:[#allocation4 + $0x808] sm:$0xff]
        %v849 = vld [vmem:[#allocation4 + $0x810] sm:$0xff]
        %v850 = vld [vmem:[#allocation4 + $0x818] sm:$0xff]
        %v851 = vld [vmem:[#allocation4 + $0x820] sm:$0xff]
        %v852 = vld [vmem:[#allocation4 + $0x828] sm:$0xff]
        %v853 = vld [vmem:[#allocation4 + $0x830] sm:$0xff]
        %v854 = vld [vmem:[#allocation4 + $0x838] sm:$0xff]
        %v855 = vld [vmem:[#allocation4 + $0x840] sm:$0xff]
        %v856 = vld [vmem:[#allocation4 + $0x848] sm:$0xff]
        %v857 = vld [vmem:[#allocation4 + $0x850] sm:$0xff]
        %v858 = vld [vmem:[#allocation4 + $0x858] sm:$0xff]
        %v859 = vld [vmem:[#allocation4 + $0x860] sm:$0xff]
        %v860 = vld [vmem:[#allocation4 + $0x868] sm:$0xff]
        %v861 = vld [vmem:[#allocation4 + $0x870] sm:$0xff]
        %v862 = vld [vmem:[#allocation4 + $0x878] sm:$0xff]
        %v863 = vld [vmem:[#allocation4 + $0x880] sm:$0xff]
        %v864 = vld [vmem:[#allocation4 + $0x888] sm:$0xff]
        %v865 = vld [vmem:[#allocation4 + $0x890] sm:$0xff]
        %v866 = vld [vmem:[#allocation4 + $0x898] sm:$0xff]
        %v867 = vld [vmem:[#allocation4 + $0x8a0] sm:$0xff]
        %v868 = vld [vmem:[#allocation4 + $0x8a8] sm:$0xff]
        %v869 = vld [vmem:[#allocation4 + $0x8b0] sm:$0xff]
        %v870 = vld [vmem:[#allocation4 + $0x8b8] sm:$0xff]
        %v871 = vld [vmem:[#allocation4 + $0x8c0] sm:$0xff]
        %v872 = vld [vmem:[#allocation4 + $0x8c8] sm:$0xff]
        %v873 = vld [vmem:[#allocation4 + $0x8d0] sm:$0xff]
        %v874 = vld [vmem:[#allocation4 + $0x8d8] sm:$0xff]
        %v875 = vld [vmem:[#allocation4 + $0x8e0] sm:$0xff]
        %v876 = vld [vmem:[#allocation4 + $0x8e8] sm:$0xff]
        %v877 = vld [vmem:[#allocation4 + $0x8f0] sm:$0xff]
        %v878 = vld [vmem:[#allocation4 + $0x8f8] sm:$0xff]
        %v879 = vld [vmem:[#allocation4 + $0x900] sm:$0xff]
        %v880 = vld [vmem:[#allocation4 + $0x908] sm:$0xff]
        %v881 = vld [vmem:[#allocation4 + $0x910] sm:$0xff]
        %v882 = vld [vmem:[#allocation4 + $0x918] sm:$0xff]
        %v883 = vld [vmem:[#allocation4 + $0x920] sm:$0xff]
        %v884 = vld [vmem:[#allocation4 + $0x928] sm:$0xff]
        %v885 = vld [vmem:[#allocation4 + $0x930] sm:$0xff]
        %v886 = vld [vmem:[#allocation4 + $0x938] sm:$0xff]
        %v887 = vld [vmem:[#allocation4 + $0x940] sm:$0xff]
        %v888 = vld [vmem:[#allocation4 + $0x948] sm:$0xff]
        %v889 = vld [vmem:[#allocation4 + $0x950] sm:$0xff]
        %v890 = vld [vmem:[#allocation4 + $0x958] sm:$0xff]
        %v891 = vld [vmem:[#allocation4 + $0x960] sm:$0xff]
        %v892 = vld [vmem:[#allocation4 + $0x968] sm:$0xff]
        %v893 = vld [vmem:[#allocation4 + $0x970] sm:$0xff]
        %v894 = vld [vmem:[#allocation4 + $0x978] sm:$0xff]
        %v895 = vld [vmem:[#allocation4 + $0x980] sm:$0xff]
        %v896 = vld [vmem:[#allocation4 + $0x988] sm:$0xff]
        %v897 = vld [vmem:[#allocation4 + $0x990] sm:$0xff]
        %v898 = vld [vmem:[#allocation4 + $0x998] sm:$0xff]
        %v899 = vld [vmem:[#allocation4 + $0x9a0] sm:$0xff]
        %v900 = vld [vmem:[#allocation4 + $0x9a8] sm:$0xff]
        %v901 = vld [vmem:[#allocation4 + $0x9b0] sm:$0xff]
        %v902 = vld [vmem:[#allocation4 + $0x9b8] sm:$0xff]
        %v903 = vld [vmem:[#allocation4 + $0x9c0] sm:$0xff]
        %v904 = vld [vmem:[#allocation4 + $0x9c8] sm:$0xff]
        %v905 = vld [vmem:[#allocation4 + $0x9d0] sm:$0xff]
        %v906 = vld [vmem:[#allocation4 + $0x9d8] sm:$0xff]
        %v907 = vld [vmem:[#allocation4 + $0x9e0] sm:$0xff]
        %v908 = vld [vmem:[#allocation4 + $0x9e8] sm:$0xff]
        %v909 = vld [vmem:[#allocation4 + $0x9f0] sm:$0xff]
        %v910 = vld [vmem:[#allocation4 + $0x9f8] sm:$0xff]
        %v911 = vld [vmem:[#allocation4 + $0xa00] sm:$0xff]
        %v912 = vld [vmem:[#allocation4 + $0xa08] sm:$0xff]
        %v913 = vld [vmem:[#allocation4 + $0xa10] sm:$0xff]
        %v914 = vld [vmem:[#allocation4 + $0xa18] sm:$0xff]
        %v915 = vld [vmem:[#allocation4 + $0xa20] sm:$0xff]
        %v916 = vld [vmem:[#allocation4 + $0xa28] sm:$0xff]
        %v917 = vld [vmem:[#allocation4 + $0xa30] sm:$0xff]
        %v918 = vld [vmem:[#allocation4 + $0xa38] sm:$0xff]
        %v919 = vld [vmem:[#allocation4 + $0xa40] sm:$0xff]
        %v920 = vld [vmem:[#allocation4 + $0xa48] sm:$0xff]
        %v921 = vld [vmem:[#allocation4 + $0xa50] sm:$0xff]
        %v922 = vld [vmem:[#allocation4 + $0xa58] sm:$0xff]
        %v923 = vld [vmem:[#allocation4 + $0xa60] sm:$0xff]
        %v924 = vld [vmem:[#allocation4 + $0xa68] sm:$0xff]
        %v925 = vld [vmem:[#allocation4 + $0xa70] sm:$0xff]
        %v926 = vld [vmem:[#allocation4 + $0xa78] sm:$0xff]
        %v927 = vld [vmem:[#allocation4 + $0xa80] sm:$0xff]
        %v928 = vld [vmem:[#allocation4 + $0xa88] sm:$0xff]
        %v929 = vld [vmem:[#allocation4 + $0xa90] sm:$0xff]
        %v930 = vld [vmem:[#allocation4 + $0xa98] sm:$0xff]
        %v931 = vld [vmem:[#allocation4 + $0xaa0] sm:$0xff]
        %v932 = vld [vmem:[#allocation4 + $0xaa8] sm:$0xff]
        %v933 = vld [vmem:[#allocation4 + $0xab0] sm:$0xff]
        %v934 = vld [vmem:[#allocation4 + $0xab8] sm:$0xff]
        %v935 = vld [vmem:[#allocation4 + $0xac0] sm:$0xff]
        %v936 = vld [vmem:[#allocation4 + $0xac8] sm:$0xff]
        %v937 = vld [vmem:[#allocation4 + $0xad0] sm:$0xff]
        %v938 = vld [vmem:[#allocation4 + $0xad8] sm:$0xff]
        %v939 = vld [vmem:[#allocation4 + $0xae0] sm:$0xff]
        %v940 = vld [vmem:[#allocation4 + $0xae8] sm:$0xff]
        %v941 = vld [vmem:[#allocation4 + $0xaf0] sm:$0xff]
        %v942 = vld [vmem:[#allocation4 + $0xaf8] sm:$0xff]
        %v943 = vld [vmem:[#allocation4 + $0xb00] sm:$0xff]
        %v944 = vld [vmem:[#allocation4 + $0xb08] sm:$0xff]
        %v945 = vld [vmem:[#allocation4 + $0xb10] sm:$0xff]
        %v946 = vld [vmem:[#allocation4 + $0xb18] sm:$0xff]
        %v947 = vld [vmem:[#allocation4 + $0xb20] sm:$0xff]
        %v948 = vld [vmem:[#allocation4 + $0xb28] sm:$0xff]
        %v949 = vld [vmem:[#allocation4 + $0xb30] sm:$0xff]
        %v950 = vld [vmem:[#allocation4 + $0xb38] sm:$0xff]
        %v951 = vld [vmem:[#allocation4 + $0xb40] sm:$0xff]
        %v952 = vld [vmem:[#allocation4 + $0xb48] sm:$0xff]
        %v953 = vld [vmem:[#allocation4 + $0xb50] sm:$0xff]
        %v954 = vld [vmem:[#allocation4 + $0xb58] sm:$0xff]
        %v955 = vld [vmem:[#allocation4 + $0xb60] sm:$0xff]
        %v956 = vld [vmem:[#allocation4 + $0xb68] sm:$0xff]
        %v957 = vld [vmem:[#allocation4 + $0xb70] sm:$0xff]
        %v958 = vld [vmem:[#allocation4 + $0xb78] sm:$0xff]
        %v959 = vld [vmem:[#allocation4 + $0xb80] sm:$0xff]
        %v960 = vld [vmem:[#allocation4 + $0xb88] sm:$0xff]
        %v961 = vld [vmem:[#allocation4 + $0xb90] sm:$0xff]
        %v962 = vld [vmem:[#allocation4 + $0xb98] sm:$0xff]
        %v963 = vld [vmem:[#allocation4 + $0xba0] sm:$0xff]
        %v964 = vld [vmem:[#allocation4 + $0xba8] sm:$0xff]
        %v965 = vld [vmem:[#allocation4 + $0xbb0] sm:$0xff]
        %v966 = vld [vmem:[#allocation4 + $0xbb8] sm:$0xff]
        %v967 = vld [vmem:[#allocation4 + $0xbc0] sm:$0xff]
        %v968 = vld [vmem:[#allocation4 + $0xbc8] sm:$0xff]
        %v969 = vld [vmem:[#allocation4 + $0xbd0] sm:$0xff]
        %v970 = vld [vmem:[#allocation4 + $0xbd8] sm:$0xff]
        %v971 = vld [vmem:[#allocation4 + $0xbe0] sm:$0xff]
        %v972 = vld [vmem:[#allocation4 + $0xbe8] sm:$0xff]
        %v973 = vld [vmem:[#allocation4 + $0xbf0] sm:$0xff]
        %v974 = vld [vmem:[#allocation4 + $0xbf8] sm:$0xff]
        %v975 = vld [vmem:[#allocation2] ss:$8 sm:$0xf]
        %v976 = vld [vmem:[#allocation2] ss:$8 sm:$0x30]
        %v977 = vor.u32 %v975, %v976
        %v979 = vlaneseq
        %v980 = vshrl.u32 %v979, 7
        %v981 = vsub.s32 0, %v980
        %v982 = vrot.slane %v977, %v981
        %v983 = vlaneseq
        %v984 = vshrl.u32 %v983, 7
        %v985 = vsub.s32 1, %v984
        %v986 = vrot.slane %v977, %v985
        %v987 = vlaneseq
        %v988 = vshrl.u32 %v987, 7
        %v989 = vsub.s32 2, %v988
        %v990 = vrot.slane %v977, %v989
        %v991 = vlaneseq
        %v992 = vshrl.u32 %v991, 7
        %v993 = vsub.s32 3, %v992
        %v994 = vrot.slane %v977, %v993
        %v995 = vlaneseq
        %v996 = vshrl.u32 %v995, 7
        %v997 = vsub.s32 4, %v996
        %v998 = vrot.slane %v977, %v997
        %v999 = vlaneseq
        %v1000 = vshrl.u32 %v999, 7
        %v1001 = vsub.s32 5, %v1000
        %v1002 = vrot.slane %v977, %v1001
        %v1017 = vunpack.c.l.b16 %v583
        %v1018 = vunpack.c.h.b16 %v583
        %v1019 = vunpack.c.l.b16 %v584
        %v1020 = vunpack.c.h.b16 %v584
        %v1021 = vunpack.c.l.b16 %v585
        %v1022 = vunpack.c.h.b16 %v585
        %v1023 = vunpack.c.l.b16 %v586
        %v1024 = vunpack.c.h.b16 %v586
        %v1025 = vunpack.c.l.b16 %v587
        %v1026 = vunpack.c.h.b16 %v587
        %v1027 = vunpack.c.l.b16 %v588
        %v1028 = vunpack.c.h.b16 %v588
        %v1029 = vunpack.c.l.b16 %v589
        %v1030 = vunpack.c.h.b16 %v589
        %v1031 = vunpack.c.l.b16 %v590
        %v1032 = vunpack.c.h.b16 %v590
        %v1033 = vpack.c.b16 %v1025, %v1017
        %v1034 = vpack.c.b16 %v1026, %v1018
        %v1035 = vpack.c.b16 %v1027, %v1019
        %v1036 = vpack.c.b16 %v1028, %v1020
        %v1037 = vpack.c.b16 %v1029, %v1021
        %v1038 = vpack.c.b16 %v1030, %v1022
        %v1039 = vpack.c.b16 %v1031, %v1023
        %v1040 = vpack.c.b16 %v1032, %v1024
        %v1433 = vunpack.c.l.b16 %v591
        %v1434 = vunpack.c.h.b16 %v591
        %v1435 = vunpack.c.l.b16 %v592
        %v1436 = vunpack.c.h.b16 %v592
        %v1437 = vunpack.c.l.b16 %v593
        %v1438 = vunpack.c.h.b16 %v593
        %v1439 = vunpack.c.l.b16 %v594
        %v1440 = vunpack.c.h.b16 %v594
        %v1441 = vunpack.c.l.b16 %v595
        %v1442 = vunpack.c.h.b16 %v595
        %v1443 = vunpack.c.l.b16 %v596
        %v1444 = vunpack.c.h.b16 %v596
        %v1445 = vunpack.c.l.b16 %v597
        %v1446 = vunpack.c.h.b16 %v597
        %v1447 = vunpack.c.l.b16 %v598
        %v1448 = vunpack.c.h.b16 %v598
        %v1449 = vunpack.c.l.b16 %v599
        %v1450 = vunpack.c.h.b16 %v599
        %v1451 = vunpack.c.l.b16 %v600
        %v1452 = vunpack.c.h.b16 %v600
        %v1453 = vunpack.c.l.b16 %v601
        %v1454 = vunpack.c.h.b16 %v601
        %v1455 = vunpack.c.l.b16 %v602
        %v1456 = vunpack.c.h.b16 %v602
        %v1457 = vunpack.c.l.b16 %v603
        %v1458 = vunpack.c.h.b16 %v603
        %v1459 = vunpack.c.l.b16 %v604
        %v1460 = vunpack.c.h.b16 %v604
        %v1461 = vunpack.c.l.b16 %v605
        %v1462 = vunpack.c.h.b16 %v605
        %v1463 = vunpack.c.l.b16 %v606
        %v1464 = vunpack.c.h.b16 %v606
        %v1465 = vunpack.c.l.b16 %v607
        %v1466 = vunpack.c.h.b16 %v607
        %v1467 = vunpack.c.l.b16 %v608
        %v1468 = vunpack.c.h.b16 %v608
        %v1469 = vunpack.c.l.b16 %v609
        %v1470 = vunpack.c.h.b16 %v609
        %v1471 = vunpack.c.l.b16 %v610
        %v1472 = vunpack.c.h.b16 %v610
        %v1473 = vunpack.c.l.b16 %v611
        %v1474 = vunpack.c.h.b16 %v611
        %v1475 = vunpack.c.l.b16 %v612
        %v1476 = vunpack.c.h.b16 %v612
        %v1477 = vunpack.c.l.b16 %v613
        %v1478 = vunpack.c.h.b16 %v613
        %v1479 = vunpack.c.l.b16 %v614
        %v1480 = vunpack.c.h.b16 %v614
        %v1481 = vunpack.c.l.b16 %v615
        %v1482 = vunpack.c.h.b16 %v615
        %v1483 = vunpack.c.l.b16 %v616
        %v1484 = vunpack.c.h.b16 %v616
        %v1485 = vunpack.c.l.b16 %v617
        %v1486 = vunpack.c.h.b16 %v617
        %v1487 = vunpack.c.l.b16 %v618
        %v1488 = vunpack.c.h.b16 %v618
        %v1489 = vunpack.c.l.b16 %v619
        %v1490 = vunpack.c.h.b16 %v619
        %v1491 = vunpack.c.l.b16 %v620
        %v1492 = vunpack.c.h.b16 %v620
        %v1493 = vunpack.c.l.b16 %v621
        %v1494 = vunpack.c.h.b16 %v621
        %v1495 = vunpack.c.l.b16 %v622
        %v1496 = vunpack.c.h.b16 %v622
        %v1497 = vunpack.c.l.b16 %v623
        %v1498 = vunpack.c.h.b16 %v623
        %v1499 = vunpack.c.l.b16 %v624
        %v1500 = vunpack.c.h.b16 %v624
        %v1501 = vunpack.c.l.b16 %v625
        %v1502 = vunpack.c.h.b16 %v625
        %v1503 = vunpack.c.l.b16 %v626
        %v1504 = vunpack.c.h.b16 %v626
        %v1505 = vunpack.c.l.b16 %v627
        %v1506 = vunpack.c.h.b16 %v627
        %v1507 = vunpack.c.l.b16 %v628
        %v1508 = vunpack.c.h.b16 %v628
        %v1509 = vunpack.c.l.b16 %v629
        %v1510 = vunpack.c.h.b16 %v629
        %v1511 = vunpack.c.l.b16 %v630
        %v1512 = vunpack.c.h.b16 %v630
        %v1513 = vunpack.c.l.b16 %v631
        %v1514 = vunpack.c.h.b16 %v631
        %v1515 = vunpack.c.l.b16 %v632
        %v1516 = vunpack.c.h.b16 %v632
        %v1517 = vunpack.c.l.b16 %v633
        %v1518 = vunpack.c.h.b16 %v633
        %v1519 = vunpack.c.l.b16 %v634
        %v1520 = vunpack.c.h.b16 %v634
        %v1521 = vunpack.c.l.b16 %v635
        %v1522 = vunpack.c.h.b16 %v635
        %v1523 = vunpack.c.l.b16 %v636
        %v1524 = vunpack.c.h.b16 %v636
        %v1525 = vunpack.c.l.b16 %v637
        %v1526 = vunpack.c.h.b16 %v637
        %v1527 = vunpack.c.l.b16 %v638
        %v1528 = vunpack.c.h.b16 %v638
        %v1529 = vunpack.c.l.b16 %v639
        %v1530 = vunpack.c.h.b16 %v639
        %v1531 = vunpack.c.l.b16 %v640
        %v1532 = vunpack.c.h.b16 %v640
        %v1533 = vunpack.c.l.b16 %v641
        %v1534 = vunpack.c.h.b16 %v641
        %v1535 = vunpack.c.l.b16 %v642
        %v1536 = vunpack.c.h.b16 %v642
        %v1537 = vunpack.c.l.b16 %v643
        %v1538 = vunpack.c.h.b16 %v643
        %v1539 = vunpack.c.l.b16 %v644
        %v1540 = vunpack.c.h.b16 %v644
        %v1541 = vunpack.c.l.b16 %v645
        %v1542 = vunpack.c.h.b16 %v645
        %v1543 = vunpack.c.l.b16 %v646
        %v1544 = vunpack.c.h.b16 %v646
        %v1545 = vunpack.c.l.b16 %v647
        %v1546 = vunpack.c.h.b16 %v647
        %v1547 = vunpack.c.l.b16 %v648
        %v1548 = vunpack.c.h.b16 %v648
        %v1549 = vunpack.c.l.b16 %v649
        %v1550 = vunpack.c.h.b16 %v649
        %v1551 = vunpack.c.l.b16 %v650
        %v1552 = vunpack.c.h.b16 %v650
        %v1553 = vunpack.c.l.b16 %v651
        %v1554 = vunpack.c.h.b16 %v651
        %v1555 = vunpack.c.l.b16 %v652
        %v1556 = vunpack.c.h.b16 %v652
        %v1557 = vunpack.c.l.b16 %v653
        %v1558 = vunpack.c.h.b16 %v653
        %v1559 = vunpack.c.l.b16 %v654
        %v1560 = vunpack.c.h.b16 %v654
        %v1561 = vunpack.c.l.b16 %v655
        %v1562 = vunpack.c.h.b16 %v655
        %v1563 = vunpack.c.l.b16 %v656
        %v1564 = vunpack.c.h.b16 %v656
        %v1565 = vunpack.c.l.b16 %v657
        %v1566 = vunpack.c.h.b16 %v657
        %v1567 = vunpack.c.l.b16 %v658
        %v1568 = vunpack.c.h.b16 %v658
        %v1569 = vunpack.c.l.b16 %v659
        %v1570 = vunpack.c.h.b16 %v659
        %v1571 = vunpack.c.l.b16 %v660
        %v1572 = vunpack.c.h.b16 %v660
        %v1573 = vunpack.c.l.b16 %v661
        %v1574 = vunpack.c.h.b16 %v661
        %v1575 = vunpack.c.l.b16 %v662
        %v1576 = vunpack.c.h.b16 %v662
        %v1577 = vunpack.c.l.b16 %v663
        %v1578 = vunpack.c.h.b16 %v663
        %v1579 = vunpack.c.l.b16 %v664
        %v1580 = vunpack.c.h.b16 %v664
        %v1581 = vunpack.c.l.b16 %v665
        %v1582 = vunpack.c.h.b16 %v665
        %v1583 = vunpack.c.l.b16 %v666
        %v1584 = vunpack.c.h.b16 %v666
        %v1585 = vunpack.c.l.b16 %v667
        %v1586 = vunpack.c.h.b16 %v667
        %v1587 = vunpack.c.l.b16 %v668
        %v1588 = vunpack.c.h.b16 %v668
        %v1589 = vunpack.c.l.b16 %v669
        %v1590 = vunpack.c.h.b16 %v669
        %v1591 = vunpack.c.l.b16 %v670
        %v1592 = vunpack.c.h.b16 %v670
        %v1593 = vunpack.c.l.b16 %v671
        %v1594 = vunpack.c.h.b16 %v671
        %v1595 = vunpack.c.l.b16 %v672
        %v1596 = vunpack.c.h.b16 %v672
        %v1597 = vunpack.c.l.b16 %v673
        %v1598 = vunpack.c.h.b16 %v673
        %v1599 = vunpack.c.l.b16 %v674
        %v1600 = vunpack.c.h.b16 %v674
        %v1601 = vunpack.c.l.b16 %v675
        %v1602 = vunpack.c.h.b16 %v675
        %v1603 = vunpack.c.l.b16 %v676
        %v1604 = vunpack.c.h.b16 %v676
        %v1605 = vunpack.c.l.b16 %v677
        %v1606 = vunpack.c.h.b16 %v677
        %v1607 = vunpack.c.l.b16 %v678
        %v1608 = vunpack.c.h.b16 %v678
        %v1609 = vunpack.c.l.b16 %v679
        %v1610 = vunpack.c.h.b16 %v679
        %v1611 = vunpack.c.l.b16 %v680
        %v1612 = vunpack.c.h.b16 %v680
        %v1613 = vunpack.c.l.b16 %v681
        %v1614 = vunpack.c.h.b16 %v681
        %v1615 = vunpack.c.l.b16 %v682
        %v1616 = vunpack.c.h.b16 %v682
        %v1617 = vunpack.c.l.b16 %v683
        %v1618 = vunpack.c.h.b16 %v683
        %v1619 = vunpack.c.l.b16 %v684
        %v1620 = vunpack.c.h.b16 %v684
        %v1621 = vunpack.c.l.b16 %v685
        %v1622 = vunpack.c.h.b16 %v685
        %v1623 = vunpack.c.l.b16 %v686
        %v1624 = vunpack.c.h.b16 %v686
        %v1625 = vunpack.c.l.b16 %v687
        %v1626 = vunpack.c.h.b16 %v687
        %v1627 = vunpack.c.l.b16 %v688
        %v1628 = vunpack.c.h.b16 %v688
        %v1629 = vunpack.c.l.b16 %v689
        %v1630 = vunpack.c.h.b16 %v689
        %v1631 = vunpack.c.l.b16 %v690
        %v1632 = vunpack.c.h.b16 %v690
        %v1633 = vunpack.c.l.b16 %v691
        %v1634 = vunpack.c.h.b16 %v691
        %v1635 = vunpack.c.l.b16 %v692
        %v1636 = vunpack.c.h.b16 %v692
        %v1637 = vunpack.c.l.b16 %v693
        %v1638 = vunpack.c.h.b16 %v693
        %v1639 = vunpack.c.l.b16 %v694
        %v1640 = vunpack.c.h.b16 %v694
        %v1641 = vunpack.c.l.b16 %v695
        %v1642 = vunpack.c.h.b16 %v695
        %v1643 = vunpack.c.l.b16 %v696
        %v1644 = vunpack.c.h.b16 %v696
        %v1645 = vunpack.c.l.b16 %v697
        %v1646 = vunpack.c.h.b16 %v697
        %v1647 = vunpack.c.l.b16 %v698
        %v1648 = vunpack.c.h.b16 %v698
        %v1649 = vunpack.c.l.b16 %v699
        %v1650 = vunpack.c.h.b16 %v699
        %v1651 = vunpack.c.l.b16 %v700
        %v1652 = vunpack.c.h.b16 %v700
        %v1653 = vunpack.c.l.b16 %v701
        %v1654 = vunpack.c.h.b16 %v701
        %v1655 = vunpack.c.l.b16 %v702
        %v1656 = vunpack.c.h.b16 %v702
        %v1657 = vunpack.c.l.b16 %v703
        %v1658 = vunpack.c.h.b16 %v703
        %v1659 = vunpack.c.l.b16 %v704
        %v1660 = vunpack.c.h.b16 %v704
        %v1661 = vunpack.c.l.b16 %v705
        %v1662 = vunpack.c.h.b16 %v705
        %v1663 = vunpack.c.l.b16 %v706
        %v1664 = vunpack.c.h.b16 %v706
        %v1665 = vunpack.c.l.b16 %v707
        %v1666 = vunpack.c.h.b16 %v707
        %v1667 = vunpack.c.l.b16 %v708
        %v1668 = vunpack.c.h.b16 %v708
        %v1669 = vunpack.c.l.b16 %v709
        %v1670 = vunpack.c.h.b16 %v709
        %v1671 = vunpack.c.l.b16 %v710
        %v1672 = vunpack.c.h.b16 %v710
        %v1673 = vunpack.c.l.b16 %v711
        %v1674 = vunpack.c.h.b16 %v711
        %v1675 = vunpack.c.l.b16 %v712
        %v1676 = vunpack.c.h.b16 %v712
        %v1677 = vunpack.c.l.b16 %v713
        %v1678 = vunpack.c.h.b16 %v713
        %v1679 = vunpack.c.l.b16 %v714
        %v1680 = vunpack.c.h.b16 %v714
        %v1681 = vunpack.c.l.b16 %v715
        %v1682 = vunpack.c.h.b16 %v715
        %v1683 = vunpack.c.l.b16 %v716
        %v1684 = vunpack.c.h.b16 %v716
        %v1685 = vunpack.c.l.b16 %v717
        %v1686 = vunpack.c.h.b16 %v717
        %v1687 = vunpack.c.l.b16 %v718
        %v1688 = vunpack.c.h.b16 %v718
        %v1689 = vunpack.c.l.b16 %v719
        %v1690 = vunpack.c.h.b16 %v719
        %v1691 = vunpack.c.l.b16 %v720
        %v1692 = vunpack.c.h.b16 %v720
        %v1693 = vunpack.c.l.b16 %v721
        %v1694 = vunpack.c.h.b16 %v721
        %v1695 = vunpack.c.l.b16 %v722
        %v1696 = vunpack.c.h.b16 %v722
        %v1697 = vunpack.c.l.b16 %v723
        %v1698 = vunpack.c.h.b16 %v723
        %v1699 = vunpack.c.l.b16 %v724
        %v1700 = vunpack.c.h.b16 %v724
        %v1701 = vunpack.c.l.b16 %v725
        %v1702 = vunpack.c.h.b16 %v725
        %v1703 = vunpack.c.l.b16 %v726
        %v1704 = vunpack.c.h.b16 %v726
        %v1705 = vunpack.c.l.b16 %v727
        %v1706 = vunpack.c.h.b16 %v727
        %v1707 = vunpack.c.l.b16 %v728
        %v1708 = vunpack.c.h.b16 %v728
        %v1709 = vunpack.c.l.b16 %v729
        %v1710 = vunpack.c.h.b16 %v729
        %v1711 = vunpack.c.l.b16 %v730
        %v1712 = vunpack.c.h.b16 %v730
        %v1713 = vunpack.c.l.b16 %v731
        %v1714 = vunpack.c.h.b16 %v731
        %v1715 = vunpack.c.l.b16 %v732
        %v1716 = vunpack.c.h.b16 %v732
        %v1717 = vunpack.c.l.b16 %v733
        %v1718 = vunpack.c.h.b16 %v733
        %v1719 = vunpack.c.l.b16 %v734
        %v1720 = vunpack.c.h.b16 %v734
        %v1721 = vunpack.c.l.b16 %v735
        %v1722 = vunpack.c.h.b16 %v735
        %v1723 = vunpack.c.l.b16 %v736
        %v1724 = vunpack.c.h.b16 %v736
        %v1725 = vunpack.c.l.b16 %v737
        %v1726 = vunpack.c.h.b16 %v737
        %v1727 = vunpack.c.l.b16 %v738
        %v1728 = vunpack.c.h.b16 %v738
        %v1729 = vunpack.c.l.b16 %v739
        %v1730 = vunpack.c.h.b16 %v739
        %v1731 = vunpack.c.l.b16 %v740
        %v1732 = vunpack.c.h.b16 %v740
        %v1733 = vunpack.c.l.b16 %v741
        %v1734 = vunpack.c.h.b16 %v741
        %v1735 = vunpack.c.l.b16 %v742
        %v1736 = vunpack.c.h.b16 %v742
        %v1737 = vunpack.c.l.b16 %v743
        %v1738 = vunpack.c.h.b16 %v743
        %v1739 = vunpack.c.l.b16 %v744
        %v1740 = vunpack.c.h.b16 %v744
        %v1741 = vunpack.c.l.b16 %v745
        %v1742 = vunpack.c.h.b16 %v745
        %v1743 = vunpack.c.l.b16 %v746
        %v1744 = vunpack.c.h.b16 %v746
        %v1745 = vunpack.c.l.b16 %v747
        %v1746 = vunpack.c.h.b16 %v747
        %v1747 = vunpack.c.l.b16 %v748
        %v1748 = vunpack.c.h.b16 %v748
        %v1749 = vunpack.c.l.b16 %v749
        %v1750 = vunpack.c.h.b16 %v749
        %v1751 = vunpack.c.l.b16 %v750
        %v1752 = vunpack.c.h.b16 %v750
        %v1753 = vunpack.c.l.b16 %v751
        %v1754 = vunpack.c.h.b16 %v751
        %v1755 = vunpack.c.l.b16 %v752
        %v1756 = vunpack.c.h.b16 %v752
        %v1757 = vunpack.c.l.b16 %v753
        %v1758 = vunpack.c.h.b16 %v753
        %v1759 = vunpack.c.l.b16 %v754
        %v1760 = vunpack.c.h.b16 %v754
        %v1761 = vunpack.c.l.b16 %v755
        %v1762 = vunpack.c.h.b16 %v755
        %v1763 = vunpack.c.l.b16 %v756
        %v1764 = vunpack.c.h.b16 %v756
        %v1765 = vunpack.c.l.b16 %v757
        %v1766 = vunpack.c.h.b16 %v757
        %v1767 = vunpack.c.l.b16 %v758
        %v1768 = vunpack.c.h.b16 %v758
        %v1769 = vunpack.c.l.b16 %v759
        %v1770 = vunpack.c.h.b16 %v759
        %v1771 = vunpack.c.l.b16 %v760
        %v1772 = vunpack.c.h.b16 %v760
        %v1773 = vunpack.c.l.b16 %v761
        %v1774 = vunpack.c.h.b16 %v761
        %v1775 = vunpack.c.l.b16 %v762
        %v1776 = vunpack.c.h.b16 %v762
        %v1777 = vunpack.c.l.b16 %v763
        %v1778 = vunpack.c.h.b16 %v763
        %v1779 = vunpack.c.l.b16 %v764
        %v1780 = vunpack.c.h.b16 %v764
        %v1781 = vunpack.c.l.b16 %v765
        %v1782 = vunpack.c.h.b16 %v765
        %v1783 = vunpack.c.l.b16 %v766
        %v1784 = vunpack.c.h.b16 %v766
        %v1785 = vunpack.c.l.b16 %v767
        %v1786 = vunpack.c.h.b16 %v767
        %v1787 = vunpack.c.l.b16 %v768
        %v1788 = vunpack.c.h.b16 %v768
        %v1789 = vunpack.c.l.b16 %v769
        %v1790 = vunpack.c.h.b16 %v769
        %v1791 = vunpack.c.l.b16 %v770
        %v1792 = vunpack.c.h.b16 %v770
        %v1793 = vunpack.c.l.b16 %v771
        %v1794 = vunpack.c.h.b16 %v771
        %v1795 = vunpack.c.l.b16 %v772
        %v1796 = vunpack.c.h.b16 %v772
        %v1797 = vunpack.c.l.b16 %v773
        %v1798 = vunpack.c.h.b16 %v773
        %v1799 = vunpack.c.l.b16 %v774
        %v1800 = vunpack.c.h.b16 %v774
        %v1801 = vunpack.c.l.b16 %v775
        %v1802 = vunpack.c.h.b16 %v775
        %v1803 = vunpack.c.l.b16 %v776
        %v1804 = vunpack.c.h.b16 %v776
        %v1805 = vunpack.c.l.b16 %v777
        %v1806 = vunpack.c.h.b16 %v777
        %v1807 = vunpack.c.l.b16 %v778
        %v1808 = vunpack.c.h.b16 %v778
        %v1809 = vunpack.c.l.b16 %v779
        %v1810 = vunpack.c.h.b16 %v779
        %v1811 = vunpack.c.l.b16 %v780
        %v1812 = vunpack.c.h.b16 %v780
        %v1813 = vunpack.c.l.b16 %v781
        %v1814 = vunpack.c.h.b16 %v781
        %v1815 = vunpack.c.l.b16 %v782
        %v1816 = vunpack.c.h.b16 %v782
        %v1817 = vunpack.c.l.b16 %v783
        %v1818 = vunpack.c.h.b16 %v783
        %v1819 = vunpack.c.l.b16 %v784
        %v1820 = vunpack.c.h.b16 %v784
        %v1821 = vunpack.c.l.b16 %v785
        %v1822 = vunpack.c.h.b16 %v785
        %v1823 = vunpack.c.l.b16 %v786
        %v1824 = vunpack.c.h.b16 %v786
        %v1825 = vunpack.c.l.b16 %v787
        %v1826 = vunpack.c.h.b16 %v787
        %v1827 = vunpack.c.l.b16 %v788
        %v1828 = vunpack.c.h.b16 %v788
        %v1829 = vunpack.c.l.b16 %v789
        %v1830 = vunpack.c.h.b16 %v789
        %v1831 = vunpack.c.l.b16 %v790
        %v1832 = vunpack.c.h.b16 %v790
        %v1833 = vunpack.c.l.b16 %v791
        %v1834 = vunpack.c.h.b16 %v791
        %v1835 = vunpack.c.l.b16 %v792
        %v1836 = vunpack.c.h.b16 %v792
        %v1837 = vunpack.c.l.b16 %v793
        %v1838 = vunpack.c.h.b16 %v793
        %v1839 = vunpack.c.l.b16 %v794
        %v1840 = vunpack.c.h.b16 %v794
        %v1841 = vunpack.c.l.b16 %v795
        %v1842 = vunpack.c.h.b16 %v795
        %v1843 = vunpack.c.l.b16 %v796
        %v1844 = vunpack.c.h.b16 %v796
        %v1845 = vunpack.c.l.b16 %v797
        %v1846 = vunpack.c.h.b16 %v797
        %v1847 = vunpack.c.l.b16 %v798
        %v1848 = vunpack.c.h.b16 %v798
        %v1849 = vunpack.c.l.b16 %v799
        %v1850 = vunpack.c.h.b16 %v799
        %v1851 = vunpack.c.l.b16 %v800
        %v1852 = vunpack.c.h.b16 %v800
        %v1853 = vunpack.c.l.b16 %v801
        %v1854 = vunpack.c.h.b16 %v801
        %v1855 = vunpack.c.l.b16 %v802
        %v1856 = vunpack.c.h.b16 %v802
        %v1857 = vunpack.c.l.b16 %v803
        %v1858 = vunpack.c.h.b16 %v803
        %v1859 = vunpack.c.l.b16 %v804
        %v1860 = vunpack.c.h.b16 %v804
        %v1861 = vunpack.c.l.b16 %v805
        %v1862 = vunpack.c.h.b16 %v805
        %v1863 = vunpack.c.l.b16 %v806
        %v1864 = vunpack.c.h.b16 %v806
        %v1865 = vunpack.c.l.b16 %v807
        %v1866 = vunpack.c.h.b16 %v807
        %v1867 = vunpack.c.l.b16 %v808
        %v1868 = vunpack.c.h.b16 %v808
        %v1869 = vunpack.c.l.b16 %v809
        %v1870 = vunpack.c.h.b16 %v809
        %v1871 = vunpack.c.l.b16 %v810
        %v1872 = vunpack.c.h.b16 %v810
        %v1873 = vunpack.c.l.b16 %v811
        %v1874 = vunpack.c.h.b16 %v811
        %v1875 = vunpack.c.l.b16 %v812
        %v1876 = vunpack.c.h.b16 %v812
        %v1877 = vunpack.c.l.b16 %v813
        %v1878 = vunpack.c.h.b16 %v813
        %v1879 = vunpack.c.l.b16 %v814
        %v1880 = vunpack.c.h.b16 %v814
        %v1881 = vunpack.c.l.b16 %v815
        %v1882 = vunpack.c.h.b16 %v815
        %v1883 = vunpack.c.l.b16 %v816
        %v1884 = vunpack.c.h.b16 %v816
        %v1885 = vunpack.c.l.b16 %v817
        %v1886 = vunpack.c.h.b16 %v817
        %v1887 = vunpack.c.l.b16 %v818
        %v1888 = vunpack.c.h.b16 %v818
        %v1889 = vunpack.c.l.b16 %v819
        %v1890 = vunpack.c.h.b16 %v819
        %v1891 = vunpack.c.l.b16 %v820
        %v1892 = vunpack.c.h.b16 %v820
        %v1893 = vunpack.c.l.b16 %v821
        %v1894 = vunpack.c.h.b16 %v821
        %v1895 = vunpack.c.l.b16 %v822
        %v1896 = vunpack.c.h.b16 %v822
        %v1897 = vunpack.c.l.b16 %v823
        %v1898 = vunpack.c.h.b16 %v823
        %v1899 = vunpack.c.l.b16 %v824
        %v1900 = vunpack.c.h.b16 %v824
        %v1901 = vunpack.c.l.b16 %v825
        %v1902 = vunpack.c.h.b16 %v825
        %v1903 = vunpack.c.l.b16 %v826
        %v1904 = vunpack.c.h.b16 %v826
        %v1905 = vunpack.c.l.b16 %v827
        %v1906 = vunpack.c.h.b16 %v827
        %v1907 = vunpack.c.l.b16 %v828
        %v1908 = vunpack.c.h.b16 %v828
        %v1909 = vunpack.c.l.b16 %v829
        %v1910 = vunpack.c.h.b16 %v829
        %v1911 = vunpack.c.l.b16 %v830
        %v1912 = vunpack.c.h.b16 %v830
        %v1913 = vunpack.c.l.b16 %v831
        %v1914 = vunpack.c.h.b16 %v831
        %v1915 = vunpack.c.l.b16 %v832
        %v1916 = vunpack.c.h.b16 %v832
        %v1917 = vunpack.c.l.b16 %v833
        %v1918 = vunpack.c.h.b16 %v833
        %v1919 = vunpack.c.l.b16 %v834
        %v1920 = vunpack.c.h.b16 %v834
        %v1921 = vunpack.c.l.b16 %v835
        %v1922 = vunpack.c.h.b16 %v835
        %v1923 = vunpack.c.l.b16 %v836
        %v1924 = vunpack.c.h.b16 %v836
        %v1925 = vunpack.c.l.b16 %v837
        %v1926 = vunpack.c.h.b16 %v837
        %v1927 = vunpack.c.l.b16 %v838
        %v1928 = vunpack.c.h.b16 %v838
        %v1929 = vunpack.c.l.b16 %v839
        %v1930 = vunpack.c.h.b16 %v839
        %v1931 = vunpack.c.l.b16 %v840
        %v1932 = vunpack.c.h.b16 %v840
        %v1933 = vunpack.c.l.b16 %v841
        %v1934 = vunpack.c.h.b16 %v841
        %v1935 = vunpack.c.l.b16 %v842
        %v1936 = vunpack.c.h.b16 %v842
        %v1937 = vunpack.c.l.b16 %v843
        %v1938 = vunpack.c.h.b16 %v843
        %v1939 = vunpack.c.l.b16 %v844
        %v1940 = vunpack.c.h.b16 %v844
        %v1941 = vunpack.c.l.b16 %v845
        %v1942 = vunpack.c.h.b16 %v845
        %v1943 = vunpack.c.l.b16 %v846
        %v1944 = vunpack.c.h.b16 %v846
        %v1945 = vunpack.c.l.b16 %v847
        %v1946 = vunpack.c.h.b16 %v847
        %v1947 = vunpack.c.l.b16 %v848
        %v1948 = vunpack.c.h.b16 %v848
        %v1949 = vunpack.c.l.b16 %v849
        %v1950 = vunpack.c.h.b16 %v849
        %v1951 = vunpack.c.l.b16 %v850
        %v1952 = vunpack.c.h.b16 %v850
        %v1953 = vunpack.c.l.b16 %v851
        %v1954 = vunpack.c.h.b16 %v851
        %v1955 = vunpack.c.l.b16 %v852
        %v1956 = vunpack.c.h.b16 %v852
        %v1957 = vunpack.c.l.b16 %v853
        %v1958 = vunpack.c.h.b16 %v853
        %v1959 = vunpack.c.l.b16 %v854
        %v1960 = vunpack.c.h.b16 %v854
        %v1961 = vunpack.c.l.b16 %v855
        %v1962 = vunpack.c.h.b16 %v855
        %v1963 = vunpack.c.l.b16 %v856
        %v1964 = vunpack.c.h.b16 %v856
        %v1965 = vunpack.c.l.b16 %v857
        %v1966 = vunpack.c.h.b16 %v857
        %v1967 = vunpack.c.l.b16 %v858
        %v1968 = vunpack.c.h.b16 %v858
        %v1969 = vunpack.c.l.b16 %v859
        %v1970 = vunpack.c.h.b16 %v859
        %v1971 = vunpack.c.l.b16 %v860
        %v1972 = vunpack.c.h.b16 %v860
        %v1973 = vunpack.c.l.b16 %v861
        %v1974 = vunpack.c.h.b16 %v861
        %v1975 = vunpack.c.l.b16 %v862
        %v1976 = vunpack.c.h.b16 %v862
        %v1977 = vunpack.c.l.b16 %v863
        %v1978 = vunpack.c.h.b16 %v863
        %v1979 = vunpack.c.l.b16 %v864
        %v1980 = vunpack.c.h.b16 %v864
        %v1981 = vunpack.c.l.b16 %v865
        %v1982 = vunpack.c.h.b16 %v865
        %v1983 = vunpack.c.l.b16 %v866
        %v1984 = vunpack.c.h.b16 %v866
        %v1985 = vunpack.c.l.b16 %v867
        %v1986 = vunpack.c.h.b16 %v867
        %v1987 = vunpack.c.l.b16 %v868
        %v1988 = vunpack.c.h.b16 %v868
        %v1989 = vunpack.c.l.b16 %v869
        %v1990 = vunpack.c.h.b16 %v869
        %v1991 = vunpack.c.l.b16 %v870
        %v1992 = vunpack.c.h.b16 %v870
        %v1993 = vunpack.c.l.b16 %v871
        %v1994 = vunpack.c.h.b16 %v871
        %v1995 = vunpack.c.l.b16 %v872
        %v1996 = vunpack.c.h.b16 %v872
        %v1997 = vunpack.c.l.b16 %v873
        %v1998 = vunpack.c.h.b16 %v873
        %v1999 = vunpack.c.l.b16 %v874
        %v2000 = vunpack.c.h.b16 %v874
        %v2001 = vunpack.c.l.b16 %v875
        %v2002 = vunpack.c.h.b16 %v875
        %v2003 = vunpack.c.l.b16 %v876
        %v2004 = vunpack.c.h.b16 %v876
        %v2005 = vunpack.c.l.b16 %v877
        %v2006 = vunpack.c.h.b16 %v877
        %v2007 = vunpack.c.l.b16 %v878
        %v2008 = vunpack.c.h.b16 %v878
        %v2009 = vunpack.c.l.b16 %v879
        %v2010 = vunpack.c.h.b16 %v879
        %v2011 = vunpack.c.l.b16 %v880
        %v2012 = vunpack.c.h.b16 %v880
        %v2013 = vunpack.c.l.b16 %v881
        %v2014 = vunpack.c.h.b16 %v881
        %v2015 = vunpack.c.l.b16 %v882
        %v2016 = vunpack.c.h.b16 %v882
        %v2017 = vunpack.c.l.b16 %v883
        %v2018 = vunpack.c.h.b16 %v883
        %v2019 = vunpack.c.l.b16 %v884
        %v2020 = vunpack.c.h.b16 %v884
        %v2021 = vunpack.c.l.b16 %v885
        %v2022 = vunpack.c.h.b16 %v885
        %v2023 = vunpack.c.l.b16 %v886
        %v2024 = vunpack.c.h.b16 %v886
        %v2025 = vunpack.c.l.b16 %v887
        %v2026 = vunpack.c.h.b16 %v887
        %v2027 = vunpack.c.l.b16 %v888
        %v2028 = vunpack.c.h.b16 %v888
        %v2029 = vunpack.c.l.b16 %v889
        %v2030 = vunpack.c.h.b16 %v889
        %v2031 = vunpack.c.l.b16 %v890
        %v2032 = vunpack.c.h.b16 %v890
        %v2033 = vunpack.c.l.b16 %v891
        %v2034 = vunpack.c.h.b16 %v891
        %v2035 = vunpack.c.l.b16 %v892
        %v2036 = vunpack.c.h.b16 %v892
        %v2037 = vunpack.c.l.b16 %v893
        %v2038 = vunpack.c.h.b16 %v893
        %v2039 = vunpack.c.l.b16 %v894
        %v2040 = vunpack.c.h.b16 %v894
        %v2041 = vunpack.c.l.b16 %v895
        %v2042 = vunpack.c.h.b16 %v895
        %v2043 = vunpack.c.l.b16 %v896
        %v2044 = vunpack.c.h.b16 %v896
        %v2045 = vunpack.c.l.b16 %v897
        %v2046 = vunpack.c.h.b16 %v897
        %v2047 = vunpack.c.l.b16 %v898
        %v2048 = vunpack.c.h.b16 %v898
        %v2049 = vunpack.c.l.b16 %v899
        %v2050 = vunpack.c.h.b16 %v899
        %v2051 = vunpack.c.l.b16 %v900
        %v2052 = vunpack.c.h.b16 %v900
        %v2053 = vunpack.c.l.b16 %v901
        %v2054 = vunpack.c.h.b16 %v901
        %v2055 = vunpack.c.l.b16 %v902
        %v2056 = vunpack.c.h.b16 %v902
        %v2057 = vunpack.c.l.b16 %v903
        %v2058 = vunpack.c.h.b16 %v903
        %v2059 = vunpack.c.l.b16 %v904
        %v2060 = vunpack.c.h.b16 %v904
        %v2061 = vunpack.c.l.b16 %v905
        %v2062 = vunpack.c.h.b16 %v905
        %v2063 = vunpack.c.l.b16 %v906
        %v2064 = vunpack.c.h.b16 %v906
        %v2065 = vunpack.c.l.b16 %v907
        %v2066 = vunpack.c.h.b16 %v907
        %v2067 = vunpack.c.l.b16 %v908
        %v2068 = vunpack.c.h.b16 %v908
        %v2069 = vunpack.c.l.b16 %v909
        %v2070 = vunpack.c.h.b16 %v909
        %v2071 = vunpack.c.l.b16 %v910
        %v2072 = vunpack.c.h.b16 %v910
        %v2073 = vunpack.c.l.b16 %v911
        %v2074 = vunpack.c.h.b16 %v911
        %v2075 = vunpack.c.l.b16 %v912
        %v2076 = vunpack.c.h.b16 %v912
        %v2077 = vunpack.c.l.b16 %v913
        %v2078 = vunpack.c.h.b16 %v913
        %v2079 = vunpack.c.l.b16 %v914
        %v2080 = vunpack.c.h.b16 %v914
        %v2081 = vunpack.c.l.b16 %v915
        %v2082 = vunpack.c.h.b16 %v915
        %v2083 = vunpack.c.l.b16 %v916
        %v2084 = vunpack.c.h.b16 %v916
        %v2085 = vunpack.c.l.b16 %v917
        %v2086 = vunpack.c.h.b16 %v917
        %v2087 = vunpack.c.l.b16 %v918
        %v2088 = vunpack.c.h.b16 %v918
        %v2089 = vunpack.c.l.b16 %v919
        %v2090 = vunpack.c.h.b16 %v919
        %v2091 = vunpack.c.l.b16 %v920
        %v2092 = vunpack.c.h.b16 %v920
        %v2093 = vunpack.c.l.b16 %v921
        %v2094 = vunpack.c.h.b16 %v921
        %v2095 = vunpack.c.l.b16 %v922
        %v2096 = vunpack.c.h.b16 %v922
        %v2097 = vunpack.c.l.b16 %v923
        %v2098 = vunpack.c.h.b16 %v923
        %v2099 = vunpack.c.l.b16 %v924
        %v2100 = vunpack.c.h.b16 %v924
        %v2101 = vunpack.c.l.b16 %v925
        %v2102 = vunpack.c.h.b16 %v925
        %v2103 = vunpack.c.l.b16 %v926
        %v2104 = vunpack.c.h.b16 %v926
        %v2105 = vunpack.c.l.b16 %v927
        %v2106 = vunpack.c.h.b16 %v927
        %v2107 = vunpack.c.l.b16 %v928
        %v2108 = vunpack.c.h.b16 %v928
        %v2109 = vunpack.c.l.b16 %v929
        %v2110 = vunpack.c.h.b16 %v929
        %v2111 = vunpack.c.l.b16 %v930
        %v2112 = vunpack.c.h.b16 %v930
        %v2113 = vunpack.c.l.b16 %v931
        %v2114 = vunpack.c.h.b16 %v931
        %v2115 = vunpack.c.l.b16 %v932
        %v2116 = vunpack.c.h.b16 %v932
        %v2117 = vunpack.c.l.b16 %v933
        %v2118 = vunpack.c.h.b16 %v933
        %v2119 = vunpack.c.l.b16 %v934
        %v2120 = vunpack.c.h.b16 %v934
        %v2121 = vunpack.c.l.b16 %v935
        %v2122 = vunpack.c.h.b16 %v935
        %v2123 = vunpack.c.l.b16 %v936
        %v2124 = vunpack.c.h.b16 %v936
        %v2125 = vunpack.c.l.b16 %v937
        %v2126 = vunpack.c.h.b16 %v937
        %v2127 = vunpack.c.l.b16 %v938
        %v2128 = vunpack.c.h.b16 %v938
        %v2129 = vunpack.c.l.b16 %v939
        %v2130 = vunpack.c.h.b16 %v939
        %v2131 = vunpack.c.l.b16 %v940
        %v2132 = vunpack.c.h.b16 %v940
        %v2133 = vunpack.c.l.b16 %v941
        %v2134 = vunpack.c.h.b16 %v941
        %v2135 = vunpack.c.l.b16 %v942
        %v2136 = vunpack.c.h.b16 %v942
        %v2137 = vunpack.c.l.b16 %v943
        %v2138 = vunpack.c.h.b16 %v943
        %v2139 = vunpack.c.l.b16 %v944
        %v2140 = vunpack.c.h.b16 %v944
        %v2141 = vunpack.c.l.b16 %v945
        %v2142 = vunpack.c.h.b16 %v945
        %v2143 = vunpack.c.l.b16 %v946
        %v2144 = vunpack.c.h.b16 %v946
        %v2145 = vunpack.c.l.b16 %v947
        %v2146 = vunpack.c.h.b16 %v947
        %v2147 = vunpack.c.l.b16 %v948
        %v2148 = vunpack.c.h.b16 %v948
        %v2149 = vunpack.c.l.b16 %v949
        %v2150 = vunpack.c.h.b16 %v949
        %v2151 = vunpack.c.l.b16 %v950
        %v2152 = vunpack.c.h.b16 %v950
        %v2153 = vunpack.c.l.b16 %v951
        %v2154 = vunpack.c.h.b16 %v951
        %v2155 = vunpack.c.l.b16 %v952
        %v2156 = vunpack.c.h.b16 %v952
        %v2157 = vunpack.c.l.b16 %v953
        %v2158 = vunpack.c.h.b16 %v953
        %v2159 = vunpack.c.l.b16 %v954
        %v2160 = vunpack.c.h.b16 %v954
        %v2161 = vunpack.c.l.b16 %v955
        %v2162 = vunpack.c.h.b16 %v955
        %v2163 = vunpack.c.l.b16 %v956
        %v2164 = vunpack.c.h.b16 %v956
        %v2165 = vunpack.c.l.b16 %v957
        %v2166 = vunpack.c.h.b16 %v957
        %v2167 = vunpack.c.l.b16 %v958
        %v2168 = vunpack.c.h.b16 %v958
        %v2169 = vunpack.c.l.b16 %v959
        %v2170 = vunpack.c.h.b16 %v959
        %v2171 = vunpack.c.l.b16 %v960
        %v2172 = vunpack.c.h.b16 %v960
        %v2173 = vunpack.c.l.b16 %v961
        %v2174 = vunpack.c.h.b16 %v961
        %v2175 = vunpack.c.l.b16 %v962
        %v2176 = vunpack.c.h.b16 %v962
        %v2177 = vunpack.c.l.b16 %v963
        %v2178 = vunpack.c.h.b16 %v963
        %v2179 = vunpack.c.l.b16 %v964
        %v2180 = vunpack.c.h.b16 %v964
        %v2181 = vunpack.c.l.b16 %v965
        %v2182 = vunpack.c.h.b16 %v965
        %v2183 = vunpack.c.l.b16 %v966
        %v2184 = vunpack.c.h.b16 %v966
        %v2185 = vunpack.c.l.b16 %v967
        %v2186 = vunpack.c.h.b16 %v967
        %v2187 = vunpack.c.l.b16 %v968
        %v2188 = vunpack.c.h.b16 %v968
        %v2189 = vunpack.c.l.b16 %v969
        %v2190 = vunpack.c.h.b16 %v969
        %v2191 = vunpack.c.l.b16 %v970
        %v2192 = vunpack.c.h.b16 %v970
        %v2193 = vunpack.c.l.b16 %v971
        %v2194 = vunpack.c.h.b16 %v971
        %v2195 = vunpack.c.l.b16 %v972
        %v2196 = vunpack.c.h.b16 %v972
        %v2197 = vunpack.c.l.b16 %v973
        %v2198 = vunpack.c.h.b16 %v973
        %v2199 = vunpack.c.l.b16 %v974
        %v2200 = vunpack.c.h.b16 %v974
        %v2201 = vpack.c.b16 %v1439, %v1433
        %v2202 = vpack.c.b16 %v1440, %v1434
        %v2203 = vpack.c.b16 %v1441, %v1435
        %v2204 = vpack.c.b16 %v1442, %v1436
        %v2205 = vpack.c.b16 %v1443, %v1437
        %v2206 = vpack.c.b16 %v1444, %v1438
        %v2207 = vpack.c.b16 %v1451, %v1445
        %v2208 = vpack.c.b16 %v1452, %v1446
        %v2209 = vpack.c.b16 %v1453, %v1447
        %v2210 = vpack.c.b16 %v1454, %v1448
        %v2211 = vpack.c.b16 %v1455, %v1449
        %v2212 = vpack.c.b16 %v1456, %v1450
        %v2213 = vpack.c.b16 %v1463, %v1457
        %v2214 = vpack.c.b16 %v1464, %v1458
        %v2215 = vpack.c.b16 %v1465, %v1459
        %v2216 = vpack.c.b16 %v1466, %v1460
        %v2217 = vpack.c.b16 %v1467, %v1461
        %v2218 = vpack.c.b16 %v1468, %v1462
        %v2219 = vpack.c.b16 %v1475, %v1469
        %v2220 = vpack.c.b16 %v1476, %v1470
        %v2221 = vpack.c.b16 %v1477, %v1471
        %v2222 = vpack.c.b16 %v1478, %v1472
        %v2223 = vpack.c.b16 %v1479, %v1473
        %v2224 = vpack.c.b16 %v1480, %v1474
        %v2225 = vpack.c.b16 %v1487, %v1481
        %v2226 = vpack.c.b16 %v1488, %v1482
        %v2227 = vpack.c.b16 %v1489, %v1483
        %v2228 = vpack.c.b16 %v1490, %v1484
        %v2229 = vpack.c.b16 %v1491, %v1485
        %v2230 = vpack.c.b16 %v1492, %v1486
        %v2231 = vpack.c.b16 %v1499, %v1493
        %v2232 = vpack.c.b16 %v1500, %v1494
        %v2233 = vpack.c.b16 %v1501, %v1495
        %v2234 = vpack.c.b16 %v1502, %v1496
        %v2235 = vpack.c.b16 %v1503, %v1497
        %v2236 = vpack.c.b16 %v1504, %v1498
        %v2237 = vpack.c.b16 %v1511, %v1505
        %v2238 = vpack.c.b16 %v1512, %v1506
        %v2239 = vpack.c.b16 %v1513, %v1507
        %v2240 = vpack.c.b16 %v1514, %v1508
        %v2241 = vpack.c.b16 %v1515, %v1509
        %v2242 = vpack.c.b16 %v1516, %v1510
        %v2243 = vpack.c.b16 %v1523, %v1517
        %v2244 = vpack.c.b16 %v1524, %v1518
        %v2245 = vpack.c.b16 %v1525, %v1519
        %v2246 = vpack.c.b16 %v1526, %v1520
        %v2247 = vpack.c.b16 %v1527, %v1521
        %v2248 = vpack.c.b16 %v1528, %v1522
        %v2249 = vpack.c.b16 %v1535, %v1529
        %v2250 = vpack.c.b16 %v1536, %v1530
        %v2251 = vpack.c.b16 %v1537, %v1531
        %v2252 = vpack.c.b16 %v1538, %v1532
        %v2253 = vpack.c.b16 %v1539, %v1533
        %v2254 = vpack.c.b16 %v1540, %v1534
        %v2255 = vpack.c.b16 %v1547, %v1541
        %v2256 = vpack.c.b16 %v1548, %v1542
        %v2257 = vpack.c.b16 %v1549, %v1543
        %v2258 = vpack.c.b16 %v1550, %v1544
        %v2259 = vpack.c.b16 %v1551, %v1545
        %v2260 = vpack.c.b16 %v1552, %v1546
        %v2261 = vpack.c.b16 %v1559, %v1553
        %v2262 = vpack.c.b16 %v1560, %v1554
        %v2263 = vpack.c.b16 %v1561, %v1555
        %v2264 = vpack.c.b16 %v1562, %v1556
        %v2265 = vpack.c.b16 %v1563, %v1557
        %v2266 = vpack.c.b16 %v1564, %v1558
        %v2267 = vpack.c.b16 %v1571, %v1565
        %v2268 = vpack.c.b16 %v1572, %v1566
        %v2269 = vpack.c.b16 %v1573, %v1567
        %v2270 = vpack.c.b16 %v1574, %v1568
        %v2271 = vpack.c.b16 %v1575, %v1569
        %v2272 = vpack.c.b16 %v1576, %v1570
        %v2273 = vpack.c.b16 %v1583, %v1577
        %v2274 = vpack.c.b16 %v1584, %v1578
        %v2275 = vpack.c.b16 %v1585, %v1579
        %v2276 = vpack.c.b16 %v1586, %v1580
        %v2277 = vpack.c.b16 %v1587, %v1581
        %v2278 = vpack.c.b16 %v1588, %v1582
        %v2279 = vpack.c.b16 %v1595, %v1589
        %v2280 = vpack.c.b16 %v1596, %v1590
        %v2281 = vpack.c.b16 %v1597, %v1591
        %v2282 = vpack.c.b16 %v1598, %v1592
        %v2283 = vpack.c.b16 %v1599, %v1593
        %v2284 = vpack.c.b16 %v1600, %v1594
        %v2285 = vpack.c.b16 %v1607, %v1601
        %v2286 = vpack.c.b16 %v1608, %v1602
        %v2287 = vpack.c.b16 %v1609, %v1603
        %v2288 = vpack.c.b16 %v1610, %v1604
        %v2289 = vpack.c.b16 %v1611, %v1605
        %v2290 = vpack.c.b16 %v1612, %v1606
        %v2291 = vpack.c.b16 %v1619, %v1613
        %v2292 = vpack.c.b16 %v1620, %v1614
        %v2293 = vpack.c.b16 %v1621, %v1615
        %v2294 = vpack.c.b16 %v1622, %v1616
        %v2295 = vpack.c.b16 %v1623, %v1617
        %v2296 = vpack.c.b16 %v1624, %v1618
        %v2297 = vpack.c.b16 %v1631, %v1625
        %v2298 = vpack.c.b16 %v1632, %v1626
        %v2299 = vpack.c.b16 %v1633, %v1627
        %v2300 = vpack.c.b16 %v1634, %v1628
        %v2301 = vpack.c.b16 %v1635, %v1629
        %v2302 = vpack.c.b16 %v1636, %v1630
        %v2303 = vpack.c.b16 %v1643, %v1637
        %v2304 = vpack.c.b16 %v1644, %v1638
        %v2305 = vpack.c.b16 %v1645, %v1639
        %v2306 = vpack.c.b16 %v1646, %v1640
        %v2307 = vpack.c.b16 %v1647, %v1641
        %v2308 = vpack.c.b16 %v1648, %v1642
        %v2309 = vpack.c.b16 %v1655, %v1649
        %v2310 = vpack.c.b16 %v1656, %v1650
        %v2311 = vpack.c.b16 %v1657, %v1651
        %v2312 = vpack.c.b16 %v1658, %v1652
        %v2313 = vpack.c.b16 %v1659, %v1653
        %v2314 = vpack.c.b16 %v1660, %v1654
        %v2315 = vpack.c.b16 %v1667, %v1661
        %v2316 = vpack.c.b16 %v1668, %v1662
        %v2317 = vpack.c.b16 %v1669, %v1663
        %v2318 = vpack.c.b16 %v1670, %v1664
        %v2319 = vpack.c.b16 %v1671, %v1665
        %v2320 = vpack.c.b16 %v1672, %v1666
        %v2321 = vpack.c.b16 %v1679, %v1673
        %v2322 = vpack.c.b16 %v1680, %v1674
        %v2323 = vpack.c.b16 %v1681, %v1675
        %v2324 = vpack.c.b16 %v1682, %v1676
        %v2325 = vpack.c.b16 %v1683, %v1677
        %v2326 = vpack.c.b16 %v1684, %v1678
        %v2327 = vpack.c.b16 %v1691, %v1685
        %v2328 = vpack.c.b16 %v1692, %v1686
        %v2329 = vpack.c.b16 %v1693, %v1687
        %v2330 = vpack.c.b16 %v1694, %v1688
        %v2331 = vpack.c.b16 %v1695, %v1689
        %v2332 = vpack.c.b16 %v1696, %v1690
        %v2333 = vpack.c.b16 %v1703, %v1697
        %v2334 = vpack.c.b16 %v1704, %v1698
        %v2335 = vpack.c.b16 %v1705, %v1699
        %v2336 = vpack.c.b16 %v1706, %v1700
        %v2337 = vpack.c.b16 %v1707, %v1701
        %v2338 = vpack.c.b16 %v1708, %v1702
        %v2339 = vpack.c.b16 %v1715, %v1709
        %v2340 = vpack.c.b16 %v1716, %v1710
        %v2341 = vpack.c.b16 %v1717, %v1711
        %v2342 = vpack.c.b16 %v1718, %v1712
        %v2343 = vpack.c.b16 %v1719, %v1713
        %v2344 = vpack.c.b16 %v1720, %v1714
        %v2345 = vpack.c.b16 %v1727, %v1721
        %v2346 = vpack.c.b16 %v1728, %v1722
        %v2347 = vpack.c.b16 %v1729, %v1723
        %v2348 = vpack.c.b16 %v1730, %v1724
        %v2349 = vpack.c.b16 %v1731, %v1725
        %v2350 = vpack.c.b16 %v1732, %v1726
        %v2351 = vpack.c.b16 %v1739, %v1733
        %v2352 = vpack.c.b16 %v1740, %v1734
        %v2353 = vpack.c.b16 %v1741, %v1735
        %v2354 = vpack.c.b16 %v1742, %v1736
        %v2355 = vpack.c.b16 %v1743, %v1737
        %v2356 = vpack.c.b16 %v1744, %v1738
        %v2357 = vpack.c.b16 %v1751, %v1745
        %v2358 = vpack.c.b16 %v1752, %v1746
        %v2359 = vpack.c.b16 %v1753, %v1747
        %v2360 = vpack.c.b16 %v1754, %v1748
        %v2361 = vpack.c.b16 %v1755, %v1749
        %v2362 = vpack.c.b16 %v1756, %v1750
        %v2363 = vpack.c.b16 %v1763, %v1757
        %v2364 = vpack.c.b16 %v1764, %v1758
        %v2365 = vpack.c.b16 %v1765, %v1759
        %v2366 = vpack.c.b16 %v1766, %v1760
        %v2367 = vpack.c.b16 %v1767, %v1761
        %v2368 = vpack.c.b16 %v1768, %v1762
        %v2369 = vpack.c.b16 %v1775, %v1769
        %v2370 = vpack.c.b16 %v1776, %v1770
        %v2371 = vpack.c.b16 %v1777, %v1771
        %v2372 = vpack.c.b16 %v1778, %v1772
        %v2373 = vpack.c.b16 %v1779, %v1773
        %v2374 = vpack.c.b16 %v1780, %v1774
        %v2375 = vpack.c.b16 %v1787, %v1781
        %v2376 = vpack.c.b16 %v1788, %v1782
        %v2377 = vpack.c.b16 %v1789, %v1783
        %v2378 = vpack.c.b16 %v1790, %v1784
        %v2379 = vpack.c.b16 %v1791, %v1785
        %v2380 = vpack.c.b16 %v1792, %v1786
        %v2381 = vpack.c.b16 %v1799, %v1793
        %v2382 = vpack.c.b16 %v1800, %v1794
        %v2383 = vpack.c.b16 %v1801, %v1795
        %v2384 = vpack.c.b16 %v1802, %v1796
        %v2385 = vpack.c.b16 %v1803, %v1797
        %v2386 = vpack.c.b16 %v1804, %v1798
        %v2387 = vpack.c.b16 %v1811, %v1805
        %v2388 = vpack.c.b16 %v1812, %v1806
        %v2389 = vpack.c.b16 %v1813, %v1807
        %v2390 = vpack.c.b16 %v1814, %v1808
        %v2391 = vpack.c.b16 %v1815, %v1809
        %v2392 = vpack.c.b16 %v1816, %v1810
        %v2393 = vpack.c.b16 %v1823, %v1817
        %v2394 = vpack.c.b16 %v1824, %v1818
        %v2395 = vpack.c.b16 %v1825, %v1819
        %v2396 = vpack.c.b16 %v1826, %v1820
        %v2397 = vpack.c.b16 %v1827, %v1821
        %v2398 = vpack.c.b16 %v1828, %v1822
        %v2399 = vpack.c.b16 %v1835, %v1829
        %v2400 = vpack.c.b16 %v1836, %v1830
        %v2401 = vpack.c.b16 %v1837, %v1831
        %v2402 = vpack.c.b16 %v1838, %v1832
        %v2403 = vpack.c.b16 %v1839, %v1833
        %v2404 = vpack.c.b16 %v1840, %v1834
        %v2405 = vpack.c.b16 %v1847, %v1841
        %v2406 = vpack.c.b16 %v1848, %v1842
        %v2407 = vpack.c.b16 %v1849, %v1843
        %v2408 = vpack.c.b16 %v1850, %v1844
        %v2409 = vpack.c.b16 %v1851, %v1845
        %v2410 = vpack.c.b16 %v1852, %v1846
        %v2411 = vpack.c.b16 %v1859, %v1853
        %v2412 = vpack.c.b16 %v1860, %v1854
        %v2413 = vpack.c.b16 %v1861, %v1855
        %v2414 = vpack.c.b16 %v1862, %v1856
        %v2415 = vpack.c.b16 %v1863, %v1857
        %v2416 = vpack.c.b16 %v1864, %v1858
        %v2417 = vpack.c.b16 %v1871, %v1865
        %v2418 = vpack.c.b16 %v1872, %v1866
        %v2419 = vpack.c.b16 %v1873, %v1867
        %v2420 = vpack.c.b16 %v1874, %v1868
        %v2421 = vpack.c.b16 %v1875, %v1869
        %v2422 = vpack.c.b16 %v1876, %v1870
        %v2423 = vpack.c.b16 %v1883, %v1877
        %v2424 = vpack.c.b16 %v1884, %v1878
        %v2425 = vpack.c.b16 %v1885, %v1879
        %v2426 = vpack.c.b16 %v1886, %v1880
        %v2427 = vpack.c.b16 %v1887, %v1881
        %v2428 = vpack.c.b16 %v1888, %v1882
        %v2429 = vpack.c.b16 %v1895, %v1889
        %v2430 = vpack.c.b16 %v1896, %v1890
        %v2431 = vpack.c.b16 %v1897, %v1891
        %v2432 = vpack.c.b16 %v1898, %v1892
        %v2433 = vpack.c.b16 %v1899, %v1893
        %v2434 = vpack.c.b16 %v1900, %v1894
        %v2435 = vpack.c.b16 %v1907, %v1901
        %v2436 = vpack.c.b16 %v1908, %v1902
        %v2437 = vpack.c.b16 %v1909, %v1903
        %v2438 = vpack.c.b16 %v1910, %v1904
        %v2439 = vpack.c.b16 %v1911, %v1905
        %v2440 = vpack.c.b16 %v1912, %v1906
        %v2441 = vpack.c.b16 %v1919, %v1913
        %v2442 = vpack.c.b16 %v1920, %v1914
        %v2443 = vpack.c.b16 %v1921, %v1915
        %v2444 = vpack.c.b16 %v1922, %v1916
        %v2445 = vpack.c.b16 %v1923, %v1917
        %v2446 = vpack.c.b16 %v1924, %v1918
        %v2447 = vpack.c.b16 %v1931, %v1925
        %v2448 = vpack.c.b16 %v1932, %v1926
        %v2449 = vpack.c.b16 %v1933, %v1927
        %v2450 = vpack.c.b16 %v1934, %v1928
        %v2451 = vpack.c.b16 %v1935, %v1929
        %v2452 = vpack.c.b16 %v1936, %v1930
        %v2453 = vpack.c.b16 %v1943, %v1937
        %v2454 = vpack.c.b16 %v1944, %v1938
        %v2455 = vpack.c.b16 %v1945, %v1939
        %v2456 = vpack.c.b16 %v1946, %v1940
        %v2457 = vpack.c.b16 %v1947, %v1941
        %v2458 = vpack.c.b16 %v1948, %v1942
        %v2459 = vpack.c.b16 %v1955, %v1949
        %v2460 = vpack.c.b16 %v1956, %v1950
        %v2461 = vpack.c.b16 %v1957, %v1951
        %v2462 = vpack.c.b16 %v1958, %v1952
        %v2463 = vpack.c.b16 %v1959, %v1953
        %v2464 = vpack.c.b16 %v1960, %v1954
        %v2465 = vpack.c.b16 %v1967, %v1961
        %v2466 = vpack.c.b16 %v1968, %v1962
        %v2467 = vpack.c.b16 %v1969, %v1963
        %v2468 = vpack.c.b16 %v1970, %v1964
        %v2469 = vpack.c.b16 %v1971, %v1965
        %v2470 = vpack.c.b16 %v1972, %v1966
        %v2471 = vpack.c.b16 %v1979, %v1973
        %v2472 = vpack.c.b16 %v1980, %v1974
        %v2473 = vpack.c.b16 %v1981, %v1975
        %v2474 = vpack.c.b16 %v1982, %v1976
        %v2475 = vpack.c.b16 %v1983, %v1977
        %v2476 = vpack.c.b16 %v1984, %v1978
        %v2477 = vpack.c.b16 %v1991, %v1985
        %v2478 = vpack.c.b16 %v1992, %v1986
        %v2479 = vpack.c.b16 %v1993, %v1987
        %v2480 = vpack.c.b16 %v1994, %v1988
        %v2481 = vpack.c.b16 %v1995, %v1989
        %v2482 = vpack.c.b16 %v1996, %v1990
        %v2483 = vpack.c.b16 %v2003, %v1997
        %v2484 = vpack.c.b16 %v2004, %v1998
        %v2485 = vpack.c.b16 %v2005, %v1999
        %v2486 = vpack.c.b16 %v2006, %v2000
        %v2487 = vpack.c.b16 %v2007, %v2001
        %v2488 = vpack.c.b16 %v2008, %v2002
        %v2489 = vpack.c.b16 %v2015, %v2009
        %v2490 = vpack.c.b16 %v2016, %v2010
        %v2491 = vpack.c.b16 %v2017, %v2011
        %v2492 = vpack.c.b16 %v2018, %v2012
        %v2493 = vpack.c.b16 %v2019, %v2013
        %v2494 = vpack.c.b16 %v2020, %v2014
        %v2495 = vpack.c.b16 %v2027, %v2021
        %v2496 = vpack.c.b16 %v2028, %v2022
        %v2497 = vpack.c.b16 %v2029, %v2023
        %v2498 = vpack.c.b16 %v2030, %v2024
        %v2499 = vpack.c.b16 %v2031, %v2025
        %v2500 = vpack.c.b16 %v2032, %v2026
        %v2501 = vpack.c.b16 %v2039, %v2033
        %v2502 = vpack.c.b16 %v2040, %v2034
        %v2503 = vpack.c.b16 %v2041, %v2035
        %v2504 = vpack.c.b16 %v2042, %v2036
        %v2505 = vpack.c.b16 %v2043, %v2037
        %v2506 = vpack.c.b16 %v2044, %v2038
        %v2507 = vpack.c.b16 %v2051, %v2045
        %v2508 = vpack.c.b16 %v2052, %v2046
        %v2509 = vpack.c.b16 %v2053, %v2047
        %v2510 = vpack.c.b16 %v2054, %v2048
        %v2511 = vpack.c.b16 %v2055, %v2049
        %v2512 = vpack.c.b16 %v2056, %v2050
        %v2513 = vpack.c.b16 %v2063, %v2057
        %v2514 = vpack.c.b16 %v2064, %v2058
        %v2515 = vpack.c.b16 %v2065, %v2059
        %v2516 = vpack.c.b16 %v2066, %v2060
        %v2517 = vpack.c.b16 %v2067, %v2061
        %v2518 = vpack.c.b16 %v2068, %v2062
        %v2519 = vpack.c.b16 %v2075, %v2069
        %v2520 = vpack.c.b16 %v2076, %v2070
        %v2521 = vpack.c.b16 %v2077, %v2071
        %v2522 = vpack.c.b16 %v2078, %v2072
        %v2523 = vpack.c.b16 %v2079, %v2073
        %v2524 = vpack.c.b16 %v2080, %v2074
        %v2525 = vpack.c.b16 %v2087, %v2081
        %v2526 = vpack.c.b16 %v2088, %v2082
        %v2527 = vpack.c.b16 %v2089, %v2083
        %v2528 = vpack.c.b16 %v2090, %v2084
        %v2529 = vpack.c.b16 %v2091, %v2085
        %v2530 = vpack.c.b16 %v2092, %v2086
        %v2531 = vpack.c.b16 %v2099, %v2093
        %v2532 = vpack.c.b16 %v2100, %v2094
        %v2533 = vpack.c.b16 %v2101, %v2095
        %v2534 = vpack.c.b16 %v2102, %v2096
        %v2535 = vpack.c.b16 %v2103, %v2097
        %v2536 = vpack.c.b16 %v2104, %v2098
        %v2537 = vpack.c.b16 %v2111, %v2105
        %v2538 = vpack.c.b16 %v2112, %v2106
        %v2539 = vpack.c.b16 %v2113, %v2107
        %v2540 = vpack.c.b16 %v2114, %v2108
        %v2541 = vpack.c.b16 %v2115, %v2109
        %v2542 = vpack.c.b16 %v2116, %v2110
        %v2543 = vpack.c.b16 %v2123, %v2117
        %v2544 = vpack.c.b16 %v2124, %v2118
        %v2545 = vpack.c.b16 %v2125, %v2119
        %v2546 = vpack.c.b16 %v2126, %v2120
        %v2547 = vpack.c.b16 %v2127, %v2121
        %v2548 = vpack.c.b16 %v2128, %v2122
        %v2549 = vpack.c.b16 %v2135, %v2129
        %v2550 = vpack.c.b16 %v2136, %v2130
        %v2551 = vpack.c.b16 %v2137, %v2131
        %v2552 = vpack.c.b16 %v2138, %v2132
        %v2553 = vpack.c.b16 %v2139, %v2133
        %v2554 = vpack.c.b16 %v2140, %v2134
        %v2555 = vpack.c.b16 %v2147, %v2141
        %v2556 = vpack.c.b16 %v2148, %v2142
        %v2557 = vpack.c.b16 %v2149, %v2143
        %v2558 = vpack.c.b16 %v2150, %v2144
        %v2559 = vpack.c.b16 %v2151, %v2145
        %v2560 = vpack.c.b16 %v2152, %v2146
        %v2561 = vpack.c.b16 %v2159, %v2153
        %v2562 = vpack.c.b16 %v2160, %v2154
        %v2563 = vpack.c.b16 %v2161, %v2155
        %v2564 = vpack.c.b16 %v2162, %v2156
        %v2565 = vpack.c.b16 %v2163, %v2157
        %v2566 = vpack.c.b16 %v2164, %v2158
        %v2567 = vpack.c.b16 %v2171, %v2165
        %v2568 = vpack.c.b16 %v2172, %v2166
        %v2569 = vpack.c.b16 %v2173, %v2167
        %v2570 = vpack.c.b16 %v2174, %v2168
        %v2571 = vpack.c.b16 %v2175, %v2169
        %v2572 = vpack.c.b16 %v2176, %v2170
        %v2573 = vpack.c.b16 %v2183, %v2177
        %v2574 = vpack.c.b16 %v2184, %v2178
        %v2575 = vpack.c.b16 %v2185, %v2179
        %v2576 = vpack.c.b16 %v2186, %v2180
        %v2577 = vpack.c.b16 %v2187, %v2181
        %v2578 = vpack.c.b16 %v2188, %v2182
        %v2579 = vpack.c.b16 %v2195, %v2189
        %v2580 = vpack.c.b16 %v2196, %v2190
        %v2581 = vpack.c.b16 %v2197, %v2191
        %v2582 = vpack.c.b16 %v2198, %v2192
        %v2583 = vpack.c.b16 %v2199, %v2193
        %v2584 = vpack.c.b16 %v2200, %v2194
        %2969 = vmatprep.subr.bf16.mxu0 %v2202
        %2970 = vmatpush1.bf16.msra.mxu0 %v2201
        %2971 = vmatprep.subr.bf16.mxu0 %v2208
        %2972 = vmatpush1.bf16.msra.mxu0 %v2207
        %2973 = vmatprep.subr.bf16.mxu0 %v2214
        %2974 = vmatpush1.bf16.msra.mxu0 %v2213
        %2975 = vmatprep.subr.bf16.mxu0 %v2220
        %2976 = vmatpush1.bf16.msra.mxu0 %v2219
        %2977 = vmatprep.subr.bf16.mxu0 %v2226
        %2978 = vmatpush1.bf16.msra.mxu0 %v2225
        %2979 = vmatprep.subr.bf16.mxu0 %v2232
        %2980 = vmatpush1.bf16.msra.mxu0 %v2231
        %2981 = vmatprep.subr.bf16.mxu0 %v2238
        %2982 = vmatpush1.bf16.msra.mxu0 %v2237
        %2983 = vmatprep.subr.bf16.mxu0 %v2244
        %2984 = vmatpush1.bf16.msra.mxu0 %v2243
        %2985 = vmatprep.subr.bf16.mxu0 %v2250
        %2986 = vmatpush1.bf16.msra.mxu0 %v2249
        %2987 = vmatprep.subr.bf16.mxu0 %v2256
        %2988 = vmatpush1.bf16.msra.mxu0 %v2255
        %2989 = vmatprep.subr.bf16.mxu0 %v2262
        %2990 = vmatpush1.bf16.msra.mxu0 %v2261
        %2991 = vmatprep.subr.bf16.mxu0 %v2268
        %2992 = vmatpush1.bf16.msra.mxu0 %v2267
        %2993 = vmatprep.subr.bf16.mxu0 %v2274
        %2994 = vmatpush1.bf16.msra.mxu0 %v2273
        %2995 = vmatprep.subr.bf16.mxu0 %v2280
        %2996 = vmatpush1.bf16.msra.mxu0 %v2279
        %2997 = vmatprep.subr.bf16.mxu0 %v2286
        %2998 = vmatpush1.bf16.msra.mxu0 %v2285
        %2999 = vmatprep.subr.bf16.mxu0 %v2292
        %3000 = vmatpush1.bf16.msra.mxu0 %v2291
        %3001 = vmatprep.mubr.bf16.mxu0 %v1034
        %3002 = vmatmul.mubr.bf16.gmra.mrb[0].mxu0 %v1033
        %v3003 = vpop.f32.mrb[0].mxu0
        %v3004 = vadd.f32 %v982, %v3003
        %v3005 = vpop.f32.mrb[0].mxu0
        %v3006 = vadd.f32 %v986, %v3005
        %v3007 = vpop.f32.mrb[0].mxu0
        %v3008 = vadd.f32 %v982, %v3007
        %v3009 = vpop.f32.mrb[0].mxu0
        %v3010 = vadd.f32 %v986, %v3009
        %3011 = vdwg.mxu0
        %3012 = vmatprep.subr.bf16.mxu0 %v2298
        %3013 = vmatpush1.bf16.msra.mxu0 %v2297
        %3014 = vmatprep.subr.bf16.mxu0 %v2304
        %3015 = vmatpush1.bf16.msra.mxu0 %v2303
        %3016 = vmatprep.subr.bf16.mxu0 %v2310
        %3017 = vmatpush1.bf16.msra.mxu0 %v2309
        %3018 = vmatprep.subr.bf16.mxu0 %v2316
        %3019 = vmatpush1.bf16.msra.mxu0 %v2315
        %3020 = vmatprep.subr.bf16.mxu0 %v2322
        %3021 = vmatpush1.bf16.msra.mxu0 %v2321
        %3022 = vmatprep.subr.bf16.mxu0 %v2328
        %3023 = vmatpush1.bf16.msra.mxu0 %v2327
        %3024 = vmatprep.subr.bf16.mxu0 %v2334
        %3025 = vmatpush1.bf16.msra.mxu0 %v2333
        %3026 = vmatprep.subr.bf16.mxu0 %v2340
        %3027 = vmatpush1.bf16.msra.mxu0 %v2339
        %3028 = vmatprep.subr.bf16.mxu0 %v2346
        %3029 = vmatpush1.bf16.msra.mxu0 %v2345
        %3030 = vmatprep.subr.bf16.mxu0 %v2352
        %3031 = vmatpush1.bf16.msra.mxu0 %v2351
        %3032 = vmatprep.subr.bf16.mxu0 %v2358
        %3033 = vmatpush1.bf16.msra.mxu0 %v2357
        %3034 = vmatprep.subr.bf16.mxu0 %v2364
        %3035 = vmatpush1.bf16.msra.mxu0 %v2363
        %3036 = vmatprep.subr.bf16.mxu0 %v2370
        %3037 = vmatpush1.bf16.msra.mxu0 %v2369
        %3038 = vmatprep.subr.bf16.mxu0 %v2376
        %3039 = vmatpush1.bf16.msra.mxu0 %v2375
        %3040 = vmatprep.subr.bf16.mxu0 %v2382
        %3041 = vmatpush1.bf16.msra.mxu0 %v2381
        %3042 = vmatprep.subr.bf16.mxu0 %v2388
        %3043 = vmatpush1.bf16.msra.mxu0 %v2387
        %3044 = vmatprep.mubr.bf16.mxu0 %v1036
        %3045 = vmatmul.mubr.bf16.gmra.mrb[0].mxu0 %v1035
        %v3046 = vpop.f32.mrb[0].mxu0
        %v3047 = vadd.f32 %v3004, %v3046
        %v3048 = vpop.f32.mrb[0].mxu0
        %v3049 = vadd.f32 %v3006, %v3048
        %v3050 = vpop.f32.mrb[0].mxu0
        %v3051 = vadd.f32 %v3008, %v3050
        %v3052 = vpop.f32.mrb[0].mxu0
        %v3053 = vadd.f32 %v3010, %v3052
        %3054 = vdwg.mxu0
        %3055 = vmatprep.subr.bf16.mxu0 %v2394
        %3056 = vmatpush1.bf16.msra.mxu0 %v2393
        %3057 = vmatprep.subr.bf16.mxu0 %v2400
        %3058 = vmatpush1.bf16.msra.mxu0 %v2399
        %3059 = vmatprep.subr.bf16.mxu0 %v2406
        %3060 = vmatpush1.bf16.msra.mxu0 %v2405
        %3061 = vmatprep.subr.bf16.mxu0 %v2412
        %3062 = vmatpush1.bf16.msra.mxu0 %v2411
        %3063 = vmatprep.subr.bf16.mxu0 %v2418
        %3064 = vmatpush1.bf16.msra.mxu0 %v2417
        %3065 = vmatprep.subr.bf16.mxu0 %v2424
        %3066 = vmatpush1.bf16.msra.mxu0 %v2423
        %3067 = vmatprep.subr.bf16.mxu0 %v2430
        %3068 = vmatpush1.bf16.msra.mxu0 %v2429
        %3069 = vmatprep.subr.bf16.mxu0 %v2436
        %3070 = vmatpush1.bf16.msra.mxu0 %v2435
        %3071 = vmatprep.subr.bf16.mxu0 %v2442
        %3072 = vmatpush1.bf16.msra.mxu0 %v2441
        %3073 = vmatprep.subr.bf16.mxu0 %v2448
        %3074 = vmatpush1.bf16.msra.mxu0 %v2447
        %3075 = vmatprep.subr.bf16.mxu0 %v2454
        %3076 = vmatpush1.bf16.msra.mxu0 %v2453
        %3077 = vmatprep.subr.bf16.mxu0 %v2460
        %3078 = vmatpush1.bf16.msra.mxu0 %v2459
        %3079 = vmatprep.subr.bf16.mxu0 %v2466
        %3080 = vmatpush1.bf16.msra.mxu0 %v2465
        %3081 = vmatprep.subr.bf16.mxu0 %v2472
        %3082 = vmatpush1.bf16.msra.mxu0 %v2471
        %3083 = vmatprep.subr.bf16.mxu0 %v2478
        %3084 = vmatpush1.bf16.msra.mxu0 %v2477
        %3085 = vmatprep.subr.bf16.mxu0 %v2484
        %3086 = vmatpush1.bf16.msra.mxu0 %v2483
        %3087 = vmatprep.mubr.bf16.mxu0 %v1038
        %3088 = vmatmul.mubr.bf16.gmra.mrb[0].mxu0 %v1037
        %v3089 = vpop.f32.mrb[0].mxu0
        %v3090 = vadd.f32 %v3047, %v3089
        %v3091 = vpop.f32.mrb[0].mxu0
        %v3092 = vadd.f32 %v3049, %v3091
        %v3093 = vpop.f32.mrb[0].mxu0
        %v3094 = vadd.f32 %v3051, %v3093
        %v3095 = vpop.f32.mrb[0].mxu0
        %v3096 = vadd.f32 %v3053, %v3095
        %3097 = vdwg.mxu0
        %3098 = vmatprep.subr.bf16.mxu0 %v2490
        %3099 = vmatpush1.bf16.msra.mxu0 %v2489
        %3100 = vmatprep.subr.bf16.mxu0 %v2496
        %3101 = vmatpush1.bf16.msra.mxu0 %v2495
        %3102 = vmatprep.subr.bf16.mxu0 %v2502
        %3103 = vmatpush1.bf16.msra.mxu0 %v2501
        %3104 = vmatprep.subr.bf16.mxu0 %v2508
        %3105 = vmatpush1.bf16.msra.mxu0 %v2507
        %3106 = vmatprep.subr.bf16.mxu0 %v2514
        %3107 = vmatpush1.bf16.msra.mxu0 %v2513
        %3108 = vmatprep.subr.bf16.mxu0 %v2520
        %3109 = vmatpush1.bf16.msra.mxu0 %v2519
        %3110 = vmatprep.subr.bf16.mxu0 %v2526
        %3111 = vmatpush1.bf16.msra.mxu0 %v2525
        %3112 = vmatprep.subr.bf16.mxu0 %v2532
        %3113 = vmatpush1.bf16.msra.mxu0 %v2531
        %3114 = vmatprep.subr.bf16.mxu0 %v2538
        %3115 = vmatpush1.bf16.msra.mxu0 %v2537
        %3116 = vmatprep.subr.bf16.mxu0 %v2544
        %3117 = vmatpush1.bf16.msra.mxu0 %v2543
        %3118 = vmatprep.subr.bf16.mxu0 %v2550
        %3119 = vmatpush1.bf16.msra.mxu0 %v2549
        %3120 = vmatprep.subr.bf16.mxu0 %v2556
        %3121 = vmatpush1.bf16.msra.mxu0 %v2555
        %3122 = vmatprep.subr.bf16.mxu0 %v2562
        %3123 = vmatpush1.bf16.msra.mxu0 %v2561
        %3124 = vmatprep.subr.bf16.mxu0 %v2568
        %3125 = vmatpush1.bf16.msra.mxu0 %v2567
        %3126 = vmatprep.subr.bf16.mxu0 %v2574
        %3127 = vmatpush1.bf16.msra.mxu0 %v2573
        %3128 = vmatprep.subr.bf16.mxu0 %v2580
        %3129 = vmatpush1.bf16.msra.mxu0 %v2579
        %3130 = vmatprep.mubr.bf16.mxu0 %v1040
        %3131 = vmatmul.mubr.bf16.gmra.mrb[0].mxu0 %v1039
        %v3132 = vpop.f32.mrb[0].mxu0
        %v3133 = vadd.f32 %v3090, %v3132
        %v3134 = vpop.f32.mrb[0].mxu0
        %v3135 = vadd.f32 %v3092, %v3134
        %v3136 = vpop.f32.mrb[0].mxu0
        %v3137 = vadd.f32 %v3094, %v3136
        %v3138 = vpop.f32.mrb[0].mxu0
        %v3139 = vadd.f32 %v3096, %v3138
        %3140 = vdwg.mxu0
        %3141 = vmatprep.subr.bf16.mxu0 %v2204
        %3142 = vmatpush1.bf16.msra.mxu0 %v2203
        %3143 = vmatprep.subr.bf16.mxu0 %v2210
        %3144 = vmatpush1.bf16.msra.mxu0 %v2209
        %3145 = vmatprep.subr.bf16.mxu0 %v2216
        %3146 = vmatpush1.bf16.msra.mxu0 %v2215
        %3147 = vmatprep.subr.bf16.mxu0 %v2222
        %3148 = vmatpush1.bf16.msra.mxu0 %v2221
        %3149 = vmatprep.subr.bf16.mxu0 %v2228
        %3150 = vmatpush1.bf16.msra.mxu0 %v2227
        %3151 = vmatprep.subr.bf16.mxu0 %v2234
        %3152 = vmatpush1.bf16.msra.mxu0 %v2233
        %3153 = vmatprep.subr.bf16.mxu0 %v2240
        %3154 = vmatpush1.bf16.msra.mxu0 %v2239
        %3155 = vmatprep.subr.bf16.mxu0 %v2246
        %3156 = vmatpush1.bf16.msra.mxu0 %v2245
        %3157 = vmatprep.subr.bf16.mxu0 %v2252
        %3158 = vmatpush1.bf16.msra.mxu0 %v2251
        %3159 = vmatprep.subr.bf16.mxu0 %v2258
        %3160 = vmatpush1.bf16.msra.mxu0 %v2257
        %3161 = vmatprep.subr.bf16.mxu0 %v2264
        %3162 = vmatpush1.bf16.msra.mxu0 %v2263
        %3163 = vmatprep.subr.bf16.mxu0 %v2270
        %3164 = vmatpush1.bf16.msra.mxu0 %v2269
        %3165 = vmatprep.subr.bf16.mxu0 %v2276
        %3166 = vmatpush1.bf16.msra.mxu0 %v2275
        %3167 = vmatprep.subr.bf16.mxu0 %v2282
        %3168 = vmatpush1.bf16.msra.mxu0 %v2281
        %3169 = vmatprep.subr.bf16.mxu0 %v2288
        %3170 = vmatpush1.bf16.msra.mxu0 %v2287
        %3171 = vmatprep.subr.bf16.mxu0 %v2294
        %3172 = vmatpush1.bf16.msra.mxu0 %v2293
        %3173 = vmatprep.mubr.bf16.mxu0 %v1034
        %3174 = vmatmul.mubr.bf16.gmra.mrb[0].mxu0 %v1033
        %v3175 = vpop.f32.mrb[0].mxu0
        %v3176 = vadd.f32 %v990, %v3175
        %v3177 = vpop.f32.mrb[0].mxu0
        %v3178 = vadd.f32 %v994, %v3177
        %v3179 = vpop.f32.mrb[0].mxu0
        %v3180 = vadd.f32 %v990, %v3179
        %v3181 = vpop.f32.mrb[0].mxu0
        %v3182 = vadd.f32 %v994, %v3181
        %3183 = vdwg.mxu0
        %3184 = vmatprep.subr.bf16.mxu0 %v2300
        %3185 = vmatpush1.bf16.msra.mxu0 %v2299
        %3186 = vmatprep.subr.bf16.mxu0 %v2306
        %3187 = vmatpush1.bf16.msra.mxu0 %v2305
        %3188 = vmatprep.subr.bf16.mxu0 %v2312
        %3189 = vmatpush1.bf16.msra.mxu0 %v2311
        %3190 = vmatprep.subr.bf16.mxu0 %v2318
        %3191 = vmatpush1.bf16.msra.mxu0 %v2317
        %3192 = vmatprep.subr.bf16.mxu0 %v2324
        %3193 = vmatpush1.bf16.msra.mxu0 %v2323
        %3194 = vmatprep.subr.bf16.mxu0 %v2330
        %3195 = vmatpush1.bf16.msra.mxu0 %v2329
        %3196 = vmatprep.subr.bf16.mxu0 %v2336
        %3197 = vmatpush1.bf16.msra.mxu0 %v2335
        %3198 = vmatprep.subr.bf16.mxu0 %v2342
        %3199 = vmatpush1.bf16.msra.mxu0 %v2341
        %3200 = vmatprep.subr.bf16.mxu0 %v2348
        %3201 = vmatpush1.bf16.msra.mxu0 %v2347
        %3202 = vmatprep.subr.bf16.mxu0 %v2354
        %3203 = vmatpush1.bf16.msra.mxu0 %v2353
        %3204 = vmatprep.subr.bf16.mxu0 %v2360
        %3205 = vmatpush1.bf16.msra.mxu0 %v2359
        %3206 = vmatprep.subr.bf16.mxu0 %v2366
        %3207 = vmatpush1.bf16.msra.mxu0 %v2365
        %3208 = vmatprep.subr.bf16.mxu0 %v2372
        %3209 = vmatpush1.bf16.msra.mxu0 %v2371
        %3210 = vmatprep.subr.bf16.mxu0 %v2378
        %3211 = vmatpush1.bf16.msra.mxu0 %v2377
        %3212 = vmatprep.subr.bf16.mxu0 %v2384
        %3213 = vmatpush1.bf16.msra.mxu0 %v2383
        %3214 = vmatprep.subr.bf16.mxu0 %v2390
        %3215 = vmatpush1.bf16.msra.mxu0 %v2389
        %3216 = vmatprep.mubr.bf16.mxu0 %v1036
        %3217 = vmatmul.mubr.bf16.gmra.mrb[0].mxu0 %v1035
        %v3218 = vpop.f32.mrb[0].mxu0
        %v3219 = vadd.f32 %v3176, %v3218
        %v3220 = vpop.f32.mrb[0].mxu0
        %v3221 = vadd.f32 %v3178, %v3220
        %v3222 = vpop.f32.mrb[0].mxu0
        %v3223 = vadd.f32 %v3180, %v3222
        %v3224 = vpop.f32.mrb[0].mxu0
        %v3225 = vadd.f32 %v3182, %v3224
        %3226 = vdwg.mxu0
        %3227 = vmatprep.subr.bf16.mxu0 %v2396
        %3228 = vmatpush1.bf16.msra.mxu0 %v2395
        %3229 = vmatprep.subr.bf16.mxu0 %v2402
        %3230 = vmatpush1.bf16.msra.mxu0 %v2401
        %3231 = vmatprep.subr.bf16.mxu0 %v2408
        %3232 = vmatpush1.bf16.msra.mxu0 %v2407
        %3233 = vmatprep.subr.bf16.mxu0 %v2414
        %3234 = vmatpush1.bf16.msra.mxu0 %v2413
        %3235 = vmatprep.subr.bf16.mxu0 %v2420
        %3236 = vmatpush1.bf16.msra.mxu0 %v2419
        %3237 = vmatprep.subr.bf16.mxu0 %v2426
        %3238 = vmatpush1.bf16.msra.mxu0 %v2425
        %3239 = vmatprep.subr.bf16.mxu0 %v2432
        %3240 = vmatpush1.bf16.msra.mxu0 %v2431
        %3241 = vmatprep.subr.bf16.mxu0 %v2438
        %3242 = vmatpush1.bf16.msra.mxu0 %v2437
        %3243 = vmatprep.subr.bf16.mxu0 %v2444
        %3244 = vmatpush1.bf16.msra.mxu0 %v2443
        %3245 = vmatprep.subr.bf16.mxu0 %v2450
        %3246 = vmatpush1.bf16.msra.mxu0 %v2449
        %3247 = vmatprep.subr.bf16.mxu0 %v2456
        %3248 = vmatpush1.bf16.msra.mxu0 %v2455
        %3249 = vmatprep.subr.bf16.mxu0 %v2462
        %3250 = vmatpush1.bf16.msra.mxu0 %v2461
        %3251 = vmatprep.subr.bf16.mxu0 %v2468
        %3252 = vmatpush1.bf16.msra.mxu0 %v2467
        %3253 = vmatprep.subr.bf16.mxu0 %v2474
        %3254 = vmatpush1.bf16.msra.mxu0 %v2473
        %3255 = vmatprep.subr.bf16.mxu0 %v2480
        %3256 = vmatpush1.bf16.msra.mxu0 %v2479
        %3257 = vmatprep.subr.bf16.mxu0 %v2486
        %3258 = vmatpush1.bf16.msra.mxu0 %v2485
        %3259 = vmatprep.mubr.bf16.mxu0 %v1038
        %3260 = vmatmul.mubr.bf16.gmra.mrb[0].mxu0 %v1037
        %v3261 = vpop.f32.mrb[0].mxu0
        %v3262 = vadd.f32 %v3219, %v3261
        %v3263 = vpop.f32.mrb[0].mxu0
        %v3264 = vadd.f32 %v3221, %v3263
        %v3265 = vpop.f32.mrb[0].mxu0
        %v3266 = vadd.f32 %v3223, %v3265
        %v3267 = vpop.f32.mrb[0].mxu0
        %v3268 = vadd.f32 %v3225, %v3267
        %3269 = vdwg.mxu0
        %3270 = vmatprep.subr.bf16.mxu0 %v2492
        %3271 = vmatpush1.bf16.msra.mxu0 %v2491
        %3272 = vmatprep.subr.bf16.mxu0 %v2498
        %3273 = vmatpush1.bf16.msra.mxu0 %v2497
        %3274 = vmatprep.subr.bf16.mxu0 %v2504
        %3275 = vmatpush1.bf16.msra.mxu0 %v2503
        %3276 = vmatprep.subr.bf16.mxu0 %v2510
        %3277 = vmatpush1.bf16.msra.mxu0 %v2509
        %3278 = vmatprep.subr.bf16.mxu0 %v2516
        %3279 = vmatpush1.bf16.msra.mxu0 %v2515
        %3280 = vmatprep.subr.bf16.mxu0 %v2522
        %3281 = vmatpush1.bf16.msra.mxu0 %v2521
        %3282 = vmatprep.subr.bf16.mxu0 %v2528
        %3283 = vmatpush1.bf16.msra.mxu0 %v2527
        %3284 = vmatprep.subr.bf16.mxu0 %v2534
        %3285 = vmatpush1.bf16.msra.mxu0 %v2533
        %3286 = vmatprep.subr.bf16.mxu0 %v2540
        %3287 = vmatpush1.bf16.msra.mxu0 %v2539
        %3288 = vmatprep.subr.bf16.mxu0 %v2546
        %3289 = vmatpush1.bf16.msra.mxu0 %v2545
        %3290 = vmatprep.subr.bf16.mxu0 %v2552
        %3291 = vmatpush1.bf16.msra.mxu0 %v2551
        %3292 = vmatprep.subr.bf16.mxu0 %v2558
        %3293 = vmatpush1.bf16.msra.mxu0 %v2557
        %3294 = vmatprep.subr.bf16.mxu0 %v2564
        %3295 = vmatpush1.bf16.msra.mxu0 %v2563
        %3296 = vmatprep.subr.bf16.mxu0 %v2570
        %3297 = vmatpush1.bf16.msra.mxu0 %v2569
        %3298 = vmatprep.subr.bf16.mxu0 %v2576
        %3299 = vmatpush1.bf16.msra.mxu0 %v2575
        %3300 = vmatprep.subr.bf16.mxu0 %v2582
        %3301 = vmatpush1.bf16.msra.mxu0 %v2581
        %3302 = vmatprep.mubr.bf16.mxu0 %v1040
        %3303 = vmatmul.mubr.bf16.gmra.mrb[0].mxu0 %v1039
        %v3304 = vpop.f32.mrb[0].mxu0
        %v3305 = vadd.f32 %v3262, %v3304
        %v3306 = vpop.f32.mrb[0].mxu0
        %v3307 = vadd.f32 %v3264, %v3306
        %v3308 = vpop.f32.mrb[0].mxu0
        %v3309 = vadd.f32 %v3266, %v3308
        %v3310 = vpop.f32.mrb[0].mxu0
        %v3311 = vadd.f32 %v3268, %v3310
        %3312 = vdwg.mxu0
        %3313 = vmatprep.subr.bf16.mxu0 %v2206
        %3314 = vmatpush1.bf16.msra.mxu0 %v2205
        %3315 = vmatprep.subr.bf16.mxu0 %v2212
        %3316 = vmatpush1.bf16.msra.mxu0 %v2211
        %3317 = vmatprep.subr.bf16.mxu0 %v2218
        %3318 = vmatpush1.bf16.msra.mxu0 %v2217
        %3319 = vmatprep.subr.bf16.mxu0 %v2224
        %3320 = vmatpush1.bf16.msra.mxu0 %v2223
        %3321 = vmatprep.subr.bf16.mxu0 %v2230
        %3322 = vmatpush1.bf16.msra.mxu0 %v2229
        %3323 = vmatprep.subr.bf16.mxu0 %v2236
        %3324 = vmatpush1.bf16.msra.mxu0 %v2235
        %3325 = vmatprep.subr.bf16.mxu0 %v2242
        %3326 = vmatpush1.bf16.msra.mxu0 %v2241
        %3327 = vmatprep.subr.bf16.mxu0 %v2248
        %3328 = vmatpush1.bf16.msra.mxu0 %v2247
        %3329 = vmatprep.subr.bf16.mxu0 %v2254
        %3330 = vmatpush1.bf16.msra.mxu0 %v2253
        %3331 = vmatprep.subr.bf16.mxu0 %v2260
        %3332 = vmatpush1.bf16.msra.mxu0 %v2259
        %3333 = vmatprep.subr.bf16.mxu0 %v2266
        %3334 = vmatpush1.bf16.msra.mxu0 %v2265
        %3335 = vmatprep.subr.bf16.mxu0 %v2272
        %3336 = vmatpush1.bf16.msra.mxu0 %v2271
        %3337 = vmatprep.subr.bf16.mxu0 %v2278
        %3338 = vmatpush1.bf16.msra.mxu0 %v2277
        %3339 = vmatprep.subr.bf16.mxu0 %v2284
        %3340 = vmatpush1.bf16.msra.mxu0 %v2283
        %3341 = vmatprep.subr.bf16.mxu0 %v2290
        %3342 = vmatpush1.bf16.msra.mxu0 %v2289
        %3343 = vmatprep.subr.bf16.mxu0 %v2296
        %3344 = vmatpush1.bf16.msra.mxu0 %v2295
        %3345 = vmatprep.mubr.bf16.mxu0 %v1034
        %3346 = vmatmul.mubr.bf16.gmra.mrb[0].mxu0 %v1033
        %v3347 = vpop.f32.mrb[0].mxu0
        %v3348 = vadd.f32 %v998, %v3347
        %v3349 = vpop.f32.mrb[0].mxu0
        %v3350 = vadd.f32 %v1002, %v3349
        %v3351 = vpop.f32.mrb[0].mxu0
        %v3352 = vadd.f32 %v998, %v3351
        %v3353 = vpop.f32.mrb[0].mxu0
        %v3354 = vadd.f32 %v1002, %v3353
        %3355 = vdwg.mxu0
        %3356 = vmatprep.subr.bf16.mxu0 %v2302
        %3357 = vmatpush1.bf16.msra.mxu0 %v2301
        %3358 = vmatprep.subr.bf16.mxu0 %v2308
        %3359 = vmatpush1.bf16.msra.mxu0 %v2307
        %3360 = vmatprep.subr.bf16.mxu0 %v2314
        %3361 = vmatpush1.bf16.msra.mxu0 %v2313
        %3362 = vmatprep.subr.bf16.mxu0 %v2320
        %3363 = vmatpush1.bf16.msra.mxu0 %v2319
        %3364 = vmatprep.subr.bf16.mxu0 %v2326
        %3365 = vmatpush1.bf16.msra.mxu0 %v2325
        %3366 = vmatprep.subr.bf16.mxu0 %v2332
        %3367 = vmatpush1.bf16.msra.mxu0 %v2331
        %3368 = vmatprep.subr.bf16.mxu0 %v2338
        %3369 = vmatpush1.bf16.msra.mxu0 %v2337
        %3370 = vmatprep.subr.bf16.mxu0 %v2344
        %3371 = vmatpush1.bf16.msra.mxu0 %v2343
        %3372 = vmatprep.subr.bf16.mxu0 %v2350
        %3373 = vmatpush1.bf16.msra.mxu0 %v2349
        %3374 = vmatprep.subr.bf16.mxu0 %v2356
        %3375 = vmatpush1.bf16.msra.mxu0 %v2355
        %3376 = vmatprep.subr.bf16.mxu0 %v2362
        %3377 = vmatpush1.bf16.msra.mxu0 %v2361
        %3378 = vmatprep.subr.bf16.mxu0 %v2368
        %3379 = vmatpush1.bf16.msra.mxu0 %v2367
        %3380 = vmatprep.subr.bf16.mxu0 %v2374
        %3381 = vmatpush1.bf16.msra.mxu0 %v2373
        %3382 = vmatprep.subr.bf16.mxu0 %v2380
        %3383 = vmatpush1.bf16.msra.mxu0 %v2379
        %3384 = vmatprep.subr.bf16.mxu0 %v2386
        %3385 = vmatpush1.bf16.msra.mxu0 %v2385
        %3386 = vmatprep.subr.bf16.mxu0 %v2392
        %3387 = vmatpush1.bf16.msra.mxu0 %v2391
        %3388 = vmatprep.mubr.bf16.mxu0 %v1036
        %3389 = vmatmul.mubr.bf16.gmra.mrb[0].mxu0 %v1035
        %v3390 = vpop.f32.mrb[0].mxu0
        %v3391 = vadd.f32 %v3348, %v3390
        %v3392 = vpop.f32.mrb[0].mxu0
        %v3393 = vadd.f32 %v3350, %v3392
        %v3394 = vpop.f32.mrb[0].mxu0
        %v3395 = vadd.f32 %v3352, %v3394
        %v3396 = vpop.f32.mrb[0].mxu0
        %v3397 = vadd.f32 %v3354, %v3396
        %3398 = vdwg.mxu0
        %3399 = vmatprep.subr.bf16.mxu0 %v2398
        %3400 = vmatpush1.bf16.msra.mxu0 %v2397
        %3401 = vmatprep.subr.bf16.mxu0 %v2404
        %3402 = vmatpush1.bf16.msra.mxu0 %v2403
        %3403 = vmatprep.subr.bf16.mxu0 %v2410
        %3404 = vmatpush1.bf16.msra.mxu0 %v2409
        %3405 = vmatprep.subr.bf16.mxu0 %v2416
        %3406 = vmatpush1.bf16.msra.mxu0 %v2415
        %3407 = vmatprep.subr.bf16.mxu0 %v2422
        %3408 = vmatpush1.bf16.msra.mxu0 %v2421
        %3409 = vmatprep.subr.bf16.mxu0 %v2428
        %3410 = vmatpush1.bf16.msra.mxu0 %v2427
        %3411 = vmatprep.subr.bf16.mxu0 %v2434
        %3412 = vmatpush1.bf16.msra.mxu0 %v2433
        %3413 = vmatprep.subr.bf16.mxu0 %v2440
        %3414 = vmatpush1.bf16.msra.mxu0 %v2439
        %3415 = vmatprep.subr.bf16.mxu0 %v2446
        %3416 = vmatpush1.bf16.msra.mxu0 %v2445
        %3417 = vmatprep.subr.bf16.mxu0 %v2452
        %3418 = vmatpush1.bf16.msra.mxu0 %v2451
        %3419 = vmatprep.subr.bf16.mxu0 %v2458
        %3420 = vmatpush1.bf16.msra.mxu0 %v2457
        %3421 = vmatprep.subr.bf16.mxu0 %v2464
        %3422 = vmatpush1.bf16.msra.mxu0 %v2463
        %3423 = vmatprep.subr.bf16.mxu0 %v2470
        %3424 = vmatpush1.bf16.msra.mxu0 %v2469
        %3425 = vmatprep.subr.bf16.mxu0 %v2476
        %3426 = vmatpush1.bf16.msra.mxu0 %v2475
        %3427 = vmatprep.subr.bf16.mxu0 %v2482
        %3428 = vmatpush1.bf16.msra.mxu0 %v2481
        %3429 = vmatprep.subr.bf16.mxu0 %v2488
        %3430 = vmatpush1.bf16.msra.mxu0 %v2487
        %3431 = vmatprep.mubr.bf16.mxu0 %v1038
        %3432 = vmatmul.mubr.bf16.gmra.mrb[0].mxu0 %v1037
        %v3433 = vpop.f32.mrb[0].mxu0
        %v3434 = vadd.f32 %v3391, %v3433
        %v3435 = vpop.f32.mrb[0].mxu0
        %v3436 = vadd.f32 %v3393, %v3435
        %v3437 = vpop.f32.mrb[0].mxu0
        %v3438 = vadd.f32 %v3395, %v3437
        %v3439 = vpop.f32.mrb[0].mxu0
        %v3440 = vadd.f32 %v3397, %v3439
        %3441 = vdwg.mxu0
        %3442 = vmatprep.subr.bf16.mxu0 %v2494
        %3443 = vmatpush1.bf16.msra.mxu0 %v2493
        %3444 = vmatprep.subr.bf16.mxu0 %v2500
        %3445 = vmatpush1.bf16.msra.mxu0 %v2499
        %3446 = vmatprep.subr.bf16.mxu0 %v2506
        %3447 = vmatpush1.bf16.msra.mxu0 %v2505
        %3448 = vmatprep.subr.bf16.mxu0 %v2512
        %3449 = vmatpush1.bf16.msra.mxu0 %v2511
        %3450 = vmatprep.subr.bf16.mxu0 %v2518
        %3451 = vmatpush1.bf16.msra.mxu0 %v2517
        %3452 = vmatprep.subr.bf16.mxu0 %v2524
        %3453 = vmatpush1.bf16.msra.mxu0 %v2523
        %3454 = vmatprep.subr.bf16.mxu0 %v2530
        %3455 = vmatpush1.bf16.msra.mxu0 %v2529
        %3456 = vmatprep.subr.bf16.mxu0 %v2536
        %3457 = vmatpush1.bf16.msra.mxu0 %v2535
        %3458 = vmatprep.subr.bf16.mxu0 %v2542
        %3459 = vmatpush1.bf16.msra.mxu0 %v2541
        %3460 = vmatprep.subr.bf16.mxu0 %v2548
        %3461 = vmatpush1.bf16.msra.mxu0 %v2547
        %3462 = vmatprep.subr.bf16.mxu0 %v2554
        %3463 = vmatpush1.bf16.msra.mxu0 %v2553
        %3464 = vmatprep.subr.bf16.mxu0 %v2560
        %3465 = vmatpush1.bf16.msra.mxu0 %v2559
        %3466 = vmatprep.subr.bf16.mxu0 %v2566
        %3467 = vmatpush1.bf16.msra.mxu0 %v2565
        %3468 = vmatprep.subr.bf16.mxu0 %v2572
        %3469 = vmatpush1.bf16.msra.mxu0 %v2571
        %3470 = vmatprep.subr.bf16.mxu0 %v2578
        %3471 = vmatpush1.bf16.msra.mxu0 %v2577
        %3472 = vmatprep.subr.bf16.mxu0 %v2584
        %3473 = vmatpush1.bf16.msra.mxu0 %v2583
        %3474 = vmatprep.mubr.bf16.mxu0 %v1040
        %3475 = vmatmul.mubr.bf16.gmra.mrb[0].mxu0 %v1039
        %v3476 = vpop.f32.mrb[0].mxu0
        %v3477 = vadd.f32 %v3434, %v3476
        %v3478 = vpop.f32.mrb[0].mxu0
        %v3479 = vadd.f32 %v3436, %v3478
        %v3480 = vpop.f32.mrb[0].mxu0
        %v3481 = vadd.f32 %v3438, %v3480
        %v3482 = vpop.f32.mrb[0].mxu0
        %v3483 = vadd.f32 %v3440, %v3482
        %3484 = vdwg.mxu0
        %vm3485 = vcmp.gt.f32.partialorder %v3133, 0.0
        %vm3486 = vcmp.gt.f32.partialorder %v3135, 0.0
        %vm3487 = vcmp.gt.f32.partialorder %v3305, 0.0
        %vm3488 = vcmp.gt.f32.partialorder %v3307, 0.0
        %vm3489 = vcmp.gt.f32.partialorder %v3477, 0.0
        %vm3490 = vcmp.gt.f32.partialorder %v3479, 0.0
        %vm3491 = vcmp.gt.f32.partialorder %v3137, 0.0
        %vm3492 = vcmp.gt.f32.partialorder %v3139, 0.0
        %vm3493 = vcmp.gt.f32.partialorder %v3309, 0.0
        %vm3494 = vcmp.gt.f32.partialorder %v3311, 0.0
        %vm3495 = vcmp.gt.f32.partialorder %v3481, 0.0
        %vm3496 = vcmp.gt.f32.partialorder %v3483, 0.0
        %v3497 = vmul.f32 %v3133, 0.01
        %v3498 = vmul.f32 %v3135, 0.01
        %v3499 = vmul.f32 %v3305, 0.01
        %v3500 = vmul.f32 %v3307, 0.01
        %v3501 = vmul.f32 %v3477, 0.01
        %v3502 = vmul.f32 %v3479, 0.01
        %v3503 = vmul.f32 %v3137, 0.01
        %v3504 = vmul.f32 %v3139, 0.01
        %v3505 = vmul.f32 %v3309, 0.01
        %v3506 = vmul.f32 %v3311, 0.01
        %v3507 = vmul.f32 %v3481, 0.01
        %v3508 = vmul.f32 %v3483, 0.01
        %v3509 = vsel %vm3485, %v3133, %v3497
        %v3510 = vsel %vm3486, %v3135, %v3498
        %v3511 = vsel %vm3487, %v3305, %v3499
        %v3512 = vsel %vm3488, %v3307, %v3500
        %v3513 = vsel %vm3489, %v3477, %v3501
        %v3514 = vsel %vm3490, %v3479, %v3502
        %v3515 = vsel %vm3491, %v3137, %v3503
        %v3516 = vsel %vm3492, %v3139, %v3504
        %v3517 = vsel %vm3493, %v3309, %v3505
        %v3518 = vsel %vm3494, %v3311, %v3506
        %v3519 = vsel %vm3495, %v3481, %v3507
        %v3520 = vsel %vm3496, %v3483, %v3508
        %v3521 = vpack.c.bf16 %v3515, %v3509
        %v3522 = vpack.c.bf16 %v3516, %v3510
        %v3523 = vpack.c.bf16 %v3517, %v3511
        %v3524 = vpack.c.bf16 %v3518, %v3512
        %v3525 = vpack.c.bf16 %v3519, %v3513
        %v3526 = vpack.c.bf16 %v3520, %v3514
        %v3527 = vld [vmem:[#allocation6] sm:$0xff]
        %v3528 = vld [vmem:[#allocation6 + $0x8] sm:$0xff]
        %v3529 = vld [vmem:[#allocation6 + $0x10] sm:$0xff]
        %v3530 = vld [vmem:[#allocation6 + $0x18] sm:$0xff]
        %v3531 = vld [vmem:[#allocation6 + $0x20] sm:$0xff]
        %v3532 = vld [vmem:[#allocation6 + $0x28] sm:$0xff]
        %v3533 = vld [vmem:[#allocation6 + $0x30] sm:$0xff]
        %v3534 = vld [vmem:[#allocation6 + $0x38] sm:$0xff]
        %v3535 = vld [vmem:[#allocation6 + $0x40] sm:$0xff]
        %v3536 = vld [vmem:[#allocation6 + $0x48] sm:$0xff]
        %v3537 = vld [vmem:[#allocation6 + $0x50] sm:$0xff]
        %v3538 = vld [vmem:[#allocation6 + $0x58] sm:$0xff]
        %v3539 = vld [vmem:[#allocation6 + $0x60] sm:$0xff]
        %v3540 = vld [vmem:[#allocation6 + $0x68] sm:$0xff]
        %v3541 = vld [vmem:[#allocation6 + $0x70] sm:$0xff]
        %v3542 = vld [vmem:[#allocation6 + $0x78] sm:$0xff]
        %v3543 = vld [vmem:[#allocation6 + $0x80] sm:$0xff]
        %v3544 = vld [vmem:[#allocation6 + $0x88] sm:$0xff]
        %v3545 = vld [vmem:[#allocation6 + $0x90] sm:$0xff]
        %v3546 = vld [vmem:[#allocation6 + $0x98] sm:$0xff]
        %v3547 = vld [vmem:[#allocation6 + $0xa0] sm:$0xff]
        %v3548 = vld [vmem:[#allocation6 + $0xa8] sm:$0xff]
        %v3549 = vld [vmem:[#allocation6 + $0xb0] sm:$0xff]
        %v3550 = vld [vmem:[#allocation6 + $0xb8] sm:$0xff]
        %v3551 = vld [vmem:[#allocation6 + $0xc0] sm:$0xff]
        %v3552 = vld [vmem:[#allocation6 + $0xc8] sm:$0xff]
        %v3553 = vld [vmem:[#allocation6 + $0xd0] sm:$0xff]
        %v3554 = vld [vmem:[#allocation6 + $0xd8] sm:$0xff]
        %v3555 = vld [vmem:[#allocation6 + $0xe0] sm:$0xff]
        %v3556 = vld [vmem:[#allocation6 + $0xe8] sm:$0xff]
        %v3557 = vld [vmem:[#allocation6 + $0xf0] sm:$0xff]
        %v3558 = vld [vmem:[#allocation6 + $0xf8] sm:$0xff]
        %v3559 = vld [vmem:[#allocation6 + $0x100] sm:$0xff]
        %v3560 = vld [vmem:[#allocation6 + $0x108] sm:$0xff]
        %v3561 = vld [vmem:[#allocation6 + $0x110] sm:$0xff]
        %v3562 = vld [vmem:[#allocation6 + $0x118] sm:$0xff]
        %v3563 = vld [vmem:[#allocation6 + $0x120] sm:$0xff]
        %v3564 = vld [vmem:[#allocation6 + $0x128] sm:$0xff]
        %v3565 = vld [vmem:[#allocation6 + $0x130] sm:$0xff]
        %v3566 = vld [vmem:[#allocation6 + $0x138] sm:$0xff]
        %v3567 = vld [vmem:[#allocation6 + $0x140] sm:$0xff]
        %v3568 = vld [vmem:[#allocation6 + $0x148] sm:$0xff]
        %v3569 = vld [vmem:[#allocation6 + $0x150] sm:$0xff]
        %v3570 = vld [vmem:[#allocation6 + $0x158] sm:$0xff]
        %v3571 = vld [vmem:[#allocation6 + $0x160] sm:$0xff]
        %v3572 = vld [vmem:[#allocation6 + $0x168] sm:$0xff]
        %v3573 = vld [vmem:[#allocation6 + $0x170] sm:$0xff]
        %v3574 = vld [vmem:[#allocation6 + $0x178] sm:$0xff]
        %v3575 = vld [vmem:[#allocation6 + $0x180] sm:$0xff]
        %v3576 = vld [vmem:[#allocation6 + $0x188] sm:$0xff]
        %v3577 = vld [vmem:[#allocation6 + $0x190] sm:$0xff]
        %v3578 = vld [vmem:[#allocation6 + $0x198] sm:$0xff]
        %v3579 = vld [vmem:[#allocation6 + $0x1a0] sm:$0xff]
        %v3580 = vld [vmem:[#allocation6 + $0x1a8] sm:$0xff]
        %v3581 = vld [vmem:[#allocation6 + $0x1b0] sm:$0xff]
        %v3582 = vld [vmem:[#allocation6 + $0x1b8] sm:$0xff]
        %v3583 = vld [vmem:[#allocation6 + $0x1c0] sm:$0xff]
        %v3584 = vld [vmem:[#allocation6 + $0x1c8] sm:$0xff]
        %v3585 = vld [vmem:[#allocation6 + $0x1d0] sm:$0xff]
        %v3586 = vld [vmem:[#allocation6 + $0x1d8] sm:$0xff]
        %v3587 = vld [vmem:[#allocation6 + $0x1e0] sm:$0xff]
        %v3588 = vld [vmem:[#allocation6 + $0x1e8] sm:$0xff]
        %v3589 = vld [vmem:[#allocation6 + $0x1f0] sm:$0xff]
        %v3590 = vld [vmem:[#allocation6 + $0x1f8] sm:$0xff]
        %v3591 = vld [vmem:[#allocation6 + $0x200] sm:$0xff]
        %v3592 = vld [vmem:[#allocation6 + $0x208] sm:$0xff]
        %v3593 = vld [vmem:[#allocation6 + $0x210] sm:$0xff]
        %v3594 = vld [vmem:[#allocation6 + $0x218] sm:$0xff]
        %v3595 = vld [vmem:[#allocation6 + $0x220] sm:$0xff]
        %v3596 = vld [vmem:[#allocation6 + $0x228] sm:$0xff]
        %v3597 = vld [vmem:[#allocation6 + $0x230] sm:$0xff]
        %v3598 = vld [vmem:[#allocation6 + $0x238] sm:$0xff]
        %v3599 = vld [vmem:[#allocation6 + $0x240] sm:$0xff]
        %v3600 = vld [vmem:[#allocation6 + $0x248] sm:$0xff]
        %v3601 = vld [vmem:[#allocation6 + $0x250] sm:$0xff]
        %v3602 = vld [vmem:[#allocation6 + $0x258] sm:$0xff]
        %v3603 = vld [vmem:[#allocation6 + $0x260] sm:$0xff]
        %v3604 = vld [vmem:[#allocation6 + $0x268] sm:$0xff]
        %v3605 = vld [vmem:[#allocation6 + $0x270] sm:$0xff]
        %v3606 = vld [vmem:[#allocation6 + $0x278] sm:$0xff]
        %v3607 = vld [vmem:[#allocation6 + $0x280] sm:$0xff]
        %v3608 = vld [vmem:[#allocation6 + $0x288] sm:$0xff]
        %v3609 = vld [vmem:[#allocation6 + $0x290] sm:$0xff]
        %v3610 = vld [vmem:[#allocation6 + $0x298] sm:$0xff]
        %v3611 = vld [vmem:[#allocation6 + $0x2a0] sm:$0xff]
        %v3612 = vld [vmem:[#allocation6 + $0x2a8] sm:$0xff]
        %v3613 = vld [vmem:[#allocation6 + $0x2b0] sm:$0xff]
        %v3614 = vld [vmem:[#allocation6 + $0x2b8] sm:$0xff]
        %v3615 = vld [vmem:[#allocation6 + $0x2c0] sm:$0xff]
        %v3616 = vld [vmem:[#allocation6 + $0x2c8] sm:$0xff]
        %v3617 = vld [vmem:[#allocation6 + $0x2d0] sm:$0xff]
        %v3618 = vld [vmem:[#allocation6 + $0x2d8] sm:$0xff]
        %v3619 = vld [vmem:[#allocation6 + $0x2e0] sm:$0xff]
        %v3620 = vld [vmem:[#allocation6 + $0x2e8] sm:$0xff]
        %v3621 = vld [vmem:[#allocation6 + $0x2f0] sm:$0xff]
        %v3622 = vld [vmem:[#allocation6 + $0x2f8] sm:$0xff]
        %v3623 = vld [vmem:[#allocation6 + $0x300] sm:$0xff]
        %v3624 = vld [vmem:[#allocation6 + $0x308] sm:$0xff]
        %v3625 = vld [vmem:[#allocation6 + $0x310] sm:$0xff]
        %v3626 = vld [vmem:[#allocation6 + $0x318] sm:$0xff]
        %v3627 = vld [vmem:[#allocation6 + $0x320] sm:$0xff]
        %v3628 = vld [vmem:[#allocation6 + $0x328] sm:$0xff]
        %v3629 = vld [vmem:[#allocation6 + $0x330] sm:$0xff]
        %v3630 = vld [vmem:[#allocation6 + $0x338] sm:$0xff]
        %v3631 = vld [vmem:[#allocation6 + $0x340] sm:$0xff]
        %v3632 = vld [vmem:[#allocation6 + $0x348] sm:$0xff]
        %v3633 = vld [vmem:[#allocation6 + $0x350] sm:$0xff]
        %v3634 = vld [vmem:[#allocation6 + $0x358] sm:$0xff]
        %v3635 = vld [vmem:[#allocation6 + $0x360] sm:$0xff]
        %v3636 = vld [vmem:[#allocation6 + $0x368] sm:$0xff]
        %v3637 = vld [vmem:[#allocation6 + $0x370] sm:$0xff]
        %v3638 = vld [vmem:[#allocation6 + $0x378] sm:$0xff]
        %v3639 = vld [vmem:[#allocation6 + $0x380] sm:$0xff]
        %v3640 = vld [vmem:[#allocation6 + $0x388] sm:$0xff]
        %v3641 = vld [vmem:[#allocation6 + $0x390] sm:$0xff]
        %v3642 = vld [vmem:[#allocation6 + $0x398] sm:$0xff]
        %v3643 = vld [vmem:[#allocation6 + $0x3a0] sm:$0xff]
        %v3644 = vld [vmem:[#allocation6 + $0x3a8] sm:$0xff]
        %v3645 = vld [vmem:[#allocation6 + $0x3b0] sm:$0xff]
        %v3646 = vld [vmem:[#allocation6 + $0x3b8] sm:$0xff]
        %v3647 = vld [vmem:[#allocation6 + $0x3c0] sm:$0xff]
        %v3648 = vld [vmem:[#allocation6 + $0x3c8] sm:$0xff]
        %v3649 = vld [vmem:[#allocation6 + $0x3d0] sm:$0xff]
        %v3650 = vld [vmem:[#allocation6 + $0x3d8] sm:$0xff]
        %v3651 = vld [vmem:[#allocation6 + $0x3e0] sm:$0xff]
        %v3652 = vld [vmem:[#allocation6 + $0x3e8] sm:$0xff]
        %v3653 = vld [vmem:[#allocation6 + $0x3f0] sm:$0xff]
        %v3654 = vld [vmem:[#allocation6 + $0x3f8] sm:$0xff]
        %v3655 = vld [vmem:[#allocation6 + $0x400] sm:$0xff]
        %v3656 = vld [vmem:[#allocation6 + $0x408] sm:$0xff]
        %v3657 = vld [vmem:[#allocation6 + $0x410] sm:$0xff]
        %v3658 = vld [vmem:[#allocation6 + $0x418] sm:$0xff]
        %v3659 = vld [vmem:[#allocation6 + $0x420] sm:$0xff]
        %v3660 = vld [vmem:[#allocation6 + $0x428] sm:$0xff]
        %v3661 = vld [vmem:[#allocation6 + $0x430] sm:$0xff]
        %v3662 = vld [vmem:[#allocation6 + $0x438] sm:$0xff]
        %v3663 = vld [vmem:[#allocation6 + $0x440] sm:$0xff]
        %v3664 = vld [vmem:[#allocation6 + $0x448] sm:$0xff]
        %v3665 = vld [vmem:[#allocation6 + $0x450] sm:$0xff]
        %v3666 = vld [vmem:[#allocation6 + $0x458] sm:$0xff]
        %v3667 = vld [vmem:[#allocation6 + $0x460] sm:$0xff]
        %v3668 = vld [vmem:[#allocation6 + $0x468] sm:$0xff]
        %v3669 = vld [vmem:[#allocation6 + $0x470] sm:$0xff]
        %v3670 = vld [vmem:[#allocation6 + $0x478] sm:$0xff]
        %v3671 = vld [vmem:[#allocation6 + $0x480] sm:$0xff]
        %v3672 = vld [vmem:[#allocation6 + $0x488] sm:$0xff]
        %v3673 = vld [vmem:[#allocation6 + $0x490] sm:$0xff]
        %v3674 = vld [vmem:[#allocation6 + $0x498] sm:$0xff]
        %v3675 = vld [vmem:[#allocation6 + $0x4a0] sm:$0xff]
        %v3676 = vld [vmem:[#allocation6 + $0x4a8] sm:$0xff]
        %v3677 = vld [vmem:[#allocation6 + $0x4b0] sm:$0xff]
        %v3678 = vld [vmem:[#allocation6 + $0x4b8] sm:$0xff]
        %v3679 = vld [vmem:[#allocation6 + $0x4c0] sm:$0xff]
        %v3680 = vld [vmem:[#allocation6 + $0x4c8] sm:$0xff]
        %v3681 = vld [vmem:[#allocation6 + $0x4d0] sm:$0xff]
        %v3682 = vld [vmem:[#allocation6 + $0x4d8] sm:$0xff]
        %v3683 = vld [vmem:[#allocation6 + $0x4e0] sm:$0xff]
        %v3684 = vld [vmem:[#allocation6 + $0x4e8] sm:$0xff]
        %v3685 = vld [vmem:[#allocation6 + $0x4f0] sm:$0xff]
        %v3686 = vld [vmem:[#allocation6 + $0x4f8] sm:$0xff]
        %v3687 = vld [vmem:[#allocation6 + $0x500] sm:$0xff]
        %v3688 = vld [vmem:[#allocation6 + $0x508] sm:$0xff]
        %v3689 = vld [vmem:[#allocation6 + $0x510] sm:$0xff]
        %v3690 = vld [vmem:[#allocation6 + $0x518] sm:$0xff]
        %v3691 = vld [vmem:[#allocation6 + $0x520] sm:$0xff]
        %v3692 = vld [vmem:[#allocation6 + $0x528] sm:$0xff]
        %v3693 = vld [vmem:[#allocation6 + $0x530] sm:$0xff]
        %v3694 = vld [vmem:[#allocation6 + $0x538] sm:$0xff]
        %v3695 = vld [vmem:[#allocation6 + $0x540] sm:$0xff]
        %v3696 = vld [vmem:[#allocation6 + $0x548] sm:$0xff]
        %v3697 = vld [vmem:[#allocation6 + $0x550] sm:$0xff]
        %v3698 = vld [vmem:[#allocation6 + $0x558] sm:$0xff]
        %v3699 = vld [vmem:[#allocation6 + $0x560] sm:$0xff]
        %v3700 = vld [vmem:[#allocation6 + $0x568] sm:$0xff]
        %v3701 = vld [vmem:[#allocation6 + $0x570] sm:$0xff]
        %v3702 = vld [vmem:[#allocation6 + $0x578] sm:$0xff]
        %v3703 = vld [vmem:[#allocation6 + $0x580] sm:$0xff]
        %v3704 = vld [vmem:[#allocation6 + $0x588] sm:$0xff]
        %v3705 = vld [vmem:[#allocation6 + $0x590] sm:$0xff]
        %v3706 = vld [vmem:[#allocation6 + $0x598] sm:$0xff]
        %v3707 = vld [vmem:[#allocation6 + $0x5a0] sm:$0xff]
        %v3708 = vld [vmem:[#allocation6 + $0x5a8] sm:$0xff]
        %v3709 = vld [vmem:[#allocation6 + $0x5b0] sm:$0xff]
        %v3710 = vld [vmem:[#allocation6 + $0x5b8] sm:$0xff]
        %v3711 = vld [vmem:[#allocation6 + $0x5c0] sm:$0xff]
        %v3712 = vld [vmem:[#allocation6 + $0x5c8] sm:$0xff]
        %v3713 = vld [vmem:[#allocation6 + $0x5d0] sm:$0xff]
        %v3714 = vld [vmem:[#allocation6 + $0x5d8] sm:$0xff]
        %v3715 = vld [vmem:[#allocation6 + $0x5e0] sm:$0xff]
        %v3716 = vld [vmem:[#allocation6 + $0x5e8] sm:$0xff]
        %v3717 = vld [vmem:[#allocation6 + $0x5f0] sm:$0xff]
        %v3718 = vld [vmem:[#allocation6 + $0x5f8] sm:$0xff]
        %s3719 = scalar_lea.vmem [#allocation2], 1
        %v3720 = vld [vmem:[%s3719] ss:$8 sm:$0xf]
        %v3722 = vlaneseq
        %v3723 = vshrl.u32 %v3722, 7
        %v3724 = vsub.s32 0, %v3723
        %v3725 = vrot.slane %v3720, %v3724
        %v3726 = vlaneseq
        %v3727 = vshrl.u32 %v3726, 7
        %v3728 = vsub.s32 1, %v3727
        %v3729 = vrot.slane %v3720, %v3728
        %v3730 = vlaneseq
        %v3731 = vshrl.u32 %v3730, 7
        %v3732 = vsub.s32 2, %v3731
        %v3733 = vrot.slane %v3720, %v3732
        %v3734 = vlaneseq
        %v3735 = vshrl.u32 %v3734, 7
        %v3736 = vsub.s32 3, %v3735
        %v3737 = vrot.slane %v3720, %v3736
        %v3934 = vunpack.c.l.b16 %v3527
        %v3935 = vunpack.c.h.b16 %v3527
        %v3936 = vunpack.c.l.b16 %v3528
        %v3937 = vunpack.c.h.b16 %v3528
        %v3938 = vunpack.c.l.b16 %v3529
        %v3939 = vunpack.c.h.b16 %v3529
        %v3940 = vunpack.c.l.b16 %v3530
        %v3941 = vunpack.c.h.b16 %v3530
        %v3942 = vunpack.c.l.b16 %v3531
        %v3943 = vunpack.c.h.b16 %v3531
        %v3944 = vunpack.c.l.b16 %v3532
        %v3945 = vunpack.c.h.b16 %v3532
        %v3946 = vunpack.c.l.b16 %v3533
        %v3947 = vunpack.c.h.b16 %v3533
        %v3948 = vunpack.c.l.b16 %v3534
        %v3949 = vunpack.c.h.b16 %v3534
        %v3950 = vunpack.c.l.b16 %v3535
        %v3951 = vunpack.c.h.b16 %v3535
        %v3952 = vunpack.c.l.b16 %v3536
        %v3953 = vunpack.c.h.b16 %v3536
        %v3954 = vunpack.c.l.b16 %v3537
        %v3955 = vunpack.c.h.b16 %v3537
        %v3956 = vunpack.c.l.b16 %v3538
        %v3957 = vunpack.c.h.b16 %v3538
        %v3958 = vunpack.c.l.b16 %v3539
        %v3959 = vunpack.c.h.b16 %v3539
        %v3960 = vunpack.c.l.b16 %v3540
        %v3961 = vunpack.c.h.b16 %v3540
        %v3962 = vunpack.c.l.b16 %v3541
        %v3963 = vunpack.c.h.b16 %v3541
        %v3964 = vunpack.c.l.b16 %v3542
        %v3965 = vunpack.c.h.b16 %v3542
        %v3966 = vunpack.c.l.b16 %v3543
        %v3967 = vunpack.c.h.b16 %v3543
        %v3968 = vunpack.c.l.b16 %v3544
        %v3969 = vunpack.c.h.b16 %v3544
        %v3970 = vunpack.c.l.b16 %v3545
        %v3971 = vunpack.c.h.b16 %v3545
        %v3972 = vunpack.c.l.b16 %v3546
        %v3973 = vunpack.c.h.b16 %v3546
        %v3974 = vunpack.c.l.b16 %v3547
        %v3975 = vunpack.c.h.b16 %v3547
        %v3976 = vunpack.c.l.b16 %v3548
        %v3977 = vunpack.c.h.b16 %v3548
        %v3978 = vunpack.c.l.b16 %v3549
        %v3979 = vunpack.c.h.b16 %v3549
        %v3980 = vunpack.c.l.b16 %v3550
        %v3981 = vunpack.c.h.b16 %v3550
        %v3982 = vunpack.c.l.b16 %v3551
        %v3983 = vunpack.c.h.b16 %v3551
        %v3984 = vunpack.c.l.b16 %v3552
        %v3985 = vunpack.c.h.b16 %v3552
        %v3986 = vunpack.c.l.b16 %v3553
        %v3987 = vunpack.c.h.b16 %v3553
        %v3988 = vunpack.c.l.b16 %v3554
        %v3989 = vunpack.c.h.b16 %v3554
        %v3990 = vunpack.c.l.b16 %v3555
        %v3991 = vunpack.c.h.b16 %v3555
        %v3992 = vunpack.c.l.b16 %v3556
        %v3993 = vunpack.c.h.b16 %v3556
        %v3994 = vunpack.c.l.b16 %v3557
        %v3995 = vunpack.c.h.b16 %v3557
        %v3996 = vunpack.c.l.b16 %v3558
        %v3997 = vunpack.c.h.b16 %v3558
        %v3998 = vunpack.c.l.b16 %v3559
        %v3999 = vunpack.c.h.b16 %v3559
        %v4000 = vunpack.c.l.b16 %v3560
        %v4001 = vunpack.c.h.b16 %v3560
        %v4002 = vunpack.c.l.b16 %v3561
        %v4003 = vunpack.c.h.b16 %v3561
        %v4004 = vunpack.c.l.b16 %v3562
        %v4005 = vunpack.c.h.b16 %v3562
        %v4006 = vunpack.c.l.b16 %v3563
        %v4007 = vunpack.c.h.b16 %v3563
        %v4008 = vunpack.c.l.b16 %v3564
        %v4009 = vunpack.c.h.b16 %v3564
        %v4010 = vunpack.c.l.b16 %v3565
        %v4011 = vunpack.c.h.b16 %v3565
        %v4012 = vunpack.c.l.b16 %v3566
        %v4013 = vunpack.c.h.b16 %v3566
        %v4014 = vunpack.c.l.b16 %v3567
        %v4015 = vunpack.c.h.b16 %v3567
        %v4016 = vunpack.c.l.b16 %v3568
        %v4017 = vunpack.c.h.b16 %v3568
        %v4018 = vunpack.c.l.b16 %v3569
        %v4019 = vunpack.c.h.b16 %v3569
        %v4020 = vunpack.c.l.b16 %v3570
        %v4021 = vunpack.c.h.b16 %v3570
        %v4022 = vunpack.c.l.b16 %v3571
        %v4023 = vunpack.c.h.b16 %v3571
        %v4024 = vunpack.c.l.b16 %v3572
        %v4025 = vunpack.c.h.b16 %v3572
        %v4026 = vunpack.c.l.b16 %v3573
        %v4027 = vunpack.c.h.b16 %v3573
        %v4028 = vunpack.c.l.b16 %v3574
        %v4029 = vunpack.c.h.b16 %v3574
        %v4030 = vunpack.c.l.b16 %v3575
        %v4031 = vunpack.c.h.b16 %v3575
        %v4032 = vunpack.c.l.b16 %v3576
        %v4033 = vunpack.c.h.b16 %v3576
        %v4034 = vunpack.c.l.b16 %v3577
        %v4035 = vunpack.c.h.b16 %v3577
        %v4036 = vunpack.c.l.b16 %v3578
        %v4037 = vunpack.c.h.b16 %v3578
        %v4038 = vunpack.c.l.b16 %v3579
        %v4039 = vunpack.c.h.b16 %v3579
        %v4040 = vunpack.c.l.b16 %v3580
        %v4041 = vunpack.c.h.b16 %v3580
        %v4042 = vunpack.c.l.b16 %v3581
        %v4043 = vunpack.c.h.b16 %v3581
        %v4044 = vunpack.c.l.b16 %v3582
        %v4045 = vunpack.c.h.b16 %v3582
        %v4046 = vunpack.c.l.b16 %v3583
        %v4047 = vunpack.c.h.b16 %v3583
        %v4048 = vunpack.c.l.b16 %v3584
        %v4049 = vunpack.c.h.b16 %v3584
        %v4050 = vunpack.c.l.b16 %v3585
        %v4051 = vunpack.c.h.b16 %v3585
        %v4052 = vunpack.c.l.b16 %v3586
        %v4053 = vunpack.c.h.b16 %v3586
        %v4054 = vunpack.c.l.b16 %v3587
        %v4055 = vunpack.c.h.b16 %v3587
        %v4056 = vunpack.c.l.b16 %v3588
        %v4057 = vunpack.c.h.b16 %v3588
        %v4058 = vunpack.c.l.b16 %v3589
        %v4059 = vunpack.c.h.b16 %v3589
        %v4060 = vunpack.c.l.b16 %v3590
        %v4061 = vunpack.c.h.b16 %v3590
        %v4062 = vunpack.c.l.b16 %v3591
        %v4063 = vunpack.c.h.b16 %v3591
        %v4064 = vunpack.c.l.b16 %v3592
        %v4065 = vunpack.c.h.b16 %v3592
        %v4066 = vunpack.c.l.b16 %v3593
        %v4067 = vunpack.c.h.b16 %v3593
        %v4068 = vunpack.c.l.b16 %v3594
        %v4069 = vunpack.c.h.b16 %v3594
        %v4070 = vunpack.c.l.b16 %v3595
        %v4071 = vunpack.c.h.b16 %v3595
        %v4072 = vunpack.c.l.b16 %v3596
        %v4073 = vunpack.c.h.b16 %v3596
        %v4074 = vunpack.c.l.b16 %v3597
        %v4075 = vunpack.c.h.b16 %v3597
        %v4076 = vunpack.c.l.b16 %v3598
        %v4077 = vunpack.c.h.b16 %v3598
        %v4078 = vunpack.c.l.b16 %v3599
        %v4079 = vunpack.c.h.b16 %v3599
        %v4080 = vunpack.c.l.b16 %v3600
        %v4081 = vunpack.c.h.b16 %v3600
        %v4082 = vunpack.c.l.b16 %v3601
        %v4083 = vunpack.c.h.b16 %v3601
        %v4084 = vunpack.c.l.b16 %v3602
        %v4085 = vunpack.c.h.b16 %v3602
        %v4086 = vunpack.c.l.b16 %v3603
        %v4087 = vunpack.c.h.b16 %v3603
        %v4088 = vunpack.c.l.b16 %v3604
        %v4089 = vunpack.c.h.b16 %v3604
        %v4090 = vunpack.c.l.b16 %v3605
        %v4091 = vunpack.c.h.b16 %v3605
        %v4092 = vunpack.c.l.b16 %v3606
        %v4093 = vunpack.c.h.b16 %v3606
        %v4094 = vunpack.c.l.b16 %v3607
        %v4095 = vunpack.c.h.b16 %v3607
        %v4096 = vunpack.c.l.b16 %v3608
        %v4097 = vunpack.c.h.b16 %v3608
        %v4098 = vunpack.c.l.b16 %v3609
        %v4099 = vunpack.c.h.b16 %v3609
        %v4100 = vunpack.c.l.b16 %v3610
        %v4101 = vunpack.c.h.b16 %v3610
        %v4102 = vunpack.c.l.b16 %v3611
        %v4103 = vunpack.c.h.b16 %v3611
        %v4104 = vunpack.c.l.b16 %v3612
        %v4105 = vunpack.c.h.b16 %v3612
        %v4106 = vunpack.c.l.b16 %v3613
        %v4107 = vunpack.c.h.b16 %v3613
        %v4108 = vunpack.c.l.b16 %v3614
        %v4109 = vunpack.c.h.b16 %v3614
        %v4110 = vunpack.c.l.b16 %v3615
        %v4111 = vunpack.c.h.b16 %v3615
        %v4112 = vunpack.c.l.b16 %v3616
        %v4113 = vunpack.c.h.b16 %v3616
        %v4114 = vunpack.c.l.b16 %v3617
        %v4115 = vunpack.c.h.b16 %v3617
        %v4116 = vunpack.c.l.b16 %v3618
        %v4117 = vunpack.c.h.b16 %v3618
        %v4118 = vunpack.c.l.b16 %v3619
        %v4119 = vunpack.c.h.b16 %v3619
        %v4120 = vunpack.c.l.b16 %v3620
        %v4121 = vunpack.c.h.b16 %v3620
        %v4122 = vunpack.c.l.b16 %v3621
        %v4123 = vunpack.c.h.b16 %v3621
        %v4124 = vunpack.c.l.b16 %v3622
        %v4125 = vunpack.c.h.b16 %v3622
        %v4126 = vunpack.c.l.b16 %v3623
        %v4127 = vunpack.c.h.b16 %v3623
        %v4128 = vunpack.c.l.b16 %v3624
        %v4129 = vunpack.c.h.b16 %v3624
        %v4130 = vunpack.c.l.b16 %v3625
        %v4131 = vunpack.c.h.b16 %v3625
        %v4132 = vunpack.c.l.b16 %v3626
        %v4133 = vunpack.c.h.b16 %v3626
        %v4134 = vunpack.c.l.b16 %v3627
        %v4135 = vunpack.c.h.b16 %v3627
        %v4136 = vunpack.c.l.b16 %v3628
        %v4137 = vunpack.c.h.b16 %v3628
        %v4138 = vunpack.c.l.b16 %v3629
        %v4139 = vunpack.c.h.b16 %v3629
        %v4140 = vunpack.c.l.b16 %v3630
        %v4141 = vunpack.c.h.b16 %v3630
        %v4142 = vunpack.c.l.b16 %v3631
        %v4143 = vunpack.c.h.b16 %v3631
        %v4144 = vunpack.c.l.b16 %v3632
        %v4145 = vunpack.c.h.b16 %v3632
        %v4146 = vunpack.c.l.b16 %v3633
        %v4147 = vunpack.c.h.b16 %v3633
        %v4148 = vunpack.c.l.b16 %v3634
        %v4149 = vunpack.c.h.b16 %v3634
        %v4150 = vunpack.c.l.b16 %v3635
        %v4151 = vunpack.c.h.b16 %v3635
        %v4152 = vunpack.c.l.b16 %v3636
        %v4153 = vunpack.c.h.b16 %v3636
        %v4154 = vunpack.c.l.b16 %v3637
        %v4155 = vunpack.c.h.b16 %v3637
        %v4156 = vunpack.c.l.b16 %v3638
        %v4157 = vunpack.c.h.b16 %v3638
        %v4158 = vunpack.c.l.b16 %v3639
        %v4159 = vunpack.c.h.b16 %v3639
        %v4160 = vunpack.c.l.b16 %v3640
        %v4161 = vunpack.c.h.b16 %v3640
        %v4162 = vunpack.c.l.b16 %v3641
        %v4163 = vunpack.c.h.b16 %v3641
        %v4164 = vunpack.c.l.b16 %v3642
        %v4165 = vunpack.c.h.b16 %v3642
        %v4166 = vunpack.c.l.b16 %v3643
        %v4167 = vunpack.c.h.b16 %v3643
        %v4168 = vunpack.c.l.b16 %v3644
        %v4169 = vunpack.c.h.b16 %v3644
        %v4170 = vunpack.c.l.b16 %v3645
        %v4171 = vunpack.c.h.b16 %v3645
        %v4172 = vunpack.c.l.b16 %v3646
        %v4173 = vunpack.c.h.b16 %v3646
        %v4174 = vunpack.c.l.b16 %v3647
        %v4175 = vunpack.c.h.b16 %v3647
        %v4176 = vunpack.c.l.b16 %v3648
        %v4177 = vunpack.c.h.b16 %v3648
        %v4178 = vunpack.c.l.b16 %v3649
        %v4179 = vunpack.c.h.b16 %v3649
        %v4180 = vunpack.c.l.b16 %v3650
        %v4181 = vunpack.c.h.b16 %v3650
        %v4182 = vunpack.c.l.b16 %v3651
        %v4183 = vunpack.c.h.b16 %v3651
        %v4184 = vunpack.c.l.b16 %v3652
        %v4185 = vunpack.c.h.b16 %v3652
        %v4186 = vunpack.c.l.b16 %v3653
        %v4187 = vunpack.c.h.b16 %v3653
        %v4188 = vunpack.c.l.b16 %v3654
        %v4189 = vunpack.c.h.b16 %v3654
        %v4190 = vunpack.c.l.b16 %v3655
        %v4191 = vunpack.c.h.b16 %v3655
        %v4192 = vunpack.c.l.b16 %v3656
        %v4193 = vunpack.c.h.b16 %v3656
        %v4194 = vunpack.c.l.b16 %v3657
        %v4195 = vunpack.c.h.b16 %v3657
        %v4196 = vunpack.c.l.b16 %v3658
        %v4197 = vunpack.c.h.b16 %v3658
        %v4198 = vunpack.c.l.b16 %v3659
        %v4199 = vunpack.c.h.b16 %v3659
        %v4200 = vunpack.c.l.b16 %v3660
        %v4201 = vunpack.c.h.b16 %v3660
        %v4202 = vunpack.c.l.b16 %v3661
        %v4203 = vunpack.c.h.b16 %v3661
        %v4204 = vunpack.c.l.b16 %v3662
        %v4205 = vunpack.c.h.b16 %v3662
        %v4206 = vunpack.c.l.b16 %v3663
        %v4207 = vunpack.c.h.b16 %v3663
        %v4208 = vunpack.c.l.b16 %v3664
        %v4209 = vunpack.c.h.b16 %v3664
        %v4210 = vunpack.c.l.b16 %v3665
        %v4211 = vunpack.c.h.b16 %v3665
        %v4212 = vunpack.c.l.b16 %v3666
        %v4213 = vunpack.c.h.b16 %v3666
        %v4214 = vunpack.c.l.b16 %v3667
        %v4215 = vunpack.c.h.b16 %v3667
        %v4216 = vunpack.c.l.b16 %v3668
        %v4217 = vunpack.c.h.b16 %v3668
        %v4218 = vunpack.c.l.b16 %v3669
        %v4219 = vunpack.c.h.b16 %v3669
        %v4220 = vunpack.c.l.b16 %v3670
        %v4221 = vunpack.c.h.b16 %v3670
        %v4222 = vunpack.c.l.b16 %v3671
        %v4223 = vunpack.c.h.b16 %v3671
        %v4224 = vunpack.c.l.b16 %v3672
        %v4225 = vunpack.c.h.b16 %v3672
        %v4226 = vunpack.c.l.b16 %v3673
        %v4227 = vunpack.c.h.b16 %v3673
        %v4228 = vunpack.c.l.b16 %v3674
        %v4229 = vunpack.c.h.b16 %v3674
        %v4230 = vunpack.c.l.b16 %v3675
        %v4231 = vunpack.c.h.b16 %v3675
        %v4232 = vunpack.c.l.b16 %v3676
        %v4233 = vunpack.c.h.b16 %v3676
        %v4234 = vunpack.c.l.b16 %v3677
        %v4235 = vunpack.c.h.b16 %v3677
        %v4236 = vunpack.c.l.b16 %v3678
        %v4237 = vunpack.c.h.b16 %v3678
        %v4238 = vunpack.c.l.b16 %v3679
        %v4239 = vunpack.c.h.b16 %v3679
        %v4240 = vunpack.c.l.b16 %v3680
        %v4241 = vunpack.c.h.b16 %v3680
        %v4242 = vunpack.c.l.b16 %v3681
        %v4243 = vunpack.c.h.b16 %v3681
        %v4244 = vunpack.c.l.b16 %v3682
        %v4245 = vunpack.c.h.b16 %v3682
        %v4246 = vunpack.c.l.b16 %v3683
        %v4247 = vunpack.c.h.b16 %v3683
        %v4248 = vunpack.c.l.b16 %v3684
        %v4249 = vunpack.c.h.b16 %v3684
        %v4250 = vunpack.c.l.b16 %v3685
        %v4251 = vunpack.c.h.b16 %v3685
        %v4252 = vunpack.c.l.b16 %v3686
        %v4253 = vunpack.c.h.b16 %v3686
        %v4254 = vunpack.c.l.b16 %v3687
        %v4255 = vunpack.c.h.b16 %v3687
        %v4256 = vunpack.c.l.b16 %v3688
        %v4257 = vunpack.c.h.b16 %v3688
        %v4258 = vunpack.c.l.b16 %v3689
        %v4259 = vunpack.c.h.b16 %v3689
        %v4260 = vunpack.c.l.b16 %v3690
        %v4261 = vunpack.c.h.b16 %v3690
        %v4262 = vunpack.c.l.b16 %v3691
        %v4263 = vunpack.c.h.b16 %v3691
        %v4264 = vunpack.c.l.b16 %v3692
        %v4265 = vunpack.c.h.b16 %v3692
        %v4266 = vunpack.c.l.b16 %v3693
        %v4267 = vunpack.c.h.b16 %v3693
        %v4268 = vunpack.c.l.b16 %v3694
        %v4269 = vunpack.c.h.b16 %v3694
        %v4270 = vunpack.c.l.b16 %v3695
        %v4271 = vunpack.c.h.b16 %v3695
        %v4272 = vunpack.c.l.b16 %v3696
        %v4273 = vunpack.c.h.b16 %v3696
        %v4274 = vunpack.c.l.b16 %v3697
        %v4275 = vunpack.c.h.b16 %v3697
        %v4276 = vunpack.c.l.b16 %v3698
        %v4277 = vunpack.c.h.b16 %v3698
        %v4278 = vunpack.c.l.b16 %v3699
        %v4279 = vunpack.c.h.b16 %v3699
        %v4280 = vunpack.c.l.b16 %v3700
        %v4281 = vunpack.c.h.b16 %v3700
        %v4282 = vunpack.c.l.b16 %v3701
        %v4283 = vunpack.c.h.b16 %v3701
        %v4284 = vunpack.c.l.b16 %v3702
        %v4285 = vunpack.c.h.b16 %v3702
        %v4286 = vunpack.c.l.b16 %v3703
        %v4287 = vunpack.c.h.b16 %v3703
        %v4288 = vunpack.c.l.b16 %v3704
        %v4289 = vunpack.c.h.b16 %v3704
        %v4290 = vunpack.c.l.b16 %v3705
        %v4291 = vunpack.c.h.b16 %v3705
        %v4292 = vunpack.c.l.b16 %v3706
        %v4293 = vunpack.c.h.b16 %v3706
        %v4294 = vunpack.c.l.b16 %v3707
        %v4295 = vunpack.c.h.b16 %v3707
        %v4296 = vunpack.c.l.b16 %v3708
        %v4297 = vunpack.c.h.b16 %v3708
        %v4298 = vunpack.c.l.b16 %v3709
        %v4299 = vunpack.c.h.b16 %v3709
        %v4300 = vunpack.c.l.b16 %v3710
        %v4301 = vunpack.c.h.b16 %v3710
        %v4302 = vunpack.c.l.b16 %v3711
        %v4303 = vunpack.c.h.b16 %v3711
        %v4304 = vunpack.c.l.b16 %v3712
        %v4305 = vunpack.c.h.b16 %v3712
        %v4306 = vunpack.c.l.b16 %v3713
        %v4307 = vunpack.c.h.b16 %v3713
        %v4308 = vunpack.c.l.b16 %v3714
        %v4309 = vunpack.c.h.b16 %v3714
        %v4310 = vunpack.c.l.b16 %v3715
        %v4311 = vunpack.c.h.b16 %v3715
        %v4312 = vunpack.c.l.b16 %v3716
        %v4313 = vunpack.c.h.b16 %v3716
        %v4314 = vunpack.c.l.b16 %v3717
        %v4315 = vunpack.c.h.b16 %v3717
        %v4316 = vunpack.c.l.b16 %v3718
        %v4317 = vunpack.c.h.b16 %v3718
        %v4318 = vpack.c.b16 %v3938, %v3934
        %v4319 = vpack.c.b16 %v3939, %v3935
        %v4320 = vpack.c.b16 %v3940, %v3936
        %v4321 = vpack.c.b16 %v3941, %v3937
        %v4322 = vpack.c.b16 %v3946, %v3942
        %v4323 = vpack.c.b16 %v3947, %v3943
        %v4324 = vpack.c.b16 %v3948, %v3944
        %v4325 = vpack.c.b16 %v3949, %v3945
        %v4326 = vpack.c.b16 %v3954, %v3950
        %v4327 = vpack.c.b16 %v3955, %v3951
        %v4328 = vpack.c.b16 %v3956, %v3952
        %v4329 = vpack.c.b16 %v3957, %v3953
        %v4330 = vpack.c.b16 %v3962, %v3958
        %v4331 = vpack.c.b16 %v3963, %v3959
        %v4332 = vpack.c.b16 %v3964, %v3960
        %v4333 = vpack.c.b16 %v3965, %v3961
        %v4334 = vpack.c.b16 %v3970, %v3966
        %v4335 = vpack.c.b16 %v3971, %v3967
        %v4336 = vpack.c.b16 %v3972, %v3968
        %v4337 = vpack.c.b16 %v3973, %v3969
        %v4338 = vpack.c.b16 %v3978, %v3974
        %v4339 = vpack.c.b16 %v3979, %v3975
        %v4340 = vpack.c.b16 %v3980, %v3976
        %v4341 = vpack.c.b16 %v3981, %v3977
        %v4342 = vpack.c.b16 %v3986, %v3982
        %v4343 = vpack.c.b16 %v3987, %v3983
        %v4344 = vpack.c.b16 %v3988, %v3984
        %v4345 = vpack.c.b16 %v3989, %v3985
        %v4346 = vpack.c.b16 %v3994, %v3990
        %v4347 = vpack.c.b16 %v3995, %v3991
        %v4348 = vpack.c.b16 %v3996, %v3992
        %v4349 = vpack.c.b16 %v3997, %v3993
        %v4350 = vpack.c.b16 %v4002, %v3998
        %v4351 = vpack.c.b16 %v4003, %v3999
        %v4352 = vpack.c.b16 %v4004, %v4000
        %v4353 = vpack.c.b16 %v4005, %v4001
        %v4354 = vpack.c.b16 %v4010, %v4006
        %v4355 = vpack.c.b16 %v4011, %v4007
        %v4356 = vpack.c.b16 %v4012, %v4008
        %v4357 = vpack.c.b16 %v4013, %v4009
        %v4358 = vpack.c.b16 %v4018, %v4014
        %v4359 = vpack.c.b16 %v4019, %v4015
        %v4360 = vpack.c.b16 %v4020, %v4016
        %v4361 = vpack.c.b16 %v4021, %v4017
        %v4362 = vpack.c.b16 %v4026, %v4022
        %v4363 = vpack.c.b16 %v4027, %v4023
        %v4364 = vpack.c.b16 %v4028, %v4024
        %v4365 = vpack.c.b16 %v4029, %v4025
        %v4366 = vpack.c.b16 %v4034, %v4030
        %v4367 = vpack.c.b16 %v4035, %v4031
        %v4368 = vpack.c.b16 %v4036, %v4032
        %v4369 = vpack.c.b16 %v4037, %v4033
        %v4370 = vpack.c.b16 %v4042, %v4038
        %v4371 = vpack.c.b16 %v4043, %v4039
        %v4372 = vpack.c.b16 %v4044, %v4040
        %v4373 = vpack.c.b16 %v4045, %v4041
        %v4374 = vpack.c.b16 %v4050, %v4046
        %v4375 = vpack.c.b16 %v4051, %v4047
        %v4376 = vpack.c.b16 %v4052, %v4048
        %v4377 = vpack.c.b16 %v4053, %v4049
        %v4378 = vpack.c.b16 %v4058, %v4054
        %v4379 = vpack.c.b16 %v4059, %v4055
        %v4380 = vpack.c.b16 %v4060, %v4056
        %v4381 = vpack.c.b16 %v4061, %v4057
        %v4382 = vpack.c.b16 %v4066, %v4062
        %v4383 = vpack.c.b16 %v4067, %v4063
        %v4384 = vpack.c.b16 %v4068, %v4064
        %v4385 = vpack.c.b16 %v4069, %v4065
        %v4386 = vpack.c.b16 %v4074, %v4070
        %v4387 = vpack.c.b16 %v4075, %v4071
        %v4388 = vpack.c.b16 %v4076, %v4072
        %v4389 = vpack.c.b16 %v4077, %v4073
        %v4390 = vpack.c.b16 %v4082, %v4078
        %v4391 = vpack.c.b16 %v4083, %v4079
        %v4392 = vpack.c.b16 %v4084, %v4080
        %v4393 = vpack.c.b16 %v4085, %v4081
        %v4394 = vpack.c.b16 %v4090, %v4086
        %v4395 = vpack.c.b16 %v4091, %v4087
        %v4396 = vpack.c.b16 %v4092, %v4088
        %v4397 = vpack.c.b16 %v4093, %v4089
        %v4398 = vpack.c.b16 %v4098, %v4094
        %v4399 = vpack.c.b16 %v4099, %v4095
        %v4400 = vpack.c.b16 %v4100, %v4096
        %v4401 = vpack.c.b16 %v4101, %v4097
        %v4402 = vpack.c.b16 %v4106, %v4102
        %v4403 = vpack.c.b16 %v4107, %v4103
        %v4404 = vpack.c.b16 %v4108, %v4104
        %v4405 = vpack.c.b16 %v4109, %v4105
        %v4406 = vpack.c.b16 %v4114, %v4110
        %v4407 = vpack.c.b16 %v4115, %v4111
        %v4408 = vpack.c.b16 %v4116, %v4112
        %v4409 = vpack.c.b16 %v4117, %v4113
        %v4410 = vpack.c.b16 %v4122, %v4118
        %v4411 = vpack.c.b16 %v4123, %v4119
        %v4412 = vpack.c.b16 %v4124, %v4120
        %v4413 = vpack.c.b16 %v4125, %v4121
        %v4414 = vpack.c.b16 %v4130, %v4126
        %v4415 = vpack.c.b16 %v4131, %v4127
        %v4416 = vpack.c.b16 %v4132, %v4128
        %v4417 = vpack.c.b16 %v4133, %v4129
        %v4418 = vpack.c.b16 %v4138, %v4134
        %v4419 = vpack.c.b16 %v4139, %v4135
        %v4420 = vpack.c.b16 %v4140, %v4136
        %v4421 = vpack.c.b16 %v4141, %v4137
        %v4422 = vpack.c.b16 %v4146, %v4142
        %v4423 = vpack.c.b16 %v4147, %v4143
        %v4424 = vpack.c.b16 %v4148, %v4144
        %v4425 = vpack.c.b16 %v4149, %v4145
        %v4426 = vpack.c.b16 %v4154, %v4150
        %v4427 = vpack.c.b16 %v4155, %v4151
        %v4428 = vpack.c.b16 %v4156, %v4152
        %v4429 = vpack.c.b16 %v4157, %v4153
        %v4430 = vpack.c.b16 %v4162, %v4158
        %v4431 = vpack.c.b16 %v4163, %v4159
        %v4432 = vpack.c.b16 %v4164, %v4160
        %v4433 = vpack.c.b16 %v4165, %v4161
        %v4434 = vpack.c.b16 %v4170, %v4166
        %v4435 = vpack.c.b16 %v4171, %v4167
        %v4436 = vpack.c.b16 %v4172, %v4168
        %v4437 = vpack.c.b16 %v4173, %v4169
        %v4438 = vpack.c.b16 %v4178, %v4174
        %v4439 = vpack.c.b16 %v4179, %v4175
        %v4440 = vpack.c.b16 %v4180, %v4176
        %v4441 = vpack.c.b16 %v4181, %v4177
        %v4442 = vpack.c.b16 %v4186, %v4182
        %v4443 = vpack.c.b16 %v4187, %v4183
        %v4444 = vpack.c.b16 %v4188, %v4184
        %v4445 = vpack.c.b16 %v4189, %v4185
        %v4446 = vpack.c.b16 %v4194, %v4190
        %v4447 = vpack.c.b16 %v4195, %v4191
        %v4448 = vpack.c.b16 %v4196, %v4192
        %v4449 = vpack.c.b16 %v4197, %v4193
        %v4450 = vpack.c.b16 %v4202, %v4198
        %v4451 = vpack.c.b16 %v4203, %v4199
        %v4452 = vpack.c.b16 %v4204, %v4200
        %v4453 = vpack.c.b16 %v4205, %v4201
        %v4454 = vpack.c.b16 %v4210, %v4206
        %v4455 = vpack.c.b16 %v4211, %v4207
        %v4456 = vpack.c.b16 %v4212, %v4208
        %v4457 = vpack.c.b16 %v4213, %v4209
        %v4458 = vpack.c.b16 %v4218, %v4214
        %v4459 = vpack.c.b16 %v4219, %v4215
        %v4460 = vpack.c.b16 %v4220, %v4216
        %v4461 = vpack.c.b16 %v4221, %v4217
        %v4462 = vpack.c.b16 %v4226, %v4222
        %v4463 = vpack.c.b16 %v4227, %v4223
        %v4464 = vpack.c.b16 %v4228, %v4224
        %v4465 = vpack.c.b16 %v4229, %v4225
        %v4466 = vpack.c.b16 %v4234, %v4230
        %v4467 = vpack.c.b16 %v4235, %v4231
        %v4468 = vpack.c.b16 %v4236, %v4232
        %v4469 = vpack.c.b16 %v4237, %v4233
        %v4470 = vpack.c.b16 %v4242, %v4238
        %v4471 = vpack.c.b16 %v4243, %v4239
        %v4472 = vpack.c.b16 %v4244, %v4240
        %v4473 = vpack.c.b16 %v4245, %v4241
        %v4474 = vpack.c.b16 %v4250, %v4246
        %v4475 = vpack.c.b16 %v4251, %v4247
        %v4476 = vpack.c.b16 %v4252, %v4248
        %v4477 = vpack.c.b16 %v4253, %v4249
        %v4478 = vpack.c.b16 %v4258, %v4254
        %v4479 = vpack.c.b16 %v4259, %v4255
        %v4480 = vpack.c.b16 %v4260, %v4256
        %v4481 = vpack.c.b16 %v4261, %v4257
        %v4482 = vpack.c.b16 %v4266, %v4262
        %v4483 = vpack.c.b16 %v4267, %v4263
        %v4484 = vpack.c.b16 %v4268, %v4264
        %v4485 = vpack.c.b16 %v4269, %v4265
        %v4486 = vpack.c.b16 %v4274, %v4270
        %v4487 = vpack.c.b16 %v4275, %v4271
        %v4488 = vpack.c.b16 %v4276, %v4272
        %v4489 = vpack.c.b16 %v4277, %v4273
        %v4490 = vpack.c.b16 %v4282, %v4278
        %v4491 = vpack.c.b16 %v4283, %v4279
        %v4492 = vpack.c.b16 %v4284, %v4280
        %v4493 = vpack.c.b16 %v4285, %v4281
        %v4494 = vpack.c.b16 %v4290, %v4286
        %v4495 = vpack.c.b16 %v4291, %v4287
        %v4496 = vpack.c.b16 %v4292, %v4288
        %v4497 = vpack.c.b16 %v4293, %v4289
        %v4498 = vpack.c.b16 %v4298, %v4294
        %v4499 = vpack.c.b16 %v4299, %v4295
        %v4500 = vpack.c.b16 %v4300, %v4296
        %v4501 = vpack.c.b16 %v4301, %v4297
        %v4502 = vpack.c.b16 %v4306, %v4302
        %v4503 = vpack.c.b16 %v4307, %v4303
        %v4504 = vpack.c.b16 %v4308, %v4304
        %v4505 = vpack.c.b16 %v4309, %v4305
        %v4506 = vpack.c.b16 %v4314, %v4310
        %v4507 = vpack.c.b16 %v4315, %v4311
        %v4508 = vpack.c.b16 %v4316, %v4312
        %v4509 = vpack.c.b16 %v4317, %v4313
        %4702 = vmatprep.subr.bf16.mxu0 %v4319
        %4703 = vmatpush1.bf16.msra.mxu0 %v4318
        %4704 = vmatprep.subr.bf16.mxu0 %v4323
        %4705 = vmatpush1.bf16.msra.mxu0 %v4322
        %4706 = vmatprep.subr.bf16.mxu0 %v4327
        %4707 = vmatpush1.bf16.msra.mxu0 %v4326
        %4708 = vmatprep.subr.bf16.mxu0 %v4331
        %4709 = vmatpush1.bf16.msra.mxu0 %v4330
        %4710 = vmatprep.subr.bf16.mxu0 %v4335
        %4711 = vmatpush1.bf16.msra.mxu0 %v4334
        %4712 = vmatprep.subr.bf16.mxu0 %v4339
        %4713 = vmatpush1.bf16.msra.mxu0 %v4338
        %4714 = vmatprep.subr.bf16.mxu0 %v4343
        %4715 = vmatpush1.bf16.msra.mxu0 %v4342
        %4716 = vmatprep.subr.bf16.mxu0 %v4347
        %4717 = vmatpush1.bf16.msra.mxu0 %v4346
        %4718 = vmatprep.subr.bf16.mxu0 %v4351
        %4719 = vmatpush1.bf16.msra.mxu0 %v4350
        %4720 = vmatprep.subr.bf16.mxu0 %v4355
        %4721 = vmatpush1.bf16.msra.mxu0 %v4354
        %4722 = vmatprep.subr.bf16.mxu0 %v4359
        %4723 = vmatpush1.bf16.msra.mxu0 %v4358
        %4724 = vmatprep.subr.bf16.mxu0 %v4363
        %4725 = vmatpush1.bf16.msra.mxu0 %v4362
        %4726 = vmatprep.subr.bf16.mxu0 %v4367
        %4727 = vmatpush1.bf16.msra.mxu0 %v4366
        %4728 = vmatprep.subr.bf16.mxu0 %v4371
        %4729 = vmatpush1.bf16.msra.mxu0 %v4370
        %4730 = vmatprep.subr.bf16.mxu0 %v4375
        %4731 = vmatpush1.bf16.msra.mxu0 %v4374
        %4732 = vmatprep.subr.bf16.mxu0 %v4379
        %4733 = vmatpush1.bf16.msra.mxu0 %v4378
        %4734 = vmatprep.mubr.bf16.mxu0 %v3522
        %4735 = vmatmul.mubr.bf16.gmra.mrb[0].mxu0 %v3521
        %v4736 = vpop.f32.mrb[0].mxu0
        %v4737 = vadd.f32 %v3725, %v4736
        %v4738 = vpop.f32.mrb[0].mxu0
        %v4739 = vadd.f32 %v3729, %v4738
        %v4740 = vpop.f32.mrb[0].mxu0
        %v4741 = vadd.f32 %v3725, %v4740
        %v4742 = vpop.f32.mrb[0].mxu0
        %v4743 = vadd.f32 %v3729, %v4742
        %4744 = vdwg.mxu0
        %4745 = vmatprep.subr.bf16.mxu0 %v4383
        %4746 = vmatpush1.bf16.msra.mxu0 %v4382
        %4747 = vmatprep.subr.bf16.mxu0 %v4387
        %4748 = vmatpush1.bf16.msra.mxu0 %v4386
        %4749 = vmatprep.subr.bf16.mxu0 %v4391
        %4750 = vmatpush1.bf16.msra.mxu0 %v4390
        %4751 = vmatprep.subr.bf16.mxu0 %v4395
        %4752 = vmatpush1.bf16.msra.mxu0 %v4394
        %4753 = vmatprep.subr.bf16.mxu0 %v4399
        %4754 = vmatpush1.bf16.msra.mxu0 %v4398
        %4755 = vmatprep.subr.bf16.mxu0 %v4403
        %4756 = vmatpush1.bf16.msra.mxu0 %v4402
        %4757 = vmatprep.subr.bf16.mxu0 %v4407
        %4758 = vmatpush1.bf16.msra.mxu0 %v4406
        %4759 = vmatprep.subr.bf16.mxu0 %v4411
        %4760 = vmatpush1.bf16.msra.mxu0 %v4410
        %4761 = vmatprep.subr.bf16.mxu0 %v4415
        %4762 = vmatpush1.bf16.msra.mxu0 %v4414
        %4763 = vmatprep.subr.bf16.mxu0 %v4419
        %4764 = vmatpush1.bf16.msra.mxu0 %v4418
        %4765 = vmatprep.subr.bf16.mxu0 %v4423
        %4766 = vmatpush1.bf16.msra.mxu0 %v4422
        %4767 = vmatprep.subr.bf16.mxu0 %v4427
        %4768 = vmatpush1.bf16.msra.mxu0 %v4426
        %4769 = vmatprep.subr.bf16.mxu0 %v4431
        %4770 = vmatpush1.bf16.msra.mxu0 %v4430
        %4771 = vmatprep.subr.bf16.mxu0 %v4435
        %4772 = vmatpush1.bf16.msra.mxu0 %v4434
        %4773 = vmatprep.subr.bf16.mxu0 %v4439
        %4774 = vmatpush1.bf16.msra.mxu0 %v4438
        %4775 = vmatprep.subr.bf16.mxu0 %v4443
        %4776 = vmatpush1.bf16.msra.mxu0 %v4442
        %4777 = vmatprep.mubr.bf16.mxu0 %v3524
        %4778 = vmatmul.mubr.bf16.gmra.mrb[0].mxu0 %v3523
        %v4779 = vpop.f32.mrb[0].mxu0
        %v4780 = vadd.f32 %v4737, %v4779
        %v4781 = vpop.f32.mrb[0].mxu0
        %v4782 = vadd.f32 %v4739, %v4781
        %v4783 = vpop.f32.mrb[0].mxu0
        %v4784 = vadd.f32 %v4741, %v4783
        %v4785 = vpop.f32.mrb[0].mxu0
        %v4786 = vadd.f32 %v4743, %v4785
        %4787 = vdwg.mxu0
        %4788 = vmatprep.subr.bf16.mxu0 %v4447
        %4789 = vmatpush1.bf16.msra.mxu0 %v4446
        %4790 = vmatprep.subr.bf16.mxu0 %v4451
        %4791 = vmatpush1.bf16.msra.mxu0 %v4450
        %4792 = vmatprep.subr.bf16.mxu0 %v4455
        %4793 = vmatpush1.bf16.msra.mxu0 %v4454
        %4794 = vmatprep.subr.bf16.mxu0 %v4459
        %4795 = vmatpush1.bf16.msra.mxu0 %v4458
        %4796 = vmatprep.subr.bf16.mxu0 %v4463
        %4797 = vmatpush1.bf16.msra.mxu0 %v4462
        %4798 = vmatprep.subr.bf16.mxu0 %v4467
        %4799 = vmatpush1.bf16.msra.mxu0 %v4466
        %4800 = vmatprep.subr.bf16.mxu0 %v4471
        %4801 = vmatpush1.bf16.msra.mxu0 %v4470
        %4802 = vmatprep.subr.bf16.mxu0 %v4475
        %4803 = vmatpush1.bf16.msra.mxu0 %v4474
        %4804 = vmatprep.subr.bf16.mxu0 %v4479
        %4805 = vmatpush1.bf16.msra.mxu0 %v4478
        %4806 = vmatprep.subr.bf16.mxu0 %v4483
        %4807 = vmatpush1.bf16.msra.mxu0 %v4482
        %4808 = vmatprep.subr.bf16.mxu0 %v4487
        %4809 = vmatpush1.bf16.msra.mxu0 %v4486
        %4810 = vmatprep.subr.bf16.mxu0 %v4491
        %4811 = vmatpush1.bf16.msra.mxu0 %v4490
        %4812 = vmatprep.subr.bf16.mxu0 %v4495
        %4813 = vmatpush1.bf16.msra.mxu0 %v4494
        %4814 = vmatprep.subr.bf16.mxu0 %v4499
        %4815 = vmatpush1.bf16.msra.mxu0 %v4498
        %4816 = vmatprep.subr.bf16.mxu0 %v4503
        %4817 = vmatpush1.bf16.msra.mxu0 %v4502
        %4818 = vmatprep.subr.bf16.mxu0 %v4507
        %4819 = vmatpush1.bf16.msra.mxu0 %v4506
        %4820 = vmatprep.mubr.bf16.mxu0 %v3526
        %4821 = vmatmul.mubr.bf16.gmra.mrb[0].mxu0 %v3525
        %v4822 = vpop.f32.mrb[0].mxu0
        %v4823 = vadd.f32 %v4780, %v4822
        %v4824 = vpop.f32.mrb[0].mxu0
        %v4825 = vadd.f32 %v4782, %v4824
        %v4826 = vpop.f32.mrb[0].mxu0
        %v4827 = vadd.f32 %v4784, %v4826
        %v4828 = vpop.f32.mrb[0].mxu0
        %v4829 = vadd.f32 %v4786, %v4828
        %4830 = vdwg.mxu0
        %4831 = vmatprep.subr.bf16.mxu0 %v4321
        %4832 = vmatpush1.bf16.msra.mxu0 %v4320
        %4833 = vmatprep.subr.bf16.mxu0 %v4325
        %4834 = vmatpush1.bf16.msra.mxu0 %v4324
        %4835 = vmatprep.subr.bf16.mxu0 %v4329
        %4836 = vmatpush1.bf16.msra.mxu0 %v4328
        %4837 = vmatprep.subr.bf16.mxu0 %v4333
        %4838 = vmatpush1.bf16.msra.mxu0 %v4332
        %4839 = vmatprep.subr.bf16.mxu0 %v4337
        %4840 = vmatpush1.bf16.msra.mxu0 %v4336
        %4841 = vmatprep.subr.bf16.mxu0 %v4341
        %4842 = vmatpush1.bf16.msra.mxu0 %v4340
        %4843 = vmatprep.subr.bf16.mxu0 %v4345
        %4844 = vmatpush1.bf16.msra.mxu0 %v4344
        %4845 = vmatprep.subr.bf16.mxu0 %v4349
        %4846 = vmatpush1.bf16.msra.mxu0 %v4348
        %4847 = vmatprep.subr.bf16.mxu0 %v4353
        %4848 = vmatpush1.bf16.msra.mxu0 %v4352
        %4849 = vmatprep.subr.bf16.mxu0 %v4357
        %4850 = vmatpush1.bf16.msra.mxu0 %v4356
        %4851 = vmatprep.subr.bf16.mxu0 %v4361
        %4852 = vmatpush1.bf16.msra.mxu0 %v4360
        %4853 = vmatprep.subr.bf16.mxu0 %v4365
        %4854 = vmatpush1.bf16.msra.mxu0 %v4364
        %4855 = vmatprep.subr.bf16.mxu0 %v4369
        %4856 = vmatpush1.bf16.msra.mxu0 %v4368
        %4857 = vmatprep.subr.bf16.mxu0 %v4373
        %4858 = vmatpush1.bf16.msra.mxu0 %v4372
        %4859 = vmatprep.subr.bf16.mxu0 %v4377
        %4860 = vmatpush1.bf16.msra.mxu0 %v4376
        %4861 = vmatprep.subr.bf16.mxu0 %v4381
        %4862 = vmatpush1.bf16.msra.mxu0 %v4380
        %4863 = vmatprep.mubr.bf16.mxu0 %v3522
        %4864 = vmatmul.mubr.bf16.gmra.mrb[0].mxu0 %v3521
        %v4865 = vpop.f32.mrb[0].mxu0
        %v4866 = vadd.f32 %v3733, %v4865
        %v4867 = vpop.f32.mrb[0].mxu0
        %v4868 = vadd.f32 %v3737, %v4867
        %v4869 = vpop.f32.mrb[0].mxu0
        %v4870 = vadd.f32 %v3733, %v4869
        %v4871 = vpop.f32.mrb[0].mxu0
        %v4872 = vadd.f32 %v3737, %v4871
        %4873 = vdwg.mxu0
        %4874 = vmatprep.subr.bf16.mxu0 %v4385
        %4875 = vmatpush1.bf16.msra.mxu0 %v4384
        %4876 = vmatprep.subr.bf16.mxu0 %v4389
        %4877 = vmatpush1.bf16.msra.mxu0 %v4388
        %4878 = vmatprep.subr.bf16.mxu0 %v4393
        %4879 = vmatpush1.bf16.msra.mxu0 %v4392
        %4880 = vmatprep.subr.bf16.mxu0 %v4397
        %4881 = vmatpush1.bf16.msra.mxu0 %v4396
        %4882 = vmatprep.subr.bf16.mxu0 %v4401
        %4883 = vmatpush1.bf16.msra.mxu0 %v4400
        %4884 = vmatprep.subr.bf16.mxu0 %v4405
        %4885 = vmatpush1.bf16.msra.mxu0 %v4404
        %4886 = vmatprep.subr.bf16.mxu0 %v4409
        %4887 = vmatpush1.bf16.msra.mxu0 %v4408
        %4888 = vmatprep.subr.bf16.mxu0 %v4413
        %4889 = vmatpush1.bf16.msra.mxu0 %v4412
        %4890 = vmatprep.subr.bf16.mxu0 %v4417
        %4891 = vmatpush1.bf16.msra.mxu0 %v4416
        %4892 = vmatprep.subr.bf16.mxu0 %v4421
        %4893 = vmatpush1.bf16.msra.mxu0 %v4420
        %4894 = vmatprep.subr.bf16.mxu0 %v4425
        %4895 = vmatpush1.bf16.msra.mxu0 %v4424
        %4896 = vmatprep.subr.bf16.mxu0 %v4429
        %4897 = vmatpush1.bf16.msra.mxu0 %v4428
        %4898 = vmatprep.subr.bf16.mxu0 %v4433
        %4899 = vmatpush1.bf16.msra.mxu0 %v4432
        %4900 = vmatprep.subr.bf16.mxu0 %v4437
        %4901 = vmatpush1.bf16.msra.mxu0 %v4436
        %4902 = vmatprep.subr.bf16.mxu0 %v4441
        %4903 = vmatpush1.bf16.msra.mxu0 %v4440
        %4904 = vmatprep.subr.bf16.mxu0 %v4445
        %4905 = vmatpush1.bf16.msra.mxu0 %v4444
        %4906 = vmatprep.mubr.bf16.mxu0 %v3524
        %4907 = vmatmul.mubr.bf16.gmra.mrb[0].mxu0 %v3523
        %v4908 = vpop.f32.mrb[0].mxu0
        %v4909 = vadd.f32 %v4866, %v4908
        %v4910 = vpop.f32.mrb[0].mxu0
        %v4911 = vadd.f32 %v4868, %v4910
        %v4912 = vpop.f32.mrb[0].mxu0
        %v4913 = vadd.f32 %v4870, %v4912
        %v4914 = vpop.f32.mrb[0].mxu0
        %v4915 = vadd.f32 %v4872, %v4914
        %4916 = vdwg.mxu0
        %4917 = vmatprep.subr.bf16.mxu0 %v4449
        %4918 = vmatpush1.bf16.msra.mxu0 %v4448
        %4919 = vmatprep.subr.bf16.mxu0 %v4453
        %4920 = vmatpush1.bf16.msra.mxu0 %v4452
        %4921 = vmatprep.subr.bf16.mxu0 %v4457
        %4922 = vmatpush1.bf16.msra.mxu0 %v4456
        %4923 = vmatprep.subr.bf16.mxu0 %v4461
        %4924 = vmatpush1.bf16.msra.mxu0 %v4460
        %4925 = vmatprep.subr.bf16.mxu0 %v4465
        %4926 = vmatpush1.bf16.msra.mxu0 %v4464
        %4927 = vmatprep.subr.bf16.mxu0 %v4469
        %4928 = vmatpush1.bf16.msra.mxu0 %v4468
        %4929 = vmatprep.subr.bf16.mxu0 %v4473
        %4930 = vmatpush1.bf16.msra.mxu0 %v4472
        %4931 = vmatprep.subr.bf16.mxu0 %v4477
        %4932 = vmatpush1.bf16.msra.mxu0 %v4476
        %4933 = vmatprep.subr.bf16.mxu0 %v4481
        %4934 = vmatpush1.bf16.msra.mxu0 %v4480
        %4935 = vmatprep.subr.bf16.mxu0 %v4485
        %4936 = vmatpush1.bf16.msra.mxu0 %v4484
        %4937 = vmatprep.subr.bf16.mxu0 %v4489
        %4938 = vmatpush1.bf16.msra.mxu0 %v4488
        %4939 = vmatprep.subr.bf16.mxu0 %v4493
        %4940 = vmatpush1.bf16.msra.mxu0 %v4492
        %4941 = vmatprep.subr.bf16.mxu0 %v4497
        %4942 = vmatpush1.bf16.msra.mxu0 %v4496
        %4943 = vmatprep.subr.bf16.mxu0 %v4501
        %4944 = vmatpush1.bf16.msra.mxu0 %v4500
        %4945 = vmatprep.subr.bf16.mxu0 %v4505
        %4946 = vmatpush1.bf16.msra.mxu0 %v4504
        %4947 = vmatprep.subr.bf16.mxu0 %v4509
        %4948 = vmatpush1.bf16.msra.mxu0 %v4508
        %4949 = vmatprep.mubr.bf16.mxu0 %v3526
        %4950 = vmatmul.mubr.bf16.gmra.mrb[0].mxu0 %v3525
        %v4951 = vpop.f32.mrb[0].mxu0
        %v4952 = vadd.f32 %v4909, %v4951
        %v4953 = vpop.f32.mrb[0].mxu0
        %v4954 = vadd.f32 %v4911, %v4953
        %v4955 = vpop.f32.mrb[0].mxu0
        %v4956 = vadd.f32 %v4913, %v4955
        %v4957 = vpop.f32.mrb[0].mxu0
        %v4958 = vadd.f32 %v4915, %v4957
        %4959 = vdwg.mxu0
        %vm4960 = vcmp.gt.f32.partialorder %v4823, 0.0
        %vm4961 = vcmp.gt.f32.partialorder %v4825, 0.0
        %vm4962 = vcmp.gt.f32.partialorder %v4952, 0.0
        %vm4963 = vcmp.gt.f32.partialorder %v4954, 0.0
        %vm4964 = vcmp.gt.f32.partialorder %v4827, 0.0
        %vm4965 = vcmp.gt.f32.partialorder %v4829, 0.0
        %vm4966 = vcmp.gt.f32.partialorder %v4956, 0.0
        %vm4967 = vcmp.gt.f32.partialorder %v4958, 0.0
        %v4968 = vmul.f32 %v4823, 0.01
        %v4969 = vmul.f32 %v4825, 0.01
        %v4970 = vmul.f32 %v4952, 0.01
        %v4971 = vmul.f32 %v4954, 0.01
        %v4972 = vmul.f32 %v4827, 0.01
        %v4973 = vmul.f32 %v4829, 0.01
        %v4974 = vmul.f32 %v4956, 0.01
        %v4975 = vmul.f32 %v4958, 0.01
        %v4976 = vsel %vm4960, %v4823, %v4968
        %v4977 = vsel %vm4961, %v4825, %v4969
        %v4978 = vsel %vm4962, %v4952, %v4970
        %v4979 = vsel %vm4963, %v4954, %v4971
        %v4980 = vsel %vm4964, %v4827, %v4972
        %v4981 = vsel %vm4965, %v4829, %v4973
        %v4982 = vsel %vm4966, %v4956, %v4974
        %v4983 = vsel %vm4967, %v4958, %v4975
        %v4984 = vpack.c.bf16 %v4980, %v4976
        %v4985 = vpack.c.bf16 %v4981, %v4977
        %v4986 = vpack.c.bf16 %v4982, %v4978
        %v4987 = vpack.c.bf16 %v4983, %v4979
        %v4988 = vld [vmem:[#allocation7] sm:$0xff]
        %v4989 = vld [vmem:[#allocation7 + $0x8] sm:$0xff]
        %v4990 = vld [vmem:[#allocation7 + $0x10] sm:$0xff]
        %v4991 = vld [vmem:[#allocation7 + $0x18] sm:$0xff]
        %v4992 = vld [vmem:[#allocation7 + $0x20] sm:$0xff]
        %v4993 = vld [vmem:[#allocation7 + $0x28] sm:$0xff]
        %v4994 = vld [vmem:[#allocation7 + $0x30] sm:$0xff]
        %v4995 = vld [vmem:[#allocation7 + $0x38] sm:$0xff]
        %v4996 = vld [vmem:[#allocation7 + $0x40] sm:$0xff]
        %v4997 = vld [vmem:[#allocation7 + $0x48] sm:$0xff]
        %v4998 = vld [vmem:[#allocation7 + $0x50] sm:$0xff]
        %v4999 = vld [vmem:[#allocation7 + $0x58] sm:$0xff]
        %v5000 = vld [vmem:[#allocation7 + $0x60] sm:$0xff]
        %v5001 = vld [vmem:[#allocation7 + $0x68] sm:$0xff]
        %v5002 = vld [vmem:[#allocation7 + $0x70] sm:$0xff]
        %v5003 = vld [vmem:[#allocation7 + $0x78] sm:$0xff]
        %v5004 = vld [vmem:[#allocation7 + $0x80] sm:$0xff]
        %v5005 = vld [vmem:[#allocation7 + $0x88] sm:$0xff]
        %v5006 = vld [vmem:[#allocation7 + $0x90] sm:$0xff]
        %v5007 = vld [vmem:[#allocation7 + $0x98] sm:$0xff]
        %v5008 = vld [vmem:[#allocation7 + $0xa0] sm:$0xff]
        %v5009 = vld [vmem:[#allocation7 + $0xa8] sm:$0xff]
        %v5010 = vld [vmem:[#allocation7 + $0xb0] sm:$0xff]
        %v5011 = vld [vmem:[#allocation7 + $0xb8] sm:$0xff]
        %v5012 = vld [vmem:[#allocation7 + $0xc0] sm:$0xff]
        %v5013 = vld [vmem:[#allocation7 + $0xc8] sm:$0xff]
        %v5014 = vld [vmem:[#allocation7 + $0xd0] sm:$0xff]
        %v5015 = vld [vmem:[#allocation7 + $0xd8] sm:$0xff]
        %v5016 = vld [vmem:[#allocation7 + $0xe0] sm:$0xff]
        %v5017 = vld [vmem:[#allocation7 + $0xe8] sm:$0xff]
        %v5018 = vld [vmem:[#allocation7 + $0xf0] sm:$0xff]
        %v5019 = vld [vmem:[#allocation7 + $0xf8] sm:$0xff]
        %v5020 = vld [vmem:[#allocation7 + $0x100] sm:$0xff]
        %v5021 = vld [vmem:[#allocation7 + $0x108] sm:$0xff]
        %v5022 = vld [vmem:[#allocation7 + $0x110] sm:$0xff]
        %v5023 = vld [vmem:[#allocation7 + $0x118] sm:$0xff]
        %v5024 = vld [vmem:[#allocation7 + $0x120] sm:$0xff]
        %v5025 = vld [vmem:[#allocation7 + $0x128] sm:$0xff]
        %v5026 = vld [vmem:[#allocation7 + $0x130] sm:$0xff]
        %v5027 = vld [vmem:[#allocation7 + $0x138] sm:$0xff]
        %v5028 = vld [vmem:[#allocation7 + $0x140] sm:$0xff]
        %v5029 = vld [vmem:[#allocation7 + $0x148] sm:$0xff]
        %v5030 = vld [vmem:[#allocation7 + $0x150] sm:$0xff]
        %v5031 = vld [vmem:[#allocation7 + $0x158] sm:$0xff]
        %v5032 = vld [vmem:[#allocation7 + $0x160] sm:$0xff]
        %v5033 = vld [vmem:[#allocation7 + $0x168] sm:$0xff]
        %v5034 = vld [vmem:[#allocation7 + $0x170] sm:$0xff]
        %v5035 = vld [vmem:[#allocation7 + $0x178] sm:$0xff]
        %v5036 = vld [vmem:[#allocation7 + $0x180] sm:$0xff]
        %v5037 = vld [vmem:[#allocation7 + $0x188] sm:$0xff]
        %v5038 = vld [vmem:[#allocation7 + $0x190] sm:$0xff]
        %v5039 = vld [vmem:[#allocation7 + $0x198] sm:$0xff]
        %v5040 = vld [vmem:[#allocation7 + $0x1a0] sm:$0xff]
        %v5041 = vld [vmem:[#allocation7 + $0x1a8] sm:$0xff]
        %v5042 = vld [vmem:[#allocation7 + $0x1b0] sm:$0xff]
        %v5043 = vld [vmem:[#allocation7 + $0x1b8] sm:$0xff]
        %v5044 = vld [vmem:[#allocation7 + $0x1c0] sm:$0xff]
        %v5045 = vld [vmem:[#allocation7 + $0x1c8] sm:$0xff]
        %v5046 = vld [vmem:[#allocation7 + $0x1d0] sm:$0xff]
        %v5047 = vld [vmem:[#allocation7 + $0x1d8] sm:$0xff]
        %v5048 = vld [vmem:[#allocation7 + $0x1e0] sm:$0xff]
        %v5049 = vld [vmem:[#allocation7 + $0x1e8] sm:$0xff]
        %v5050 = vld [vmem:[#allocation7 + $0x1f0] sm:$0xff]
        %v5051 = vld [vmem:[#allocation7 + $0x1f8] sm:$0xff]
        %s5052 = scalar_lea.vmem [#allocation2], 2
        %v5053 = vld [vmem:[%s5052] ss:$8 sm:$0x3]
        %v5055 = vlaneseq
        %v5056 = vshrl.u32 %v5055, 7
        %v5057 = vsub.s32 0, %v5056
        %v5058 = vrot.slane %v5053, %v5057
        %v5059 = vlaneseq
        %v5060 = vshrl.u32 %v5059, 7
        %v5061 = vsub.s32 1, %v5060
        %v5062 = vrot.slane %v5053, %v5061
        %v5129 = vunpack.c.l.b16 %v4988
        %v5130 = vunpack.c.h.b16 %v4988
        %v5131 = vunpack.c.l.b16 %v4989
        %v5132 = vunpack.c.h.b16 %v4989
        %v5133 = vunpack.c.l.b16 %v4990
        %v5134 = vunpack.c.h.b16 %v4990
        %v5135 = vunpack.c.l.b16 %v4991
        %v5136 = vunpack.c.h.b16 %v4991
        %v5137 = vunpack.c.l.b16 %v4992
        %v5138 = vunpack.c.h.b16 %v4992
        %v5139 = vunpack.c.l.b16 %v4993
        %v5140 = vunpack.c.h.b16 %v4993
        %v5141 = vunpack.c.l.b16 %v4994
        %v5142 = vunpack.c.h.b16 %v4994
        %v5143 = vunpack.c.l.b16 %v4995
        %v5144 = vunpack.c.h.b16 %v4995
        %v5145 = vunpack.c.l.b16 %v4996
        %v5146 = vunpack.c.h.b16 %v4996
        %v5147 = vunpack.c.l.b16 %v4997
        %v5148 = vunpack.c.h.b16 %v4997
        %v5149 = vunpack.c.l.b16 %v4998
        %v5150 = vunpack.c.h.b16 %v4998
        %v5151 = vunpack.c.l.b16 %v4999
        %v5152 = vunpack.c.h.b16 %v4999
        %v5153 = vunpack.c.l.b16 %v5000
        %v5154 = vunpack.c.h.b16 %v5000
        %v5155 = vunpack.c.l.b16 %v5001
        %v5156 = vunpack.c.h.b16 %v5001
        %v5157 = vunpack.c.l.b16 %v5002
        %v5158 = vunpack.c.h.b16 %v5002
        %v5159 = vunpack.c.l.b16 %v5003
        %v5160 = vunpack.c.h.b16 %v5003
        %v5161 = vunpack.c.l.b16 %v5004
        %v5162 = vunpack.c.h.b16 %v5004
        %v5163 = vunpack.c.l.b16 %v5005
        %v5164 = vunpack.c.h.b16 %v5005
        %v5165 = vunpack.c.l.b16 %v5006
        %v5166 = vunpack.c.h.b16 %v5006
        %v5167 = vunpack.c.l.b16 %v5007
        %v5168 = vunpack.c.h.b16 %v5007
        %v5169 = vunpack.c.l.b16 %v5008
        %v5170 = vunpack.c.h.b16 %v5008
        %v5171 = vunpack.c.l.b16 %v5009
        %v5172 = vunpack.c.h.b16 %v5009
        %v5173 = vunpack.c.l.b16 %v5010
        %v5174 = vunpack.c.h.b16 %v5010
        %v5175 = vunpack.c.l.b16 %v5011
        %v5176 = vunpack.c.h.b16 %v5011
        %v5177 = vunpack.c.l.b16 %v5012
        %v5178 = vunpack.c.h.b16 %v5012
        %v5179 = vunpack.c.l.b16 %v5013
        %v5180 = vunpack.c.h.b16 %v5013
        %v5181 = vunpack.c.l.b16 %v5014
        %v5182 = vunpack.c.h.b16 %v5014
        %v5183 = vunpack.c.l.b16 %v5015
        %v5184 = vunpack.c.h.b16 %v5015
        %v5185 = vunpack.c.l.b16 %v5016
        %v5186 = vunpack.c.h.b16 %v5016
        %v5187 = vunpack.c.l.b16 %v5017
        %v5188 = vunpack.c.h.b16 %v5017
        %v5189 = vunpack.c.l.b16 %v5018
        %v5190 = vunpack.c.h.b16 %v5018
        %v5191 = vunpack.c.l.b16 %v5019
        %v5192 = vunpack.c.h.b16 %v5019
        %v5193 = vunpack.c.l.b16 %v5020
        %v5194 = vunpack.c.h.b16 %v5020
        %v5195 = vunpack.c.l.b16 %v5021
        %v5196 = vunpack.c.h.b16 %v5021
        %v5197 = vunpack.c.l.b16 %v5022
        %v5198 = vunpack.c.h.b16 %v5022
        %v5199 = vunpack.c.l.b16 %v5023
        %v5200 = vunpack.c.h.b16 %v5023
        %v5201 = vunpack.c.l.b16 %v5024
        %v5202 = vunpack.c.h.b16 %v5024
        %v5203 = vunpack.c.l.b16 %v5025
        %v5204 = vunpack.c.h.b16 %v5025
        %v5205 = vunpack.c.l.b16 %v5026
        %v5206 = vunpack.c.h.b16 %v5026
        %v5207 = vunpack.c.l.b16 %v5027
        %v5208 = vunpack.c.h.b16 %v5027
        %v5209 = vunpack.c.l.b16 %v5028
        %v5210 = vunpack.c.h.b16 %v5028
        %v5211 = vunpack.c.l.b16 %v5029
        %v5212 = vunpack.c.h.b16 %v5029
        %v5213 = vunpack.c.l.b16 %v5030
        %v5214 = vunpack.c.h.b16 %v5030
        %v5215 = vunpack.c.l.b16 %v5031
        %v5216 = vunpack.c.h.b16 %v5031
        %v5217 = vunpack.c.l.b16 %v5032
        %v5218 = vunpack.c.h.b16 %v5032
        %v5219 = vunpack.c.l.b16 %v5033
        %v5220 = vunpack.c.h.b16 %v5033
        %v5221 = vunpack.c.l.b16 %v5034
        %v5222 = vunpack.c.h.b16 %v5034
        %v5223 = vunpack.c.l.b16 %v5035
        %v5224 = vunpack.c.h.b16 %v5035
        %v5225 = vunpack.c.l.b16 %v5036
        %v5226 = vunpack.c.h.b16 %v5036
        %v5227 = vunpack.c.l.b16 %v5037
        %v5228 = vunpack.c.h.b16 %v5037
        %v5229 = vunpack.c.l.b16 %v5038
        %v5230 = vunpack.c.h.b16 %v5038
        %v5231 = vunpack.c.l.b16 %v5039
        %v5232 = vunpack.c.h.b16 %v5039
        %v5233 = vunpack.c.l.b16 %v5040
        %v5234 = vunpack.c.h.b16 %v5040
        %v5235 = vunpack.c.l.b16 %v5041
        %v5236 = vunpack.c.h.b16 %v5041
        %v5237 = vunpack.c.l.b16 %v5042
        %v5238 = vunpack.c.h.b16 %v5042
        %v5239 = vunpack.c.l.b16 %v5043
        %v5240 = vunpack.c.h.b16 %v5043
        %v5241 = vunpack.c.l.b16 %v5044
        %v5242 = vunpack.c.h.b16 %v5044
        %v5243 = vunpack.c.l.b16 %v5045
        %v5244 = vunpack.c.h.b16 %v5045
        %v5245 = vunpack.c.l.b16 %v5046
        %v5246 = vunpack.c.h.b16 %v5046
        %v5247 = vunpack.c.l.b16 %v5047
        %v5248 = vunpack.c.h.b16 %v5047
        %v5249 = vunpack.c.l.b16 %v5048
        %v5250 = vunpack.c.h.b16 %v5048
        %v5251 = vunpack.c.l.b16 %v5049
        %v5252 = vunpack.c.h.b16 %v5049
        %v5253 = vunpack.c.l.b16 %v5050
        %v5254 = vunpack.c.h.b16 %v5050
        %v5255 = vunpack.c.l.b16 %v5051
        %v5256 = vunpack.c.h.b16 %v5051
        %v5257 = vpack.c.b16 %v5131, %v5129
        %v5258 = vpack.c.b16 %v5132, %v5130
        %v5259 = vpack.c.b16 %v5135, %v5133
        %v5260 = vpack.c.b16 %v5136, %v5134
        %v5261 = vpack.c.b16 %v5139, %v5137
        %v5262 = vpack.c.b16 %v5140, %v5138
        %v5263 = vpack.c.b16 %v5143, %v5141
        %v5264 = vpack.c.b16 %v5144, %v5142
        %v5265 = vpack.c.b16 %v5147, %v5145
        %v5266 = vpack.c.b16 %v5148, %v5146
        %v5267 = vpack.c.b16 %v5151, %v5149
        %v5268 = vpack.c.b16 %v5152, %v5150
        %v5269 = vpack.c.b16 %v5155, %v5153
        %v5270 = vpack.c.b16 %v5156, %v5154
        %v5271 = vpack.c.b16 %v5159, %v5157
        %v5272 = vpack.c.b16 %v5160, %v5158
        %v5273 = vpack.c.b16 %v5163, %v5161
        %v5274 = vpack.c.b16 %v5164, %v5162
        %v5275 = vpack.c.b16 %v5167, %v5165
        %v5276 = vpack.c.b16 %v5168, %v5166
        %v5277 = vpack.c.b16 %v5171, %v5169
        %v5278 = vpack.c.b16 %v5172, %v5170
        %v5279 = vpack.c.b16 %v5175, %v5173
        %v5280 = vpack.c.b16 %v5176, %v5174
        %v5281 = vpack.c.b16 %v5179, %v5177
        %v5282 = vpack.c.b16 %v5180, %v5178
        %v5283 = vpack.c.b16 %v5183, %v5181
        %v5284 = vpack.c.b16 %v5184, %v5182
        %v5285 = vpack.c.b16 %v5187, %v5185
        %v5286 = vpack.c.b16 %v5188, %v5186
        %v5287 = vpack.c.b16 %v5191, %v5189
        %v5288 = vpack.c.b16 %v5192, %v5190
        %v5289 = vpack.c.b16 %v5195, %v5193
        %v5290 = vpack.c.b16 %v5196, %v5194
        %v5291 = vpack.c.b16 %v5199, %v5197
        %v5292 = vpack.c.b16 %v5200, %v5198
        %v5293 = vpack.c.b16 %v5203, %v5201
        %v5294 = vpack.c.b16 %v5204, %v5202
        %v5295 = vpack.c.b16 %v5207, %v5205
        %v5296 = vpack.c.b16 %v5208, %v5206
        %v5297 = vpack.c.b16 %v5211, %v5209
        %v5298 = vpack.c.b16 %v5212, %v5210
        %v5299 = vpack.c.b16 %v5215, %v5213
        %v5300 = vpack.c.b16 %v5216, %v5214
        %v5301 = vpack.c.b16 %v5219, %v5217
        %v5302 = vpack.c.b16 %v5220, %v5218
        %v5303 = vpack.c.b16 %v5223, %v5221
        %v5304 = vpack.c.b16 %v5224, %v5222
        %v5305 = vpack.c.b16 %v5227, %v5225
        %v5306 = vpack.c.b16 %v5228, %v5226
        %v5307 = vpack.c.b16 %v5231, %v5229
        %v5308 = vpack.c.b16 %v5232, %v5230
        %v5309 = vpack.c.b16 %v5235, %v5233
        %v5310 = vpack.c.b16 %v5236, %v5234
        %v5311 = vpack.c.b16 %v5239, %v5237
        %v5312 = vpack.c.b16 %v5240, %v5238
        %v5313 = vpack.c.b16 %v5243, %v5241
        %v5314 = vpack.c.b16 %v5244, %v5242
        %v5315 = vpack.c.b16 %v5247, %v5245
        %v5316 = vpack.c.b16 %v5248, %v5246
        %v5317 = vpack.c.b16 %v5251, %v5249
        %v5318 = vpack.c.b16 %v5252, %v5250
        %v5319 = vpack.c.b16 %v5255, %v5253
        %v5320 = vpack.c.b16 %v5256, %v5254
        %5385 = vmatprep.subr.bf16.mxu0 %v5258
        %5386 = vmatpush1.bf16.msra.mxu0 %v5257
        %5387 = vmatprep.subr.bf16.mxu0 %v5260
        %5388 = vmatpush1.bf16.msra.mxu0 %v5259
        %5389 = vmatprep.subr.bf16.mxu0 %v5262
        %5390 = vmatpush1.bf16.msra.mxu0 %v5261
        %5391 = vmatprep.subr.bf16.mxu0 %v5264
        %5392 = vmatpush1.bf16.msra.mxu0 %v5263
        %5393 = vmatprep.subr.bf16.mxu0 %v5266
        %5394 = vmatpush1.bf16.msra.mxu0 %v5265
        %5395 = vmatprep.subr.bf16.mxu0 %v5268
        %5396 = vmatpush1.bf16.msra.mxu0 %v5267
        %5397 = vmatprep.subr.bf16.mxu0 %v5270
        %5398 = vmatpush1.bf16.msra.mxu0 %v5269
        %5399 = vmatprep.subr.bf16.mxu0 %v5272
        %5400 = vmatpush1.bf16.msra.mxu0 %v5271
        %5401 = vmatprep.subr.bf16.mxu0 %v5274
        %5402 = vmatpush1.bf16.msra.mxu0 %v5273
        %5403 = vmatprep.subr.bf16.mxu0 %v5276
        %5404 = vmatpush1.bf16.msra.mxu0 %v5275
        %5405 = vmatprep.subr.bf16.mxu0 %v5278
        %5406 = vmatpush1.bf16.msra.mxu0 %v5277
        %5407 = vmatprep.subr.bf16.mxu0 %v5280
        %5408 = vmatpush1.bf16.msra.mxu0 %v5279
        %5409 = vmatprep.subr.bf16.mxu0 %v5282
        %5410 = vmatpush1.bf16.msra.mxu0 %v5281
        %5411 = vmatprep.subr.bf16.mxu0 %v5284
        %5412 = vmatpush1.bf16.msra.mxu0 %v5283
        %5413 = vmatprep.subr.bf16.mxu0 %v5286
        %5414 = vmatpush1.bf16.msra.mxu0 %v5285
        %5415 = vmatprep.subr.bf16.mxu0 %v5288
        %5416 = vmatpush1.bf16.msra.mxu0 %v5287
        %5417 = vmatprep.mubr.bf16.mxu0 %v4985
        %5418 = vmatmul.mubr.bf16.gmra.mrb[0].mxu0 %v4984
        %v5419 = vpop.f32.mrb[0].mxu0
        %v5420 = vadd.f32 %v5058, %v5419
        %v5421 = vpop.f32.mrb[0].mxu0
        %v5422 = vadd.f32 %v5062, %v5421
        %v5423 = vpop.f32.mrb[0].mxu0
        %v5424 = vadd.f32 %v5058, %v5423
        %v5425 = vpop.f32.mrb[0].mxu0
        %v5426 = vadd.f32 %v5062, %v5425
        %5427 = vdwg.mxu0
        %5428 = vmatprep.subr.bf16.mxu0 %v5290
        %5429 = vmatpush1.bf16.msra.mxu0 %v5289
        %5430 = vmatprep.subr.bf16.mxu0 %v5292
        %5431 = vmatpush1.bf16.msra.mxu0 %v5291
        %5432 = vmatprep.subr.bf16.mxu0 %v5294
        %5433 = vmatpush1.bf16.msra.mxu0 %v5293
        %5434 = vmatprep.subr.bf16.mxu0 %v5296
        %5435 = vmatpush1.bf16.msra.mxu0 %v5295
        %5436 = vmatprep.subr.bf16.mxu0 %v5298
        %5437 = vmatpush1.bf16.msra.mxu0 %v5297
        %5438 = vmatprep.subr.bf16.mxu0 %v5300
        %5439 = vmatpush1.bf16.msra.mxu0 %v5299
        %5440 = vmatprep.subr.bf16.mxu0 %v5302
        %5441 = vmatpush1.bf16.msra.mxu0 %v5301
        %5442 = vmatprep.subr.bf16.mxu0 %v5304
        %5443 = vmatpush1.bf16.msra.mxu0 %v5303
        %5444 = vmatprep.subr.bf16.mxu0 %v5306
        %5445 = vmatpush1.bf16.msra.mxu0 %v5305
        %5446 = vmatprep.subr.bf16.mxu0 %v5308
        %5447 = vmatpush1.bf16.msra.mxu0 %v5307
        %5448 = vmatprep.subr.bf16.mxu0 %v5310
        %5449 = vmatpush1.bf16.msra.mxu0 %v5309
        %5450 = vmatprep.subr.bf16.mxu0 %v5312
        %5451 = vmatpush1.bf16.msra.mxu0 %v5311
        %5452 = vmatprep.subr.bf16.mxu0 %v5314
        %5453 = vmatpush1.bf16.msra.mxu0 %v5313
        %5454 = vmatprep.subr.bf16.mxu0 %v5316
        %5455 = vmatpush1.bf16.msra.mxu0 %v5315
        %5456 = vmatprep.subr.bf16.mxu0 %v5318
        %5457 = vmatpush1.bf16.msra.mxu0 %v5317
        %5458 = vmatprep.subr.bf16.mxu0 %v5320
        %5459 = vmatpush1.bf16.msra.mxu0 %v5319
        %5460 = vmatprep.mubr.bf16.mxu0 %v4987
        %5461 = vmatmul.mubr.bf16.gmra.mrb[0].mxu0 %v4986
        %v5462 = vpop.f32.mrb[0].mxu0
        %v5463 = vadd.f32 %v5420, %v5462
        %v5464 = vpop.f32.mrb[0].mxu0
        %v5465 = vadd.f32 %v5422, %v5464
        %v5466 = vpop.f32.mrb[0].mxu0
        %v5467 = vadd.f32 %v5424, %v5466
        %v5468 = vpop.f32.mrb[0].mxu0
        %v5469 = vadd.f32 %v5426, %v5468
        %5470 = vdwg.mxu0
        %vm5471 = vcmp.gt.f32.partialorder %v5463, 0.0
        %vm5472 = vcmp.gt.f32.partialorder %v5465, 0.0
        %vm5473 = vcmp.gt.f32.partialorder %v5467, 0.0
        %vm5474 = vcmp.gt.f32.partialorder %v5469, 0.0
        %v5475 = vmul.f32 %v5463, 0.01
        %v5476 = vmul.f32 %v5465, 0.01
        %v5477 = vmul.f32 %v5467, 0.01
        %v5478 = vmul.f32 %v5469, 0.01
        %v5479 = vsel %vm5471, %v5463, %v5475
        %v5480 = vsel %vm5472, %v5465, %v5476
        %v5481 = vsel %vm5473, %v5467, %v5477
        %v5482 = vsel %vm5474, %v5469, %v5478
        %v5483 = vpack.c.bf16 %v5481, %v5479
        %v5484 = vpack.c.bf16 %v5482, %v5480
        %v5485 = vld [vmem:[#allocation9] sm:$0xf]
        %v5486 = vld [vmem:[#allocation9 + $0x4] sm:$0xf]
        %v5487 = vld [vmem:[#allocation9 + $0x8] sm:$0xf]
        %v5488 = vld [vmem:[#allocation9 + $0xc] sm:$0xf]
        %v5489 = vld [vmem:[#allocation9 + $0x10] sm:$0xf]
        %v5490 = vld [vmem:[#allocation9 + $0x14] sm:$0xf]
        %v5491 = vld [vmem:[#allocation9 + $0x18] sm:$0xf]
        %v5492 = vld [vmem:[#allocation9 + $0x1c] sm:$0xf]
        %v5493 = vld [vmem:[#allocation9 + $0x20] sm:$0xf]
        %v5494 = vld [vmem:[#allocation9 + $0x24] sm:$0xf]
        %v5495 = vld [vmem:[#allocation9 + $0x28] sm:$0xf]
        %v5496 = vld [vmem:[#allocation9 + $0x2c] sm:$0xf]
        %v5497 = vld [vmem:[#allocation9 + $0x30] sm:$0xf]
        %v5498 = vld [vmem:[#allocation9 + $0x34] sm:$0xf]
        %v5499 = vld [vmem:[#allocation9 + $0x38] sm:$0xf]
        %v5500 = vld [vmem:[#allocation9 + $0x3c] sm:$0xf]
        %v5501 = vld [vmem:[#allocation9 + $0x40] sm:$0xf]
        %v5502 = vld [vmem:[#allocation9 + $0x44] sm:$0xf]
        %v5503 = vld [vmem:[#allocation9 + $0x48] sm:$0xf]
        %v5504 = vld [vmem:[#allocation9 + $0x4c] sm:$0xf]
        %v5505 = vld [vmem:[#allocation9 + $0x50] sm:$0xf]
        %v5506 = vld [vmem:[#allocation9 + $0x54] sm:$0xf]
        %v5507 = vld [vmem:[#allocation9 + $0x58] sm:$0xf]
        %v5508 = vld [vmem:[#allocation9 + $0x5c] sm:$0xf]
        %v5509 = vld [vmem:[#allocation9 + $0x60] sm:$0xf]
        %v5510 = vld [vmem:[#allocation9 + $0x64] sm:$0xf]
        %v5511 = vld [vmem:[#allocation9 + $0x68] sm:$0xf]
        %v5512 = vld [vmem:[#allocation9 + $0x6c] sm:$0xf]
        %v5513 = vld [vmem:[#allocation9 + $0x70] sm:$0xf]
        %v5514 = vld [vmem:[#allocation9 + $0x74] sm:$0xf]
        %v5515 = vld [vmem:[#allocation9 + $0x78] sm:$0xf]
        %v5516 = vld [vmem:[#allocation9 + $0x7c] sm:$0xf]
        %v5517 = vld [vmem:[#allocation2 + $0x3] ss:$0 sm:$0xff]
        %v5550 = vunpack.c.l.b16 %v5485
        %v5551 = vunpack.c.l.b16 %v5486
        %v5552 = vunpack.c.l.b16 %v5487
        %v5553 = vunpack.c.l.b16 %v5488
        %v5554 = vunpack.c.l.b16 %v5489
        %v5555 = vunpack.c.l.b16 %v5490
        %v5556 = vunpack.c.l.b16 %v5491
        %v5557 = vunpack.c.l.b16 %v5492
        %v5558 = vunpack.c.l.b16 %v5493
        %v5559 = vunpack.c.l.b16 %v5494
        %v5560 = vunpack.c.l.b16 %v5495
        %v5561 = vunpack.c.l.b16 %v5496
        %v5562 = vunpack.c.l.b16 %v5497
        %v5563 = vunpack.c.l.b16 %v5498
        %v5564 = vunpack.c.l.b16 %v5499
        %v5565 = vunpack.c.l.b16 %v5500
        %v5566 = vunpack.c.l.b16 %v5501
        %v5567 = vunpack.c.l.b16 %v5502
        %v5568 = vunpack.c.l.b16 %v5503
        %v5569 = vunpack.c.l.b16 %v5504
        %v5570 = vunpack.c.l.b16 %v5505
        %v5571 = vunpack.c.l.b16 %v5506
        %v5572 = vunpack.c.l.b16 %v5507
        %v5573 = vunpack.c.l.b16 %v5508
        %v5574 = vunpack.c.l.b16 %v5509
        %v5575 = vunpack.c.l.b16 %v5510
        %v5576 = vunpack.c.l.b16 %v5511
        %v5577 = vunpack.c.l.b16 %v5512
        %v5578 = vunpack.c.l.b16 %v5513
        %v5579 = vunpack.c.l.b16 %v5514
        %v5580 = vunpack.c.l.b16 %v5515
        %v5581 = vunpack.c.l.b16 %v5516
        %v5582 = vpack.c.b16 %v5551, %v5550
        %v5583 = vpack.c.b16 %v5553, %v5552
        %v5584 = vpack.c.b16 %v5555, %v5554
        %v5585 = vpack.c.b16 %v5557, %v5556
        %v5586 = vpack.c.b16 %v5559, %v5558
        %v5587 = vpack.c.b16 %v5561, %v5560
        %v5588 = vpack.c.b16 %v5563, %v5562
        %v5589 = vpack.c.b16 %v5565, %v5564
        %v5590 = vpack.c.b16 %v5567, %v5566
        %v5591 = vpack.c.b16 %v5569, %v5568
        %v5592 = vpack.c.b16 %v5571, %v5570
        %v5593 = vpack.c.b16 %v5573, %v5572
        %v5594 = vpack.c.b16 %v5575, %v5574
        %v5595 = vpack.c.b16 %v5577, %v5576
        %v5596 = vpack.c.b16 %v5579, %v5578
        %v5597 = vpack.c.b16 %v5581, %v5580
        %5614 = vmatprep.subr.bf16.mxu0 0
        %5615 = vmatpush1.bf16.msra.mxu0 %v5582
        %5616 = vmatprep.subr.bf16.mxu0 0
        %5617 = vmatpush1.bf16.msra.mxu0 %v5583
        %5618 = vmatprep.subr.bf16.mxu0 0
        %5619 = vmatpush1.bf16.msra.mxu0 %v5584
        %5620 = vmatprep.subr.bf16.mxu0 0
        %5621 = vmatpush1.bf16.msra.mxu0 %v5585
        %5622 = vmatprep.subr.bf16.mxu0 0
        %5623 = vmatpush1.bf16.msra.mxu0 %v5586
        %5624 = vmatprep.subr.bf16.mxu0 0
        %5625 = vmatpush1.bf16.msra.mxu0 %v5587
        %5626 = vmatprep.subr.bf16.mxu0 0
        %5627 = vmatpush1.bf16.msra.mxu0 %v5588
        %5628 = vmatprep.subr.bf16.mxu0 0
        %5629 = vmatpush1.bf16.msra.mxu0 %v5589
        %5630 = vmatprep.subr.bf16.mxu0 0
        %5631 = vmatpush1.bf16.msra.mxu0 %v5590
        %5632 = vmatprep.subr.bf16.mxu0 0
        %5633 = vmatpush1.bf16.msra.mxu0 %v5591
        %5634 = vmatprep.subr.bf16.mxu0 0
        %5635 = vmatpush1.bf16.msra.mxu0 %v5592
        %5636 = vmatprep.subr.bf16.mxu0 0
        %5637 = vmatpush1.bf16.msra.mxu0 %v5593
        %5638 = vmatprep.subr.bf16.mxu0 0
        %5639 = vmatpush1.bf16.msra.mxu0 %v5594
        %5640 = vmatprep.subr.bf16.mxu0 0
        %5641 = vmatpush1.bf16.msra.mxu0 %v5595
        %5642 = vmatprep.subr.bf16.mxu0 0
        %5643 = vmatpush1.bf16.msra.mxu0 %v5596
        %5644 = vmatprep.subr.bf16.mxu0 0
        %5645 = vmatpush1.bf16.msra.mxu0 %v5597
        %5646 = vmatprep.mubr.bf16.mxu0 %v5484
        %5647 = vmatmul.mubr.bf16.gmra.mrb[0].mxu0 %v5483
        %v5648 = vpop.f32.mrb[0].mxu0
        %v5649 = vadd.f32 %v5517, %v5648
        %v5650 = vpop.f32.mrb[0].mxu0
        %v5651 = vpop.f32.mrb[0].mxu0
        %v5652 = vadd.f32 %v5517, %v5651
        %v5653 = vpop.f32.mrb[0].mxu0
        %5654 = vdwg.mxu0
        %vm5655 = vcmp.gt.f32.partialorder %v5649, 0.0
        %vm5656 = vcmp.gt.f32.partialorder %v5652, 0.0
        %v5657 = vmul.f32 %v5649, 0.01
        %v5658 = vmul.f32 %v5652, 0.01
        %v5659 = vsel %vm5655, %v5649, %v5657
        %v5660 = vsel %vm5656, %v5652, %v5658
        %v5661 = vpack.c.bf16 %v5660, %v5659
        %v5662 = vld [vmem:[#allocation10] sm:$0xf]
        %v5663 = vld [vmem:[#allocation10 + $0x4] sm:$0xf]
        %v5664 = vld [vmem:[#allocation10 + $0x8] sm:$0xf]
        %v5665 = vld [vmem:[#allocation10 + $0xc] sm:$0xf]
        %v5666 = vld [vmem:[#allocation10 + $0x10] sm:$0xf]
        %v5667 = vld [vmem:[#allocation10 + $0x14] sm:$0xf]
        %v5668 = vld [vmem:[#allocation10 + $0x18] sm:$0xf]
        %v5669 = vld [vmem:[#allocation10 + $0x1c] sm:$0xf]
        %v5670 = vld [vmem:[#allocation10 + $0x20] sm:$0xf]
        %v5671 = vld [vmem:[#allocation10 + $0x24] sm:$0xf]
        %v5672 = vld [vmem:[#allocation10 + $0x28] sm:$0xf]
        %v5673 = vld [vmem:[#allocation10 + $0x2c] sm:$0xf]
        %v5674 = vld [vmem:[#allocation10 + $0x30] sm:$0xf]
        %v5675 = vld [vmem:[#allocation10 + $0x34] sm:$0xf]
        %v5676 = vld [vmem:[#allocation10 + $0x38] sm:$0xf]
        %v5677 = vld [vmem:[#allocation10 + $0x3c] sm:$0xf]
        %v5678 = vld [vmem:[#allocation2 + $0x4] ss:$0 sm:$0xff]
        %v5695 = vunpack.c.l.b16 %v5662
        %v5696 = vunpack.c.l.b16 %v5663
        %v5697 = vunpack.c.l.b16 %v5664
        %v5698 = vunpack.c.l.b16 %v5665
        %v5699 = vunpack.c.l.b16 %v5666
        %v5700 = vunpack.c.l.b16 %v5667
        %v5701 = vunpack.c.l.b16 %v5668
        %v5702 = vunpack.c.l.b16 %v5669
        %v5703 = vunpack.c.l.b16 %v5670
        %v5704 = vunpack.c.l.b16 %v5671
        %v5705 = vunpack.c.l.b16 %v5672
        %v5706 = vunpack.c.l.b16 %v5673
        %v5707 = vunpack.c.l.b16 %v5674
        %v5708 = vunpack.c.l.b16 %v5675
        %v5709 = vunpack.c.l.b16 %v5676
        %v5710 = vunpack.c.l.b16 %v5677
        %v5711 = vpack.c.b16 %v5696, %v5695
        %v5712 = vpack.c.b16 %v5698, %v5697
        %v5713 = vpack.c.b16 %v5700, %v5699
        %v5714 = vpack.c.b16 %v5702, %v5701
        %v5715 = vpack.c.b16 %v5704, %v5703
        %v5716 = vpack.c.b16 %v5706, %v5705
        %v5717 = vpack.c.b16 %v5708, %v5707
        %v5718 = vpack.c.b16 %v5710, %v5709
        %5727 = vmatprep.subr.bf16.mxu0 0
        %5728 = vmatpush1.bf16.msra.mxu0 %v5711
        %5729 = vmatprep.subr.bf16.mxu0 0
        %5730 = vmatpush1.bf16.msra.mxu0 %v5712
        %5731 = vmatprep.subr.bf16.mxu0 0
        %5732 = vmatpush1.bf16.msra.mxu0 %v5713
        %5733 = vmatprep.subr.bf16.mxu0 0
        %5734 = vmatpush1.bf16.msra.mxu0 %v5714
        %5735 = vmatprep.subr.bf16.mxu0 0
        %5736 = vmatpush1.bf16.msra.mxu0 %v5715
        %5737 = vmatprep.subr.bf16.mxu0 0
        %5738 = vmatpush1.bf16.msra.mxu0 %v5716
        %5739 = vmatprep.subr.bf16.mxu0 0
        %5740 = vmatpush1.bf16.msra.mxu0 %v5717
        %5741 = vmatprep.subr.bf16.mxu0 0
        %5742 = vmatpush1.bf16.msra.mxu0 %v5718
        %5743 = vmatprep.subr.bf16.mxu0 0
        %5744 = vmatpush1.bf16.msra.mxu0 0
        %5745 = vmatprep.subr.bf16.mxu0 0
        %5746 = vmatpush1.bf16.msra.mxu0 0
        %5747 = vmatprep.subr.bf16.mxu0 0
        %5748 = vmatpush1.bf16.msra.mxu0 0
        %5749 = vmatprep.subr.bf16.mxu0 0
        %5750 = vmatpush1.bf16.msra.mxu0 0
        %5751 = vmatprep.subr.bf16.mxu0 0
        %5752 = vmatpush1.bf16.msra.mxu0 0
        %5753 = vmatprep.subr.bf16.mxu0 0
        %5754 = vmatpush1.bf16.msra.mxu0 0
        %5755 = vmatprep.subr.bf16.mxu0 0
        %5756 = vmatpush1.bf16.msra.mxu0 0
        %5757 = vmatprep.subr.bf16.mxu0 0
        %5758 = vmatpush1.bf16.msra.mxu0 0
        %5759 = vmatprep.mubr.bf16.mxu0 0
        %5760 = vmatmul.mubr.bf16.gmra.mrb[0].mxu0 %v5661
        %v5761 = vpop.f32.mrb[0].mxu0
        %v5762 = vadd.f32 %v5678, %v5761
        %v5763 = vpop.f32.mrb[0].mxu0
        %v5764 = vpop.f32.mrb[0].mxu0
        %v5765 = vadd.f32 %v5678, %v5764
        %v5766 = vpop.f32.mrb[0].mxu0
        %5767 = vdwg.mxu0
        %vm5768 = vcmp.gt.f32.partialorder %v5762, 0.0
        %vm5769 = vcmp.gt.f32.partialorder %v5765, 0.0
        %v5770 = vmul.f32 %v5762, 0.01
        %v5771 = vmul.f32 %v5765, 0.01
        %v5772 = vsel %vm5768, %v5762, %v5770
        %v5773 = vsel %vm5769, %v5765, %v5771
        %v5774 = vpack.c.bf16 %v5773, %v5772
        %v5775 = vld [vmem:[#allocation12] sm:$0xf]
        %v5776 = vld [vmem:[#allocation12 + $0x4] sm:$0xf]
        %v5777 = vld [vmem:[#allocation12 + $0x8] sm:$0xf]
        %v5778 = vld [vmem:[#allocation12 + $0xc] sm:$0xf]
        %v5779 = vld [vmem:[#allocation12 + $0x10] sm:$0xf]
        %v5780 = vld [vmem:[#allocation12 + $0x14] sm:$0xf]
        %v5781 = vld [vmem:[#allocation12 + $0x18] sm:$0xf]
        %v5782 = vld [vmem:[#allocation12 + $0x1c] sm:$0xf]
        %v5783 = vld [vmem:[#allocation12 + $0x20] sm:$0xf]
        %v5784 = vld [vmem:[#allocation12 + $0x24] sm:$0xf]
        %v5785 = vld [vmem:[#allocation12 + $0x28] sm:$0xf]
        %v5786 = vld [vmem:[#allocation12 + $0x2c] sm:$0xf]
        %v5787 = vld [vmem:[#allocation12 + $0x30] sm:$0xf]
        %v5788 = vld [vmem:[#allocation12 + $0x34] sm:$0xf]
        %v5789 = vld [vmem:[#allocation12 + $0x38] sm:$0xf]
        %v5790 = vld [vmem:[#allocation12 + $0x3c] sm:$0xf]
        %v5791 = vld [vmem:[#allocation2 + $0x5] ss:$0 sm:$0xff]
        %v5808 = vunpack.c.l.b16 %v5775
        %v5809 = vunpack.c.l.b16 %v5776
        %v5810 = vunpack.c.l.b16 %v5777
        %v5811 = vunpack.c.l.b16 %v5778
        %v5812 = vunpack.c.l.b16 %v5779
        %v5813 = vunpack.c.l.b16 %v5780
        %v5814 = vunpack.c.l.b16 %v5781
        %v5815 = vunpack.c.l.b16 %v5782
        %v5816 = vunpack.c.l.b16 %v5783
        %v5817 = vunpack.c.l.b16 %v5784
        %v5818 = vunpack.c.l.b16 %v5785
        %v5819 = vunpack.c.l.b16 %v5786
        %v5820 = vunpack.c.l.b16 %v5787
        %v5821 = vunpack.c.l.b16 %v5788
        %v5822 = vunpack.c.l.b16 %v5789
        %v5823 = vunpack.c.l.b16 %v5790
        %v5824 = vpack.c.b16 %v5809, %v5808
        %v5825 = vpack.c.b16 %v5811, %v5810
        %v5826 = vpack.c.b16 %v5813, %v5812
        %v5827 = vpack.c.b16 %v5815, %v5814
        %v5828 = vpack.c.b16 %v5817, %v5816
        %v5829 = vpack.c.b16 %v5819, %v5818
        %v5830 = vpack.c.b16 %v5821, %v5820
        %v5831 = vpack.c.b16 %v5823, %v5822
        %5840 = vmatprep.subr.bf16.mxu0 0
        %5841 = vmatpush1.bf16.msra.mxu0 %v5824
        %5842 = vmatprep.subr.bf16.mxu0 0
        %5843 = vmatpush1.bf16.msra.mxu0 %v5825
        %5844 = vmatprep.subr.bf16.mxu0 0
        %5845 = vmatpush1.bf16.msra.mxu0 %v5826
        %5846 = vmatprep.subr.bf16.mxu0 0
        %5847 = vmatpush1.bf16.msra.mxu0 %v5827
        %5848 = vmatprep.subr.bf16.mxu0 0
        %5849 = vmatpush1.bf16.msra.mxu0 %v5828
        %5850 = vmatprep.subr.bf16.mxu0 0
        %5851 = vmatpush1.bf16.msra.mxu0 %v5829
        %5852 = vmatprep.subr.bf16.mxu0 0
        %5853 = vmatpush1.bf16.msra.mxu0 %v5830
        %5854 = vmatprep.subr.bf16.mxu0 0
        %5855 = vmatpush1.bf16.msra.mxu0 %v5831
        %5856 = vmatprep.subr.bf16.mxu0 0
        %5857 = vmatpush1.bf16.msra.mxu0 0
        %5858 = vmatprep.subr.bf16.mxu0 0
        %5859 = vmatpush1.bf16.msra.mxu0 0
        %5860 = vmatprep.subr.bf16.mxu0 0
        %5861 = vmatpush1.bf16.msra.mxu0 0
        %5862 = vmatprep.subr.bf16.mxu0 0
        %5863 = vmatpush1.bf16.msra.mxu0 0
        %5864 = vmatprep.subr.bf16.mxu0 0
        %5865 = vmatpush1.bf16.msra.mxu0 0
        %5866 = vmatprep.subr.bf16.mxu0 0
        %5867 = vmatpush1.bf16.msra.mxu0 0
        %5868 = vmatprep.subr.bf16.mxu0 0
        %5869 = vmatpush1.bf16.msra.mxu0 0
        %5870 = vmatprep.subr.bf16.mxu0 0
        %5871 = vmatpush1.bf16.msra.mxu0 0
        %5872 = vmatprep.mubr.bf16.mxu0 0
        %5873 = vmatmul.mubr.bf16.gmra.mrb[0].mxu0 %v5774
        %v5874 = vpop.f32.mrb[0].mxu0
        %v5875 = vadd.f32 %v5791, %v5874
        %v5876 = vpop.f32.mrb[0].mxu0
        %v5877 = vpop.f32.mrb[0].mxu0
        %v5878 = vadd.f32 %v5791, %v5877
        %v5879 = vpop.f32.mrb[0].mxu0
        %5880 = vdwg.mxu0
        %vm5881 = vcmp.gt.f32.partialorder %v5875, 0.0
        %vm5882 = vcmp.gt.f32.partialorder %v5878, 0.0
        %v5883 = vmul.f32 %v5875, 0.01
        %v5884 = vmul.f32 %v5878, 0.01
        %v5885 = vsel %vm5881, %v5875, %v5883
        %v5886 = vsel %vm5882, %v5878, %v5884
        %v5887 = vpack.c.bf16 %v5886, %v5885
        %v5888 = vld [vmem:[#allocation13] sm:$0xff]
        %v5889 = vld [vmem:[#allocation13 + $0x8] sm:$0xff]
        %v5890 = vld [vmem:[#allocation13 + $0x10] sm:$0xff]
        %v5891 = vld [vmem:[#allocation13 + $0x18] sm:$0xff]
        %v5892 = vld [vmem:[#allocation13 + $0x20] sm:$0xff]
        %v5893 = vld [vmem:[#allocation13 + $0x28] sm:$0xff]
        %v5894 = vld [vmem:[#allocation13 + $0x30] sm:$0xff]
        %v5895 = vld [vmem:[#allocation13 + $0x38] sm:$0xff]
        %v5896 = vld [vmem:[#allocation13 + $0x40] sm:$0xff]
        %v5897 = vld [vmem:[#allocation13 + $0x48] sm:$0xff]
        %v5898 = vld [vmem:[#allocation13 + $0x50] sm:$0xff]
        %v5899 = vld [vmem:[#allocation13 + $0x58] sm:$0xff]
        %v5900 = vld [vmem:[#allocation13 + $0x60] sm:$0xff]
        %v5901 = vld [vmem:[#allocation13 + $0x68] sm:$0xff]
        %v5902 = vld [vmem:[#allocation13 + $0x70] sm:$0xff]
        %v5903 = vld [vmem:[#allocation13 + $0x78] sm:$0xff]
        %s5904 = scalar_lea.vmem [#allocation2], 6
        %v5905 = vld [vmem:[%s5904] ss:$8 sm:$0x3]
        %v5907 = vlaneseq
        %v5908 = vshrl.u32 %v5907, 7
        %v5909 = vsub.s32 0, %v5908
        %v5910 = vrot.slane %v5905, %v5909
        %v5911 = vlaneseq
        %v5912 = vshrl.u32 %v5911, 7
        %v5913 = vsub.s32 1, %v5912
        %v5914 = vrot.slane %v5905, %v5913
        %v5933 = vunpack.c.l.b16 %v5888
        %v5934 = vunpack.c.h.b16 %v5888
        %v5935 = vunpack.c.l.b16 %v5889
        %v5936 = vunpack.c.h.b16 %v5889
        %v5937 = vunpack.c.l.b16 %v5890
        %v5938 = vunpack.c.h.b16 %v5890
        %v5939 = vunpack.c.l.b16 %v5891
        %v5940 = vunpack.c.h.b16 %v5891
        %v5941 = vunpack.c.l.b16 %v5892
        %v5942 = vunpack.c.h.b16 %v5892
        %v5943 = vunpack.c.l.b16 %v5893
        %v5944 = vunpack.c.h.b16 %v5893
        %v5945 = vunpack.c.l.b16 %v5894
        %v5946 = vunpack.c.h.b16 %v5894
        %v5947 = vunpack.c.l.b16 %v5895
        %v5948 = vunpack.c.h.b16 %v5895
        %v5949 = vunpack.c.l.b16 %v5896
        %v5950 = vunpack.c.h.b16 %v5896
        %v5951 = vunpack.c.l.b16 %v5897
        %v5952 = vunpack.c.h.b16 %v5897
        %v5953 = vunpack.c.l.b16 %v5898
        %v5954 = vunpack.c.h.b16 %v5898
        %v5955 = vunpack.c.l.b16 %v5899
        %v5956 = vunpack.c.h.b16 %v5899
        %v5957 = vunpack.c.l.b16 %v5900
        %v5958 = vunpack.c.h.b16 %v5900
        %v5959 = vunpack.c.l.b16 %v5901
        %v5960 = vunpack.c.h.b16 %v5901
        %v5961 = vunpack.c.l.b16 %v5902
        %v5962 = vunpack.c.h.b16 %v5902
        %v5963 = vunpack.c.l.b16 %v5903
        %v5964 = vunpack.c.h.b16 %v5903
        %v5965 = vpack.c.b16 %v5935, %v5933
        %v5966 = vpack.c.b16 %v5936, %v5934
        %v5967 = vpack.c.b16 %v5939, %v5937
        %v5968 = vpack.c.b16 %v5940, %v5938
        %v5969 = vpack.c.b16 %v5943, %v5941
        %v5970 = vpack.c.b16 %v5944, %v5942
        %v5971 = vpack.c.b16 %v5947, %v5945
        %v5972 = vpack.c.b16 %v5948, %v5946
        %v5973 = vpack.c.b16 %v5951, %v5949
        %v5974 = vpack.c.b16 %v5952, %v5950
        %v5975 = vpack.c.b16 %v5955, %v5953
        %v5976 = vpack.c.b16 %v5956, %v5954
        %v5977 = vpack.c.b16 %v5959, %v5957
        %v5978 = vpack.c.b16 %v5960, %v5958
        %v5979 = vpack.c.b16 %v5963, %v5961
        %v5980 = vpack.c.b16 %v5964, %v5962
        %5997 = vmatprep.subr.bf16.mxu0 %v5966
        %5998 = vmatpush1.bf16.msra.mxu0 %v5965
        %5999 = vmatprep.subr.bf16.mxu0 %v5968
        %6000 = vmatpush1.bf16.msra.mxu0 %v5967
        %6001 = vmatprep.subr.bf16.mxu0 %v5970
        %6002 = vmatpush1.bf16.msra.mxu0 %v5969
        %6003 = vmatprep.subr.bf16.mxu0 %v5972
        %6004 = vmatpush1.bf16.msra.mxu0 %v5971
        %6005 = vmatprep.subr.bf16.mxu0 %v5974
        %6006 = vmatpush1.bf16.msra.mxu0 %v5973
        %6007 = vmatprep.subr.bf16.mxu0 %v5976
        %6008 = vmatpush1.bf16.msra.mxu0 %v5975
        %6009 = vmatprep.subr.bf16.mxu0 %v5978
        %6010 = vmatpush1.bf16.msra.mxu0 %v5977
        %6011 = vmatprep.subr.bf16.mxu0 %v5980
        %6012 = vmatpush1.bf16.msra.mxu0 %v5979
        %6013 = vmatprep.subr.bf16.mxu0 0
        %6014 = vmatpush1.bf16.msra.mxu0 0
        %6015 = vmatprep.subr.bf16.mxu0 0
        %6016 = vmatpush1.bf16.msra.mxu0 0
        %6017 = vmatprep.subr.bf16.mxu0 0
        %6018 = vmatpush1.bf16.msra.mxu0 0
        %6019 = vmatprep.subr.bf16.mxu0 0
        %6020 = vmatpush1.bf16.msra.mxu0 0
        %6021 = vmatprep.subr.bf16.mxu0 0
        %6022 = vmatpush1.bf16.msra.mxu0 0
        %6023 = vmatprep.subr.bf16.mxu0 0
        %6024 = vmatpush1.bf16.msra.mxu0 0
        %6025 = vmatprep.subr.bf16.mxu0 0
        %6026 = vmatpush1.bf16.msra.mxu0 0
        %6027 = vmatprep.subr.bf16.mxu0 0
        %6028 = vmatpush1.bf16.msra.mxu0 0
        %6029 = vmatprep.mubr.bf16.mxu0 0
        %6030 = vmatmul.mubr.bf16.gmra.mrb[0].mxu0 %v5887
        %v6031 = vpop.f32.mrb[0].mxu0
        %v6032 = vadd.f32 %v5910, %v6031
        %v6033 = vpop.f32.mrb[0].mxu0
        %v6034 = vadd.f32 %v5914, %v6033
        %v6035 = vpop.f32.mrb[0].mxu0
        %v6036 = vadd.f32 %v5910, %v6035
        %v6037 = vpop.f32.mrb[0].mxu0
        %v6038 = vadd.f32 %v5914, %v6037
        %6039 = vdwg.mxu0
        %vm6040 = vcmp.gt.f32.partialorder %v6032, 0.0
        %vm6041 = vcmp.gt.f32.partialorder %v6034, 0.0
        %vm6042 = vcmp.gt.f32.partialorder %v6036, 0.0
        %vm6043 = vcmp.gt.f32.partialorder %v6038, 0.0
        %v6044 = vmul.f32 %v6032, 0.01
        %v6045 = vmul.f32 %v6034, 0.01
        %v6046 = vmul.f32 %v6036, 0.01
        %v6047 = vmul.f32 %v6038, 0.01
        %v6048 = vsel %vm6040, %v6032, %v6044
        %v6049 = vsel %vm6041, %v6034, %v6045
        %v6050 = vsel %vm6042, %v6036, %v6046
        %v6051 = vsel %vm6043, %v6038, %v6047
        %v6052 = vpack.c.bf16 %v6050, %v6048
        %v6053 = vpack.c.bf16 %v6051, %v6049
        %v6054 = vld [vmem:[#allocation15] sm:$0xff]
        %v6055 = vld [vmem:[#allocation15 + $0x8] sm:$0xff]
        %v6056 = vld [vmem:[#allocation15 + $0x10] sm:$0xff]
        %v6057 = vld [vmem:[#allocation15 + $0x18] sm:$0xff]
        %v6058 = vld [vmem:[#allocation15 + $0x20] sm:$0xff]
        %v6059 = vld [vmem:[#allocation15 + $0x28] sm:$0xff]
        %v6060 = vld [vmem:[#allocation15 + $0x30] sm:$0xff]
        %v6061 = vld [vmem:[#allocation15 + $0x38] sm:$0xff]
        %v6062 = vld [vmem:[#allocation15 + $0x40] sm:$0xff]
        %v6063 = vld [vmem:[#allocation15 + $0x48] sm:$0xff]
        %v6064 = vld [vmem:[#allocation15 + $0x50] sm:$0xff]
        %v6065 = vld [vmem:[#allocation15 + $0x58] sm:$0xff]
        %v6066 = vld [vmem:[#allocation15 + $0x60] sm:$0xff]
        %v6067 = vld [vmem:[#allocation15 + $0x68] sm:$0xff]
        %v6068 = vld [vmem:[#allocation15 + $0x70] sm:$0xff]
        %v6069 = vld [vmem:[#allocation15 + $0x78] sm:$0xff]
        %v6070 = vld [vmem:[#allocation15 + $0x80] sm:$0xff]
        %v6071 = vld [vmem:[#allocation15 + $0x88] sm:$0xff]
        %v6072 = vld [vmem:[#allocation15 + $0x90] sm:$0xff]
        %v6073 = vld [vmem:[#allocation15 + $0x98] sm:$0xff]
        %v6074 = vld [vmem:[#allocation15 + $0xa0] sm:$0xff]
        %v6075 = vld [vmem:[#allocation15 + $0xa8] sm:$0xff]
        %v6076 = vld [vmem:[#allocation15 + $0xb0] sm:$0xff]
        %v6077 = vld [vmem:[#allocation15 + $0xb8] sm:$0xff]
        %v6078 = vld [vmem:[#allocation15 + $0xc0] sm:$0xff]
        %v6079 = vld [vmem:[#allocation15 + $0xc8] sm:$0xff]
        %v6080 = vld [vmem:[#allocation15 + $0xd0] sm:$0xff]
        %v6081 = vld [vmem:[#allocation15 + $0xd8] sm:$0xff]
        %v6082 = vld [vmem:[#allocation15 + $0xe0] sm:$0xff]
        %v6083 = vld [vmem:[#allocation15 + $0xe8] sm:$0xff]
        %v6084 = vld [vmem:[#allocation15 + $0xf0] sm:$0xff]
        %v6085 = vld [vmem:[#allocation15 + $0xf8] sm:$0xff]
        %v6086 = vld [vmem:[#allocation15 + $0x100] sm:$0xff]
        %v6087 = vld [vmem:[#allocation15 + $0x108] sm:$0xff]
        %v6088 = vld [vmem:[#allocation15 + $0x110] sm:$0xff]
        %v6089 = vld [vmem:[#allocation15 + $0x118] sm:$0xff]
        %v6090 = vld [vmem:[#allocation15 + $0x120] sm:$0xff]
        %v6091 = vld [vmem:[#allocation15 + $0x128] sm:$0xff]
        %v6092 = vld [vmem:[#allocation15 + $0x130] sm:$0xff]
        %v6093 = vld [vmem:[#allocation15 + $0x138] sm:$0xff]
        %v6094 = vld [vmem:[#allocation15 + $0x140] sm:$0xff]
        %v6095 = vld [vmem:[#allocation15 + $0x148] sm:$0xff]
        %v6096 = vld [vmem:[#allocation15 + $0x150] sm:$0xff]
        %v6097 = vld [vmem:[#allocation15 + $0x158] sm:$0xff]
        %v6098 = vld [vmem:[#allocation15 + $0x160] sm:$0xff]
        %v6099 = vld [vmem:[#allocation15 + $0x168] sm:$0xff]
        %v6100 = vld [vmem:[#allocation15 + $0x170] sm:$0xff]
        %v6101 = vld [vmem:[#allocation15 + $0x178] sm:$0xff]
        %v6102 = vld [vmem:[#allocation15 + $0x180] sm:$0xff]
        %v6103 = vld [vmem:[#allocation15 + $0x188] sm:$0xff]
        %v6104 = vld [vmem:[#allocation15 + $0x190] sm:$0xff]
        %v6105 = vld [vmem:[#allocation15 + $0x198] sm:$0xff]
        %v6106 = vld [vmem:[#allocation15 + $0x1a0] sm:$0xff]
        %v6107 = vld [vmem:[#allocation15 + $0x1a8] sm:$0xff]
        %v6108 = vld [vmem:[#allocation15 + $0x1b0] sm:$0xff]
        %v6109 = vld [vmem:[#allocation15 + $0x1b8] sm:$0xff]
        %v6110 = vld [vmem:[#allocation15 + $0x1c0] sm:$0xff]
        %v6111 = vld [vmem:[#allocation15 + $0x1c8] sm:$0xff]
        %v6112 = vld [vmem:[#allocation15 + $0x1d0] sm:$0xff]
        %v6113 = vld [vmem:[#allocation15 + $0x1d8] sm:$0xff]
        %v6114 = vld [vmem:[#allocation15 + $0x1e0] sm:$0xff]
        %v6115 = vld [vmem:[#allocation15 + $0x1e8] sm:$0xff]
        %v6116 = vld [vmem:[#allocation15 + $0x1f0] sm:$0xff]
        %v6117 = vld [vmem:[#allocation15 + $0x1f8] sm:$0xff]
        %s6118 = scalar_lea.vmem [#allocation2], 7
        %v6119 = vld [vmem:[%s6118] ss:$8 sm:$0xf]
        %v6121 = vlaneseq
        %v6122 = vshrl.u32 %v6121, 7
        %v6123 = vsub.s32 0, %v6122
        %v6124 = vrot.slane %v6119, %v6123
        %v6125 = vlaneseq
        %v6126 = vshrl.u32 %v6125, 7
        %v6127 = vsub.s32 1, %v6126
        %v6128 = vrot.slane %v6119, %v6127
        %v6129 = vlaneseq
        %v6130 = vshrl.u32 %v6129, 7
        %v6131 = vsub.s32 2, %v6130
        %v6132 = vrot.slane %v6119, %v6131
        %v6133 = vlaneseq
        %v6134 = vshrl.u32 %v6133, 7
        %v6135 = vsub.s32 3, %v6134
        %v6136 = vrot.slane %v6119, %v6135
        %v6205 = vunpack.c.l.b16 %v6054
        %v6206 = vunpack.c.h.b16 %v6054
        %v6207 = vunpack.c.l.b16 %v6055
        %v6208 = vunpack.c.h.b16 %v6055
        %v6209 = vunpack.c.l.b16 %v6056
        %v6210 = vunpack.c.h.b16 %v6056
        %v6211 = vunpack.c.l.b16 %v6057
        %v6212 = vunpack.c.h.b16 %v6057
        %v6213 = vunpack.c.l.b16 %v6058
        %v6214 = vunpack.c.h.b16 %v6058
        %v6215 = vunpack.c.l.b16 %v6059
        %v6216 = vunpack.c.h.b16 %v6059
        %v6217 = vunpack.c.l.b16 %v6060
        %v6218 = vunpack.c.h.b16 %v6060
        %v6219 = vunpack.c.l.b16 %v6061
        %v6220 = vunpack.c.h.b16 %v6061
        %v6221 = vunpack.c.l.b16 %v6062
        %v6222 = vunpack.c.h.b16 %v6062
        %v6223 = vunpack.c.l.b16 %v6063
        %v6224 = vunpack.c.h.b16 %v6063
        %v6225 = vunpack.c.l.b16 %v6064
        %v6226 = vunpack.c.h.b16 %v6064
        %v6227 = vunpack.c.l.b16 %v6065
        %v6228 = vunpack.c.h.b16 %v6065
        %v6229 = vunpack.c.l.b16 %v6066
        %v6230 = vunpack.c.h.b16 %v6066
        %v6231 = vunpack.c.l.b16 %v6067
        %v6232 = vunpack.c.h.b16 %v6067
        %v6233 = vunpack.c.l.b16 %v6068
        %v6234 = vunpack.c.h.b16 %v6068
        %v6235 = vunpack.c.l.b16 %v6069
        %v6236 = vunpack.c.h.b16 %v6069
        %v6237 = vunpack.c.l.b16 %v6070
        %v6238 = vunpack.c.h.b16 %v6070
        %v6239 = vunpack.c.l.b16 %v6071
        %v6240 = vunpack.c.h.b16 %v6071
        %v6241 = vunpack.c.l.b16 %v6072
        %v6242 = vunpack.c.h.b16 %v6072
        %v6243 = vunpack.c.l.b16 %v6073
        %v6244 = vunpack.c.h.b16 %v6073
        %v6245 = vunpack.c.l.b16 %v6074
        %v6246 = vunpack.c.h.b16 %v6074
        %v6247 = vunpack.c.l.b16 %v6075
        %v6248 = vunpack.c.h.b16 %v6075
        %v6249 = vunpack.c.l.b16 %v6076
        %v6250 = vunpack.c.h.b16 %v6076
        %v6251 = vunpack.c.l.b16 %v6077
        %v6252 = vunpack.c.h.b16 %v6077
        %v6253 = vunpack.c.l.b16 %v6078
        %v6254 = vunpack.c.h.b16 %v6078
        %v6255 = vunpack.c.l.b16 %v6079
        %v6256 = vunpack.c.h.b16 %v6079
        %v6257 = vunpack.c.l.b16 %v6080
        %v6258 = vunpack.c.h.b16 %v6080
        %v6259 = vunpack.c.l.b16 %v6081
        %v6260 = vunpack.c.h.b16 %v6081
        %v6261 = vunpack.c.l.b16 %v6082
        %v6262 = vunpack.c.h.b16 %v6082
        %v6263 = vunpack.c.l.b16 %v6083
        %v6264 = vunpack.c.h.b16 %v6083
        %v6265 = vunpack.c.l.b16 %v6084
        %v6266 = vunpack.c.h.b16 %v6084
        %v6267 = vunpack.c.l.b16 %v6085
        %v6268 = vunpack.c.h.b16 %v6085
        %v6269 = vunpack.c.l.b16 %v6086
        %v6270 = vunpack.c.h.b16 %v6086
        %v6271 = vunpack.c.l.b16 %v6087
        %v6272 = vunpack.c.h.b16 %v6087
        %v6273 = vunpack.c.l.b16 %v6088
        %v6274 = vunpack.c.h.b16 %v6088
        %v6275 = vunpack.c.l.b16 %v6089
        %v6276 = vunpack.c.h.b16 %v6089
        %v6277 = vunpack.c.l.b16 %v6090
        %v6278 = vunpack.c.h.b16 %v6090
        %v6279 = vunpack.c.l.b16 %v6091
        %v6280 = vunpack.c.h.b16 %v6091
        %v6281 = vunpack.c.l.b16 %v6092
        %v6282 = vunpack.c.h.b16 %v6092
        %v6283 = vunpack.c.l.b16 %v6093
        %v6284 = vunpack.c.h.b16 %v6093
        %v6285 = vunpack.c.l.b16 %v6094
        %v6286 = vunpack.c.h.b16 %v6094
        %v6287 = vunpack.c.l.b16 %v6095
        %v6288 = vunpack.c.h.b16 %v6095
        %v6289 = vunpack.c.l.b16 %v6096
        %v6290 = vunpack.c.h.b16 %v6096
        %v6291 = vunpack.c.l.b16 %v6097
        %v6292 = vunpack.c.h.b16 %v6097
        %v6293 = vunpack.c.l.b16 %v6098
        %v6294 = vunpack.c.h.b16 %v6098
        %v6295 = vunpack.c.l.b16 %v6099
        %v6296 = vunpack.c.h.b16 %v6099
        %v6297 = vunpack.c.l.b16 %v6100
        %v6298 = vunpack.c.h.b16 %v6100
        %v6299 = vunpack.c.l.b16 %v6101
        %v6300 = vunpack.c.h.b16 %v6101
        %v6301 = vunpack.c.l.b16 %v6102
        %v6302 = vunpack.c.h.b16 %v6102
        %v6303 = vunpack.c.l.b16 %v6103
        %v6304 = vunpack.c.h.b16 %v6103
        %v6305 = vunpack.c.l.b16 %v6104
        %v6306 = vunpack.c.h.b16 %v6104
        %v6307 = vunpack.c.l.b16 %v6105
        %v6308 = vunpack.c.h.b16 %v6105
        %v6309 = vunpack.c.l.b16 %v6106
        %v6310 = vunpack.c.h.b16 %v6106
        %v6311 = vunpack.c.l.b16 %v6107
        %v6312 = vunpack.c.h.b16 %v6107
        %v6313 = vunpack.c.l.b16 %v6108
        %v6314 = vunpack.c.h.b16 %v6108
        %v6315 = vunpack.c.l.b16 %v6109
        %v6316 = vunpack.c.h.b16 %v6109
        %v6317 = vunpack.c.l.b16 %v6110
        %v6318 = vunpack.c.h.b16 %v6110
        %v6319 = vunpack.c.l.b16 %v6111
        %v6320 = vunpack.c.h.b16 %v6111
        %v6321 = vunpack.c.l.b16 %v6112
        %v6322 = vunpack.c.h.b16 %v6112
        %v6323 = vunpack.c.l.b16 %v6113
        %v6324 = vunpack.c.h.b16 %v6113
        %v6325 = vunpack.c.l.b16 %v6114
        %v6326 = vunpack.c.h.b16 %v6114
        %v6327 = vunpack.c.l.b16 %v6115
        %v6328 = vunpack.c.h.b16 %v6115
        %v6329 = vunpack.c.l.b16 %v6116
        %v6330 = vunpack.c.h.b16 %v6116
        %v6331 = vunpack.c.l.b16 %v6117
        %v6332 = vunpack.c.h.b16 %v6117
        %v6333 = vpack.c.b16 %v6209, %v6205
        %v6334 = vpack.c.b16 %v6210, %v6206
        %v6335 = vpack.c.b16 %v6211, %v6207
        %v6336 = vpack.c.b16 %v6212, %v6208
        %v6337 = vpack.c.b16 %v6217, %v6213
        %v6338 = vpack.c.b16 %v6218, %v6214
        %v6339 = vpack.c.b16 %v6219, %v6215
        %v6340 = vpack.c.b16 %v6220, %v6216
        %v6341 = vpack.c.b16 %v6225, %v6221
        %v6342 = vpack.c.b16 %v6226, %v6222
        %v6343 = vpack.c.b16 %v6227, %v6223
        %v6344 = vpack.c.b16 %v6228, %v6224
        %v6345 = vpack.c.b16 %v6233, %v6229
        %v6346 = vpack.c.b16 %v6234, %v6230
        %v6347 = vpack.c.b16 %v6235, %v6231
        %v6348 = vpack.c.b16 %v6236, %v6232
        %v6349 = vpack.c.b16 %v6241, %v6237
        %v6350 = vpack.c.b16 %v6242, %v6238
        %v6351 = vpack.c.b16 %v6243, %v6239
        %v6352 = vpack.c.b16 %v6244, %v6240
        %v6353 = vpack.c.b16 %v6249, %v6245
        %v6354 = vpack.c.b16 %v6250, %v6246
        %v6355 = vpack.c.b16 %v6251, %v6247
        %v6356 = vpack.c.b16 %v6252, %v6248
        %v6357 = vpack.c.b16 %v6257, %v6253
        %v6358 = vpack.c.b16 %v6258, %v6254
        %v6359 = vpack.c.b16 %v6259, %v6255
        %v6360 = vpack.c.b16 %v6260, %v6256
        %v6361 = vpack.c.b16 %v6265, %v6261
        %v6362 = vpack.c.b16 %v6266, %v6262
        %v6363 = vpack.c.b16 %v6267, %v6263
        %v6364 = vpack.c.b16 %v6268, %v6264
        %v6365 = vpack.c.b16 %v6273, %v6269
        %v6366 = vpack.c.b16 %v6274, %v6270
        %v6367 = vpack.c.b16 %v6275, %v6271
        %v6368 = vpack.c.b16 %v6276, %v6272
        %v6369 = vpack.c.b16 %v6281, %v6277
        %v6370 = vpack.c.b16 %v6282, %v6278
        %v6371 = vpack.c.b16 %v6283, %v6279
        %v6372 = vpack.c.b16 %v6284, %v6280
        %v6373 = vpack.c.b16 %v6289, %v6285
        %v6374 = vpack.c.b16 %v6290, %v6286
        %v6375 = vpack.c.b16 %v6291, %v6287
        %v6376 = vpack.c.b16 %v6292, %v6288
        %v6377 = vpack.c.b16 %v6297, %v6293
        %v6378 = vpack.c.b16 %v6298, %v6294
        %v6379 = vpack.c.b16 %v6299, %v6295
        %v6380 = vpack.c.b16 %v6300, %v6296
        %v6381 = vpack.c.b16 %v6305, %v6301
        %v6382 = vpack.c.b16 %v6306, %v6302
        %v6383 = vpack.c.b16 %v6307, %v6303
        %v6384 = vpack.c.b16 %v6308, %v6304
        %v6385 = vpack.c.b16 %v6313, %v6309
        %v6386 = vpack.c.b16 %v6314, %v6310
        %v6387 = vpack.c.b16 %v6315, %v6311
        %v6388 = vpack.c.b16 %v6316, %v6312
        %v6389 = vpack.c.b16 %v6321, %v6317
        %v6390 = vpack.c.b16 %v6322, %v6318
        %v6391 = vpack.c.b16 %v6323, %v6319
        %v6392 = vpack.c.b16 %v6324, %v6320
        %v6393 = vpack.c.b16 %v6329, %v6325
        %v6394 = vpack.c.b16 %v6330, %v6326
        %v6395 = vpack.c.b16 %v6331, %v6327
        %v6396 = vpack.c.b16 %v6332, %v6328
        %6461 = vmatprep.subr.bf16.mxu0 %v6334
        %6462 = vmatpush1.bf16.msra.mxu0 %v6333
        %6463 = vmatprep.subr.bf16.mxu0 %v6338
        %6464 = vmatpush1.bf16.msra.mxu0 %v6337
        %6465 = vmatprep.subr.bf16.mxu0 %v6342
        %6466 = vmatpush1.bf16.msra.mxu0 %v6341
        %6467 = vmatprep.subr.bf16.mxu0 %v6346
        %6468 = vmatpush1.bf16.msra.mxu0 %v6345
        %6469 = vmatprep.subr.bf16.mxu0 %v6350
        %6470 = vmatpush1.bf16.msra.mxu0 %v6349
        %6471 = vmatprep.subr.bf16.mxu0 %v6354
        %6472 = vmatpush1.bf16.msra.mxu0 %v6353
        %6473 = vmatprep.subr.bf16.mxu0 %v6358
        %6474 = vmatpush1.bf16.msra.mxu0 %v6357
        %6475 = vmatprep.subr.bf16.mxu0 %v6362
        %6476 = vmatpush1.bf16.msra.mxu0 %v6361
        %6477 = vmatprep.subr.bf16.mxu0 %v6366
        %6478 = vmatpush1.bf16.msra.mxu0 %v6365
        %6479 = vmatprep.subr.bf16.mxu0 %v6370
        %6480 = vmatpush1.bf16.msra.mxu0 %v6369
        %6481 = vmatprep.subr.bf16.mxu0 %v6374
        %6482 = vmatpush1.bf16.msra.mxu0 %v6373
        %6483 = vmatprep.subr.bf16.mxu0 %v6378
        %6484 = vmatpush1.bf16.msra.mxu0 %v6377
        %6485 = vmatprep.subr.bf16.mxu0 %v6382
        %6486 = vmatpush1.bf16.msra.mxu0 %v6381
        %6487 = vmatprep.subr.bf16.mxu0 %v6386
        %6488 = vmatpush1.bf16.msra.mxu0 %v6385
        %6489 = vmatprep.subr.bf16.mxu0 %v6390
        %6490 = vmatpush1.bf16.msra.mxu0 %v6389
        %6491 = vmatprep.subr.bf16.mxu0 %v6394
        %6492 = vmatpush1.bf16.msra.mxu0 %v6393
        %6493 = vmatprep.mubr.bf16.mxu0 %v6053
        %6494 = vmatmul.mubr.bf16.gmra.mrb[0].mxu0 %v6052
        %v6495 = vpop.f32.mrb[0].mxu0
        %v6496 = vadd.f32 %v6124, %v6495
        %v6497 = vpop.f32.mrb[0].mxu0
        %v6498 = vadd.f32 %v6128, %v6497
        %v6499 = vpop.f32.mrb[0].mxu0
        %v6500 = vadd.f32 %v6124, %v6499
        %v6501 = vpop.f32.mrb[0].mxu0
        %v6502 = vadd.f32 %v6128, %v6501
        %6503 = vdwg.mxu0
        %6504 = vmatprep.subr.bf16.mxu0 %v6336
        %6505 = vmatpush1.bf16.msra.mxu0 %v6335
        %6506 = vmatprep.subr.bf16.mxu0 %v6340
        %6507 = vmatpush1.bf16.msra.mxu0 %v6339
        %6508 = vmatprep.subr.bf16.mxu0 %v6344
        %6509 = vmatpush1.bf16.msra.mxu0 %v6343
        %6510 = vmatprep.subr.bf16.mxu0 %v6348
        %6511 = vmatpush1.bf16.msra.mxu0 %v6347
        %6512 = vmatprep.subr.bf16.mxu0 %v6352
        %6513 = vmatpush1.bf16.msra.mxu0 %v6351
        %6514 = vmatprep.subr.bf16.mxu0 %v6356
        %6515 = vmatpush1.bf16.msra.mxu0 %v6355
        %6516 = vmatprep.subr.bf16.mxu0 %v6360
        %6517 = vmatpush1.bf16.msra.mxu0 %v6359
        %6518 = vmatprep.subr.bf16.mxu0 %v6364
        %6519 = vmatpush1.bf16.msra.mxu0 %v6363
        %6520 = vmatprep.subr.bf16.mxu0 %v6368
        %6521 = vmatpush1.bf16.msra.mxu0 %v6367
        %6522 = vmatprep.subr.bf16.mxu0 %v6372
        %6523 = vmatpush1.bf16.msra.mxu0 %v6371
        %6524 = vmatprep.subr.bf16.mxu0 %v6376
        %6525 = vmatpush1.bf16.msra.mxu0 %v6375
        %6526 = vmatprep.subr.bf16.mxu0 %v6380
        %6527 = vmatpush1.bf16.msra.mxu0 %v6379
        %6528 = vmatprep.subr.bf16.mxu0 %v6384
        %6529 = vmatpush1.bf16.msra.mxu0 %v6383
        %6530 = vmatprep.subr.bf16.mxu0 %v6388
        %6531 = vmatpush1.bf16.msra.mxu0 %v6387
        %6532 = vmatprep.subr.bf16.mxu0 %v6392
        %6533 = vmatpush1.bf16.msra.mxu0 %v6391
        %6534 = vmatprep.subr.bf16.mxu0 %v6396
        %6535 = vmatpush1.bf16.msra.mxu0 %v6395
        %6536 = vmatprep.mubr.bf16.mxu0 %v6053
        %6537 = vmatmul.mubr.bf16.gmra.mrb[0].mxu0 %v6052
        %v6538 = vpop.f32.mrb[0].mxu0
        %v6539 = vadd.f32 %v6132, %v6538
        %v6540 = vpop.f32.mrb[0].mxu0
        %v6541 = vadd.f32 %v6136, %v6540
        %v6542 = vpop.f32.mrb[0].mxu0
        %v6543 = vadd.f32 %v6132, %v6542
        %v6544 = vpop.f32.mrb[0].mxu0
        %v6545 = vadd.f32 %v6136, %v6544
        %6546 = vdwg.mxu0
        %vm6547 = vcmp.gt.f32.partialorder %v6496, 0.0
        %vm6548 = vcmp.gt.f32.partialorder %v6498, 0.0
        %vm6549 = vcmp.gt.f32.partialorder %v6539, 0.0
        %vm6550 = vcmp.gt.f32.partialorder %v6541, 0.0
        %vm6551 = vcmp.gt.f32.partialorder %v6500, 0.0
        %vm6552 = vcmp.gt.f32.partialorder %v6502, 0.0
        %vm6553 = vcmp.gt.f32.partialorder %v6543, 0.0
        %vm6554 = vcmp.gt.f32.partialorder %v6545, 0.0
        %v6555 = vmul.f32 %v6496, 0.01
        %v6556 = vmul.f32 %v6498, 0.01
        %v6557 = vmul.f32 %v6539, 0.01
        %v6558 = vmul.f32 %v6541, 0.01
        %v6559 = vmul.f32 %v6500, 0.01
        %v6560 = vmul.f32 %v6502, 0.01
        %v6561 = vmul.f32 %v6543, 0.01
        %v6562 = vmul.f32 %v6545, 0.01
        %v6563 = vsel %vm6547, %v6496, %v6555
        %v6564 = vsel %vm6548, %v6498, %v6556
        %v6565 = vsel %vm6549, %v6539, %v6557
        %v6566 = vsel %vm6550, %v6541, %v6558
        %v6567 = vsel %vm6551, %v6500, %v6559
        %v6568 = vsel %vm6552, %v6502, %v6560
        %v6569 = vsel %vm6553, %v6543, %v6561
        %v6570 = vsel %vm6554, %v6545, %v6562
        %v6571 = vpack.c.bf16 %v6567, %v6563
        %v6572 = vpack.c.bf16 %v6568, %v6564
        %v6573 = vpack.c.bf16 %v6569, %v6565
        %v6574 = vpack.c.bf16 %v6570, %v6566
        %v6575 = vld [vmem:[#allocation16] sm:$0xff]
        %v6576 = vld [vmem:[#allocation16 + $0x8] sm:$0xff]
        %v6577 = vld [vmem:[#allocation16 + $0x10] sm:$0xff]
        %v6578 = vld [vmem:[#allocation16 + $0x18] sm:$0xff]
        %v6579 = vld [vmem:[#allocation16 + $0x20] sm:$0xff]
        %v6580 = vld [vmem:[#allocation16 + $0x28] sm:$0xff]
        %v6581 = vld [vmem:[#allocation16 + $0x30] sm:$0xff]
        %v6582 = vld [vmem:[#allocation16 + $0x38] sm:$0xff]
        %v6583 = vld [vmem:[#allocation16 + $0x40] sm:$0xff]
        %v6584 = vld [vmem:[#allocation16 + $0x48] sm:$0xff]
        %v6585 = vld [vmem:[#allocation16 + $0x50] sm:$0xff]
        %v6586 = vld [vmem:[#allocation16 + $0x58] sm:$0xff]
        %v6587 = vld [vmem:[#allocation16 + $0x60] sm:$0xff]
        %v6588 = vld [vmem:[#allocation16 + $0x68] sm:$0xff]
        %v6589 = vld [vmem:[#allocation16 + $0x70] sm:$0xff]
        %v6590 = vld [vmem:[#allocation16 + $0x78] sm:$0xff]
        %v6591 = vld [vmem:[#allocation16 + $0x80] sm:$0xff]
        %v6592 = vld [vmem:[#allocation16 + $0x88] sm:$0xff]
        %v6593 = vld [vmem:[#allocation16 + $0x90] sm:$0xff]
        %v6594 = vld [vmem:[#allocation16 + $0x98] sm:$0xff]
        %v6595 = vld [vmem:[#allocation16 + $0xa0] sm:$0xff]
        %v6596 = vld [vmem:[#allocation16 + $0xa8] sm:$0xff]
        %v6597 = vld [vmem:[#allocation16 + $0xb0] sm:$0xff]
        %v6598 = vld [vmem:[#allocation16 + $0xb8] sm:$0xff]
        %v6599 = vld [vmem:[#allocation16 + $0xc0] sm:$0xff]
        %v6600 = vld [vmem:[#allocation16 + $0xc8] sm:$0xff]
        %v6601 = vld [vmem:[#allocation16 + $0xd0] sm:$0xff]
        %v6602 = vld [vmem:[#allocation16 + $0xd8] sm:$0xff]
        %v6603 = vld [vmem:[#allocation16 + $0xe0] sm:$0xff]
        %v6604 = vld [vmem:[#allocation16 + $0xe8] sm:$0xff]
        %v6605 = vld [vmem:[#allocation16 + $0xf0] sm:$0xff]
        %v6606 = vld [vmem:[#allocation16 + $0xf8] sm:$0xff]
        %v6607 = vld [vmem:[#allocation16 + $0x100] sm:$0xff]
        %v6608 = vld [vmem:[#allocation16 + $0x108] sm:$0xff]
        %v6609 = vld [vmem:[#allocation16 + $0x110] sm:$0xff]
        %v6610 = vld [vmem:[#allocation16 + $0x118] sm:$0xff]
        %v6611 = vld [vmem:[#allocation16 + $0x120] sm:$0xff]
        %v6612 = vld [vmem:[#allocation16 + $0x128] sm:$0xff]
        %v6613 = vld [vmem:[#allocation16 + $0x130] sm:$0xff]
        %v6614 = vld [vmem:[#allocation16 + $0x138] sm:$0xff]
        %v6615 = vld [vmem:[#allocation16 + $0x140] sm:$0xff]
        %v6616 = vld [vmem:[#allocation16 + $0x148] sm:$0xff]
        %v6617 = vld [vmem:[#allocation16 + $0x150] sm:$0xff]
        %v6618 = vld [vmem:[#allocation16 + $0x158] sm:$0xff]
        %v6619 = vld [vmem:[#allocation16 + $0x160] sm:$0xff]
        %v6620 = vld [vmem:[#allocation16 + $0x168] sm:$0xff]
        %v6621 = vld [vmem:[#allocation16 + $0x170] sm:$0xff]
        %v6622 = vld [vmem:[#allocation16 + $0x178] sm:$0xff]
        %v6623 = vld [vmem:[#allocation16 + $0x180] sm:$0xff]
        %v6624 = vld [vmem:[#allocation16 + $0x188] sm:$0xff]
        %v6625 = vld [vmem:[#allocation16 + $0x190] sm:$0xff]
        %v6626 = vld [vmem:[#allocation16 + $0x198] sm:$0xff]
        %v6627 = vld [vmem:[#allocation16 + $0x1a0] sm:$0xff]
        %v6628 = vld [vmem:[#allocation16 + $0x1a8] sm:$0xff]
        %v6629 = vld [vmem:[#allocation16 + $0x1b0] sm:$0xff]
        %v6630 = vld [vmem:[#allocation16 + $0x1b8] sm:$0xff]
        %v6631 = vld [vmem:[#allocation16 + $0x1c0] sm:$0xff]
        %v6632 = vld [vmem:[#allocation16 + $0x1c8] sm:$0xff]
        %v6633 = vld [vmem:[#allocation16 + $0x1d0] sm:$0xff]
        %v6634 = vld [vmem:[#allocation16 + $0x1d8] sm:$0xff]
        %v6635 = vld [vmem:[#allocation16 + $0x1e0] sm:$0xff]
        %v6636 = vld [vmem:[#allocation16 + $0x1e8] sm:$0xff]
        %v6637 = vld [vmem:[#allocation16 + $0x1f0] sm:$0xff]
        %v6638 = vld [vmem:[#allocation16 + $0x1f8] sm:$0xff]
        %v6639 = vld [vmem:[#allocation16 + $0x200] sm:$0xff]
        %v6640 = vld [vmem:[#allocation16 + $0x208] sm:$0xff]
        %v6641 = vld [vmem:[#allocation16 + $0x210] sm:$0xff]
        %v6642 = vld [vmem:[#allocation16 + $0x218] sm:$0xff]
        %v6643 = vld [vmem:[#allocation16 + $0x220] sm:$0xff]
        %v6644 = vld [vmem:[#allocation16 + $0x228] sm:$0xff]
        %v6645 = vld [vmem:[#allocation16 + $0x230] sm:$0xff]
        %v6646 = vld [vmem:[#allocation16 + $0x238] sm:$0xff]
        %v6647 = vld [vmem:[#allocation16 + $0x240] sm:$0xff]
        %v6648 = vld [vmem:[#allocation16 + $0x248] sm:$0xff]
        %v6649 = vld [vmem:[#allocation16 + $0x250] sm:$0xff]
        %v6650 = vld [vmem:[#allocation16 + $0x258] sm:$0xff]
        %v6651 = vld [vmem:[#allocation16 + $0x260] sm:$0xff]
        %v6652 = vld [vmem:[#allocation16 + $0x268] sm:$0xff]
        %v6653 = vld [vmem:[#allocation16 + $0x270] sm:$0xff]
        %v6654 = vld [vmem:[#allocation16 + $0x278] sm:$0xff]
        %v6655 = vld [vmem:[#allocation16 + $0x280] sm:$0xff]
        %v6656 = vld [vmem:[#allocation16 + $0x288] sm:$0xff]
        %v6657 = vld [vmem:[#allocation16 + $0x290] sm:$0xff]
        %v6658 = vld [vmem:[#allocation16 + $0x298] sm:$0xff]
        %v6659 = vld [vmem:[#allocation16 + $0x2a0] sm:$0xff]
        %v6660 = vld [vmem:[#allocation16 + $0x2a8] sm:$0xff]
        %v6661 = vld [vmem:[#allocation16 + $0x2b0] sm:$0xff]
        %v6662 = vld [vmem:[#allocation16 + $0x2b8] sm:$0xff]
        %v6663 = vld [vmem:[#allocation16 + $0x2c0] sm:$0xff]
        %v6664 = vld [vmem:[#allocation16 + $0x2c8] sm:$0xff]
        %v6665 = vld [vmem:[#allocation16 + $0x2d0] sm:$0xff]
        %v6666 = vld [vmem:[#allocation16 + $0x2d8] sm:$0xff]
        %v6667 = vld [vmem:[#allocation16 + $0x2e0] sm:$0xff]
        %v6668 = vld [vmem:[#allocation16 + $0x2e8] sm:$0xff]
        %v6669 = vld [vmem:[#allocation16 + $0x2f0] sm:$0xff]
        %v6670 = vld [vmem:[#allocation16 + $0x2f8] sm:$0xff]
        %v6671 = vld [vmem:[#allocation16 + $0x300] sm:$0xff]
        %v6672 = vld [vmem:[#allocation16 + $0x308] sm:$0xff]
        %v6673 = vld [vmem:[#allocation16 + $0x310] sm:$0xff]
        %v6674 = vld [vmem:[#allocation16 + $0x318] sm:$0xff]
        %v6675 = vld [vmem:[#allocation16 + $0x320] sm:$0xff]
        %v6676 = vld [vmem:[#allocation16 + $0x328] sm:$0xff]
        %v6677 = vld [vmem:[#allocation16 + $0x330] sm:$0xff]
        %v6678 = vld [vmem:[#allocation16 + $0x338] sm:$0xff]
        %v6679 = vld [vmem:[#allocation16 + $0x340] sm:$0xff]
        %v6680 = vld [vmem:[#allocation16 + $0x348] sm:$0xff]
        %v6681 = vld [vmem:[#allocation16 + $0x350] sm:$0xff]
        %v6682 = vld [vmem:[#allocation16 + $0x358] sm:$0xff]
        %v6683 = vld [vmem:[#allocation16 + $0x360] sm:$0xff]
        %v6684 = vld [vmem:[#allocation16 + $0x368] sm:$0xff]
        %v6685 = vld [vmem:[#allocation16 + $0x370] sm:$0xff]
        %v6686 = vld [vmem:[#allocation16 + $0x378] sm:$0xff]
        %v6687 = vld [vmem:[#allocation16 + $0x380] sm:$0xff]
        %v6688 = vld [vmem:[#allocation16 + $0x388] sm:$0xff]
        %v6689 = vld [vmem:[#allocation16 + $0x390] sm:$0xff]
        %v6690 = vld [vmem:[#allocation16 + $0x398] sm:$0xff]
        %v6691 = vld [vmem:[#allocation16 + $0x3a0] sm:$0xff]
        %v6692 = vld [vmem:[#allocation16 + $0x3a8] sm:$0xff]
        %v6693 = vld [vmem:[#allocation16 + $0x3b0] sm:$0xff]
        %v6694 = vld [vmem:[#allocation16 + $0x3b8] sm:$0xff]
        %v6695 = vld [vmem:[#allocation16 + $0x3c0] sm:$0xff]
        %v6696 = vld [vmem:[#allocation16 + $0x3c8] sm:$0xff]
        %v6697 = vld [vmem:[#allocation16 + $0x3d0] sm:$0xff]
        %v6698 = vld [vmem:[#allocation16 + $0x3d8] sm:$0xff]
        %v6699 = vld [vmem:[#allocation16 + $0x3e0] sm:$0xff]
        %v6700 = vld [vmem:[#allocation16 + $0x3e8] sm:$0xff]
        %v6701 = vld [vmem:[#allocation16 + $0x3f0] sm:$0xff]
        %v6702 = vld [vmem:[#allocation16 + $0x3f8] sm:$0xff]
        %v6703 = vld [vmem:[#allocation16 + $0x400] sm:$0xff]
        %v6704 = vld [vmem:[#allocation16 + $0x408] sm:$0xff]
        %v6705 = vld [vmem:[#allocation16 + $0x410] sm:$0xff]
        %v6706 = vld [vmem:[#allocation16 + $0x418] sm:$0xff]
        %v6707 = vld [vmem:[#allocation16 + $0x420] sm:$0xff]
        %v6708 = vld [vmem:[#allocation16 + $0x428] sm:$0xff]
        %v6709 = vld [vmem:[#allocation16 + $0x430] sm:$0xff]
        %v6710 = vld [vmem:[#allocation16 + $0x438] sm:$0xff]
        %v6711 = vld [vmem:[#allocation16 + $0x440] sm:$0xff]
        %v6712 = vld [vmem:[#allocation16 + $0x448] sm:$0xff]
        %v6713 = vld [vmem:[#allocation16 + $0x450] sm:$0xff]
        %v6714 = vld [vmem:[#allocation16 + $0x458] sm:$0xff]
        %v6715 = vld [vmem:[#allocation16 + $0x460] sm:$0xff]
        %v6716 = vld [vmem:[#allocation16 + $0x468] sm:$0xff]
        %v6717 = vld [vmem:[#allocation16 + $0x470] sm:$0xff]
        %v6718 = vld [vmem:[#allocation16 + $0x478] sm:$0xff]
        %v6719 = vld [vmem:[#allocation16 + $0x480] sm:$0xff]
        %v6720 = vld [vmem:[#allocation16 + $0x488] sm:$0xff]
        %v6721 = vld [vmem:[#allocation16 + $0x490] sm:$0xff]
        %v6722 = vld [vmem:[#allocation16 + $0x498] sm:$0xff]
        %v6723 = vld [vmem:[#allocation16 + $0x4a0] sm:$0xff]
        %v6724 = vld [vmem:[#allocation16 + $0x4a8] sm:$0xff]
        %v6725 = vld [vmem:[#allocation16 + $0x4b0] sm:$0xff]
        %v6726 = vld [vmem:[#allocation16 + $0x4b8] sm:$0xff]
        %v6727 = vld [vmem:[#allocation16 + $0x4c0] sm:$0xff]
        %v6728 = vld [vmem:[#allocation16 + $0x4c8] sm:$0xff]
        %v6729 = vld [vmem:[#allocation16 + $0x4d0] sm:$0xff]
        %v6730 = vld [vmem:[#allocation16 + $0x4d8] sm:$0xff]
        %v6731 = vld [vmem:[#allocation16 + $0x4e0] sm:$0xff]
        %v6732 = vld [vmem:[#allocation16 + $0x4e8] sm:$0xff]
        %v6733 = vld [vmem:[#allocation16 + $0x4f0] sm:$0xff]
        %v6734 = vld [vmem:[#allocation16 + $0x4f8] sm:$0xff]
        %v6735 = vld [vmem:[#allocation16 + $0x500] sm:$0xff]
        %v6736 = vld [vmem:[#allocation16 + $0x508] sm:$0xff]
        %v6737 = vld [vmem:[#allocation16 + $0x510] sm:$0xff]
        %v6738 = vld [vmem:[#allocation16 + $0x518] sm:$0xff]
        %v6739 = vld [vmem:[#allocation16 + $0x520] sm:$0xff]
        %v6740 = vld [vmem:[#allocation16 + $0x528] sm:$0xff]
        %v6741 = vld [vmem:[#allocation16 + $0x530] sm:$0xff]
        %v6742 = vld [vmem:[#allocation16 + $0x538] sm:$0xff]
        %v6743 = vld [vmem:[#allocation16 + $0x540] sm:$0xff]
        %v6744 = vld [vmem:[#allocation16 + $0x548] sm:$0xff]
        %v6745 = vld [vmem:[#allocation16 + $0x550] sm:$0xff]
        %v6746 = vld [vmem:[#allocation16 + $0x558] sm:$0xff]
        %v6747 = vld [vmem:[#allocation16 + $0x560] sm:$0xff]
        %v6748 = vld [vmem:[#allocation16 + $0x568] sm:$0xff]
        %v6749 = vld [vmem:[#allocation16 + $0x570] sm:$0xff]
        %v6750 = vld [vmem:[#allocation16 + $0x578] sm:$0xff]
        %v6751 = vld [vmem:[#allocation16 + $0x580] sm:$0xff]
        %v6752 = vld [vmem:[#allocation16 + $0x588] sm:$0xff]
        %v6753 = vld [vmem:[#allocation16 + $0x590] sm:$0xff]
        %v6754 = vld [vmem:[#allocation16 + $0x598] sm:$0xff]
        %v6755 = vld [vmem:[#allocation16 + $0x5a0] sm:$0xff]
        %v6756 = vld [vmem:[#allocation16 + $0x5a8] sm:$0xff]
        %v6757 = vld [vmem:[#allocation16 + $0x5b0] sm:$0xff]
        %v6758 = vld [vmem:[#allocation16 + $0x5b8] sm:$0xff]
        %v6759 = vld [vmem:[#allocation16 + $0x5c0] sm:$0xff]
        %v6760 = vld [vmem:[#allocation16 + $0x5c8] sm:$0xff]
        %v6761 = vld [vmem:[#allocation16 + $0x5d0] sm:$0xff]
        %v6762 = vld [vmem:[#allocation16 + $0x5d8] sm:$0xff]
        %v6763 = vld [vmem:[#allocation16 + $0x5e0] sm:$0xff]
        %v6764 = vld [vmem:[#allocation16 + $0x5e8] sm:$0xff]
        %v6765 = vld [vmem:[#allocation16 + $0x5f0] sm:$0xff]
        %v6766 = vld [vmem:[#allocation16 + $0x5f8] sm:$0xff]
        %s6767 = scalar_lea.vmem [#allocation2], 64
        %v6768 = vld [vmem:[%s6767] ss:$8 sm:$0xf]
        %v6769 = vld [vmem:[%s6767] ss:$8 sm:$0x30]
        %v6770 = vor.u32 %v6768, %v6769
        %v6772 = vlaneseq
        %v6773 = vshrl.u32 %v6772, 7
        %v6774 = vsub.s32 0, %v6773
        %v6775 = vrot.slane %v6770, %v6774
        %v6776 = vlaneseq
        %v6777 = vshrl.u32 %v6776, 7
        %v6778 = vsub.s32 1, %v6777
        %v6779 = vrot.slane %v6770, %v6778
        %v6780 = vlaneseq
        %v6781 = vshrl.u32 %v6780, 7
        %v6782 = vsub.s32 2, %v6781
        %v6783 = vrot.slane %v6770, %v6782
        %v6784 = vlaneseq
        %v6785 = vshrl.u32 %v6784, 7
        %v6786 = vsub.s32 3, %v6785
        %v6787 = vrot.slane %v6770, %v6786
        %v6788 = vlaneseq
        %v6789 = vshrl.u32 %v6788, 7
        %v6790 = vsub.s32 4, %v6789
        %v6791 = vrot.slane %v6770, %v6790
        %v6792 = vlaneseq
        %v6793 = vshrl.u32 %v6792, 7
        %v6794 = vsub.s32 5, %v6793
        %v6795 = vrot.slane %v6770, %v6794
        %v6994 = vunpack.c.l.b16 %v6575
        %v6995 = vunpack.c.h.b16 %v6575
        %v6996 = vunpack.c.l.b16 %v6576
        %v6997 = vunpack.c.h.b16 %v6576
        %v6998 = vunpack.c.l.b16 %v6577
        %v6999 = vunpack.c.h.b16 %v6577
        %v7000 = vunpack.c.l.b16 %v6578
        %v7001 = vunpack.c.h.b16 %v6578
        %v7002 = vunpack.c.l.b16 %v6579
        %v7003 = vunpack.c.h.b16 %v6579
        %v7004 = vunpack.c.l.b16 %v6580
        %v7005 = vunpack.c.h.b16 %v6580
        %v7006 = vunpack.c.l.b16 %v6581
        %v7007 = vunpack.c.h.b16 %v6581
        %v7008 = vunpack.c.l.b16 %v6582
        %v7009 = vunpack.c.h.b16 %v6582
        %v7010 = vunpack.c.l.b16 %v6583
        %v7011 = vunpack.c.h.b16 %v6583
        %v7012 = vunpack.c.l.b16 %v6584
        %v7013 = vunpack.c.h.b16 %v6584
        %v7014 = vunpack.c.l.b16 %v6585
        %v7015 = vunpack.c.h.b16 %v6585
        %v7016 = vunpack.c.l.b16 %v6586
        %v7017 = vunpack.c.h.b16 %v6586
        %v7018 = vunpack.c.l.b16 %v6587
        %v7019 = vunpack.c.h.b16 %v6587
        %v7020 = vunpack.c.l.b16 %v6588
        %v7021 = vunpack.c.h.b16 %v6588
        %v7022 = vunpack.c.l.b16 %v6589
        %v7023 = vunpack.c.h.b16 %v6589
        %v7024 = vunpack.c.l.b16 %v6590
        %v7025 = vunpack.c.h.b16 %v6590
        %v7026 = vunpack.c.l.b16 %v6591
        %v7027 = vunpack.c.h.b16 %v6591
        %v7028 = vunpack.c.l.b16 %v6592
        %v7029 = vunpack.c.h.b16 %v6592
        %v7030 = vunpack.c.l.b16 %v6593
        %v7031 = vunpack.c.h.b16 %v6593
        %v7032 = vunpack.c.l.b16 %v6594
        %v7033 = vunpack.c.h.b16 %v6594
        %v7034 = vunpack.c.l.b16 %v6595
        %v7035 = vunpack.c.h.b16 %v6595
        %v7036 = vunpack.c.l.b16 %v6596
        %v7037 = vunpack.c.h.b16 %v6596
        %v7038 = vunpack.c.l.b16 %v6597
        %v7039 = vunpack.c.h.b16 %v6597
        %v7040 = vunpack.c.l.b16 %v6598
        %v7041 = vunpack.c.h.b16 %v6598
        %v7042 = vunpack.c.l.b16 %v6599
        %v7043 = vunpack.c.h.b16 %v6599
        %v7044 = vunpack.c.l.b16 %v6600
        %v7045 = vunpack.c.h.b16 %v6600
        %v7046 = vunpack.c.l.b16 %v6601
        %v7047 = vunpack.c.h.b16 %v6601
        %v7048 = vunpack.c.l.b16 %v6602
        %v7049 = vunpack.c.h.b16 %v6602
        %v7050 = vunpack.c.l.b16 %v6603
        %v7051 = vunpack.c.h.b16 %v6603
        %v7052 = vunpack.c.l.b16 %v6604
        %v7053 = vunpack.c.h.b16 %v6604
        %v7054 = vunpack.c.l.b16 %v6605
        %v7055 = vunpack.c.h.b16 %v6605
        %v7056 = vunpack.c.l.b16 %v6606
        %v7057 = vunpack.c.h.b16 %v6606
        %v7058 = vunpack.c.l.b16 %v6607
        %v7059 = vunpack.c.h.b16 %v6607
        %v7060 = vunpack.c.l.b16 %v6608
        %v7061 = vunpack.c.h.b16 %v6608
        %v7062 = vunpack.c.l.b16 %v6609
        %v7063 = vunpack.c.h.b16 %v6609
        %v7064 = vunpack.c.l.b16 %v6610
        %v7065 = vunpack.c.h.b16 %v6610
        %v7066 = vunpack.c.l.b16 %v6611
        %v7067 = vunpack.c.h.b16 %v6611
        %v7068 = vunpack.c.l.b16 %v6612
        %v7069 = vunpack.c.h.b16 %v6612
        %v7070 = vunpack.c.l.b16 %v6613
        %v7071 = vunpack.c.h.b16 %v6613
        %v7072 = vunpack.c.l.b16 %v6614
        %v7073 = vunpack.c.h.b16 %v6614
        %v7074 = vunpack.c.l.b16 %v6615
        %v7075 = vunpack.c.h.b16 %v6615
        %v7076 = vunpack.c.l.b16 %v6616
        %v7077 = vunpack.c.h.b16 %v6616
        %v7078 = vunpack.c.l.b16 %v6617
        %v7079 = vunpack.c.h.b16 %v6617
        %v7080 = vunpack.c.l.b16 %v6618
        %v7081 = vunpack.c.h.b16 %v6618
        %v7082 = vunpack.c.l.b16 %v6619
        %v7083 = vunpack.c.h.b16 %v6619
        %v7084 = vunpack.c.l.b16 %v6620
        %v7085 = vunpack.c.h.b16 %v6620
        %v7086 = vunpack.c.l.b16 %v6621
        %v7087 = vunpack.c.h.b16 %v6621
        %v7088 = vunpack.c.l.b16 %v6622
        %v7089 = vunpack.c.h.b16 %v6622
        %v7090 = vunpack.c.l.b16 %v6623
        %v7091 = vunpack.c.h.b16 %v6623
        %v7092 = vunpack.c.l.b16 %v6624
        %v7093 = vunpack.c.h.b16 %v6624
        %v7094 = vunpack.c.l.b16 %v6625
        %v7095 = vunpack.c.h.b16 %v6625
        %v7096 = vunpack.c.l.b16 %v6626
        %v7097 = vunpack.c.h.b16 %v6626
        %v7098 = vunpack.c.l.b16 %v6627
        %v7099 = vunpack.c.h.b16 %v6627
        %v7100 = vunpack.c.l.b16 %v6628
        %v7101 = vunpack.c.h.b16 %v6628
        %v7102 = vunpack.c.l.b16 %v6629
        %v7103 = vunpack.c.h.b16 %v6629
        %v7104 = vunpack.c.l.b16 %v6630
        %v7105 = vunpack.c.h.b16 %v6630
        %v7106 = vunpack.c.l.b16 %v6631
        %v7107 = vunpack.c.h.b16 %v6631
        %v7108 = vunpack.c.l.b16 %v6632
        %v7109 = vunpack.c.h.b16 %v6632
        %v7110 = vunpack.c.l.b16 %v6633
        %v7111 = vunpack.c.h.b16 %v6633
        %v7112 = vunpack.c.l.b16 %v6634
        %v7113 = vunpack.c.h.b16 %v6634
        %v7114 = vunpack.c.l.b16 %v6635
        %v7115 = vunpack.c.h.b16 %v6635
        %v7116 = vunpack.c.l.b16 %v6636
        %v7117 = vunpack.c.h.b16 %v6636
        %v7118 = vunpack.c.l.b16 %v6637
        %v7119 = vunpack.c.h.b16 %v6637
        %v7120 = vunpack.c.l.b16 %v6638
        %v7121 = vunpack.c.h.b16 %v6638
        %v7122 = vunpack.c.l.b16 %v6639
        %v7123 = vunpack.c.h.b16 %v6639
        %v7124 = vunpack.c.l.b16 %v6640
        %v7125 = vunpack.c.h.b16 %v6640
        %v7126 = vunpack.c.l.b16 %v6641
        %v7127 = vunpack.c.h.b16 %v6641
        %v7128 = vunpack.c.l.b16 %v6642
        %v7129 = vunpack.c.h.b16 %v6642
        %v7130 = vunpack.c.l.b16 %v6643
        %v7131 = vunpack.c.h.b16 %v6643
        %v7132 = vunpack.c.l.b16 %v6644
        %v7133 = vunpack.c.h.b16 %v6644
        %v7134 = vunpack.c.l.b16 %v6645
        %v7135 = vunpack.c.h.b16 %v6645
        %v7136 = vunpack.c.l.b16 %v6646
        %v7137 = vunpack.c.h.b16 %v6646
        %v7138 = vunpack.c.l.b16 %v6647
        %v7139 = vunpack.c.h.b16 %v6647
        %v7140 = vunpack.c.l.b16 %v6648
        %v7141 = vunpack.c.h.b16 %v6648
        %v7142 = vunpack.c.l.b16 %v6649
        %v7143 = vunpack.c.h.b16 %v6649
        %v7144 = vunpack.c.l.b16 %v6650
        %v7145 = vunpack.c.h.b16 %v6650
        %v7146 = vunpack.c.l.b16 %v6651
        %v7147 = vunpack.c.h.b16 %v6651
        %v7148 = vunpack.c.l.b16 %v6652
        %v7149 = vunpack.c.h.b16 %v6652
        %v7150 = vunpack.c.l.b16 %v6653
        %v7151 = vunpack.c.h.b16 %v6653
        %v7152 = vunpack.c.l.b16 %v6654
        %v7153 = vunpack.c.h.b16 %v6654
        %v7154 = vunpack.c.l.b16 %v6655
        %v7155 = vunpack.c.h.b16 %v6655
        %v7156 = vunpack.c.l.b16 %v6656
        %v7157 = vunpack.c.h.b16 %v6656
        %v7158 = vunpack.c.l.b16 %v6657
        %v7159 = vunpack.c.h.b16 %v6657
        %v7160 = vunpack.c.l.b16 %v6658
        %v7161 = vunpack.c.h.b16 %v6658
        %v7162 = vunpack.c.l.b16 %v6659
        %v7163 = vunpack.c.h.b16 %v6659
        %v7164 = vunpack.c.l.b16 %v6660
        %v7165 = vunpack.c.h.b16 %v6660
        %v7166 = vunpack.c.l.b16 %v6661
        %v7167 = vunpack.c.h.b16 %v6661
        %v7168 = vunpack.c.l.b16 %v6662
        %v7169 = vunpack.c.h.b16 %v6662
        %v7170 = vunpack.c.l.b16 %v6663
        %v7171 = vunpack.c.h.b16 %v6663
        %v7172 = vunpack.c.l.b16 %v6664
        %v7173 = vunpack.c.h.b16 %v6664
        %v7174 = vunpack.c.l.b16 %v6665
        %v7175 = vunpack.c.h.b16 %v6665
        %v7176 = vunpack.c.l.b16 %v6666
        %v7177 = vunpack.c.h.b16 %v6666
        %v7178 = vunpack.c.l.b16 %v6667
        %v7179 = vunpack.c.h.b16 %v6667
        %v7180 = vunpack.c.l.b16 %v6668
        %v7181 = vunpack.c.h.b16 %v6668
        %v7182 = vunpack.c.l.b16 %v6669
        %v7183 = vunpack.c.h.b16 %v6669
        %v7184 = vunpack.c.l.b16 %v6670
        %v7185 = vunpack.c.h.b16 %v6670
        %v7186 = vunpack.c.l.b16 %v6671
        %v7187 = vunpack.c.h.b16 %v6671
        %v7188 = vunpack.c.l.b16 %v6672
        %v7189 = vunpack.c.h.b16 %v6672
        %v7190 = vunpack.c.l.b16 %v6673
        %v7191 = vunpack.c.h.b16 %v6673
        %v7192 = vunpack.c.l.b16 %v6674
        %v7193 = vunpack.c.h.b16 %v6674
        %v7194 = vunpack.c.l.b16 %v6675
        %v7195 = vunpack.c.h.b16 %v6675
        %v7196 = vunpack.c.l.b16 %v6676
        %v7197 = vunpack.c.h.b16 %v6676
        %v7198 = vunpack.c.l.b16 %v6677
        %v7199 = vunpack.c.h.b16 %v6677
        %v7200 = vunpack.c.l.b16 %v6678
        %v7201 = vunpack.c.h.b16 %v6678
        %v7202 = vunpack.c.l.b16 %v6679
        %v7203 = vunpack.c.h.b16 %v6679
        %v7204 = vunpack.c.l.b16 %v6680
        %v7205 = vunpack.c.h.b16 %v6680
        %v7206 = vunpack.c.l.b16 %v6681
        %v7207 = vunpack.c.h.b16 %v6681
        %v7208 = vunpack.c.l.b16 %v6682
        %v7209 = vunpack.c.h.b16 %v6682
        %v7210 = vunpack.c.l.b16 %v6683
        %v7211 = vunpack.c.h.b16 %v6683
        %v7212 = vunpack.c.l.b16 %v6684
        %v7213 = vunpack.c.h.b16 %v6684
        %v7214 = vunpack.c.l.b16 %v6685
        %v7215 = vunpack.c.h.b16 %v6685
        %v7216 = vunpack.c.l.b16 %v6686
        %v7217 = vunpack.c.h.b16 %v6686
        %v7218 = vunpack.c.l.b16 %v6687
        %v7219 = vunpack.c.h.b16 %v6687
        %v7220 = vunpack.c.l.b16 %v6688
        %v7221 = vunpack.c.h.b16 %v6688
        %v7222 = vunpack.c.l.b16 %v6689
        %v7223 = vunpack.c.h.b16 %v6689
        %v7224 = vunpack.c.l.b16 %v6690
        %v7225 = vunpack.c.h.b16 %v6690
        %v7226 = vunpack.c.l.b16 %v6691
        %v7227 = vunpack.c.h.b16 %v6691
        %v7228 = vunpack.c.l.b16 %v6692
        %v7229 = vunpack.c.h.b16 %v6692
        %v7230 = vunpack.c.l.b16 %v6693
        %v7231 = vunpack.c.h.b16 %v6693
        %v7232 = vunpack.c.l.b16 %v6694
        %v7233 = vunpack.c.h.b16 %v6694
        %v7234 = vunpack.c.l.b16 %v6695
        %v7235 = vunpack.c.h.b16 %v6695
        %v7236 = vunpack.c.l.b16 %v6696
        %v7237 = vunpack.c.h.b16 %v6696
        %v7238 = vunpack.c.l.b16 %v6697
        %v7239 = vunpack.c.h.b16 %v6697
        %v7240 = vunpack.c.l.b16 %v6698
        %v7241 = vunpack.c.h.b16 %v6698
        %v7242 = vunpack.c.l.b16 %v6699
        %v7243 = vunpack.c.h.b16 %v6699
        %v7244 = vunpack.c.l.b16 %v6700
        %v7245 = vunpack.c.h.b16 %v6700
        %v7246 = vunpack.c.l.b16 %v6701
        %v7247 = vunpack.c.h.b16 %v6701
        %v7248 = vunpack.c.l.b16 %v6702
        %v7249 = vunpack.c.h.b16 %v6702
        %v7250 = vunpack.c.l.b16 %v6703
        %v7251 = vunpack.c.h.b16 %v6703
        %v7252 = vunpack.c.l.b16 %v6704
        %v7253 = vunpack.c.h.b16 %v6704
        %v7254 = vunpack.c.l.b16 %v6705
        %v7255 = vunpack.c.h.b16 %v6705
        %v7256 = vunpack.c.l.b16 %v6706
        %v7257 = vunpack.c.h.b16 %v6706
        %v7258 = vunpack.c.l.b16 %v6707
        %v7259 = vunpack.c.h.b16 %v6707
        %v7260 = vunpack.c.l.b16 %v6708
        %v7261 = vunpack.c.h.b16 %v6708
        %v7262 = vunpack.c.l.b16 %v6709
        %v7263 = vunpack.c.h.b16 %v6709
        %v7264 = vunpack.c.l.b16 %v6710
        %v7265 = vunpack.c.h.b16 %v6710
        %v7266 = vunpack.c.l.b16 %v6711
        %v7267 = vunpack.c.h.b16 %v6711
        %v7268 = vunpack.c.l.b16 %v6712
        %v7269 = vunpack.c.h.b16 %v6712
        %v7270 = vunpack.c.l.b16 %v6713
        %v7271 = vunpack.c.h.b16 %v6713
        %v7272 = vunpack.c.l.b16 %v6714
        %v7273 = vunpack.c.h.b16 %v6714
        %v7274 = vunpack.c.l.b16 %v6715
        %v7275 = vunpack.c.h.b16 %v6715
        %v7276 = vunpack.c.l.b16 %v6716
        %v7277 = vunpack.c.h.b16 %v6716
        %v7278 = vunpack.c.l.b16 %v6717
        %v7279 = vunpack.c.h.b16 %v6717
        %v7280 = vunpack.c.l.b16 %v6718
        %v7281 = vunpack.c.h.b16 %v6718
        %v7282 = vunpack.c.l.b16 %v6719
        %v7283 = vunpack.c.h.b16 %v6719
        %v7284 = vunpack.c.l.b16 %v6720
        %v7285 = vunpack.c.h.b16 %v6720
        %v7286 = vunpack.c.l.b16 %v6721
        %v7287 = vunpack.c.h.b16 %v6721
        %v7288 = vunpack.c.l.b16 %v6722
        %v7289 = vunpack.c.h.b16 %v6722
        %v7290 = vunpack.c.l.b16 %v6723
        %v7291 = vunpack.c.h.b16 %v6723
        %v7292 = vunpack.c.l.b16 %v6724
        %v7293 = vunpack.c.h.b16 %v6724
        %v7294 = vunpack.c.l.b16 %v6725
        %v7295 = vunpack.c.h.b16 %v6725
        %v7296 = vunpack.c.l.b16 %v6726
        %v7297 = vunpack.c.h.b16 %v6726
        %v7298 = vunpack.c.l.b16 %v6727
        %v7299 = vunpack.c.h.b16 %v6727
        %v7300 = vunpack.c.l.b16 %v6728
        %v7301 = vunpack.c.h.b16 %v6728
        %v7302 = vunpack.c.l.b16 %v6729
        %v7303 = vunpack.c.h.b16 %v6729
        %v7304 = vunpack.c.l.b16 %v6730
        %v7305 = vunpack.c.h.b16 %v6730
        %v7306 = vunpack.c.l.b16 %v6731
        %v7307 = vunpack.c.h.b16 %v6731
        %v7308 = vunpack.c.l.b16 %v6732
        %v7309 = vunpack.c.h.b16 %v6732
        %v7310 = vunpack.c.l.b16 %v6733
        %v7311 = vunpack.c.h.b16 %v6733
        %v7312 = vunpack.c.l.b16 %v6734
        %v7313 = vunpack.c.h.b16 %v6734
        %v7314 = vunpack.c.l.b16 %v6735
        %v7315 = vunpack.c.h.b16 %v6735
        %v7316 = vunpack.c.l.b16 %v6736
        %v7317 = vunpack.c.h.b16 %v6736
        %v7318 = vunpack.c.l.b16 %v6737
        %v7319 = vunpack.c.h.b16 %v6737
        %v7320 = vunpack.c.l.b16 %v6738
        %v7321 = vunpack.c.h.b16 %v6738
        %v7322 = vunpack.c.l.b16 %v6739
        %v7323 = vunpack.c.h.b16 %v6739
        %v7324 = vunpack.c.l.b16 %v6740
        %v7325 = vunpack.c.h.b16 %v6740
        %v7326 = vunpack.c.l.b16 %v6741
        %v7327 = vunpack.c.h.b16 %v6741
        %v7328 = vunpack.c.l.b16 %v6742
        %v7329 = vunpack.c.h.b16 %v6742
        %v7330 = vunpack.c.l.b16 %v6743
        %v7331 = vunpack.c.h.b16 %v6743
        %v7332 = vunpack.c.l.b16 %v6744
        %v7333 = vunpack.c.h.b16 %v6744
        %v7334 = vunpack.c.l.b16 %v6745
        %v7335 = vunpack.c.h.b16 %v6745
        %v7336 = vunpack.c.l.b16 %v6746
        %v7337 = vunpack.c.h.b16 %v6746
        %v7338 = vunpack.c.l.b16 %v6747
        %v7339 = vunpack.c.h.b16 %v6747
        %v7340 = vunpack.c.l.b16 %v6748
        %v7341 = vunpack.c.h.b16 %v6748
        %v7342 = vunpack.c.l.b16 %v6749
        %v7343 = vunpack.c.h.b16 %v6749
        %v7344 = vunpack.c.l.b16 %v6750
        %v7345 = vunpack.c.h.b16 %v6750
        %v7346 = vunpack.c.l.b16 %v6751
        %v7347 = vunpack.c.h.b16 %v6751
        %v7348 = vunpack.c.l.b16 %v6752
        %v7349 = vunpack.c.h.b16 %v6752
        %v7350 = vunpack.c.l.b16 %v6753
        %v7351 = vunpack.c.h.b16 %v6753
        %v7352 = vunpack.c.l.b16 %v6754
        %v7353 = vunpack.c.h.b16 %v6754
        %v7354 = vunpack.c.l.b16 %v6755
        %v7355 = vunpack.c.h.b16 %v6755
        %v7356 = vunpack.c.l.b16 %v6756
        %v7357 = vunpack.c.h.b16 %v6756
        %v7358 = vunpack.c.l.b16 %v6757
        %v7359 = vunpack.c.h.b16 %v6757
        %v7360 = vunpack.c.l.b16 %v6758
        %v7361 = vunpack.c.h.b16 %v6758
        %v7362 = vunpack.c.l.b16 %v6759
        %v7363 = vunpack.c.h.b16 %v6759
        %v7364 = vunpack.c.l.b16 %v6760
        %v7365 = vunpack.c.h.b16 %v6760
        %v7366 = vunpack.c.l.b16 %v6761
        %v7367 = vunpack.c.h.b16 %v6761
        %v7368 = vunpack.c.l.b16 %v6762
        %v7369 = vunpack.c.h.b16 %v6762
        %v7370 = vunpack.c.l.b16 %v6763
        %v7371 = vunpack.c.h.b16 %v6763
        %v7372 = vunpack.c.l.b16 %v6764
        %v7373 = vunpack.c.h.b16 %v6764
        %v7374 = vunpack.c.l.b16 %v6765
        %v7375 = vunpack.c.h.b16 %v6765
        %v7376 = vunpack.c.l.b16 %v6766
        %v7377 = vunpack.c.h.b16 %v6766
        %v7378 = vpack.c.b16 %v7000, %v6994
        %v7379 = vpack.c.b16 %v7001, %v6995
        %v7380 = vpack.c.b16 %v7002, %v6996
        %v7381 = vpack.c.b16 %v7003, %v6997
        %v7382 = vpack.c.b16 %v7004, %v6998
        %v7383 = vpack.c.b16 %v7005, %v6999
        %v7384 = vpack.c.b16 %v7012, %v7006
        %v7385 = vpack.c.b16 %v7013, %v7007
        %v7386 = vpack.c.b16 %v7014, %v7008
        %v7387 = vpack.c.b16 %v7015, %v7009
        %v7388 = vpack.c.b16 %v7016, %v7010
        %v7389 = vpack.c.b16 %v7017, %v7011
        %v7390 = vpack.c.b16 %v7024, %v7018
        %v7391 = vpack.c.b16 %v7025, %v7019
        %v7392 = vpack.c.b16 %v7026, %v7020
        %v7393 = vpack.c.b16 %v7027, %v7021
        %v7394 = vpack.c.b16 %v7028, %v7022
        %v7395 = vpack.c.b16 %v7029, %v7023
        %v7396 = vpack.c.b16 %v7036, %v7030
        %v7397 = vpack.c.b16 %v7037, %v7031
        %v7398 = vpack.c.b16 %v7038, %v7032
        %v7399 = vpack.c.b16 %v7039, %v7033
        %v7400 = vpack.c.b16 %v7040, %v7034
        %v7401 = vpack.c.b16 %v7041, %v7035
        %v7402 = vpack.c.b16 %v7048, %v7042
        %v7403 = vpack.c.b16 %v7049, %v7043
        %v7404 = vpack.c.b16 %v7050, %v7044
        %v7405 = vpack.c.b16 %v7051, %v7045
        %v7406 = vpack.c.b16 %v7052, %v7046
        %v7407 = vpack.c.b16 %v7053, %v7047
        %v7408 = vpack.c.b16 %v7060, %v7054
        %v7409 = vpack.c.b16 %v7061, %v7055
        %v7410 = vpack.c.b16 %v7062, %v7056
        %v7411 = vpack.c.b16 %v7063, %v7057
        %v7412 = vpack.c.b16 %v7064, %v7058
        %v7413 = vpack.c.b16 %v7065, %v7059
        %v7414 = vpack.c.b16 %v7072, %v7066
        %v7415 = vpack.c.b16 %v7073, %v7067
        %v7416 = vpack.c.b16 %v7074, %v7068
        %v7417 = vpack.c.b16 %v7075, %v7069
        %v7418 = vpack.c.b16 %v7076, %v7070
        %v7419 = vpack.c.b16 %v7077, %v7071
        %v7420 = vpack.c.b16 %v7084, %v7078
        %v7421 = vpack.c.b16 %v7085, %v7079
        %v7422 = vpack.c.b16 %v7086, %v7080
        %v7423 = vpack.c.b16 %v7087, %v7081
        %v7424 = vpack.c.b16 %v7088, %v7082
        %v7425 = vpack.c.b16 %v7089, %v7083
        %v7426 = vpack.c.b16 %v7096, %v7090
        %v7427 = vpack.c.b16 %v7097, %v7091
        %v7428 = vpack.c.b16 %v7098, %v7092
        %v7429 = vpack.c.b16 %v7099, %v7093
        %v7430 = vpack.c.b16 %v7100, %v7094
        %v7431 = vpack.c.b16 %v7101, %v7095
        %v7432 = vpack.c.b16 %v7108, %v7102
        %v7433 = vpack.c.b16 %v7109, %v7103
        %v7434 = vpack.c.b16 %v7110, %v7104
        %v7435 = vpack.c.b16 %v7111, %v7105
        %v7436 = vpack.c.b16 %v7112, %v7106
        %v7437 = vpack.c.b16 %v7113, %v7107
        %v7438 = vpack.c.b16 %v7120, %v7114
        %v7439 = vpack.c.b16 %v7121, %v7115
        %v7440 = vpack.c.b16 %v7122, %v7116
        %v7441 = vpack.c.b16 %v7123, %v7117
        %v7442 = vpack.c.b16 %v7124, %v7118
        %v7443 = vpack.c.b16 %v7125, %v7119
        %v7444 = vpack.c.b16 %v7132, %v7126
        %v7445 = vpack.c.b16 %v7133, %v7127
        %v7446 = vpack.c.b16 %v7134, %v7128
        %v7447 = vpack.c.b16 %v7135, %v7129
        %v7448 = vpack.c.b16 %v7136, %v7130
        %v7449 = vpack.c.b16 %v7137, %v7131
        %v7450 = vpack.c.b16 %v7144, %v7138
        %v7451 = vpack.c.b16 %v7145, %v7139
        %v7452 = vpack.c.b16 %v7146, %v7140
        %v7453 = vpack.c.b16 %v7147, %v7141
        %v7454 = vpack.c.b16 %v7148, %v7142
        %v7455 = vpack.c.b16 %v7149, %v7143
        %v7456 = vpack.c.b16 %v7156, %v7150
        %v7457 = vpack.c.b16 %v7157, %v7151
        %v7458 = vpack.c.b16 %v7158, %v7152
        %v7459 = vpack.c.b16 %v7159, %v7153
        %v7460 = vpack.c.b16 %v7160, %v7154
        %v7461 = vpack.c.b16 %v7161, %v7155
        %v7462 = vpack.c.b16 %v7168, %v7162
        %v7463 = vpack.c.b16 %v7169, %v7163
        %v7464 = vpack.c.b16 %v7170, %v7164
        %v7465 = vpack.c.b16 %v7171, %v7165
        %v7466 = vpack.c.b16 %v7172, %v7166
        %v7467 = vpack.c.b16 %v7173, %v7167
        %v7468 = vpack.c.b16 %v7180, %v7174
        %v7469 = vpack.c.b16 %v7181, %v7175
        %v7470 = vpack.c.b16 %v7182, %v7176
        %v7471 = vpack.c.b16 %v7183, %v7177
        %v7472 = vpack.c.b16 %v7184, %v7178
        %v7473 = vpack.c.b16 %v7185, %v7179
        %v7474 = vpack.c.b16 %v7192, %v7186
        %v7475 = vpack.c.b16 %v7193, %v7187
        %v7476 = vpack.c.b16 %v7194, %v7188
        %v7477 = vpack.c.b16 %v7195, %v7189
        %v7478 = vpack.c.b16 %v7196, %v7190
        %v7479 = vpack.c.b16 %v7197, %v7191
        %v7480 = vpack.c.b16 %v7204, %v7198
        %v7481 = vpack.c.b16 %v7205, %v7199
        %v7482 = vpack.c.b16 %v7206, %v7200
        %v7483 = vpack.c.b16 %v7207, %v7201
        %v7484 = vpack.c.b16 %v7208, %v7202
        %v7485 = vpack.c.b16 %v7209, %v7203
        %v7486 = vpack.c.b16 %v7216, %v7210
        %v7487 = vpack.c.b16 %v7217, %v7211
        %v7488 = vpack.c.b16 %v7218, %v7212
        %v7489 = vpack.c.b16 %v7219, %v7213
        %v7490 = vpack.c.b16 %v7220, %v7214
        %v7491 = vpack.c.b16 %v7221, %v7215
        %v7492 = vpack.c.b16 %v7228, %v7222
        %v7493 = vpack.c.b16 %v7229, %v7223
        %v7494 = vpack.c.b16 %v7230, %v7224
        %v7495 = vpack.c.b16 %v7231, %v7225
        %v7496 = vpack.c.b16 %v7232, %v7226
        %v7497 = vpack.c.b16 %v7233, %v7227
        %v7498 = vpack.c.b16 %v7240, %v7234
        %v7499 = vpack.c.b16 %v7241, %v7235
        %v7500 = vpack.c.b16 %v7242, %v7236
        %v7501 = vpack.c.b16 %v7243, %v7237
        %v7502 = vpack.c.b16 %v7244, %v7238
        %v7503 = vpack.c.b16 %v7245, %v7239
        %v7504 = vpack.c.b16 %v7252, %v7246
        %v7505 = vpack.c.b16 %v7253, %v7247
        %v7506 = vpack.c.b16 %v7254, %v7248
        %v7507 = vpack.c.b16 %v7255, %v7249
        %v7508 = vpack.c.b16 %v7256, %v7250
        %v7509 = vpack.c.b16 %v7257, %v7251
        %v7510 = vpack.c.b16 %v7264, %v7258
        %v7511 = vpack.c.b16 %v7265, %v7259
        %v7512 = vpack.c.b16 %v7266, %v7260
        %v7513 = vpack.c.b16 %v7267, %v7261
        %v7514 = vpack.c.b16 %v7268, %v7262
        %v7515 = vpack.c.b16 %v7269, %v7263
        %v7516 = vpack.c.b16 %v7276, %v7270
        %v7517 = vpack.c.b16 %v7277, %v7271
        %v7518 = vpack.c.b16 %v7278, %v7272
        %v7519 = vpack.c.b16 %v7279, %v7273
        %v7520 = vpack.c.b16 %v7280, %v7274
        %v7521 = vpack.c.b16 %v7281, %v7275
        %v7522 = vpack.c.b16 %v7288, %v7282
        %v7523 = vpack.c.b16 %v7289, %v7283
        %v7524 = vpack.c.b16 %v7290, %v7284
        %v7525 = vpack.c.b16 %v7291, %v7285
        %v7526 = vpack.c.b16 %v7292, %v7286
        %v7527 = vpack.c.b16 %v7293, %v7287
        %v7528 = vpack.c.b16 %v7300, %v7294
        %v7529 = vpack.c.b16 %v7301, %v7295
        %v7530 = vpack.c.b16 %v7302, %v7296
        %v7531 = vpack.c.b16 %v7303, %v7297
        %v7532 = vpack.c.b16 %v7304, %v7298
        %v7533 = vpack.c.b16 %v7305, %v7299
        %v7534 = vpack.c.b16 %v7312, %v7306
        %v7535 = vpack.c.b16 %v7313, %v7307
        %v7536 = vpack.c.b16 %v7314, %v7308
        %v7537 = vpack.c.b16 %v7315, %v7309
        %v7538 = vpack.c.b16 %v7316, %v7310
        %v7539 = vpack.c.b16 %v7317, %v7311
        %v7540 = vpack.c.b16 %v7324, %v7318
        %v7541 = vpack.c.b16 %v7325, %v7319
        %v7542 = vpack.c.b16 %v7326, %v7320
        %v7543 = vpack.c.b16 %v7327, %v7321
        %v7544 = vpack.c.b16 %v7328, %v7322
        %v7545 = vpack.c.b16 %v7329, %v7323
        %v7546 = vpack.c.b16 %v7336, %v7330
        %v7547 = vpack.c.b16 %v7337, %v7331
        %v7548 = vpack.c.b16 %v7338, %v7332
        %v7549 = vpack.c.b16 %v7339, %v7333
        %v7550 = vpack.c.b16 %v7340, %v7334
        %v7551 = vpack.c.b16 %v7341, %v7335
        %v7552 = vpack.c.b16 %v7348, %v7342
        %v7553 = vpack.c.b16 %v7349, %v7343
        %v7554 = vpack.c.b16 %v7350, %v7344
        %v7555 = vpack.c.b16 %v7351, %v7345
        %v7556 = vpack.c.b16 %v7352, %v7346
        %v7557 = vpack.c.b16 %v7353, %v7347
        %v7558 = vpack.c.b16 %v7360, %v7354
        %v7559 = vpack.c.b16 %v7361, %v7355
        %v7560 = vpack.c.b16 %v7362, %v7356
        %v7561 = vpack.c.b16 %v7363, %v7357
        %v7562 = vpack.c.b16 %v7364, %v7358
        %v7563 = vpack.c.b16 %v7365, %v7359
        %v7564 = vpack.c.b16 %v7372, %v7366
        %v7565 = vpack.c.b16 %v7373, %v7367
        %v7566 = vpack.c.b16 %v7374, %v7368
        %v7567 = vpack.c.b16 %v7375, %v7369
        %v7568 = vpack.c.b16 %v7376, %v7370
        %v7569 = vpack.c.b16 %v7377, %v7371
        %7762 = vmatprep.subr.bf16.mxu0 %v7379
        %7763 = vmatpush1.bf16.msra.mxu0 %v7378
        %7764 = vmatprep.subr.bf16.mxu0 %v7385
        %7765 = vmatpush1.bf16.msra.mxu0 %v7384
        %7766 = vmatprep.subr.bf16.mxu0 %v7391
        %7767 = vmatpush1.bf16.msra.mxu0 %v7390
        %7768 = vmatprep.subr.bf16.mxu0 %v7397
        %7769 = vmatpush1.bf16.msra.mxu0 %v7396
        %7770 = vmatprep.subr.bf16.mxu0 %v7403
        %7771 = vmatpush1.bf16.msra.mxu0 %v7402
        %7772 = vmatprep.subr.bf16.mxu0 %v7409
        %7773 = vmatpush1.bf16.msra.mxu0 %v7408
        %7774 = vmatprep.subr.bf16.mxu0 %v7415
        %7775 = vmatpush1.bf16.msra.mxu0 %v7414
        %7776 = vmatprep.subr.bf16.mxu0 %v7421
        %7777 = vmatpush1.bf16.msra.mxu0 %v7420
        %7778 = vmatprep.subr.bf16.mxu0 %v7427
        %7779 = vmatpush1.bf16.msra.mxu0 %v7426
        %7780 = vmatprep.subr.bf16.mxu0 %v7433
        %7781 = vmatpush1.bf16.msra.mxu0 %v7432
        %7782 = vmatprep.subr.bf16.mxu0 %v7439
        %7783 = vmatpush1.bf16.msra.mxu0 %v7438
        %7784 = vmatprep.subr.bf16.mxu0 %v7445
        %7785 = vmatpush1.bf16.msra.mxu0 %v7444
        %7786 = vmatprep.subr.bf16.mxu0 %v7451
        %7787 = vmatpush1.bf16.msra.mxu0 %v7450
        %7788 = vmatprep.subr.bf16.mxu0 %v7457
        %7789 = vmatpush1.bf16.msra.mxu0 %v7456
        %7790 = vmatprep.subr.bf16.mxu0 %v7463
        %7791 = vmatpush1.bf16.msra.mxu0 %v7462
        %7792 = vmatprep.subr.bf16.mxu0 %v7469
        %7793 = vmatpush1.bf16.msra.mxu0 %v7468
        %7794 = vmatprep.mubr.bf16.mxu0 %v6572
        %7795 = vmatmul.mubr.bf16.gmra.mrb[0].mxu0 %v6571
        %v7796 = vpop.f32.mrb[0].mxu0
        %v7797 = vadd.f32 %v6775, %v7796
        %v7798 = vpop.f32.mrb[0].mxu0
        %v7799 = vadd.f32 %v6779, %v7798
        %v7800 = vpop.f32.mrb[0].mxu0
        %v7801 = vadd.f32 %v6775, %v7800
        %v7802 = vpop.f32.mrb[0].mxu0
        %v7803 = vadd.f32 %v6779, %v7802
        %7804 = vdwg.mxu0
        %7805 = vmatprep.subr.bf16.mxu0 %v7475
        %7806 = vmatpush1.bf16.msra.mxu0 %v7474
        %7807 = vmatprep.subr.bf16.mxu0 %v7481
        %7808 = vmatpush1.bf16.msra.mxu0 %v7480
        %7809 = vmatprep.subr.bf16.mxu0 %v7487
        %7810 = vmatpush1.bf16.msra.mxu0 %v7486
        %7811 = vmatprep.subr.bf16.mxu0 %v7493
        %7812 = vmatpush1.bf16.msra.mxu0 %v7492
        %7813 = vmatprep.subr.bf16.mxu0 %v7499
        %7814 = vmatpush1.bf16.msra.mxu0 %v7498
        %7815 = vmatprep.subr.bf16.mxu0 %v7505
        %7816 = vmatpush1.bf16.msra.mxu0 %v7504
        %7817 = vmatprep.subr.bf16.mxu0 %v7511
        %7818 = vmatpush1.bf16.msra.mxu0 %v7510
        %7819 = vmatprep.subr.bf16.mxu0 %v7517
        %7820 = vmatpush1.bf16.msra.mxu0 %v7516
        %7821 = vmatprep.subr.bf16.mxu0 %v7523
        %7822 = vmatpush1.bf16.msra.mxu0 %v7522
        %7823 = vmatprep.subr.bf16.mxu0 %v7529
        %7824 = vmatpush1.bf16.msra.mxu0 %v7528
        %7825 = vmatprep.subr.bf16.mxu0 %v7535
        %7826 = vmatpush1.bf16.msra.mxu0 %v7534
        %7827 = vmatprep.subr.bf16.mxu0 %v7541
        %7828 = vmatpush1.bf16.msra.mxu0 %v7540
        %7829 = vmatprep.subr.bf16.mxu0 %v7547
        %7830 = vmatpush1.bf16.msra.mxu0 %v7546
        %7831 = vmatprep.subr.bf16.mxu0 %v7553
        %7832 = vmatpush1.bf16.msra.mxu0 %v7552
        %7833 = vmatprep.subr.bf16.mxu0 %v7559
        %7834 = vmatpush1.bf16.msra.mxu0 %v7558
        %7835 = vmatprep.subr.bf16.mxu0 %v7565
        %7836 = vmatpush1.bf16.msra.mxu0 %v7564
        %7837 = vmatprep.mubr.bf16.mxu0 %v6574
        %7838 = vmatmul.mubr.bf16.gmra.mrb[0].mxu0 %v6573
        %v7839 = vpop.f32.mrb[0].mxu0
        %v7840 = vadd.f32 %v7797, %v7839
        %v7841 = vpop.f32.mrb[0].mxu0
        %v7842 = vadd.f32 %v7799, %v7841
        %v7843 = vpop.f32.mrb[0].mxu0
        %v7844 = vadd.f32 %v7801, %v7843
        %v7845 = vpop.f32.mrb[0].mxu0
        %v7846 = vadd.f32 %v7803, %v7845
        %7847 = vdwg.mxu0
        %7848 = vmatprep.subr.bf16.mxu0 %v7381
        %7849 = vmatpush1.bf16.msra.mxu0 %v7380
        %7850 = vmatprep.subr.bf16.mxu0 %v7387
        %7851 = vmatpush1.bf16.msra.mxu0 %v7386
        %7852 = vmatprep.subr.bf16.mxu0 %v7393
        %7853 = vmatpush1.bf16.msra.mxu0 %v7392
        %7854 = vmatprep.subr.bf16.mxu0 %v7399
        %7855 = vmatpush1.bf16.msra.mxu0 %v7398
        %7856 = vmatprep.subr.bf16.mxu0 %v7405
        %7857 = vmatpush1.bf16.msra.mxu0 %v7404
        %7858 = vmatprep.subr.bf16.mxu0 %v7411
        %7859 = vmatpush1.bf16.msra.mxu0 %v7410
        %7860 = vmatprep.subr.bf16.mxu0 %v7417
        %7861 = vmatpush1.bf16.msra.mxu0 %v7416
        %7862 = vmatprep.subr.bf16.mxu0 %v7423
        %7863 = vmatpush1.bf16.msra.mxu0 %v7422
        %7864 = vmatprep.subr.bf16.mxu0 %v7429
        %7865 = vmatpush1.bf16.msra.mxu0 %v7428
        %7866 = vmatprep.subr.bf16.mxu0 %v7435
        %7867 = vmatpush1.bf16.msra.mxu0 %v7434
        %7868 = vmatprep.subr.bf16.mxu0 %v7441
        %7869 = vmatpush1.bf16.msra.mxu0 %v7440
        %7870 = vmatprep.subr.bf16.mxu0 %v7447
        %7871 = vmatpush1.bf16.msra.mxu0 %v7446
        %7872 = vmatprep.subr.bf16.mxu0 %v7453
        %7873 = vmatpush1.bf16.msra.mxu0 %v7452
        %7874 = vmatprep.subr.bf16.mxu0 %v7459
        %7875 = vmatpush1.bf16.msra.mxu0 %v7458
        %7876 = vmatprep.subr.bf16.mxu0 %v7465
        %7877 = vmatpush1.bf16.msra.mxu0 %v7464
        %7878 = vmatprep.subr.bf16.mxu0 %v7471
        %7879 = vmatpush1.bf16.msra.mxu0 %v7470
        %7880 = vmatprep.mubr.bf16.mxu0 %v6572
        %7881 = vmatmul.mubr.bf16.gmra.mrb[0].mxu0 %v6571
        %v7882 = vpop.f32.mrb[0].mxu0
        %v7883 = vadd.f32 %v6783, %v7882
        %v7884 = vpop.f32.mrb[0].mxu0
        %v7885 = vadd.f32 %v6787, %v7884
        %v7886 = vpop.f32.mrb[0].mxu0
        %v7887 = vadd.f32 %v6783, %v7886
        %v7888 = vpop.f32.mrb[0].mxu0
        %v7889 = vadd.f32 %v6787, %v7888
        %7890 = vdwg.mxu0
        %7891 = vmatprep.subr.bf16.mxu0 %v7477
        %7892 = vmatpush1.bf16.msra.mxu0 %v7476
        %7893 = vmatprep.subr.bf16.mxu0 %v7483
        %7894 = vmatpush1.bf16.msra.mxu0 %v7482
        %7895 = vmatprep.subr.bf16.mxu0 %v7489
        %7896 = vmatpush1.bf16.msra.mxu0 %v7488
        %7897 = vmatprep.subr.bf16.mxu0 %v7495
        %7898 = vmatpush1.bf16.msra.mxu0 %v7494
        %7899 = vmatprep.subr.bf16.mxu0 %v7501
        %7900 = vmatpush1.bf16.msra.mxu0 %v7500
        %7901 = vmatprep.subr.bf16.mxu0 %v7507
        %7902 = vmatpush1.bf16.msra.mxu0 %v7506
        %7903 = vmatprep.subr.bf16.mxu0 %v7513
        %7904 = vmatpush1.bf16.msra.mxu0 %v7512
        %7905 = vmatprep.subr.bf16.mxu0 %v7519
        %7906 = vmatpush1.bf16.msra.mxu0 %v7518
        %7907 = vmatprep.subr.bf16.mxu0 %v7525
        %7908 = vmatpush1.bf16.msra.mxu0 %v7524
        %7909 = vmatprep.subr.bf16.mxu0 %v7531
        %7910 = vmatpush1.bf16.msra.mxu0 %v7530
        %7911 = vmatprep.subr.bf16.mxu0 %v7537
        %7912 = vmatpush1.bf16.msra.mxu0 %v7536
        %7913 = vmatprep.subr.bf16.mxu0 %v7543
        %7914 = vmatpush1.bf16.msra.mxu0 %v7542
        %7915 = vmatprep.subr.bf16.mxu0 %v7549
        %7916 = vmatpush1.bf16.msra.mxu0 %v7548
        %7917 = vmatprep.subr.bf16.mxu0 %v7555
        %7918 = vmatpush1.bf16.msra.mxu0 %v7554
        %7919 = vmatprep.subr.bf16.mxu0 %v7561
        %7920 = vmatpush1.bf16.msra.mxu0 %v7560
        %7921 = vmatprep.subr.bf16.mxu0 %v7567
        %7922 = vmatpush1.bf16.msra.mxu0 %v7566
        %7923 = vmatprep.mubr.bf16.mxu0 %v6574
        %7924 = vmatmul.mubr.bf16.gmra.mrb[0].mxu0 %v6573
        %v7925 = vpop.f32.mrb[0].mxu0
        %v7926 = vadd.f32 %v7883, %v7925
        %v7927 = vpop.f32.mrb[0].mxu0
        %v7928 = vadd.f32 %v7885, %v7927
        %v7929 = vpop.f32.mrb[0].mxu0
        %v7930 = vadd.f32 %v7887, %v7929
        %v7931 = vpop.f32.mrb[0].mxu0
        %v7932 = vadd.f32 %v7889, %v7931
        %7933 = vdwg.mxu0
        %7934 = vmatprep.subr.bf16.mxu0 %v7383
        %7935 = vmatpush1.bf16.msra.mxu0 %v7382
        %7936 = vmatprep.subr.bf16.mxu0 %v7389
        %7937 = vmatpush1.bf16.msra.mxu0 %v7388
        %7938 = vmatprep.subr.bf16.mxu0 %v7395
        %7939 = vmatpush1.bf16.msra.mxu0 %v7394
        %7940 = vmatprep.subr.bf16.mxu0 %v7401
        %7941 = vmatpush1.bf16.msra.mxu0 %v7400
        %7942 = vmatprep.subr.bf16.mxu0 %v7407
        %7943 = vmatpush1.bf16.msra.mxu0 %v7406
        %7944 = vmatprep.subr.bf16.mxu0 %v7413
        %7945 = vmatpush1.bf16.msra.mxu0 %v7412
        %7946 = vmatprep.subr.bf16.mxu0 %v7419
        %7947 = vmatpush1.bf16.msra.mxu0 %v7418
        %7948 = vmatprep.subr.bf16.mxu0 %v7425
        %7949 = vmatpush1.bf16.msra.mxu0 %v7424
        %7950 = vmatprep.subr.bf16.mxu0 %v7431
        %7951 = vmatpush1.bf16.msra.mxu0 %v7430
        %7952 = vmatprep.subr.bf16.mxu0 %v7437
        %7953 = vmatpush1.bf16.msra.mxu0 %v7436
        %7954 = vmatprep.subr.bf16.mxu0 %v7443
        %7955 = vmatpush1.bf16.msra.mxu0 %v7442
        %7956 = vmatprep.subr.bf16.mxu0 %v7449
        %7957 = vmatpush1.bf16.msra.mxu0 %v7448
        %7958 = vmatprep.subr.bf16.mxu0 %v7455
        %7959 = vmatpush1.bf16.msra.mxu0 %v7454
        %7960 = vmatprep.subr.bf16.mxu0 %v7461
        %7961 = vmatpush1.bf16.msra.mxu0 %v7460
        %7962 = vmatprep.subr.bf16.mxu0 %v7467
        %7963 = vmatpush1.bf16.msra.mxu0 %v7466
        %7964 = vmatprep.subr.bf16.mxu0 %v7473
        %7965 = vmatpush1.bf16.msra.mxu0 %v7472
        %7966 = vmatprep.mubr.bf16.mxu0 %v6572
        %7967 = vmatmul.mubr.bf16.gmra.mrb[0].mxu0 %v6571
        %v7968 = vpop.f32.mrb[0].mxu0
        %v7969 = vadd.f32 %v6791, %v7968
        %v7970 = vpop.f32.mrb[0].mxu0
        %v7971 = vadd.f32 %v6795, %v7970
        %v7972 = vpop.f32.mrb[0].mxu0
        %v7973 = vadd.f32 %v6791, %v7972
        %v7974 = vpop.f32.mrb[0].mxu0
        %v7975 = vadd.f32 %v6795, %v7974
        %7976 = vdwg.mxu0
        %7977 = vmatprep.subr.bf16.mxu0 %v7479
        %7978 = vmatpush1.bf16.msra.mxu0 %v7478
        %7979 = vmatprep.subr.bf16.mxu0 %v7485
        %7980 = vmatpush1.bf16.msra.mxu0 %v7484
        %7981 = vmatprep.subr.bf16.mxu0 %v7491
        %7982 = vmatpush1.bf16.msra.mxu0 %v7490
        %7983 = vmatprep.subr.bf16.mxu0 %v7497
        %7984 = vmatpush1.bf16.msra.mxu0 %v7496
        %7985 = vmatprep.subr.bf16.mxu0 %v7503
        %7986 = vmatpush1.bf16.msra.mxu0 %v7502
        %7987 = vmatprep.subr.bf16.mxu0 %v7509
        %7988 = vmatpush1.bf16.msra.mxu0 %v7508
        %7989 = vmatprep.subr.bf16.mxu0 %v7515
        %7990 = vmatpush1.bf16.msra.mxu0 %v7514
        %7991 = vmatprep.subr.bf16.mxu0 %v7521
        %7992 = vmatpush1.bf16.msra.mxu0 %v7520
        %7993 = vmatprep.subr.bf16.mxu0 %v7527
        %7994 = vmatpush1.bf16.msra.mxu0 %v7526
        %7995 = vmatprep.subr.bf16.mxu0 %v7533
        %7996 = vmatpush1.bf16.msra.mxu0 %v7532
        %7997 = vmatprep.subr.bf16.mxu0 %v7539
        %7998 = vmatpush1.bf16.msra.mxu0 %v7538
        %7999 = vmatprep.subr.bf16.mxu0 %v7545
        %8000 = vmatpush1.bf16.msra.mxu0 %v7544
        %8001 = vmatprep.subr.bf16.mxu0 %v7551
        %8002 = vmatpush1.bf16.msra.mxu0 %v7550
        %8003 = vmatprep.subr.bf16.mxu0 %v7557
        %8004 = vmatpush1.bf16.msra.mxu0 %v7556
        %8005 = vmatprep.subr.bf16.mxu0 %v7563
        %8006 = vmatpush1.bf16.msra.mxu0 %v7562
        %8007 = vmatprep.subr.bf16.mxu0 %v7569
        %8008 = vmatpush1.bf16.msra.mxu0 %v7568
        %8009 = vmatprep.mubr.bf16.mxu0 %v6574
        %8010 = vmatmul.mubr.bf16.gmra.mrb[0].mxu0 %v6573
        %v8011 = vpop.f32.mrb[0].mxu0
        %v8012 = vadd.f32 %v7969, %v8011
        %v8013 = vpop.f32.mrb[0].mxu0
        %v8014 = vadd.f32 %v7971, %v8013
        %v8015 = vpop.f32.mrb[0].mxu0
        %v8016 = vadd.f32 %v7973, %v8015
        %v8017 = vpop.f32.mrb[0].mxu0
        %v8018 = vadd.f32 %v7975, %v8017
        %8019 = vdwg.mxu0
        %vm8020 = vcmp.gt.f32.partialorder %v7840, 0.0
        %vm8021 = vcmp.gt.f32.partialorder %v7842, 0.0
        %vm8022 = vcmp.gt.f32.partialorder %v7926, 0.0
        %vm8023 = vcmp.gt.f32.partialorder %v7928, 0.0
        %vm8024 = vcmp.gt.f32.partialorder %v8012, 0.0
        %vm8025 = vcmp.gt.f32.partialorder %v8014, 0.0
        %vm8026 = vcmp.gt.f32.partialorder %v7844, 0.0
        %vm8027 = vcmp.gt.f32.partialorder %v7846, 0.0
        %vm8028 = vcmp.gt.f32.partialorder %v7930, 0.0
        %vm8029 = vcmp.gt.f32.partialorder %v7932, 0.0
        %vm8030 = vcmp.gt.f32.partialorder %v8016, 0.0
        %vm8031 = vcmp.gt.f32.partialorder %v8018, 0.0
        %v8032 = vmul.f32 %v7840, 0.01
        %v8033 = vmul.f32 %v7842, 0.01
        %v8034 = vmul.f32 %v7926, 0.01
        %v8035 = vmul.f32 %v7928, 0.01
        %v8036 = vmul.f32 %v8012, 0.01
        %v8037 = vmul.f32 %v8014, 0.01
        %v8038 = vmul.f32 %v7844, 0.01
        %v8039 = vmul.f32 %v7846, 0.01
        %v8040 = vmul.f32 %v7930, 0.01
        %v8041 = vmul.f32 %v7932, 0.01
        %v8042 = vmul.f32 %v8016, 0.01
        %v8043 = vmul.f32 %v8018, 0.01
        %v8044 = vsel %vm8020, %v7840, %v8032
        %v8045 = vsel %vm8021, %v7842, %v8033
        %v8046 = vsel %vm8022, %v7926, %v8034
        %v8047 = vsel %vm8023, %v7928, %v8035
        %v8048 = vsel %vm8024, %v8012, %v8036
        %v8049 = vsel %vm8025, %v8014, %v8037
        %v8050 = vsel %vm8026, %v7844, %v8038
        %v8051 = vsel %vm8027, %v7846, %v8039
        %v8052 = vsel %vm8028, %v7930, %v8040
        %v8053 = vsel %vm8029, %v7932, %v8041
        %v8054 = vsel %vm8030, %v8016, %v8042
        %v8055 = vsel %vm8031, %v8018, %v8043
        %v8056 = vpack.c.bf16 %v8050, %v8044
        %v8057 = vpack.c.bf16 %v8051, %v8045
        %v8058 = vpack.c.bf16 %v8052, %v8046
        %v8059 = vpack.c.bf16 %v8053, %v8047
        %v8060 = vpack.c.bf16 %v8054, %v8048
        %v8061 = vpack.c.bf16 %v8055, %v8049
        %v8062 = vld [vmem:[#allocation18] sm:$0xff]
        %v8063 = vld [vmem:[#allocation18 + $0x8] sm:$0xff]
        %v8064 = vld [vmem:[#allocation18 + $0x10] sm:$0xff]
        %v8065 = vld [vmem:[#allocation18 + $0x18] sm:$0xff]
        %v8066 = vld [vmem:[#allocation18 + $0x20] sm:$0xff]
        %v8067 = vld [vmem:[#allocation18 + $0x28] sm:$0xff]
        %v8068 = vld [vmem:[#allocation18 + $0x30] sm:$0xff]
        %v8069 = vld [vmem:[#allocation18 + $0x38] sm:$0xff]
        %v8070 = vld [vmem:[#allocation18 + $0x40] sm:$0xff]
        %v8071 = vld [vmem:[#allocation18 + $0x48] sm:$0xff]
        %v8072 = vld [vmem:[#allocation18 + $0x50] sm:$0xff]
        %v8073 = vld [vmem:[#allocation18 + $0x58] sm:$0xff]
        %v8074 = vld [vmem:[#allocation18 + $0x60] sm:$0xff]
        %v8075 = vld [vmem:[#allocation18 + $0x68] sm:$0xff]
        %v8076 = vld [vmem:[#allocation18 + $0x70] sm:$0xff]
        %v8077 = vld [vmem:[#allocation18 + $0x78] sm:$0xff]
        %v8078 = vld [vmem:[#allocation18 + $0x80] sm:$0xff]
        %v8079 = vld [vmem:[#allocation18 + $0x88] sm:$0xff]
        %v8080 = vld [vmem:[#allocation18 + $0x90] sm:$0xff]
        %v8081 = vld [vmem:[#allocation18 + $0x98] sm:$0xff]
        %v8082 = vld [vmem:[#allocation18 + $0xa0] sm:$0xff]
        %v8083 = vld [vmem:[#allocation18 + $0xa8] sm:$0xff]
        %v8084 = vld [vmem:[#allocation18 + $0xb0] sm:$0xff]
        %v8085 = vld [vmem:[#allocation18 + $0xb8] sm:$0xff]
        %v8086 = vld [vmem:[#allocation18 + $0xc0] sm:$0xff]
        %v8087 = vld [vmem:[#allocation18 + $0xc8] sm:$0xff]
        %v8088 = vld [vmem:[#allocation18 + $0xd0] sm:$0xff]
        %v8089 = vld [vmem:[#allocation18 + $0xd8] sm:$0xff]
        %v8090 = vld [vmem:[#allocation18 + $0xe0] sm:$0xff]
        %v8091 = vld [vmem:[#allocation18 + $0xe8] sm:$0xff]
        %v8092 = vld [vmem:[#allocation18 + $0xf0] sm:$0xff]
        %v8093 = vld [vmem:[#allocation18 + $0xf8] sm:$0xff]
        %v8094 = vld [vmem:[#allocation18 + $0x100] sm:$0xff]
        %v8095 = vld [vmem:[#allocation18 + $0x108] sm:$0xff]
        %v8096 = vld [vmem:[#allocation18 + $0x110] sm:$0xff]
        %v8097 = vld [vmem:[#allocation18 + $0x118] sm:$0xff]
        %v8098 = vld [vmem:[#allocation18 + $0x120] sm:$0xff]
        %v8099 = vld [vmem:[#allocation18 + $0x128] sm:$0xff]
        %v8100 = vld [vmem:[#allocation18 + $0x130] sm:$0xff]
        %v8101 = vld [vmem:[#allocation18 + $0x138] sm:$0xff]
        %v8102 = vld [vmem:[#allocation18 + $0x140] sm:$0xff]
        %v8103 = vld [vmem:[#allocation18 + $0x148] sm:$0xff]
        %v8104 = vld [vmem:[#allocation18 + $0x150] sm:$0xff]
        %v8105 = vld [vmem:[#allocation18 + $0x158] sm:$0xff]
        %v8106 = vld [vmem:[#allocation18 + $0x160] sm:$0xff]
        %v8107 = vld [vmem:[#allocation18 + $0x168] sm:$0xff]
        %v8108 = vld [vmem:[#allocation18 + $0x170] sm:$0xff]
        %v8109 = vld [vmem:[#allocation18 + $0x178] sm:$0xff]
        %v8110 = vld [vmem:[#allocation18 + $0x180] sm:$0xff]
        %v8111 = vld [vmem:[#allocation18 + $0x188] sm:$0xff]
        %v8112 = vld [vmem:[#allocation18 + $0x190] sm:$0xff]
        %v8113 = vld [vmem:[#allocation18 + $0x198] sm:$0xff]
        %v8114 = vld [vmem:[#allocation18 + $0x1a0] sm:$0xff]
        %v8115 = vld [vmem:[#allocation18 + $0x1a8] sm:$0xff]
        %v8116 = vld [vmem:[#allocation18 + $0x1b0] sm:$0xff]
        %v8117 = vld [vmem:[#allocation18 + $0x1b8] sm:$0xff]
        %v8118 = vld [vmem:[#allocation18 + $0x1c0] sm:$0xff]
        %v8119 = vld [vmem:[#allocation18 + $0x1c8] sm:$0xff]
        %v8120 = vld [vmem:[#allocation18 + $0x1d0] sm:$0xff]
        %v8121 = vld [vmem:[#allocation18 + $0x1d8] sm:$0xff]
        %v8122 = vld [vmem:[#allocation18 + $0x1e0] sm:$0xff]
        %v8123 = vld [vmem:[#allocation18 + $0x1e8] sm:$0xff]
        %v8124 = vld [vmem:[#allocation18 + $0x1f0] sm:$0xff]
        %v8125 = vld [vmem:[#allocation18 + $0x1f8] sm:$0xff]
        %v8126 = vld [vmem:[#allocation18 + $0x200] sm:$0xff]
        %v8127 = vld [vmem:[#allocation18 + $0x208] sm:$0xff]
        %v8128 = vld [vmem:[#allocation18 + $0x210] sm:$0xff]
        %v8129 = vld [vmem:[#allocation18 + $0x218] sm:$0xff]
        %v8130 = vld [vmem:[#allocation18 + $0x220] sm:$0xff]
        %v8131 = vld [vmem:[#allocation18 + $0x228] sm:$0xff]
        %v8132 = vld [vmem:[#allocation18 + $0x230] sm:$0xff]
        %v8133 = vld [vmem:[#allocation18 + $0x238] sm:$0xff]
        %v8134 = vld [vmem:[#allocation18 + $0x240] sm:$0xff]
        %v8135 = vld [vmem:[#allocation18 + $0x248] sm:$0xff]
        %v8136 = vld [vmem:[#allocation18 + $0x250] sm:$0xff]
        %v8137 = vld [vmem:[#allocation18 + $0x258] sm:$0xff]
        %v8138 = vld [vmem:[#allocation18 + $0x260] sm:$0xff]
        %v8139 = vld [vmem:[#allocation18 + $0x268] sm:$0xff]
        %v8140 = vld [vmem:[#allocation18 + $0x270] sm:$0xff]
        %v8141 = vld [vmem:[#allocation18 + $0x278] sm:$0xff]
        %v8142 = vld [vmem:[#allocation18 + $0x280] sm:$0xff]
        %v8143 = vld [vmem:[#allocation18 + $0x288] sm:$0xff]
        %v8144 = vld [vmem:[#allocation18 + $0x290] sm:$0xff]
        %v8145 = vld [vmem:[#allocation18 + $0x298] sm:$0xff]
        %v8146 = vld [vmem:[#allocation18 + $0x2a0] sm:$0xff]
        %v8147 = vld [vmem:[#allocation18 + $0x2a8] sm:$0xff]
        %v8148 = vld [vmem:[#allocation18 + $0x2b0] sm:$0xff]
        %v8149 = vld [vmem:[#allocation18 + $0x2b8] sm:$0xff]
        %v8150 = vld [vmem:[#allocation18 + $0x2c0] sm:$0xff]
        %v8151 = vld [vmem:[#allocation18 + $0x2c8] sm:$0xff]
        %v8152 = vld [vmem:[#allocation18 + $0x2d0] sm:$0xff]
        %v8153 = vld [vmem:[#allocation18 + $0x2d8] sm:$0xff]
        %v8154 = vld [vmem:[#allocation18 + $0x2e0] sm:$0xff]
        %v8155 = vld [vmem:[#allocation18 + $0x2e8] sm:$0xff]
        %v8156 = vld [vmem:[#allocation18 + $0x2f0] sm:$0xff]
        %v8157 = vld [vmem:[#allocation18 + $0x2f8] sm:$0xff]
        %v8158 = vld [vmem:[#allocation18 + $0x300] sm:$0xff]
        %v8159 = vld [vmem:[#allocation18 + $0x308] sm:$0xff]
        %v8160 = vld [vmem:[#allocation18 + $0x310] sm:$0xff]
        %v8161 = vld [vmem:[#allocation18 + $0x318] sm:$0xff]
        %v8162 = vld [vmem:[#allocation18 + $0x320] sm:$0xff]
        %v8163 = vld [vmem:[#allocation18 + $0x328] sm:$0xff]
        %v8164 = vld [vmem:[#allocation18 + $0x330] sm:$0xff]
        %v8165 = vld [vmem:[#allocation18 + $0x338] sm:$0xff]
        %v8166 = vld [vmem:[#allocation18 + $0x340] sm:$0xff]
        %v8167 = vld [vmem:[#allocation18 + $0x348] sm:$0xff]
        %v8168 = vld [vmem:[#allocation18 + $0x350] sm:$0xff]
        %v8169 = vld [vmem:[#allocation18 + $0x358] sm:$0xff]
        %v8170 = vld [vmem:[#allocation18 + $0x360] sm:$0xff]
        %v8171 = vld [vmem:[#allocation18 + $0x368] sm:$0xff]
        %v8172 = vld [vmem:[#allocation18 + $0x370] sm:$0xff]
        %v8173 = vld [vmem:[#allocation18 + $0x378] sm:$0xff]
        %v8174 = vld [vmem:[#allocation18 + $0x380] sm:$0xff]
        %v8175 = vld [vmem:[#allocation18 + $0x388] sm:$0xff]
        %v8176 = vld [vmem:[#allocation18 + $0x390] sm:$0xff]
        %v8177 = vld [vmem:[#allocation18 + $0x398] sm:$0xff]
        %v8178 = vld [vmem:[#allocation18 + $0x3a0] sm:$0xff]
        %v8179 = vld [vmem:[#allocation18 + $0x3a8] sm:$0xff]
        %v8180 = vld [vmem:[#allocation18 + $0x3b0] sm:$0xff]
        %v8181 = vld [vmem:[#allocation18 + $0x3b8] sm:$0xff]
        %v8182 = vld [vmem:[#allocation18 + $0x3c0] sm:$0xff]
        %v8183 = vld [vmem:[#allocation18 + $0x3c8] sm:$0xff]
        %v8184 = vld [vmem:[#allocation18 + $0x3d0] sm:$0xff]
        %v8185 = vld [vmem:[#allocation18 + $0x3d8] sm:$0xff]
        %v8186 = vld [vmem:[#allocation18 + $0x3e0] sm:$0xff]
        %v8187 = vld [vmem:[#allocation18 + $0x3e8] sm:$0xff]
        %v8188 = vld [vmem:[#allocation18 + $0x3f0] sm:$0xff]
        %v8189 = vld [vmem:[#allocation18 + $0x3f8] sm:$0xff]
        %v8190 = vld [vmem:[#allocation18 + $0x400] sm:$0xff]
        %v8191 = vld [vmem:[#allocation18 + $0x408] sm:$0xff]
        %v8192 = vld [vmem:[#allocation18 + $0x410] sm:$0xff]
        %v8193 = vld [vmem:[#allocation18 + $0x418] sm:$0xff]
        %v8194 = vld [vmem:[#allocation18 + $0x420] sm:$0xff]
        %v8195 = vld [vmem:[#allocation18 + $0x428] sm:$0xff]
        %v8196 = vld [vmem:[#allocation18 + $0x430] sm:$0xff]
        %v8197 = vld [vmem:[#allocation18 + $0x438] sm:$0xff]
        %v8198 = vld [vmem:[#allocation18 + $0x440] sm:$0xff]
        %v8199 = vld [vmem:[#allocation18 + $0x448] sm:$0xff]
        %v8200 = vld [vmem:[#allocation18 + $0x450] sm:$0xff]
        %v8201 = vld [vmem:[#allocation18 + $0x458] sm:$0xff]
        %v8202 = vld [vmem:[#allocation18 + $0x460] sm:$0xff]
        %v8203 = vld [vmem:[#allocation18 + $0x468] sm:$0xff]
        %v8204 = vld [vmem:[#allocation18 + $0x470] sm:$0xff]
        %v8205 = vld [vmem:[#allocation18 + $0x478] sm:$0xff]
        %v8206 = vld [vmem:[#allocation18 + $0x480] sm:$0xff]
        %v8207 = vld [vmem:[#allocation18 + $0x488] sm:$0xff]
        %v8208 = vld [vmem:[#allocation18 + $0x490] sm:$0xff]
        %v8209 = vld [vmem:[#allocation18 + $0x498] sm:$0xff]
        %v8210 = vld [vmem:[#allocation18 + $0x4a0] sm:$0xff]
        %v8211 = vld [vmem:[#allocation18 + $0x4a8] sm:$0xff]
        %v8212 = vld [vmem:[#allocation18 + $0x4b0] sm:$0xff]
        %v8213 = vld [vmem:[#allocation18 + $0x4b8] sm:$0xff]
        %v8214 = vld [vmem:[#allocation18 + $0x4c0] sm:$0xff]
        %v8215 = vld [vmem:[#allocation18 + $0x4c8] sm:$0xff]
        %v8216 = vld [vmem:[#allocation18 + $0x4d0] sm:$0xff]
        %v8217 = vld [vmem:[#allocation18 + $0x4d8] sm:$0xff]
        %v8218 = vld [vmem:[#allocation18 + $0x4e0] sm:$0xff]
        %v8219 = vld [vmem:[#allocation18 + $0x4e8] sm:$0xff]
        %v8220 = vld [vmem:[#allocation18 + $0x4f0] sm:$0xff]
        %v8221 = vld [vmem:[#allocation18 + $0x4f8] sm:$0xff]
        %v8222 = vld [vmem:[#allocation18 + $0x500] sm:$0xff]
        %v8223 = vld [vmem:[#allocation18 + $0x508] sm:$0xff]
        %v8224 = vld [vmem:[#allocation18 + $0x510] sm:$0xff]
        %v8225 = vld [vmem:[#allocation18 + $0x518] sm:$0xff]
        %v8226 = vld [vmem:[#allocation18 + $0x520] sm:$0xff]
        %v8227 = vld [vmem:[#allocation18 + $0x528] sm:$0xff]
        %v8228 = vld [vmem:[#allocation18 + $0x530] sm:$0xff]
        %v8229 = vld [vmem:[#allocation18 + $0x538] sm:$0xff]
        %v8230 = vld [vmem:[#allocation18 + $0x540] sm:$0xff]
        %v8231 = vld [vmem:[#allocation18 + $0x548] sm:$0xff]
        %v8232 = vld [vmem:[#allocation18 + $0x550] sm:$0xff]
        %v8233 = vld [vmem:[#allocation18 + $0x558] sm:$0xff]
        %v8234 = vld [vmem:[#allocation18 + $0x560] sm:$0xff]
        %v8235 = vld [vmem:[#allocation18 + $0x568] sm:$0xff]
        %v8236 = vld [vmem:[#allocation18 + $0x570] sm:$0xff]
        %v8237 = vld [vmem:[#allocation18 + $0x578] sm:$0xff]
        %v8238 = vld [vmem:[#allocation18 + $0x580] sm:$0xff]
        %v8239 = vld [vmem:[#allocation18 + $0x588] sm:$0xff]
        %v8240 = vld [vmem:[#allocation18 + $0x590] sm:$0xff]
        %v8241 = vld [vmem:[#allocation18 + $0x598] sm:$0xff]
        %v8242 = vld [vmem:[#allocation18 + $0x5a0] sm:$0xff]
        %v8243 = vld [vmem:[#allocation18 + $0x5a8] sm:$0xff]
        %v8244 = vld [vmem:[#allocation18 + $0x5b0] sm:$0xff]
        %v8245 = vld [vmem:[#allocation18 + $0x5b8] sm:$0xff]
        %v8246 = vld [vmem:[#allocation18 + $0x5c0] sm:$0xff]
        %v8247 = vld [vmem:[#allocation18 + $0x5c8] sm:$0xff]
        %v8248 = vld [vmem:[#allocation18 + $0x5d0] sm:$0xff]
        %v8249 = vld [vmem:[#allocation18 + $0x5d8] sm:$0xff]
        %v8250 = vld [vmem:[#allocation18 + $0x5e0] sm:$0xff]
        %v8251 = vld [vmem:[#allocation18 + $0x5e8] sm:$0xff]
        %v8252 = vld [vmem:[#allocation18 + $0x5f0] sm:$0xff]
        %v8253 = vld [vmem:[#allocation18 + $0x5f8] sm:$0xff]
        %v8254 = vld [vmem:[#allocation18 + $0x600] sm:$0xff]
        %v8255 = vld [vmem:[#allocation18 + $0x608] sm:$0xff]
        %v8256 = vld [vmem:[#allocation18 + $0x610] sm:$0xff]
        %v8257 = vld [vmem:[#allocation18 + $0x618] sm:$0xff]
        %v8258 = vld [vmem:[#allocation18 + $0x620] sm:$0xff]
        %v8259 = vld [vmem:[#allocation18 + $0x628] sm:$0xff]
        %v8260 = vld [vmem:[#allocation18 + $0x630] sm:$0xff]
        %v8261 = vld [vmem:[#allocation18 + $0x638] sm:$0xff]
        %v8262 = vld [vmem:[#allocation18 + $0x640] sm:$0xff]
        %v8263 = vld [vmem:[#allocation18 + $0x648] sm:$0xff]
        %v8264 = vld [vmem:[#allocation18 + $0x650] sm:$0xff]
        %v8265 = vld [vmem:[#allocation18 + $0x658] sm:$0xff]
        %v8266 = vld [vmem:[#allocation18 + $0x660] sm:$0xff]
        %v8267 = vld [vmem:[#allocation18 + $0x668] sm:$0xff]
        %v8268 = vld [vmem:[#allocation18 + $0x670] sm:$0xff]
        %v8269 = vld [vmem:[#allocation18 + $0x678] sm:$0xff]
        %v8270 = vld [vmem:[#allocation18 + $0x680] sm:$0xff]
        %v8271 = vld [vmem:[#allocation18 + $0x688] sm:$0xff]
        %v8272 = vld [vmem:[#allocation18 + $0x690] sm:$0xff]
        %v8273 = vld [vmem:[#allocation18 + $0x698] sm:$0xff]
        %v8274 = vld [vmem:[#allocation18 + $0x6a0] sm:$0xff]
        %v8275 = vld [vmem:[#allocation18 + $0x6a8] sm:$0xff]
        %v8276 = vld [vmem:[#allocation18 + $0x6b0] sm:$0xff]
        %v8277 = vld [vmem:[#allocation18 + $0x6b8] sm:$0xff]
        %v8278 = vld [vmem:[#allocation18 + $0x6c0] sm:$0xff]
        %v8279 = vld [vmem:[#allocation18 + $0x6c8] sm:$0xff]
        %v8280 = vld [vmem:[#allocation18 + $0x6d0] sm:$0xff]
        %v8281 = vld [vmem:[#allocation18 + $0x6d8] sm:$0xff]
        %v8282 = vld [vmem:[#allocation18 + $0x6e0] sm:$0xff]
        %v8283 = vld [vmem:[#allocation18 + $0x6e8] sm:$0xff]
        %v8284 = vld [vmem:[#allocation18 + $0x6f0] sm:$0xff]
        %v8285 = vld [vmem:[#allocation18 + $0x6f8] sm:$0xff]
        %v8286 = vld [vmem:[#allocation18 + $0x700] sm:$0xff]
        %v8287 = vld [vmem:[#allocation18 + $0x708] sm:$0xff]
        %v8288 = vld [vmem:[#allocation18 + $0x710] sm:$0xff]
        %v8289 = vld [vmem:[#allocation18 + $0x718] sm:$0xff]
        %v8290 = vld [vmem:[#allocation18 + $0x720] sm:$0xff]
        %v8291 = vld [vmem:[#allocation18 + $0x728] sm:$0xff]
        %v8292 = vld [vmem:[#allocation18 + $0x730] sm:$0xff]
        %v8293 = vld [vmem:[#allocation18 + $0x738] sm:$0xff]
        %v8294 = vld [vmem:[#allocation18 + $0x740] sm:$0xff]
        %v8295 = vld [vmem:[#allocation18 + $0x748] sm:$0xff]
        %v8296 = vld [vmem:[#allocation18 + $0x750] sm:$0xff]
        %v8297 = vld [vmem:[#allocation18 + $0x758] sm:$0xff]
        %v8298 = vld [vmem:[#allocation18 + $0x760] sm:$0xff]
        %v8299 = vld [vmem:[#allocation18 + $0x768] sm:$0xff]
        %v8300 = vld [vmem:[#allocation18 + $0x770] sm:$0xff]
        %v8301 = vld [vmem:[#allocation18 + $0x778] sm:$0xff]
        %v8302 = vld [vmem:[#allocation18 + $0x780] sm:$0xff]
        %v8303 = vld [vmem:[#allocation18 + $0x788] sm:$0xff]
        %v8304 = vld [vmem:[#allocation18 + $0x790] sm:$0xff]
        %v8305 = vld [vmem:[#allocation18 + $0x798] sm:$0xff]
        %v8306 = vld [vmem:[#allocation18 + $0x7a0] sm:$0xff]
        %v8307 = vld [vmem:[#allocation18 + $0x7a8] sm:$0xff]
        %v8308 = vld [vmem:[#allocation18 + $0x7b0] sm:$0xff]
        %v8309 = vld [vmem:[#allocation18 + $0x7b8] sm:$0xff]
        %v8310 = vld [vmem:[#allocation18 + $0x7c0] sm:$0xff]
        %v8311 = vld [vmem:[#allocation18 + $0x7c8] sm:$0xff]
        %v8312 = vld [vmem:[#allocation18 + $0x7d0] sm:$0xff]
        %v8313 = vld [vmem:[#allocation18 + $0x7d8] sm:$0xff]
        %v8314 = vld [vmem:[#allocation18 + $0x7e0] sm:$0xff]
        %v8315 = vld [vmem:[#allocation18 + $0x7e8] sm:$0xff]
        %v8316 = vld [vmem:[#allocation18 + $0x7f0] sm:$0xff]
        %v8317 = vld [vmem:[#allocation18 + $0x7f8] sm:$0xff]
        %v8318 = vld [vmem:[#allocation18 + $0x800] sm:$0xff]
        %v8319 = vld [vmem:[#allocation18 + $0x808] sm:$0xff]
        %v8320 = vld [vmem:[#allocation18 + $0x810] sm:$0xff]
        %v8321 = vld [vmem:[#allocation18 + $0x818] sm:$0xff]
        %v8322 = vld [vmem:[#allocation18 + $0x820] sm:$0xff]
        %v8323 = vld [vmem:[#allocation18 + $0x828] sm:$0xff]
        %v8324 = vld [vmem:[#allocation18 + $0x830] sm:$0xff]
        %v8325 = vld [vmem:[#allocation18 + $0x838] sm:$0xff]
        %v8326 = vld [vmem:[#allocation18 + $0x840] sm:$0xff]
        %v8327 = vld [vmem:[#allocation18 + $0x848] sm:$0xff]
        %v8328 = vld [vmem:[#allocation18 + $0x850] sm:$0xff]
        %v8329 = vld [vmem:[#allocation18 + $0x858] sm:$0xff]
        %v8330 = vld [vmem:[#allocation18 + $0x860] sm:$0xff]
        %v8331 = vld [vmem:[#allocation18 + $0x868] sm:$0xff]
        %v8332 = vld [vmem:[#allocation18 + $0x870] sm:$0xff]
        %v8333 = vld [vmem:[#allocation18 + $0x878] sm:$0xff]
        %v8334 = vld [vmem:[#allocation18 + $0x880] sm:$0xff]
        %v8335 = vld [vmem:[#allocation18 + $0x888] sm:$0xff]
        %v8336 = vld [vmem:[#allocation18 + $0x890] sm:$0xff]
        %v8337 = vld [vmem:[#allocation18 + $0x898] sm:$0xff]
        %v8338 = vld [vmem:[#allocation18 + $0x8a0] sm:$0xff]
        %v8339 = vld [vmem:[#allocation18 + $0x8a8] sm:$0xff]
        %v8340 = vld [vmem:[#allocation18 + $0x8b0] sm:$0xff]
        %v8341 = vld [vmem:[#allocation18 + $0x8b8] sm:$0xff]
        %v8342 = vld [vmem:[#allocation18 + $0x8c0] sm:$0xff]
        %v8343 = vld [vmem:[#allocation18 + $0x8c8] sm:$0xff]
        %v8344 = vld [vmem:[#allocation18 + $0x8d0] sm:$0xff]
        %v8345 = vld [vmem:[#allocation18 + $0x8d8] sm:$0xff]
        %v8346 = vld [vmem:[#allocation18 + $0x8e0] sm:$0xff]
        %v8347 = vld [vmem:[#allocation18 + $0x8e8] sm:$0xff]
        %v8348 = vld [vmem:[#allocation18 + $0x8f0] sm:$0xff]
        %v8349 = vld [vmem:[#allocation18 + $0x8f8] sm:$0xff]
        %v8350 = vld [vmem:[#allocation18 + $0x900] sm:$0xff]
        %v8351 = vld [vmem:[#allocation18 + $0x908] sm:$0xff]
        %v8352 = vld [vmem:[#allocation18 + $0x910] sm:$0xff]
        %v8353 = vld [vmem:[#allocation18 + $0x918] sm:$0xff]
        %v8354 = vld [vmem:[#allocation18 + $0x920] sm:$0xff]
        %v8355 = vld [vmem:[#allocation18 + $0x928] sm:$0xff]
        %v8356 = vld [vmem:[#allocation18 + $0x930] sm:$0xff]
        %v8357 = vld [vmem:[#allocation18 + $0x938] sm:$0xff]
        %v8358 = vld [vmem:[#allocation18 + $0x940] sm:$0xff]
        %v8359 = vld [vmem:[#allocation18 + $0x948] sm:$0xff]
        %v8360 = vld [vmem:[#allocation18 + $0x950] sm:$0xff]
        %v8361 = vld [vmem:[#allocation18 + $0x958] sm:$0xff]
        %v8362 = vld [vmem:[#allocation18 + $0x960] sm:$0xff]
        %v8363 = vld [vmem:[#allocation18 + $0x968] sm:$0xff]
        %v8364 = vld [vmem:[#allocation18 + $0x970] sm:$0xff]
        %v8365 = vld [vmem:[#allocation18 + $0x978] sm:$0xff]
        %v8366 = vld [vmem:[#allocation18 + $0x980] sm:$0xff]
        %v8367 = vld [vmem:[#allocation18 + $0x988] sm:$0xff]
        %v8368 = vld [vmem:[#allocation18 + $0x990] sm:$0xff]
        %v8369 = vld [vmem:[#allocation18 + $0x998] sm:$0xff]
        %v8370 = vld [vmem:[#allocation18 + $0x9a0] sm:$0xff]
        %v8371 = vld [vmem:[#allocation18 + $0x9a8] sm:$0xff]
        %v8372 = vld [vmem:[#allocation18 + $0x9b0] sm:$0xff]
        %v8373 = vld [vmem:[#allocation18 + $0x9b8] sm:$0xff]
        %v8374 = vld [vmem:[#allocation18 + $0x9c0] sm:$0xff]
        %v8375 = vld [vmem:[#allocation18 + $0x9c8] sm:$0xff]
        %v8376 = vld [vmem:[#allocation18 + $0x9d0] sm:$0xff]
        %v8377 = vld [vmem:[#allocation18 + $0x9d8] sm:$0xff]
        %v8378 = vld [vmem:[#allocation18 + $0x9e0] sm:$0xff]
        %v8379 = vld [vmem:[#allocation18 + $0x9e8] sm:$0xff]
        %v8380 = vld [vmem:[#allocation18 + $0x9f0] sm:$0xff]
        %v8381 = vld [vmem:[#allocation18 + $0x9f8] sm:$0xff]
        %v8382 = vld [vmem:[#allocation18 + $0xa00] sm:$0xff]
        %v8383 = vld [vmem:[#allocation18 + $0xa08] sm:$0xff]
        %v8384 = vld [vmem:[#allocation18 + $0xa10] sm:$0xff]
        %v8385 = vld [vmem:[#allocation18 + $0xa18] sm:$0xff]
        %v8386 = vld [vmem:[#allocation18 + $0xa20] sm:$0xff]
        %v8387 = vld [vmem:[#allocation18 + $0xa28] sm:$0xff]
        %v8388 = vld [vmem:[#allocation18 + $0xa30] sm:$0xff]
        %v8389 = vld [vmem:[#allocation18 + $0xa38] sm:$0xff]
        %v8390 = vld [vmem:[#allocation18 + $0xa40] sm:$0xff]
        %v8391 = vld [vmem:[#allocation18 + $0xa48] sm:$0xff]
        %v8392 = vld [vmem:[#allocation18 + $0xa50] sm:$0xff]
        %v8393 = vld [vmem:[#allocation18 + $0xa58] sm:$0xff]
        %v8394 = vld [vmem:[#allocation18 + $0xa60] sm:$0xff]
        %v8395 = vld [vmem:[#allocation18 + $0xa68] sm:$0xff]
        %v8396 = vld [vmem:[#allocation18 + $0xa70] sm:$0xff]
        %v8397 = vld [vmem:[#allocation18 + $0xa78] sm:$0xff]
        %v8398 = vld [vmem:[#allocation18 + $0xa80] sm:$0xff]
        %v8399 = vld [vmem:[#allocation18 + $0xa88] sm:$0xff]
        %v8400 = vld [vmem:[#allocation18 + $0xa90] sm:$0xff]
        %v8401 = vld [vmem:[#allocation18 + $0xa98] sm:$0xff]
        %v8402 = vld [vmem:[#allocation18 + $0xaa0] sm:$0xff]
        %v8403 = vld [vmem:[#allocation18 + $0xaa8] sm:$0xff]
        %v8404 = vld [vmem:[#allocation18 + $0xab0] sm:$0xff]
        %v8405 = vld [vmem:[#allocation18 + $0xab8] sm:$0xff]
        %v8406 = vld [vmem:[#allocation18 + $0xac0] sm:$0xff]
        %v8407 = vld [vmem:[#allocation18 + $0xac8] sm:$0xff]
        %v8408 = vld [vmem:[#allocation18 + $0xad0] sm:$0xff]
        %v8409 = vld [vmem:[#allocation18 + $0xad8] sm:$0xff]
        %v8410 = vld [vmem:[#allocation18 + $0xae0] sm:$0xff]
        %v8411 = vld [vmem:[#allocation18 + $0xae8] sm:$0xff]
        %v8412 = vld [vmem:[#allocation18 + $0xaf0] sm:$0xff]
        %v8413 = vld [vmem:[#allocation18 + $0xaf8] sm:$0xff]
        %v8414 = vld [vmem:[#allocation18 + $0xb00] sm:$0xff]
        %v8415 = vld [vmem:[#allocation18 + $0xb08] sm:$0xff]
        %v8416 = vld [vmem:[#allocation18 + $0xb10] sm:$0xff]
        %v8417 = vld [vmem:[#allocation18 + $0xb18] sm:$0xff]
        %v8418 = vld [vmem:[#allocation18 + $0xb20] sm:$0xff]
        %v8419 = vld [vmem:[#allocation18 + $0xb28] sm:$0xff]
        %v8420 = vld [vmem:[#allocation18 + $0xb30] sm:$0xff]
        %v8421 = vld [vmem:[#allocation18 + $0xb38] sm:$0xff]
        %v8422 = vld [vmem:[#allocation18 + $0xb40] sm:$0xff]
        %v8423 = vld [vmem:[#allocation18 + $0xb48] sm:$0xff]
        %v8424 = vld [vmem:[#allocation18 + $0xb50] sm:$0xff]
        %v8425 = vld [vmem:[#allocation18 + $0xb58] sm:$0xff]
        %v8426 = vld [vmem:[#allocation18 + $0xb60] sm:$0xff]
        %v8427 = vld [vmem:[#allocation18 + $0xb68] sm:$0xff]
        %v8428 = vld [vmem:[#allocation18 + $0xb70] sm:$0xff]
        %v8429 = vld [vmem:[#allocation18 + $0xb78] sm:$0xff]
        %v8430 = vld [vmem:[#allocation18 + $0xb80] sm:$0xff]
        %v8431 = vld [vmem:[#allocation18 + $0xb88] sm:$0xff]
        %v8432 = vld [vmem:[#allocation18 + $0xb90] sm:$0xff]
        %v8433 = vld [vmem:[#allocation18 + $0xb98] sm:$0xff]
        %v8434 = vld [vmem:[#allocation18 + $0xba0] sm:$0xff]
        %v8435 = vld [vmem:[#allocation18 + $0xba8] sm:$0xff]
        %v8436 = vld [vmem:[#allocation18 + $0xbb0] sm:$0xff]
        %v8437 = vld [vmem:[#allocation18 + $0xbb8] sm:$0xff]
        %v8438 = vld [vmem:[#allocation18 + $0xbc0] sm:$0xff]
        %v8439 = vld [vmem:[#allocation18 + $0xbc8] sm:$0xff]
        %v8440 = vld [vmem:[#allocation18 + $0xbd0] sm:$0xff]
        %v8441 = vld [vmem:[#allocation18 + $0xbd8] sm:$0xff]
        %v8442 = vld [vmem:[#allocation18 + $0xbe0] sm:$0xff]
        %v8443 = vld [vmem:[#allocation18 + $0xbe8] sm:$0xff]
        %v8444 = vld [vmem:[#allocation18 + $0xbf0] sm:$0xff]
        %v8445 = vld [vmem:[#allocation18 + $0xbf8] sm:$0xff]
        %s8446 = scalar_lea.vmem [#allocation2], 65
        %v8447 = vld [vmem:[%s8446] ss:$8 sm:$0xf]
        %v8448 = vld [vmem:[%s8446] ss:$8 sm:$0xf0]
        %v8449 = vor.u32 %v8447, %v8448
        %v8451 = vlaneseq
        %v8452 = vshrl.u32 %v8451, 7
        %v8453 = vsub.s32 0, %v8452
        %v8454 = vrot.slane %v8449, %v8453
        %v8455 = vlaneseq
        %v8456 = vshrl.u32 %v8455, 7
        %v8457 = vsub.s32 1, %v8456
        %v8458 = vrot.slane %v8449, %v8457
        %v8459 = vlaneseq
        %v8460 = vshrl.u32 %v8459, 7
        %v8461 = vsub.s32 2, %v8460
        %v8462 = vrot.slane %v8449, %v8461
        %v8463 = vlaneseq
        %v8464 = vshrl.u32 %v8463, 7
        %v8465 = vsub.s32 3, %v8464
        %v8466 = vrot.slane %v8449, %v8465
        %v8467 = vlaneseq
        %v8468 = vshrl.u32 %v8467, 7
        %v8469 = vsub.s32 4, %v8468
        %v8470 = vrot.slane %v8449, %v8469
        %v8471 = vlaneseq
        %v8472 = vshrl.u32 %v8471, 7
        %v8473 = vsub.s32 5, %v8472
        %v8474 = vrot.slane %v8449, %v8473
        %v8475 = vlaneseq
        %v8476 = vshrl.u32 %v8475, 7
        %v8477 = vsub.s32 6, %v8476
        %v8478 = vrot.slane %v8449, %v8477
        %v8479 = vlaneseq
        %v8480 = vshrl.u32 %v8479, 7
        %v8481 = vsub.s32 7, %v8480
        %v8482 = vrot.slane %v8449, %v8481
        %v8875 = vunpack.c.l.b16 %v8062
        %v8876 = vunpack.c.h.b16 %v8062
        %v8877 = vunpack.c.l.b16 %v8063
        %v8878 = vunpack.c.h.b16 %v8063
        %v8879 = vunpack.c.l.b16 %v8064
        %v8880 = vunpack.c.h.b16 %v8064
        %v8881 = vunpack.c.l.b16 %v8065
        %v8882 = vunpack.c.h.b16 %v8065
        %v8883 = vunpack.c.l.b16 %v8066
        %v8884 = vunpack.c.h.b16 %v8066
        %v8885 = vunpack.c.l.b16 %v8067
        %v8886 = vunpack.c.h.b16 %v8067
        %v8887 = vunpack.c.l.b16 %v8068
        %v8888 = vunpack.c.h.b16 %v8068
        %v8889 = vunpack.c.l.b16 %v8069
        %v8890 = vunpack.c.h.b16 %v8069
        %v8891 = vunpack.c.l.b16 %v8070
        %v8892 = vunpack.c.h.b16 %v8070
        %v8893 = vunpack.c.l.b16 %v8071
        %v8894 = vunpack.c.h.b16 %v8071
        %v8895 = vunpack.c.l.b16 %v8072
        %v8896 = vunpack.c.h.b16 %v8072
        %v8897 = vunpack.c.l.b16 %v8073
        %v8898 = vunpack.c.h.b16 %v8073
        %v8899 = vunpack.c.l.b16 %v8074
        %v8900 = vunpack.c.h.b16 %v8074
        %v8901 = vunpack.c.l.b16 %v8075
        %v8902 = vunpack.c.h.b16 %v8075
        %v8903 = vunpack.c.l.b16 %v8076
        %v8904 = vunpack.c.h.b16 %v8076
        %v8905 = vunpack.c.l.b16 %v8077
        %v8906 = vunpack.c.h.b16 %v8077
        %v8907 = vunpack.c.l.b16 %v8078
        %v8908 = vunpack.c.h.b16 %v8078
        %v8909 = vunpack.c.l.b16 %v8079
        %v8910 = vunpack.c.h.b16 %v8079
        %v8911 = vunpack.c.l.b16 %v8080
        %v8912 = vunpack.c.h.b16 %v8080
        %v8913 = vunpack.c.l.b16 %v8081
        %v8914 = vunpack.c.h.b16 %v8081
        %v8915 = vunpack.c.l.b16 %v8082
        %v8916 = vunpack.c.h.b16 %v8082
        %v8917 = vunpack.c.l.b16 %v8083
        %v8918 = vunpack.c.h.b16 %v8083
        %v8919 = vunpack.c.l.b16 %v8084
        %v8920 = vunpack.c.h.b16 %v8084
        %v8921 = vunpack.c.l.b16 %v8085
        %v8922 = vunpack.c.h.b16 %v8085
        %v8923 = vunpack.c.l.b16 %v8086
        %v8924 = vunpack.c.h.b16 %v8086
        %v8925 = vunpack.c.l.b16 %v8087
        %v8926 = vunpack.c.h.b16 %v8087
        %v8927 = vunpack.c.l.b16 %v8088
        %v8928 = vunpack.c.h.b16 %v8088
        %v8929 = vunpack.c.l.b16 %v8089
        %v8930 = vunpack.c.h.b16 %v8089
        %v8931 = vunpack.c.l.b16 %v8090
        %v8932 = vunpack.c.h.b16 %v8090
        %v8933 = vunpack.c.l.b16 %v8091
        %v8934 = vunpack.c.h.b16 %v8091
        %v8935 = vunpack.c.l.b16 %v8092
        %v8936 = vunpack.c.h.b16 %v8092
        %v8937 = vunpack.c.l.b16 %v8093
        %v8938 = vunpack.c.h.b16 %v8093
        %v8939 = vunpack.c.l.b16 %v8094
        %v8940 = vunpack.c.h.b16 %v8094
        %v8941 = vunpack.c.l.b16 %v8095
        %v8942 = vunpack.c.h.b16 %v8095
        %v8943 = vunpack.c.l.b16 %v8096
        %v8944 = vunpack.c.h.b16 %v8096
        %v8945 = vunpack.c.l.b16 %v8097
        %v8946 = vunpack.c.h.b16 %v8097
        %v8947 = vunpack.c.l.b16 %v8098
        %v8948 = vunpack.c.h.b16 %v8098
        %v8949 = vunpack.c.l.b16 %v8099
        %v8950 = vunpack.c.h.b16 %v8099
        %v8951 = vunpack.c.l.b16 %v8100
        %v8952 = vunpack.c.h.b16 %v8100
        %v8953 = vunpack.c.l.b16 %v8101
        %v8954 = vunpack.c.h.b16 %v8101
        %v8955 = vunpack.c.l.b16 %v8102
        %v8956 = vunpack.c.h.b16 %v8102
        %v8957 = vunpack.c.l.b16 %v8103
        %v8958 = vunpack.c.h.b16 %v8103
        %v8959 = vunpack.c.l.b16 %v8104
        %v8960 = vunpack.c.h.b16 %v8104
        %v8961 = vunpack.c.l.b16 %v8105
        %v8962 = vunpack.c.h.b16 %v8105
        %v8963 = vunpack.c.l.b16 %v8106
        %v8964 = vunpack.c.h.b16 %v8106
        %v8965 = vunpack.c.l.b16 %v8107
        %v8966 = vunpack.c.h.b16 %v8107
        %v8967 = vunpack.c.l.b16 %v8108
        %v8968 = vunpack.c.h.b16 %v8108
        %v8969 = vunpack.c.l.b16 %v8109
        %v8970 = vunpack.c.h.b16 %v8109
        %v8971 = vunpack.c.l.b16 %v8110
        %v8972 = vunpack.c.h.b16 %v8110
        %v8973 = vunpack.c.l.b16 %v8111
        %v8974 = vunpack.c.h.b16 %v8111
        %v8975 = vunpack.c.l.b16 %v8112
        %v8976 = vunpack.c.h.b16 %v8112
        %v8977 = vunpack.c.l.b16 %v8113
        %v8978 = vunpack.c.h.b16 %v8113
        %v8979 = vunpack.c.l.b16 %v8114
        %v8980 = vunpack.c.h.b16 %v8114
        %v8981 = vunpack.c.l.b16 %v8115
        %v8982 = vunpack.c.h.b16 %v8115
        %v8983 = vunpack.c.l.b16 %v8116
        %v8984 = vunpack.c.h.b16 %v8116
        %v8985 = vunpack.c.l.b16 %v8117
        %v8986 = vunpack.c.h.b16 %v8117
        %v8987 = vunpack.c.l.b16 %v8118
        %v8988 = vunpack.c.h.b16 %v8118
        %v8989 = vunpack.c.l.b16 %v8119
        %v8990 = vunpack.c.h.b16 %v8119
        %v8991 = vunpack.c.l.b16 %v8120
        %v8992 = vunpack.c.h.b16 %v8120
        %v8993 = vunpack.c.l.b16 %v8121
        %v8994 = vunpack.c.h.b16 %v8121
        %v8995 = vunpack.c.l.b16 %v8122
        %v8996 = vunpack.c.h.b16 %v8122
        %v8997 = vunpack.c.l.b16 %v8123
        %v8998 = vunpack.c.h.b16 %v8123
        %v8999 = vunpack.c.l.b16 %v8124
        %v9000 = vunpack.c.h.b16 %v8124
        %v9001 = vunpack.c.l.b16 %v8125
        %v9002 = vunpack.c.h.b16 %v8125
        %v9003 = vunpack.c.l.b16 %v8126
        %v9004 = vunpack.c.h.b16 %v8126
        %v9005 = vunpack.c.l.b16 %v8127
        %v9006 = vunpack.c.h.b16 %v8127
        %v9007 = vunpack.c.l.b16 %v8128
        %v9008 = vunpack.c.h.b16 %v8128
        %v9009 = vunpack.c.l.b16 %v8129
        %v9010 = vunpack.c.h.b16 %v8129
        %v9011 = vunpack.c.l.b16 %v8130
        %v9012 = vunpack.c.h.b16 %v8130
        %v9013 = vunpack.c.l.b16 %v8131
        %v9014 = vunpack.c.h.b16 %v8131
        %v9015 = vunpack.c.l.b16 %v8132
        %v9016 = vunpack.c.h.b16 %v8132
        %v9017 = vunpack.c.l.b16 %v8133
        %v9018 = vunpack.c.h.b16 %v8133
        %v9019 = vunpack.c.l.b16 %v8134
        %v9020 = vunpack.c.h.b16 %v8134
        %v9021 = vunpack.c.l.b16 %v8135
        %v9022 = vunpack.c.h.b16 %v8135
        %v9023 = vunpack.c.l.b16 %v8136
        %v9024 = vunpack.c.h.b16 %v8136
        %v9025 = vunpack.c.l.b16 %v8137
        %v9026 = vunpack.c.h.b16 %v8137
        %v9027 = vunpack.c.l.b16 %v8138
        %v9028 = vunpack.c.h.b16 %v8138
        %v9029 = vunpack.c.l.b16 %v8139
        %v9030 = vunpack.c.h.b16 %v8139
        %v9031 = vunpack.c.l.b16 %v8140
        %v9032 = vunpack.c.h.b16 %v8140
        %v9033 = vunpack.c.l.b16 %v8141
        %v9034 = vunpack.c.h.b16 %v8141
        %v9035 = vunpack.c.l.b16 %v8142
        %v9036 = vunpack.c.h.b16 %v8142
        %v9037 = vunpack.c.l.b16 %v8143
        %v9038 = vunpack.c.h.b16 %v8143
        %v9039 = vunpack.c.l.b16 %v8144
        %v9040 = vunpack.c.h.b16 %v8144
        %v9041 = vunpack.c.l.b16 %v8145
        %v9042 = vunpack.c.h.b16 %v8145
        %v9043 = vunpack.c.l.b16 %v8146
        %v9044 = vunpack.c.h.b16 %v8146
        %v9045 = vunpack.c.l.b16 %v8147
        %v9046 = vunpack.c.h.b16 %v8147
        %v9047 = vunpack.c.l.b16 %v8148
        %v9048 = vunpack.c.h.b16 %v8148
        %v9049 = vunpack.c.l.b16 %v8149
        %v9050 = vunpack.c.h.b16 %v8149
        %v9051 = vunpack.c.l.b16 %v8150
        %v9052 = vunpack.c.h.b16 %v8150
        %v9053 = vunpack.c.l.b16 %v8151
        %v9054 = vunpack.c.h.b16 %v8151
        %v9055 = vunpack.c.l.b16 %v8152
        %v9056 = vunpack.c.h.b16 %v8152
        %v9057 = vunpack.c.l.b16 %v8153
        %v9058 = vunpack.c.h.b16 %v8153
        %v9059 = vunpack.c.l.b16 %v8154
        %v9060 = vunpack.c.h.b16 %v8154
        %v9061 = vunpack.c.l.b16 %v8155
        %v9062 = vunpack.c.h.b16 %v8155
        %v9063 = vunpack.c.l.b16 %v8156
        %v9064 = vunpack.c.h.b16 %v8156
        %v9065 = vunpack.c.l.b16 %v8157
        %v9066 = vunpack.c.h.b16 %v8157
        %v9067 = vunpack.c.l.b16 %v8158
        %v9068 = vunpack.c.h.b16 %v8158
        %v9069 = vunpack.c.l.b16 %v8159
        %v9070 = vunpack.c.h.b16 %v8159
        %v9071 = vunpack.c.l.b16 %v8160
        %v9072 = vunpack.c.h.b16 %v8160
        %v9073 = vunpack.c.l.b16 %v8161
        %v9074 = vunpack.c.h.b16 %v8161
        %v9075 = vunpack.c.l.b16 %v8162
        %v9076 = vunpack.c.h.b16 %v8162
        %v9077 = vunpack.c.l.b16 %v8163
        %v9078 = vunpack.c.h.b16 %v8163
        %v9079 = vunpack.c.l.b16 %v8164
        %v9080 = vunpack.c.h.b16 %v8164
        %v9081 = vunpack.c.l.b16 %v8165
        %v9082 = vunpack.c.h.b16 %v8165
        %v9083 = vunpack.c.l.b16 %v8166
        %v9084 = vunpack.c.h.b16 %v8166
        %v9085 = vunpack.c.l.b16 %v8167
        %v9086 = vunpack.c.h.b16 %v8167
        %v9087 = vunpack.c.l.b16 %v8168
        %v9088 = vunpack.c.h.b16 %v8168
        %v9089 = vunpack.c.l.b16 %v8169
        %v9090 = vunpack.c.h.b16 %v8169
        %v9091 = vunpack.c.l.b16 %v8170
        %v9092 = vunpack.c.h.b16 %v8170
        %v9093 = vunpack.c.l.b16 %v8171
        %v9094 = vunpack.c.h.b16 %v8171
        %v9095 = vunpack.c.l.b16 %v8172
        %v9096 = vunpack.c.h.b16 %v8172
        %v9097 = vunpack.c.l.b16 %v8173
        %v9098 = vunpack.c.h.b16 %v8173
        %v9099 = vunpack.c.l.b16 %v8174
        %v9100 = vunpack.c.h.b16 %v8174
        %v9101 = vunpack.c.l.b16 %v8175
        %v9102 = vunpack.c.h.b16 %v8175
        %v9103 = vunpack.c.l.b16 %v8176
        %v9104 = vunpack.c.h.b16 %v8176
        %v9105 = vunpack.c.l.b16 %v8177
        %v9106 = vunpack.c.h.b16 %v8177
        %v9107 = vunpack.c.l.b16 %v8178
        %v9108 = vunpack.c.h.b16 %v8178
        %v9109 = vunpack.c.l.b16 %v8179
        %v9110 = vunpack.c.h.b16 %v8179
        %v9111 = vunpack.c.l.b16 %v8180
        %v9112 = vunpack.c.h.b16 %v8180
        %v9113 = vunpack.c.l.b16 %v8181
        %v9114 = vunpack.c.h.b16 %v8181
        %v9115 = vunpack.c.l.b16 %v8182
        %v9116 = vunpack.c.h.b16 %v8182
        %v9117 = vunpack.c.l.b16 %v8183
        %v9118 = vunpack.c.h.b16 %v8183
        %v9119 = vunpack.c.l.b16 %v8184
        %v9120 = vunpack.c.h.b16 %v8184
        %v9121 = vunpack.c.l.b16 %v8185
        %v9122 = vunpack.c.h.b16 %v8185
        %v9123 = vunpack.c.l.b16 %v8186
        %v9124 = vunpack.c.h.b16 %v8186
        %v9125 = vunpack.c.l.b16 %v8187
        %v9126 = vunpack.c.h.b16 %v8187
        %v9127 = vunpack.c.l.b16 %v8188
        %v9128 = vunpack.c.h.b16 %v8188
        %v9129 = vunpack.c.l.b16 %v8189
        %v9130 = vunpack.c.h.b16 %v8189
        %v9131 = vunpack.c.l.b16 %v8190
        %v9132 = vunpack.c.h.b16 %v8190
        %v9133 = vunpack.c.l.b16 %v8191
        %v9134 = vunpack.c.h.b16 %v8191
        %v9135 = vunpack.c.l.b16 %v8192
        %v9136 = vunpack.c.h.b16 %v8192
        %v9137 = vunpack.c.l.b16 %v8193
        %v9138 = vunpack.c.h.b16 %v8193
        %v9139 = vunpack.c.l.b16 %v8194
        %v9140 = vunpack.c.h.b16 %v8194
        %v9141 = vunpack.c.l.b16 %v8195
        %v9142 = vunpack.c.h.b16 %v8195
        %v9143 = vunpack.c.l.b16 %v8196
        %v9144 = vunpack.c.h.b16 %v8196
        %v9145 = vunpack.c.l.b16 %v8197
        %v9146 = vunpack.c.h.b16 %v8197
        %v9147 = vunpack.c.l.b16 %v8198
        %v9148 = vunpack.c.h.b16 %v8198
        %v9149 = vunpack.c.l.b16 %v8199
        %v9150 = vunpack.c.h.b16 %v8199
        %v9151 = vunpack.c.l.b16 %v8200
        %v9152 = vunpack.c.h.b16 %v8200
        %v9153 = vunpack.c.l.b16 %v8201
        %v9154 = vunpack.c.h.b16 %v8201
        %v9155 = vunpack.c.l.b16 %v8202
        %v9156 = vunpack.c.h.b16 %v8202
        %v9157 = vunpack.c.l.b16 %v8203
        %v9158 = vunpack.c.h.b16 %v8203
        %v9159 = vunpack.c.l.b16 %v8204
        %v9160 = vunpack.c.h.b16 %v8204
        %v9161 = vunpack.c.l.b16 %v8205
        %v9162 = vunpack.c.h.b16 %v8205
        %v9163 = vunpack.c.l.b16 %v8206
        %v9164 = vunpack.c.h.b16 %v8206
        %v9165 = vunpack.c.l.b16 %v8207
        %v9166 = vunpack.c.h.b16 %v8207
        %v9167 = vunpack.c.l.b16 %v8208
        %v9168 = vunpack.c.h.b16 %v8208
        %v9169 = vunpack.c.l.b16 %v8209
        %v9170 = vunpack.c.h.b16 %v8209
        %v9171 = vunpack.c.l.b16 %v8210
        %v9172 = vunpack.c.h.b16 %v8210
        %v9173 = vunpack.c.l.b16 %v8211
        %v9174 = vunpack.c.h.b16 %v8211
        %v9175 = vunpack.c.l.b16 %v8212
        %v9176 = vunpack.c.h.b16 %v8212
        %v9177 = vunpack.c.l.b16 %v8213
        %v9178 = vunpack.c.h.b16 %v8213
        %v9179 = vunpack.c.l.b16 %v8214
        %v9180 = vunpack.c.h.b16 %v8214
        %v9181 = vunpack.c.l.b16 %v8215
        %v9182 = vunpack.c.h.b16 %v8215
        %v9183 = vunpack.c.l.b16 %v8216
        %v9184 = vunpack.c.h.b16 %v8216
        %v9185 = vunpack.c.l.b16 %v8217
        %v9186 = vunpack.c.h.b16 %v8217
        %v9187 = vunpack.c.l.b16 %v8218
        %v9188 = vunpack.c.h.b16 %v8218
        %v9189 = vunpack.c.l.b16 %v8219
        %v9190 = vunpack.c.h.b16 %v8219
        %v9191 = vunpack.c.l.b16 %v8220
        %v9192 = vunpack.c.h.b16 %v8220
        %v9193 = vunpack.c.l.b16 %v8221
        %v9194 = vunpack.c.h.b16 %v8221
        %v9195 = vunpack.c.l.b16 %v8222
        %v9196 = vunpack.c.h.b16 %v8222
        %v9197 = vunpack.c.l.b16 %v8223
        %v9198 = vunpack.c.h.b16 %v8223
        %v9199 = vunpack.c.l.b16 %v8224
        %v9200 = vunpack.c.h.b16 %v8224
        %v9201 = vunpack.c.l.b16 %v8225
        %v9202 = vunpack.c.h.b16 %v8225
        %v9203 = vunpack.c.l.b16 %v8226
        %v9204 = vunpack.c.h.b16 %v8226
        %v9205 = vunpack.c.l.b16 %v8227
        %v9206 = vunpack.c.h.b16 %v8227
        %v9207 = vunpack.c.l.b16 %v8228
        %v9208 = vunpack.c.h.b16 %v8228
        %v9209 = vunpack.c.l.b16 %v8229
        %v9210 = vunpack.c.h.b16 %v8229
        %v9211 = vunpack.c.l.b16 %v8230
        %v9212 = vunpack.c.h.b16 %v8230
        %v9213 = vunpack.c.l.b16 %v8231
        %v9214 = vunpack.c.h.b16 %v8231
        %v9215 = vunpack.c.l.b16 %v8232
        %v9216 = vunpack.c.h.b16 %v8232
        %v9217 = vunpack.c.l.b16 %v8233
        %v9218 = vunpack.c.h.b16 %v8233
        %v9219 = vunpack.c.l.b16 %v8234
        %v9220 = vunpack.c.h.b16 %v8234
        %v9221 = vunpack.c.l.b16 %v8235
        %v9222 = vunpack.c.h.b16 %v8235
        %v9223 = vunpack.c.l.b16 %v8236
        %v9224 = vunpack.c.h.b16 %v8236
        %v9225 = vunpack.c.l.b16 %v8237
        %v9226 = vunpack.c.h.b16 %v8237
        %v9227 = vunpack.c.l.b16 %v8238
        %v9228 = vunpack.c.h.b16 %v8238
        %v9229 = vunpack.c.l.b16 %v8239
        %v9230 = vunpack.c.h.b16 %v8239
        %v9231 = vunpack.c.l.b16 %v8240
        %v9232 = vunpack.c.h.b16 %v8240
        %v9233 = vunpack.c.l.b16 %v8241
        %v9234 = vunpack.c.h.b16 %v8241
        %v9235 = vunpack.c.l.b16 %v8242
        %v9236 = vunpack.c.h.b16 %v8242
        %v9237 = vunpack.c.l.b16 %v8243
        %v9238 = vunpack.c.h.b16 %v8243
        %v9239 = vunpack.c.l.b16 %v8244
        %v9240 = vunpack.c.h.b16 %v8244
        %v9241 = vunpack.c.l.b16 %v8245
        %v9242 = vunpack.c.h.b16 %v8245
        %v9243 = vunpack.c.l.b16 %v8246
        %v9244 = vunpack.c.h.b16 %v8246
        %v9245 = vunpack.c.l.b16 %v8247
        %v9246 = vunpack.c.h.b16 %v8247
        %v9247 = vunpack.c.l.b16 %v8248
        %v9248 = vunpack.c.h.b16 %v8248
        %v9249 = vunpack.c.l.b16 %v8249
        %v9250 = vunpack.c.h.b16 %v8249
        %v9251 = vunpack.c.l.b16 %v8250
        %v9252 = vunpack.c.h.b16 %v8250
        %v9253 = vunpack.c.l.b16 %v8251
        %v9254 = vunpack.c.h.b16 %v8251
        %v9255 = vunpack.c.l.b16 %v8252
        %v9256 = vunpack.c.h.b16 %v8252
        %v9257 = vunpack.c.l.b16 %v8253
        %v9258 = vunpack.c.h.b16 %v8253
        %v9259 = vunpack.c.l.b16 %v8254
        %v9260 = vunpack.c.h.b16 %v8254
        %v9261 = vunpack.c.l.b16 %v8255
        %v9262 = vunpack.c.h.b16 %v8255
        %v9263 = vunpack.c.l.b16 %v8256
        %v9264 = vunpack.c.h.b16 %v8256
        %v9265 = vunpack.c.l.b16 %v8257
        %v9266 = vunpack.c.h.b16 %v8257
        %v9267 = vunpack.c.l.b16 %v8258
        %v9268 = vunpack.c.h.b16 %v8258
        %v9269 = vunpack.c.l.b16 %v8259
        %v9270 = vunpack.c.h.b16 %v8259
        %v9271 = vunpack.c.l.b16 %v8260
        %v9272 = vunpack.c.h.b16 %v8260
        %v9273 = vunpack.c.l.b16 %v8261
        %v9274 = vunpack.c.h.b16 %v8261
        %v9275 = vunpack.c.l.b16 %v8262
        %v9276 = vunpack.c.h.b16 %v8262
        %v9277 = vunpack.c.l.b16 %v8263
        %v9278 = vunpack.c.h.b16 %v8263
        %v9279 = vunpack.c.l.b16 %v8264
        %v9280 = vunpack.c.h.b16 %v8264
        %v9281 = vunpack.c.l.b16 %v8265
        %v9282 = vunpack.c.h.b16 %v8265
        %v9283 = vunpack.c.l.b16 %v8266
        %v9284 = vunpack.c.h.b16 %v8266
        %v9285 = vunpack.c.l.b16 %v8267
        %v9286 = vunpack.c.h.b16 %v8267
        %v9287 = vunpack.c.l.b16 %v8268
        %v9288 = vunpack.c.h.b16 %v8268
        %v9289 = vunpack.c.l.b16 %v8269
        %v9290 = vunpack.c.h.b16 %v8269
        %v9291 = vunpack.c.l.b16 %v8270
        %v9292 = vunpack.c.h.b16 %v8270
        %v9293 = vunpack.c.l.b16 %v8271
        %v9294 = vunpack.c.h.b16 %v8271
        %v9295 = vunpack.c.l.b16 %v8272
        %v9296 = vunpack.c.h.b16 %v8272
        %v9297 = vunpack.c.l.b16 %v8273
        %v9298 = vunpack.c.h.b16 %v8273
        %v9299 = vunpack.c.l.b16 %v8274
        %v9300 = vunpack.c.h.b16 %v8274
        %v9301 = vunpack.c.l.b16 %v8275
        %v9302 = vunpack.c.h.b16 %v8275
        %v9303 = vunpack.c.l.b16 %v8276
        %v9304 = vunpack.c.h.b16 %v8276
        %v9305 = vunpack.c.l.b16 %v8277
        %v9306 = vunpack.c.h.b16 %v8277
        %v9307 = vunpack.c.l.b16 %v8278
        %v9308 = vunpack.c.h.b16 %v8278
        %v9309 = vunpack.c.l.b16 %v8279
        %v9310 = vunpack.c.h.b16 %v8279
        %v9311 = vunpack.c.l.b16 %v8280
        %v9312 = vunpack.c.h.b16 %v8280
        %v9313 = vunpack.c.l.b16 %v8281
        %v9314 = vunpack.c.h.b16 %v8281
        %v9315 = vunpack.c.l.b16 %v8282
        %v9316 = vunpack.c.h.b16 %v8282
        %v9317 = vunpack.c.l.b16 %v8283
        %v9318 = vunpack.c.h.b16 %v8283
        %v9319 = vunpack.c.l.b16 %v8284
        %v9320 = vunpack.c.h.b16 %v8284
        %v9321 = vunpack.c.l.b16 %v8285
        %v9322 = vunpack.c.h.b16 %v8285
        %v9323 = vunpack.c.l.b16 %v8286
        %v9324 = vunpack.c.h.b16 %v8286
        %v9325 = vunpack.c.l.b16 %v8287
        %v9326 = vunpack.c.h.b16 %v8287
        %v9327 = vunpack.c.l.b16 %v8288
        %v9328 = vunpack.c.h.b16 %v8288
        %v9329 = vunpack.c.l.b16 %v8289
        %v9330 = vunpack.c.h.b16 %v8289
        %v9331 = vunpack.c.l.b16 %v8290
        %v9332 = vunpack.c.h.b16 %v8290
        %v9333 = vunpack.c.l.b16 %v8291
        %v9334 = vunpack.c.h.b16 %v8291
        %v9335 = vunpack.c.l.b16 %v8292
        %v9336 = vunpack.c.h.b16 %v8292
        %v9337 = vunpack.c.l.b16 %v8293
        %v9338 = vunpack.c.h.b16 %v8293
        %v9339 = vunpack.c.l.b16 %v8294
        %v9340 = vunpack.c.h.b16 %v8294
        %v9341 = vunpack.c.l.b16 %v8295
        %v9342 = vunpack.c.h.b16 %v8295
        %v9343 = vunpack.c.l.b16 %v8296
        %v9344 = vunpack.c.h.b16 %v8296
        %v9345 = vunpack.c.l.b16 %v8297
        %v9346 = vunpack.c.h.b16 %v8297
        %v9347 = vunpack.c.l.b16 %v8298
        %v9348 = vunpack.c.h.b16 %v8298
        %v9349 = vunpack.c.l.b16 %v8299
        %v9350 = vunpack.c.h.b16 %v8299
        %v9351 = vunpack.c.l.b16 %v8300
        %v9352 = vunpack.c.h.b16 %v8300
        %v9353 = vunpack.c.l.b16 %v8301
        %v9354 = vunpack.c.h.b16 %v8301
        %v9355 = vunpack.c.l.b16 %v8302
        %v9356 = vunpack.c.h.b16 %v8302
        %v9357 = vunpack.c.l.b16 %v8303
        %v9358 = vunpack.c.h.b16 %v8303
        %v9359 = vunpack.c.l.b16 %v8304
        %v9360 = vunpack.c.h.b16 %v8304
        %v9361 = vunpack.c.l.b16 %v8305
        %v9362 = vunpack.c.h.b16 %v8305
        %v9363 = vunpack.c.l.b16 %v8306
        %v9364 = vunpack.c.h.b16 %v8306
        %v9365 = vunpack.c.l.b16 %v8307
        %v9366 = vunpack.c.h.b16 %v8307
        %v9367 = vunpack.c.l.b16 %v8308
        %v9368 = vunpack.c.h.b16 %v8308
        %v9369 = vunpack.c.l.b16 %v8309
        %v9370 = vunpack.c.h.b16 %v8309
        %v9371 = vunpack.c.l.b16 %v8310
        %v9372 = vunpack.c.h.b16 %v8310
        %v9373 = vunpack.c.l.b16 %v8311
        %v9374 = vunpack.c.h.b16 %v8311
        %v9375 = vunpack.c.l.b16 %v8312
        %v9376 = vunpack.c.h.b16 %v8312
        %v9377 = vunpack.c.l.b16 %v8313
        %v9378 = vunpack.c.h.b16 %v8313
        %v9379 = vunpack.c.l.b16 %v8314
        %v9380 = vunpack.c.h.b16 %v8314
        %v9381 = vunpack.c.l.b16 %v8315
        %v9382 = vunpack.c.h.b16 %v8315
        %v9383 = vunpack.c.l.b16 %v8316
        %v9384 = vunpack.c.h.b16 %v8316
        %v9385 = vunpack.c.l.b16 %v8317
        %v9386 = vunpack.c.h.b16 %v8317
        %v9387 = vunpack.c.l.b16 %v8318
        %v9388 = vunpack.c.h.b16 %v8318
        %v9389 = vunpack.c.l.b16 %v8319
        %v9390 = vunpack.c.h.b16 %v8319
        %v9391 = vunpack.c.l.b16 %v8320
        %v9392 = vunpack.c.h.b16 %v8320
        %v9393 = vunpack.c.l.b16 %v8321
        %v9394 = vunpack.c.h.b16 %v8321
        %v9395 = vunpack.c.l.b16 %v8322
        %v9396 = vunpack.c.h.b16 %v8322
        %v9397 = vunpack.c.l.b16 %v8323
        %v9398 = vunpack.c.h.b16 %v8323
        %v9399 = vunpack.c.l.b16 %v8324
        %v9400 = vunpack.c.h.b16 %v8324
        %v9401 = vunpack.c.l.b16 %v8325
        %v9402 = vunpack.c.h.b16 %v8325
        %v9403 = vunpack.c.l.b16 %v8326
        %v9404 = vunpack.c.h.b16 %v8326
        %v9405 = vunpack.c.l.b16 %v8327
        %v9406 = vunpack.c.h.b16 %v8327
        %v9407 = vunpack.c.l.b16 %v8328
        %v9408 = vunpack.c.h.b16 %v8328
        %v9409 = vunpack.c.l.b16 %v8329
        %v9410 = vunpack.c.h.b16 %v8329
        %v9411 = vunpack.c.l.b16 %v8330
        %v9412 = vunpack.c.h.b16 %v8330
        %v9413 = vunpack.c.l.b16 %v8331
        %v9414 = vunpack.c.h.b16 %v8331
        %v9415 = vunpack.c.l.b16 %v8332
        %v9416 = vunpack.c.h.b16 %v8332
        %v9417 = vunpack.c.l.b16 %v8333
        %v9418 = vunpack.c.h.b16 %v8333
        %v9419 = vunpack.c.l.b16 %v8334
        %v9420 = vunpack.c.h.b16 %v8334
        %v9421 = vunpack.c.l.b16 %v8335
        %v9422 = vunpack.c.h.b16 %v8335
        %v9423 = vunpack.c.l.b16 %v8336
        %v9424 = vunpack.c.h.b16 %v8336
        %v9425 = vunpack.c.l.b16 %v8337
        %v9426 = vunpack.c.h.b16 %v8337
        %v9427 = vunpack.c.l.b16 %v8338
        %v9428 = vunpack.c.h.b16 %v8338
        %v9429 = vunpack.c.l.b16 %v8339
        %v9430 = vunpack.c.h.b16 %v8339
        %v9431 = vunpack.c.l.b16 %v8340
        %v9432 = vunpack.c.h.b16 %v8340
        %v9433 = vunpack.c.l.b16 %v8341
        %v9434 = vunpack.c.h.b16 %v8341
        %v9435 = vunpack.c.l.b16 %v8342
        %v9436 = vunpack.c.h.b16 %v8342
        %v9437 = vunpack.c.l.b16 %v8343
        %v9438 = vunpack.c.h.b16 %v8343
        %v9439 = vunpack.c.l.b16 %v8344
        %v9440 = vunpack.c.h.b16 %v8344
        %v9441 = vunpack.c.l.b16 %v8345
        %v9442 = vunpack.c.h.b16 %v8345
        %v9443 = vunpack.c.l.b16 %v8346
        %v9444 = vunpack.c.h.b16 %v8346
        %v9445 = vunpack.c.l.b16 %v8347
        %v9446 = vunpack.c.h.b16 %v8347
        %v9447 = vunpack.c.l.b16 %v8348
        %v9448 = vunpack.c.h.b16 %v8348
        %v9449 = vunpack.c.l.b16 %v8349
        %v9450 = vunpack.c.h.b16 %v8349
        %v9451 = vunpack.c.l.b16 %v8350
        %v9452 = vunpack.c.h.b16 %v8350
        %v9453 = vunpack.c.l.b16 %v8351
        %v9454 = vunpack.c.h.b16 %v8351
        %v9455 = vunpack.c.l.b16 %v8352
        %v9456 = vunpack.c.h.b16 %v8352
        %v9457 = vunpack.c.l.b16 %v8353
        %v9458 = vunpack.c.h.b16 %v8353
        %v9459 = vunpack.c.l.b16 %v8354
        %v9460 = vunpack.c.h.b16 %v8354
        %v9461 = vunpack.c.l.b16 %v8355
        %v9462 = vunpack.c.h.b16 %v8355
        %v9463 = vunpack.c.l.b16 %v8356
        %v9464 = vunpack.c.h.b16 %v8356
        %v9465 = vunpack.c.l.b16 %v8357
        %v9466 = vunpack.c.h.b16 %v8357
        %v9467 = vunpack.c.l.b16 %v8358
        %v9468 = vunpack.c.h.b16 %v8358
        %v9469 = vunpack.c.l.b16 %v8359
        %v9470 = vunpack.c.h.b16 %v8359
        %v9471 = vunpack.c.l.b16 %v8360
        %v9472 = vunpack.c.h.b16 %v8360
        %v9473 = vunpack.c.l.b16 %v8361
        %v9474 = vunpack.c.h.b16 %v8361
        %v9475 = vunpack.c.l.b16 %v8362
        %v9476 = vunpack.c.h.b16 %v8362
        %v9477 = vunpack.c.l.b16 %v8363
        %v9478 = vunpack.c.h.b16 %v8363
        %v9479 = vunpack.c.l.b16 %v8364
        %v9480 = vunpack.c.h.b16 %v8364
        %v9481 = vunpack.c.l.b16 %v8365
        %v9482 = vunpack.c.h.b16 %v8365
        %v9483 = vunpack.c.l.b16 %v8366
        %v9484 = vunpack.c.h.b16 %v8366
        %v9485 = vunpack.c.l.b16 %v8367
        %v9486 = vunpack.c.h.b16 %v8367
        %v9487 = vunpack.c.l.b16 %v8368
        %v9488 = vunpack.c.h.b16 %v8368
        %v9489 = vunpack.c.l.b16 %v8369
        %v9490 = vunpack.c.h.b16 %v8369
        %v9491 = vunpack.c.l.b16 %v8370
        %v9492 = vunpack.c.h.b16 %v8370
        %v9493 = vunpack.c.l.b16 %v8371
        %v9494 = vunpack.c.h.b16 %v8371
        %v9495 = vunpack.c.l.b16 %v8372
        %v9496 = vunpack.c.h.b16 %v8372
        %v9497 = vunpack.c.l.b16 %v8373
        %v9498 = vunpack.c.h.b16 %v8373
        %v9499 = vunpack.c.l.b16 %v8374
        %v9500 = vunpack.c.h.b16 %v8374
        %v9501 = vunpack.c.l.b16 %v8375
        %v9502 = vunpack.c.h.b16 %v8375
        %v9503 = vunpack.c.l.b16 %v8376
        %v9504 = vunpack.c.h.b16 %v8376
        %v9505 = vunpack.c.l.b16 %v8377
        %v9506 = vunpack.c.h.b16 %v8377
        %v9507 = vunpack.c.l.b16 %v8378
        %v9508 = vunpack.c.h.b16 %v8378
        %v9509 = vunpack.c.l.b16 %v8379
        %v9510 = vunpack.c.h.b16 %v8379
        %v9511 = vunpack.c.l.b16 %v8380
        %v9512 = vunpack.c.h.b16 %v8380
        %v9513 = vunpack.c.l.b16 %v8381
        %v9514 = vunpack.c.h.b16 %v8381
        %v9515 = vunpack.c.l.b16 %v8382
        %v9516 = vunpack.c.h.b16 %v8382
        %v9517 = vunpack.c.l.b16 %v8383
        %v9518 = vunpack.c.h.b16 %v8383
        %v9519 = vunpack.c.l.b16 %v8384
        %v9520 = vunpack.c.h.b16 %v8384
        %v9521 = vunpack.c.l.b16 %v8385
        %v9522 = vunpack.c.h.b16 %v8385
        %v9523 = vunpack.c.l.b16 %v8386
        %v9524 = vunpack.c.h.b16 %v8386
        %v9525 = vunpack.c.l.b16 %v8387
        %v9526 = vunpack.c.h.b16 %v8387
        %v9527 = vunpack.c.l.b16 %v8388
        %v9528 = vunpack.c.h.b16 %v8388
        %v9529 = vunpack.c.l.b16 %v8389
        %v9530 = vunpack.c.h.b16 %v8389
        %v9531 = vunpack.c.l.b16 %v8390
        %v9532 = vunpack.c.h.b16 %v8390
        %v9533 = vunpack.c.l.b16 %v8391
        %v9534 = vunpack.c.h.b16 %v8391
        %v9535 = vunpack.c.l.b16 %v8392
        %v9536 = vunpack.c.h.b16 %v8392
        %v9537 = vunpack.c.l.b16 %v8393
        %v9538 = vunpack.c.h.b16 %v8393
        %v9539 = vunpack.c.l.b16 %v8394
        %v9540 = vunpack.c.h.b16 %v8394
        %v9541 = vunpack.c.l.b16 %v8395
        %v9542 = vunpack.c.h.b16 %v8395
        %v9543 = vunpack.c.l.b16 %v8396
        %v9544 = vunpack.c.h.b16 %v8396
        %v9545 = vunpack.c.l.b16 %v8397
        %v9546 = vunpack.c.h.b16 %v8397
        %v9547 = vunpack.c.l.b16 %v8398
        %v9548 = vunpack.c.h.b16 %v8398
        %v9549 = vunpack.c.l.b16 %v8399
        %v9550 = vunpack.c.h.b16 %v8399
        %v9551 = vunpack.c.l.b16 %v8400
        %v9552 = vunpack.c.h.b16 %v8400
        %v9553 = vunpack.c.l.b16 %v8401
        %v9554 = vunpack.c.h.b16 %v8401
        %v9555 = vunpack.c.l.b16 %v8402
        %v9556 = vunpack.c.h.b16 %v8402
        %v9557 = vunpack.c.l.b16 %v8403
        %v9558 = vunpack.c.h.b16 %v8403
        %v9559 = vunpack.c.l.b16 %v8404
        %v9560 = vunpack.c.h.b16 %v8404
        %v9561 = vunpack.c.l.b16 %v8405
        %v9562 = vunpack.c.h.b16 %v8405
        %v9563 = vunpack.c.l.b16 %v8406
        %v9564 = vunpack.c.h.b16 %v8406
        %v9565 = vunpack.c.l.b16 %v8407
        %v9566 = vunpack.c.h.b16 %v8407
        %v9567 = vunpack.c.l.b16 %v8408
        %v9568 = vunpack.c.h.b16 %v8408
        %v9569 = vunpack.c.l.b16 %v8409
        %v9570 = vunpack.c.h.b16 %v8409
        %v9571 = vunpack.c.l.b16 %v8410
        %v9572 = vunpack.c.h.b16 %v8410
        %v9573 = vunpack.c.l.b16 %v8411
        %v9574 = vunpack.c.h.b16 %v8411
        %v9575 = vunpack.c.l.b16 %v8412
        %v9576 = vunpack.c.h.b16 %v8412
        %v9577 = vunpack.c.l.b16 %v8413
        %v9578 = vunpack.c.h.b16 %v8413
        %v9579 = vunpack.c.l.b16 %v8414
        %v9580 = vunpack.c.h.b16 %v8414
        %v9581 = vunpack.c.l.b16 %v8415
        %v9582 = vunpack.c.h.b16 %v8415
        %v9583 = vunpack.c.l.b16 %v8416
        %v9584 = vunpack.c.h.b16 %v8416
        %v9585 = vunpack.c.l.b16 %v8417
        %v9586 = vunpack.c.h.b16 %v8417
        %v9587 = vunpack.c.l.b16 %v8418
        %v9588 = vunpack.c.h.b16 %v8418
        %v9589 = vunpack.c.l.b16 %v8419
        %v9590 = vunpack.c.h.b16 %v8419
        %v9591 = vunpack.c.l.b16 %v8420
        %v9592 = vunpack.c.h.b16 %v8420
        %v9593 = vunpack.c.l.b16 %v8421
        %v9594 = vunpack.c.h.b16 %v8421
        %v9595 = vunpack.c.l.b16 %v8422
        %v9596 = vunpack.c.h.b16 %v8422
        %v9597 = vunpack.c.l.b16 %v8423
        %v9598 = vunpack.c.h.b16 %v8423
        %v9599 = vunpack.c.l.b16 %v8424
        %v9600 = vunpack.c.h.b16 %v8424
        %v9601 = vunpack.c.l.b16 %v8425
        %v9602 = vunpack.c.h.b16 %v8425
        %v9603 = vunpack.c.l.b16 %v8426
        %v9604 = vunpack.c.h.b16 %v8426
        %v9605 = vunpack.c.l.b16 %v8427
        %v9606 = vunpack.c.h.b16 %v8427
        %v9607 = vunpack.c.l.b16 %v8428
        %v9608 = vunpack.c.h.b16 %v8428
        %v9609 = vunpack.c.l.b16 %v8429
        %v9610 = vunpack.c.h.b16 %v8429
        %v9611 = vunpack.c.l.b16 %v8430
        %v9612 = vunpack.c.h.b16 %v8430
        %v9613 = vunpack.c.l.b16 %v8431
        %v9614 = vunpack.c.h.b16 %v8431
        %v9615 = vunpack.c.l.b16 %v8432
        %v9616 = vunpack.c.h.b16 %v8432
        %v9617 = vunpack.c.l.b16 %v8433
        %v9618 = vunpack.c.h.b16 %v8433
        %v9619 = vunpack.c.l.b16 %v8434
        %v9620 = vunpack.c.h.b16 %v8434
        %v9621 = vunpack.c.l.b16 %v8435
        %v9622 = vunpack.c.h.b16 %v8435
        %v9623 = vunpack.c.l.b16 %v8436
        %v9624 = vunpack.c.h.b16 %v8436
        %v9625 = vunpack.c.l.b16 %v8437
        %v9626 = vunpack.c.h.b16 %v8437
        %v9627 = vunpack.c.l.b16 %v8438
        %v9628 = vunpack.c.h.b16 %v8438
        %v9629 = vunpack.c.l.b16 %v8439
        %v9630 = vunpack.c.h.b16 %v8439
        %v9631 = vunpack.c.l.b16 %v8440
        %v9632 = vunpack.c.h.b16 %v8440
        %v9633 = vunpack.c.l.b16 %v8441
        %v9634 = vunpack.c.h.b16 %v8441
        %v9635 = vunpack.c.l.b16 %v8442
        %v9636 = vunpack.c.h.b16 %v8442
        %v9637 = vunpack.c.l.b16 %v8443
        %v9638 = vunpack.c.h.b16 %v8443
        %v9639 = vunpack.c.l.b16 %v8444
        %v9640 = vunpack.c.h.b16 %v8444
        %v9641 = vunpack.c.l.b16 %v8445
        %v9642 = vunpack.c.h.b16 %v8445
        %v9643 = vpack.c.b16 %v8883, %v8875
        %v9644 = vpack.c.b16 %v8884, %v8876
        %v9645 = vpack.c.b16 %v8885, %v8877
        %v9646 = vpack.c.b16 %v8886, %v8878
        %v9647 = vpack.c.b16 %v8887, %v8879
        %v9648 = vpack.c.b16 %v8888, %v8880
        %v9649 = vpack.c.b16 %v8889, %v8881
        %v9650 = vpack.c.b16 %v8890, %v8882
        %v9651 = vpack.c.b16 %v8899, %v8891
        %v9652 = vpack.c.b16 %v8900, %v8892
        %v9653 = vpack.c.b16 %v8901, %v8893
        %v9654 = vpack.c.b16 %v8902, %v8894
        %v9655 = vpack.c.b16 %v8903, %v8895
        %v9656 = vpack.c.b16 %v8904, %v8896
        %v9657 = vpack.c.b16 %v8905, %v8897
        %v9658 = vpack.c.b16 %v8906, %v8898
        %v9659 = vpack.c.b16 %v8915, %v8907
        %v9660 = vpack.c.b16 %v8916, %v8908
        %v9661 = vpack.c.b16 %v8917, %v8909
        %v9662 = vpack.c.b16 %v8918, %v8910
        %v9663 = vpack.c.b16 %v8919, %v8911
        %v9664 = vpack.c.b16 %v8920, %v8912
        %v9665 = vpack.c.b16 %v8921, %v8913
        %v9666 = vpack.c.b16 %v8922, %v8914
        %v9667 = vpack.c.b16 %v8931, %v8923
        %v9668 = vpack.c.b16 %v8932, %v8924
        %v9669 = vpack.c.b16 %v8933, %v8925
        %v9670 = vpack.c.b16 %v8934, %v8926
        %v9671 = vpack.c.b16 %v8935, %v8927
        %v9672 = vpack.c.b16 %v8936, %v8928
        %v9673 = vpack.c.b16 %v8937, %v8929
        %v9674 = vpack.c.b16 %v8938, %v8930
        %v9675 = vpack.c.b16 %v8947, %v8939
        %v9676 = vpack.c.b16 %v8948, %v8940
        %v9677 = vpack.c.b16 %v8949, %v8941
        %v9678 = vpack.c.b16 %v8950, %v8942
        %v9679 = vpack.c.b16 %v8951, %v8943
        %v9680 = vpack.c.b16 %v8952, %v8944
        %v9681 = vpack.c.b16 %v8953, %v8945
        %v9682 = vpack.c.b16 %v8954, %v8946
        %v9683 = vpack.c.b16 %v8963, %v8955
        %v9684 = vpack.c.b16 %v8964, %v8956
        %v9685 = vpack.c.b16 %v8965, %v8957
        %v9686 = vpack.c.b16 %v8966, %v8958
        %v9687 = vpack.c.b16 %v8967, %v8959
        %v9688 = vpack.c.b16 %v8968, %v8960
        %v9689 = vpack.c.b16 %v8969, %v8961
        %v9690 = vpack.c.b16 %v8970, %v8962
        %v9691 = vpack.c.b16 %v8979, %v8971
        %v9692 = vpack.c.b16 %v8980, %v8972
        %v9693 = vpack.c.b16 %v8981, %v8973
        %v9694 = vpack.c.b16 %v8982, %v8974
        %v9695 = vpack.c.b16 %v8983, %v8975
        %v9696 = vpack.c.b16 %v8984, %v8976
        %v9697 = vpack.c.b16 %v8985, %v8977
        %v9698 = vpack.c.b16 %v8986, %v8978
        %v9699 = vpack.c.b16 %v8995, %v8987
        %v9700 = vpack.c.b16 %v8996, %v8988
        %v9701 = vpack.c.b16 %v8997, %v8989
        %v9702 = vpack.c.b16 %v8998, %v8990
        %v9703 = vpack.c.b16 %v8999, %v8991
        %v9704 = vpack.c.b16 %v9000, %v8992
        %v9705 = vpack.c.b16 %v9001, %v8993
        %v9706 = vpack.c.b16 %v9002, %v8994
        %v9707 = vpack.c.b16 %v9011, %v9003
        %v9708 = vpack.c.b16 %v9012, %v9004
        %v9709 = vpack.c.b16 %v9013, %v9005
        %v9710 = vpack.c.b16 %v9014, %v9006
        %v9711 = vpack.c.b16 %v9015, %v9007
        %v9712 = vpack.c.b16 %v9016, %v9008
        %v9713 = vpack.c.b16 %v9017, %v9009
        %v9714 = vpack.c.b16 %v9018, %v9010
        %v9715 = vpack.c.b16 %v9027, %v9019
        %v9716 = vpack.c.b16 %v9028, %v9020
        %v9717 = vpack.c.b16 %v9029, %v9021
        %v9718 = vpack.c.b16 %v9030, %v9022
        %v9719 = vpack.c.b16 %v9031, %v9023
        %v9720 = vpack.c.b16 %v9032, %v9024
        %v9721 = vpack.c.b16 %v9033, %v9025
        %v9722 = vpack.c.b16 %v9034, %v9026
        %v9723 = vpack.c.b16 %v9043, %v9035
        %v9724 = vpack.c.b16 %v9044, %v9036
        %v9725 = vpack.c.b16 %v9045, %v9037
        %v9726 = vpack.c.b16 %v9046, %v9038
        %v9727 = vpack.c.b16 %v9047, %v9039
        %v9728 = vpack.c.b16 %v9048, %v9040
        %v9729 = vpack.c.b16 %v9049, %v9041
        %v9730 = vpack.c.b16 %v9050, %v9042
        %v9731 = vpack.c.b16 %v9059, %v9051
        %v9732 = vpack.c.b16 %v9060, %v9052
        %v9733 = vpack.c.b16 %v9061, %v9053
        %v9734 = vpack.c.b16 %v9062, %v9054
        %v9735 = vpack.c.b16 %v9063, %v9055
        %v9736 = vpack.c.b16 %v9064, %v9056
        %v9737 = vpack.c.b16 %v9065, %v9057
        %v9738 = vpack.c.b16 %v9066, %v9058
        %v9739 = vpack.c.b16 %v9075, %v9067
        %v9740 = vpack.c.b16 %v9076, %v9068
        %v9741 = vpack.c.b16 %v9077, %v9069
        %v9742 = vpack.c.b16 %v9078, %v9070
        %v9743 = vpack.c.b16 %v9079, %v9071
        %v9744 = vpack.c.b16 %v9080, %v9072
        %v9745 = vpack.c.b16 %v9081, %v9073
        %v9746 = vpack.c.b16 %v9082, %v9074
        %v9747 = vpack.c.b16 %v9091, %v9083
        %v9748 = vpack.c.b16 %v9092, %v9084
        %v9749 = vpack.c.b16 %v9093, %v9085
        %v9750 = vpack.c.b16 %v9094, %v9086
        %v9751 = vpack.c.b16 %v9095, %v9087
        %v9752 = vpack.c.b16 %v9096, %v9088
        %v9753 = vpack.c.b16 %v9097, %v9089
        %v9754 = vpack.c.b16 %v9098, %v9090
        %v9755 = vpack.c.b16 %v9107, %v9099
        %v9756 = vpack.c.b16 %v9108, %v9100
        %v9757 = vpack.c.b16 %v9109, %v9101
        %v9758 = vpack.c.b16 %v9110, %v9102
        %v9759 = vpack.c.b16 %v9111, %v9103
        %v9760 = vpack.c.b16 %v9112, %v9104
        %v9761 = vpack.c.b16 %v9113, %v9105
        %v9762 = vpack.c.b16 %v9114, %v9106
        %v9763 = vpack.c.b16 %v9123, %v9115
        %v9764 = vpack.c.b16 %v9124, %v9116
        %v9765 = vpack.c.b16 %v9125, %v9117
        %v9766 = vpack.c.b16 %v9126, %v9118
        %v9767 = vpack.c.b16 %v9127, %v9119
        %v9768 = vpack.c.b16 %v9128, %v9120
        %v9769 = vpack.c.b16 %v9129, %v9121
        %v9770 = vpack.c.b16 %v9130, %v9122
        %v9771 = vpack.c.b16 %v9139, %v9131
        %v9772 = vpack.c.b16 %v9140, %v9132
        %v9773 = vpack.c.b16 %v9141, %v9133
        %v9774 = vpack.c.b16 %v9142, %v9134
        %v9775 = vpack.c.b16 %v9143, %v9135
        %v9776 = vpack.c.b16 %v9144, %v9136
        %v9777 = vpack.c.b16 %v9145, %v9137
        %v9778 = vpack.c.b16 %v9146, %v9138
        %v9779 = vpack.c.b16 %v9155, %v9147
        %v9780 = vpack.c.b16 %v9156, %v9148
        %v9781 = vpack.c.b16 %v9157, %v9149
        %v9782 = vpack.c.b16 %v9158, %v9150
        %v9783 = vpack.c.b16 %v9159, %v9151
        %v9784 = vpack.c.b16 %v9160, %v9152
        %v9785 = vpack.c.b16 %v9161, %v9153
        %v9786 = vpack.c.b16 %v9162, %v9154
        %v9787 = vpack.c.b16 %v9171, %v9163
        %v9788 = vpack.c.b16 %v9172, %v9164
        %v9789 = vpack.c.b16 %v9173, %v9165
        %v9790 = vpack.c.b16 %v9174, %v9166
        %v9791 = vpack.c.b16 %v9175, %v9167
        %v9792 = vpack.c.b16 %v9176, %v9168
        %v9793 = vpack.c.b16 %v9177, %v9169
        %v9794 = vpack.c.b16 %v9178, %v9170
        %v9795 = vpack.c.b16 %v9187, %v9179
        %v9796 = vpack.c.b16 %v9188, %v9180
        %v9797 = vpack.c.b16 %v9189, %v9181
        %v9798 = vpack.c.b16 %v9190, %v9182
        %v9799 = vpack.c.b16 %v9191, %v9183
        %v9800 = vpack.c.b16 %v9192, %v9184
        %v9801 = vpack.c.b16 %v9193, %v9185
        %v9802 = vpack.c.b16 %v9194, %v9186
        %v9803 = vpack.c.b16 %v9203, %v9195
        %v9804 = vpack.c.b16 %v9204, %v9196
        %v9805 = vpack.c.b16 %v9205, %v9197
        %v9806 = vpack.c.b16 %v9206, %v9198
        %v9807 = vpack.c.b16 %v9207, %v9199
        %v9808 = vpack.c.b16 %v9208, %v9200
        %v9809 = vpack.c.b16 %v9209, %v9201
        %v9810 = vpack.c.b16 %v9210, %v9202
        %v9811 = vpack.c.b16 %v9219, %v9211
        %v9812 = vpack.c.b16 %v9220, %v9212
        %v9813 = vpack.c.b16 %v9221, %v9213
        %v9814 = vpack.c.b16 %v9222, %v9214
        %v9815 = vpack.c.b16 %v9223, %v9215
        %v9816 = vpack.c.b16 %v9224, %v9216
        %v9817 = vpack.c.b16 %v9225, %v9217
        %v9818 = vpack.c.b16 %v9226, %v9218
        %v9819 = vpack.c.b16 %v9235, %v9227
        %v9820 = vpack.c.b16 %v9236, %v9228
        %v9821 = vpack.c.b16 %v9237, %v9229
        %v9822 = vpack.c.b16 %v9238, %v9230
        %v9823 = vpack.c.b16 %v9239, %v9231
        %v9824 = vpack.c.b16 %v9240, %v9232
        %v9825 = vpack.c.b16 %v9241, %v9233
        %v9826 = vpack.c.b16 %v9242, %v9234
        %v9827 = vpack.c.b16 %v9251, %v9243
        %v9828 = vpack.c.b16 %v9252, %v9244
        %v9829 = vpack.c.b16 %v9253, %v9245
        %v9830 = vpack.c.b16 %v9254, %v9246
        %v9831 = vpack.c.b16 %v9255, %v9247
        %v9832 = vpack.c.b16 %v9256, %v9248
        %v9833 = vpack.c.b16 %v9257, %v9249
        %v9834 = vpack.c.b16 %v9258, %v9250
        %v9835 = vpack.c.b16 %v9267, %v9259
        %v9836 = vpack.c.b16 %v9268, %v9260
        %v9837 = vpack.c.b16 %v9269, %v9261
        %v9838 = vpack.c.b16 %v9270, %v9262
        %v9839 = vpack.c.b16 %v9271, %v9263
        %v9840 = vpack.c.b16 %v9272, %v9264
        %v9841 = vpack.c.b16 %v9273, %v9265
        %v9842 = vpack.c.b16 %v9274, %v9266
        %v9843 = vpack.c.b16 %v9283, %v9275
        %v9844 = vpack.c.b16 %v9284, %v9276
        %v9845 = vpack.c.b16 %v9285, %v9277
        %v9846 = vpack.c.b16 %v9286, %v9278
        %v9847 = vpack.c.b16 %v9287, %v9279
        %v9848 = vpack.c.b16 %v9288, %v9280
        %v9849 = vpack.c.b16 %v9289, %v9281
        %v9850 = vpack.c.b16 %v9290, %v9282
        %v9851 = vpack.c.b16 %v9299, %v9291
        %v9852 = vpack.c.b16 %v9300, %v9292
        %v9853 = vpack.c.b16 %v9301, %v9293
        %v9854 = vpack.c.b16 %v9302, %v9294
        %v9855 = vpack.c.b16 %v9303, %v9295
        %v9856 = vpack.c.b16 %v9304, %v9296
        %v9857 = vpack.c.b16 %v9305, %v9297
        %v9858 = vpack.c.b16 %v9306, %v9298
        %v9859 = vpack.c.b16 %v9315, %v9307
        %v9860 = vpack.c.b16 %v9316, %v9308
        %v9861 = vpack.c.b16 %v9317, %v9309
        %v9862 = vpack.c.b16 %v9318, %v9310
        %v9863 = vpack.c.b16 %v9319, %v9311
        %v9864 = vpack.c.b16 %v9320, %v9312
        %v9865 = vpack.c.b16 %v9321, %v9313
        %v9866 = vpack.c.b16 %v9322, %v9314
        %v9867 = vpack.c.b16 %v9331, %v9323
        %v9868 = vpack.c.b16 %v9332, %v9324
        %v9869 = vpack.c.b16 %v9333, %v9325
        %v9870 = vpack.c.b16 %v9334, %v9326
        %v9871 = vpack.c.b16 %v9335, %v9327
        %v9872 = vpack.c.b16 %v9336, %v9328
        %v9873 = vpack.c.b16 %v9337, %v9329
        %v9874 = vpack.c.b16 %v9338, %v9330
        %v9875 = vpack.c.b16 %v9347, %v9339
        %v9876 = vpack.c.b16 %v9348, %v9340
        %v9877 = vpack.c.b16 %v9349, %v9341
        %v9878 = vpack.c.b16 %v9350, %v9342
        %v9879 = vpack.c.b16 %v9351, %v9343
        %v9880 = vpack.c.b16 %v9352, %v9344
        %v9881 = vpack.c.b16 %v9353, %v9345
        %v9882 = vpack.c.b16 %v9354, %v9346
        %v9883 = vpack.c.b16 %v9363, %v9355
        %v9884 = vpack.c.b16 %v9364, %v9356
        %v9885 = vpack.c.b16 %v9365, %v9357
        %v9886 = vpack.c.b16 %v9366, %v9358
        %v9887 = vpack.c.b16 %v9367, %v9359
        %v9888 = vpack.c.b16 %v9368, %v9360
        %v9889 = vpack.c.b16 %v9369, %v9361
        %v9890 = vpack.c.b16 %v9370, %v9362
        %v9891 = vpack.c.b16 %v9379, %v9371
        %v9892 = vpack.c.b16 %v9380, %v9372
        %v9893 = vpack.c.b16 %v9381, %v9373
        %v9894 = vpack.c.b16 %v9382, %v9374
        %v9895 = vpack.c.b16 %v9383, %v9375
        %v9896 = vpack.c.b16 %v9384, %v9376
        %v9897 = vpack.c.b16 %v9385, %v9377
        %v9898 = vpack.c.b16 %v9386, %v9378
        %v9899 = vpack.c.b16 %v9395, %v9387
        %v9900 = vpack.c.b16 %v9396, %v9388
        %v9901 = vpack.c.b16 %v9397, %v9389
        %v9902 = vpack.c.b16 %v9398, %v9390
        %v9903 = vpack.c.b16 %v9399, %v9391
        %v9904 = vpack.c.b16 %v9400, %v9392
        %v9905 = vpack.c.b16 %v9401, %v9393
        %v9906 = vpack.c.b16 %v9402, %v9394
        %v9907 = vpack.c.b16 %v9411, %v9403
        %v9908 = vpack.c.b16 %v9412, %v9404
        %v9909 = vpack.c.b16 %v9413, %v9405
        %v9910 = vpack.c.b16 %v9414, %v9406
        %v9911 = vpack.c.b16 %v9415, %v9407
        %v9912 = vpack.c.b16 %v9416, %v9408
        %v9913 = vpack.c.b16 %v9417, %v9409
        %v9914 = vpack.c.b16 %v9418, %v9410
        %v9915 = vpack.c.b16 %v9427, %v9419
        %v9916 = vpack.c.b16 %v9428, %v9420
        %v9917 = vpack.c.b16 %v9429, %v9421
        %v9918 = vpack.c.b16 %v9430, %v9422
        %v9919 = vpack.c.b16 %v9431, %v9423
        %v9920 = vpack.c.b16 %v9432, %v9424
        %v9921 = vpack.c.b16 %v9433, %v9425
        %v9922 = vpack.c.b16 %v9434, %v9426
        %v9923 = vpack.c.b16 %v9443, %v9435
        %v9924 = vpack.c.b16 %v9444, %v9436
        %v9925 = vpack.c.b16 %v9445, %v9437
        %v9926 = vpack.c.b16 %v9446, %v9438
        %v9927 = vpack.c.b16 %v9447, %v9439
        %v9928 = vpack.c.b16 %v9448, %v9440
        %v9929 = vpack.c.b16 %v9449, %v9441
        %v9930 = vpack.c.b16 %v9450, %v9442
        %v9931 = vpack.c.b16 %v9459, %v9451
        %v9932 = vpack.c.b16 %v9460, %v9452
        %v9933 = vpack.c.b16 %v9461, %v9453
        %v9934 = vpack.c.b16 %v9462, %v9454
        %v9935 = vpack.c.b16 %v9463, %v9455
        %v9936 = vpack.c.b16 %v9464, %v9456
        %v9937 = vpack.c.b16 %v9465, %v9457
        %v9938 = vpack.c.b16 %v9466, %v9458
        %v9939 = vpack.c.b16 %v9475, %v9467
        %v9940 = vpack.c.b16 %v9476, %v9468
        %v9941 = vpack.c.b16 %v9477, %v9469
        %v9942 = vpack.c.b16 %v9478, %v9470
        %v9943 = vpack.c.b16 %v9479, %v9471
        %v9944 = vpack.c.b16 %v9480, %v9472
        %v9945 = vpack.c.b16 %v9481, %v9473
        %v9946 = vpack.c.b16 %v9482, %v9474
        %v9947 = vpack.c.b16 %v9491, %v9483
        %v9948 = vpack.c.b16 %v9492, %v9484
        %v9949 = vpack.c.b16 %v9493, %v9485
        %v9950 = vpack.c.b16 %v9494, %v9486
        %v9951 = vpack.c.b16 %v9495, %v9487
        %v9952 = vpack.c.b16 %v9496, %v9488
        %v9953 = vpack.c.b16 %v9497, %v9489
        %v9954 = vpack.c.b16 %v9498, %v9490
        %v9955 = vpack.c.b16 %v9507, %v9499
        %v9956 = vpack.c.b16 %v9508, %v9500
        %v9957 = vpack.c.b16 %v9509, %v9501
        %v9958 = vpack.c.b16 %v9510, %v9502
        %v9959 = vpack.c.b16 %v9511, %v9503
        %v9960 = vpack.c.b16 %v9512, %v9504
        %v9961 = vpack.c.b16 %v9513, %v9505
        %v9962 = vpack.c.b16 %v9514, %v9506
        %v9963 = vpack.c.b16 %v9523, %v9515
        %v9964 = vpack.c.b16 %v9524, %v9516
        %v9965 = vpack.c.b16 %v9525, %v9517
        %v9966 = vpack.c.b16 %v9526, %v9518
        %v9967 = vpack.c.b16 %v9527, %v9519
        %v9968 = vpack.c.b16 %v9528, %v9520
        %v9969 = vpack.c.b16 %v9529, %v9521
        %v9970 = vpack.c.b16 %v9530, %v9522
        %v9971 = vpack.c.b16 %v9539, %v9531
        %v9972 = vpack.c.b16 %v9540, %v9532
        %v9973 = vpack.c.b16 %v9541, %v9533
        %v9974 = vpack.c.b16 %v9542, %v9534
        %v9975 = vpack.c.b16 %v9543, %v9535
        %v9976 = vpack.c.b16 %v9544, %v9536
        %v9977 = vpack.c.b16 %v9545, %v9537
        %v9978 = vpack.c.b16 %v9546, %v9538
        %v9979 = vpack.c.b16 %v9555, %v9547
        %v9980 = vpack.c.b16 %v9556, %v9548
        %v9981 = vpack.c.b16 %v9557, %v9549
        %v9982 = vpack.c.b16 %v9558, %v9550
        %v9983 = vpack.c.b16 %v9559, %v9551
        %v9984 = vpack.c.b16 %v9560, %v9552
        %v9985 = vpack.c.b16 %v9561, %v9553
        %v9986 = vpack.c.b16 %v9562, %v9554
        %v9987 = vpack.c.b16 %v9571, %v9563
        %v9988 = vpack.c.b16 %v9572, %v9564
        %v9989 = vpack.c.b16 %v9573, %v9565
        %v9990 = vpack.c.b16 %v9574, %v9566
        %v9991 = vpack.c.b16 %v9575, %v9567
        %v9992 = vpack.c.b16 %v9576, %v9568
        %v9993 = vpack.c.b16 %v9577, %v9569
        %v9994 = vpack.c.b16 %v9578, %v9570
        %v9995 = vpack.c.b16 %v9587, %v9579
        %v9996 = vpack.c.b16 %v9588, %v9580
        %v9997 = vpack.c.b16 %v9589, %v9581
        %v9998 = vpack.c.b16 %v9590, %v9582
        %v9999 = vpack.c.b16 %v9591, %v9583
        %v10000 = vpack.c.b16 %v9592, %v9584
        %v10001 = vpack.c.b16 %v9593, %v9585
        %v10002 = vpack.c.b16 %v9594, %v9586
        %v10003 = vpack.c.b16 %v9603, %v9595
        %v10004 = vpack.c.b16 %v9604, %v9596
        %v10005 = vpack.c.b16 %v9605, %v9597
        %v10006 = vpack.c.b16 %v9606, %v9598
        %v10007 = vpack.c.b16 %v9607, %v9599
        %v10008 = vpack.c.b16 %v9608, %v9600
        %v10009 = vpack.c.b16 %v9609, %v9601
        %v10010 = vpack.c.b16 %v9610, %v9602
        %v10011 = vpack.c.b16 %v9619, %v9611
        %v10012 = vpack.c.b16 %v9620, %v9612
        %v10013 = vpack.c.b16 %v9621, %v9613
        %v10014 = vpack.c.b16 %v9622, %v9614
        %v10015 = vpack.c.b16 %v9623, %v9615
        %v10016 = vpack.c.b16 %v9624, %v9616
        %v10017 = vpack.c.b16 %v9625, %v9617
        %v10018 = vpack.c.b16 %v9626, %v9618
        %v10019 = vpack.c.b16 %v9635, %v9627
        %v10020 = vpack.c.b16 %v9636, %v9628
        %v10021 = vpack.c.b16 %v9637, %v9629
        %v10022 = vpack.c.b16 %v9638, %v9630
        %v10023 = vpack.c.b16 %v9639, %v9631
        %v10024 = vpack.c.b16 %v9640, %v9632
        %v10025 = vpack.c.b16 %v9641, %v9633
        %v10026 = vpack.c.b16 %v9642, %v9634
        %10411 = vmatprep.subr.bf16.mxu0 %v9644
        %10412 = vmatpush1.bf16.msra.mxu0 %v9643
        %10413 = vmatprep.subr.bf16.mxu0 %v9652
        %10414 = vmatpush1.bf16.msra.mxu0 %v9651
        %10415 = vmatprep.subr.bf16.mxu0 %v9660
        %10416 = vmatpush1.bf16.msra.mxu0 %v9659
        %10417 = vmatprep.subr.bf16.mxu0 %v9668
        %10418 = vmatpush1.bf16.msra.mxu0 %v9667
        %10419 = vmatprep.subr.bf16.mxu0 %v9676
        %10420 = vmatpush1.bf16.msra.mxu0 %v9675
        %10421 = vmatprep.subr.bf16.mxu0 %v9684
        %10422 = vmatpush1.bf16.msra.mxu0 %v9683
        %10423 = vmatprep.subr.bf16.mxu0 %v9692
        %10424 = vmatpush1.bf16.msra.mxu0 %v9691
        %10425 = vmatprep.subr.bf16.mxu0 %v9700
        %10426 = vmatpush1.bf16.msra.mxu0 %v9699
        %10427 = vmatprep.subr.bf16.mxu0 %v9708
        %10428 = vmatpush1.bf16.msra.mxu0 %v9707
        %10429 = vmatprep.subr.bf16.mxu0 %v9716
        %10430 = vmatpush1.bf16.msra.mxu0 %v9715
        %10431 = vmatprep.subr.bf16.mxu0 %v9724
        %10432 = vmatpush1.bf16.msra.mxu0 %v9723
        %10433 = vmatprep.subr.bf16.mxu0 %v9732
        %10434 = vmatpush1.bf16.msra.mxu0 %v9731
        %10435 = vmatprep.subr.bf16.mxu0 %v9740
        %10436 = vmatpush1.bf16.msra.mxu0 %v9739
        %10437 = vmatprep.subr.bf16.mxu0 %v9748
        %10438 = vmatpush1.bf16.msra.mxu0 %v9747
        %10439 = vmatprep.subr.bf16.mxu0 %v9756
        %10440 = vmatpush1.bf16.msra.mxu0 %v9755
        %10441 = vmatprep.subr.bf16.mxu0 %v9764
        %10442 = vmatpush1.bf16.msra.mxu0 %v9763
        %10443 = vmatprep.mubr.bf16.mxu0 %v8057
        %10444 = vmatmul.mubr.bf16.gmra.mrb[0].mxu0 %v8056
        %v10445 = vpop.f32.mrb[0].mxu0
        %v10446 = vadd.f32 %v8454, %v10445
        %v10447 = vpop.f32.mrb[0].mxu0
        %v10448 = vadd.f32 %v8458, %v10447
        %v10449 = vpop.f32.mrb[0].mxu0
        %v10450 = vadd.f32 %v8454, %v10449
        %v10451 = vpop.f32.mrb[0].mxu0
        %v10452 = vadd.f32 %v8458, %v10451
        %10453 = vdwg.mxu0
        %10454 = vmatprep.subr.bf16.mxu0 %v9772
        %10455 = vmatpush1.bf16.msra.mxu0 %v9771
        %10456 = vmatprep.subr.bf16.mxu0 %v9780
        %10457 = vmatpush1.bf16.msra.mxu0 %v9779
        %10458 = vmatprep.subr.bf16.mxu0 %v9788
        %10459 = vmatpush1.bf16.msra.mxu0 %v9787
        %10460 = vmatprep.subr.bf16.mxu0 %v9796
        %10461 = vmatpush1.bf16.msra.mxu0 %v9795
        %10462 = vmatprep.subr.bf16.mxu0 %v9804
        %10463 = vmatpush1.bf16.msra.mxu0 %v9803
        %10464 = vmatprep.subr.bf16.mxu0 %v9812
        %10465 = vmatpush1.bf16.msra.mxu0 %v9811
        %10466 = vmatprep.subr.bf16.mxu0 %v9820
        %10467 = vmatpush1.bf16.msra.mxu0 %v9819
        %10468 = vmatprep.subr.bf16.mxu0 %v9828
        %10469 = vmatpush1.bf16.msra.mxu0 %v9827
        %10470 = vmatprep.subr.bf16.mxu0 %v9836
        %10471 = vmatpush1.bf16.msra.mxu0 %v9835
        %10472 = vmatprep.subr.bf16.mxu0 %v9844
        %10473 = vmatpush1.bf16.msra.mxu0 %v9843
        %10474 = vmatprep.subr.bf16.mxu0 %v9852
        %10475 = vmatpush1.bf16.msra.mxu0 %v9851
        %10476 = vmatprep.subr.bf16.mxu0 %v9860
        %10477 = vmatpush1.bf16.msra.mxu0 %v9859
        %10478 = vmatprep.subr.bf16.mxu0 %v9868
        %10479 = vmatpush1.bf16.msra.mxu0 %v9867
        %10480 = vmatprep.subr.bf16.mxu0 %v9876
        %10481 = vmatpush1.bf16.msra.mxu0 %v9875
        %10482 = vmatprep.subr.bf16.mxu0 %v9884
        %10483 = vmatpush1.bf16.msra.mxu0 %v9883
        %10484 = vmatprep.subr.bf16.mxu0 %v9892
        %10485 = vmatpush1.bf16.msra.mxu0 %v9891
        %10486 = vmatprep.mubr.bf16.mxu0 %v8059
        %10487 = vmatmul.mubr.bf16.gmra.mrb[0].mxu0 %v8058
        %v10488 = vpop.f32.mrb[0].mxu0
        %v10489 = vadd.f32 %v10446, %v10488
        %v10490 = vpop.f32.mrb[0].mxu0
        %v10491 = vadd.f32 %v10448, %v10490
        %v10492 = vpop.f32.mrb[0].mxu0
        %v10493 = vadd.f32 %v10450, %v10492
        %v10494 = vpop.f32.mrb[0].mxu0
        %v10495 = vadd.f32 %v10452, %v10494
        %10496 = vdwg.mxu0
        %10497 = vmatprep.subr.bf16.mxu0 %v9900
        %10498 = vmatpush1.bf16.msra.mxu0 %v9899
        %10499 = vmatprep.subr.bf16.mxu0 %v9908
        %10500 = vmatpush1.bf16.msra.mxu0 %v9907
        %10501 = vmatprep.subr.bf16.mxu0 %v9916
        %10502 = vmatpush1.bf16.msra.mxu0 %v9915
        %10503 = vmatprep.subr.bf16.mxu0 %v9924
        %10504 = vmatpush1.bf16.msra.mxu0 %v9923
        %10505 = vmatprep.subr.bf16.mxu0 %v9932
        %10506 = vmatpush1.bf16.msra.mxu0 %v9931
        %10507 = vmatprep.subr.bf16.mxu0 %v9940
        %10508 = vmatpush1.bf16.msra.mxu0 %v9939
        %10509 = vmatprep.subr.bf16.mxu0 %v9948
        %10510 = vmatpush1.bf16.msra.mxu0 %v9947
        %10511 = vmatprep.subr.bf16.mxu0 %v9956
        %10512 = vmatpush1.bf16.msra.mxu0 %v9955
        %10513 = vmatprep.subr.bf16.mxu0 %v9964
        %10514 = vmatpush1.bf16.msra.mxu0 %v9963
        %10515 = vmatprep.subr.bf16.mxu0 %v9972
        %10516 = vmatpush1.bf16.msra.mxu0 %v9971
        %10517 = vmatprep.subr.bf16.mxu0 %v9980
        %10518 = vmatpush1.bf16.msra.mxu0 %v9979
        %10519 = vmatprep.subr.bf16.mxu0 %v9988
        %10520 = vmatpush1.bf16.msra.mxu0 %v9987
        %10521 = vmatprep.subr.bf16.mxu0 %v9996
        %10522 = vmatpush1.bf16.msra.mxu0 %v9995
        %10523 = vmatprep.subr.bf16.mxu0 %v10004
        %10524 = vmatpush1.bf16.msra.mxu0 %v10003
        %10525 = vmatprep.subr.bf16.mxu0 %v10012
        %10526 = vmatpush1.bf16.msra.mxu0 %v10011
        %10527 = vmatprep.subr.bf16.mxu0 %v10020
        %10528 = vmatpush1.bf16.msra.mxu0 %v10019
        %10529 = vmatprep.mubr.bf16.mxu0 %v8061
        %10530 = vmatmul.mubr.bf16.gmra.mrb[0].mxu0 %v8060
        %v10531 = vpop.f32.mrb[0].mxu0
        %v10532 = vadd.f32 %v10489, %v10531
        %v10533 = vpop.f32.mrb[0].mxu0
        %v10534 = vadd.f32 %v10491, %v10533
        %v10535 = vpop.f32.mrb[0].mxu0
        %v10536 = vadd.f32 %v10493, %v10535
        %v10537 = vpop.f32.mrb[0].mxu0
        %v10538 = vadd.f32 %v10495, %v10537
        %10539 = vdwg.mxu0
        %10540 = vmatprep.subr.bf16.mxu0 %v9646
        %10541 = vmatpush1.bf16.msra.mxu0 %v9645
        %10542 = vmatprep.subr.bf16.mxu0 %v9654
        %10543 = vmatpush1.bf16.msra.mxu0 %v9653
        %10544 = vmatprep.subr.bf16.mxu0 %v9662
        %10545 = vmatpush1.bf16.msra.mxu0 %v9661
        %10546 = vmatprep.subr.bf16.mxu0 %v9670
        %10547 = vmatpush1.bf16.msra.mxu0 %v9669
        %10548 = vmatprep.subr.bf16.mxu0 %v9678
        %10549 = vmatpush1.bf16.msra.mxu0 %v9677
        %10550 = vmatprep.subr.bf16.mxu0 %v9686
        %10551 = vmatpush1.bf16.msra.mxu0 %v9685
        %10552 = vmatprep.subr.bf16.mxu0 %v9694
        %10553 = vmatpush1.bf16.msra.mxu0 %v9693
        %10554 = vmatprep.subr.bf16.mxu0 %v9702
        %10555 = vmatpush1.bf16.msra.mxu0 %v9701
        %10556 = vmatprep.subr.bf16.mxu0 %v9710
        %10557 = vmatpush1.bf16.msra.mxu0 %v9709
        %10558 = vmatprep.subr.bf16.mxu0 %v9718
        %10559 = vmatpush1.bf16.msra.mxu0 %v9717
        %10560 = vmatprep.subr.bf16.mxu0 %v9726
        %10561 = vmatpush1.bf16.msra.mxu0 %v9725
        %10562 = vmatprep.subr.bf16.mxu0 %v9734
        %10563 = vmatpush1.bf16.msra.mxu0 %v9733
        %10564 = vmatprep.subr.bf16.mxu0 %v9742
        %10565 = vmatpush1.bf16.msra.mxu0 %v9741
        %10566 = vmatprep.subr.bf16.mxu0 %v9750
        %10567 = vmatpush1.bf16.msra.mxu0 %v9749
        %10568 = vmatprep.subr.bf16.mxu0 %v9758
        %10569 = vmatpush1.bf16.msra.mxu0 %v9757
        %10570 = vmatprep.subr.bf16.mxu0 %v9766
        %10571 = vmatpush1.bf16.msra.mxu0 %v9765
        %10572 = vmatprep.mubr.bf16.mxu0 %v8057
        %10573 = vmatmul.mubr.bf16.gmra.mrb[0].mxu0 %v8056
        %v10574 = vpop.f32.mrb[0].mxu0
        %v10575 = vadd.f32 %v8462, %v10574
        %v10576 = vpop.f32.mrb[0].mxu0
        %v10577 = vadd.f32 %v8466, %v10576
        %v10578 = vpop.f32.mrb[0].mxu0
        %v10579 = vadd.f32 %v8462, %v10578
        %v10580 = vpop.f32.mrb[0].mxu0
        %v10581 = vadd.f32 %v8466, %v10580
        %10582 = vdwg.mxu0
        %10583 = vmatprep.subr.bf16.mxu0 %v9774
        %10584 = vmatpush1.bf16.msra.mxu0 %v9773
        %10585 = vmatprep.subr.bf16.mxu0 %v9782
        %10586 = vmatpush1.bf16.msra.mxu0 %v9781
        %10587 = vmatprep.subr.bf16.mxu0 %v9790
        %10588 = vmatpush1.bf16.msra.mxu0 %v9789
        %10589 = vmatprep.subr.bf16.mxu0 %v9798
        %10590 = vmatpush1.bf16.msra.mxu0 %v9797
        %10591 = vmatprep.subr.bf16.mxu0 %v9806
        %10592 = vmatpush1.bf16.msra.mxu0 %v9805
        %10593 = vmatprep.subr.bf16.mxu0 %v9814
        %10594 = vmatpush1.bf16.msra.mxu0 %v9813
        %10595 = vmatprep.subr.bf16.mxu0 %v9822
        %10596 = vmatpush1.bf16.msra.mxu0 %v9821
        %10597 = vmatprep.subr.bf16.mxu0 %v9830
        %10598 = vmatpush1.bf16.msra.mxu0 %v9829
        %10599 = vmatprep.subr.bf16.mxu0 %v9838
        %10600 = vmatpush1.bf16.msra.mxu0 %v9837
        %10601 = vmatprep.subr.bf16.mxu0 %v9846
        %10602 = vmatpush1.bf16.msra.mxu0 %v9845
        %10603 = vmatprep.subr.bf16.mxu0 %v9854
        %10604 = vmatpush1.bf16.msra.mxu0 %v9853
        %10605 = vmatprep.subr.bf16.mxu0 %v9862
        %10606 = vmatpush1.bf16.msra.mxu0 %v9861
        %10607 = vmatprep.subr.bf16.mxu0 %v9870
        %10608 = vmatpush1.bf16.msra.mxu0 %v9869
        %10609 = vmatprep.subr.bf16.mxu0 %v9878
        %10610 = vmatpush1.bf16.msra.mxu0 %v9877
        %10611 = vmatprep.subr.bf16.mxu0 %v9886
        %10612 = vmatpush1.bf16.msra.mxu0 %v9885
        %10613 = vmatprep.subr.bf16.mxu0 %v9894
        %10614 = vmatpush1.bf16.msra.mxu0 %v9893
        %10615 = vmatprep.mubr.bf16.mxu0 %v8059
        %10616 = vmatmul.mubr.bf16.gmra.mrb[0].mxu0 %v8058
        %v10617 = vpop.f32.mrb[0].mxu0
        %v10618 = vadd.f32 %v10575, %v10617
        %v10619 = vpop.f32.mrb[0].mxu0
        %v10620 = vadd.f32 %v10577, %v10619
        %v10621 = vpop.f32.mrb[0].mxu0
        %v10622 = vadd.f32 %v10579, %v10621
        %v10623 = vpop.f32.mrb[0].mxu0
        %v10624 = vadd.f32 %v10581, %v10623
        %10625 = vdwg.mxu0
        %10626 = vmatprep.subr.bf16.mxu0 %v9902
        %10627 = vmatpush1.bf16.msra.mxu0 %v9901
        %10628 = vmatprep.subr.bf16.mxu0 %v9910
        %10629 = vmatpush1.bf16.msra.mxu0 %v9909
        %10630 = vmatprep.subr.bf16.mxu0 %v9918
        %10631 = vmatpush1.bf16.msra.mxu0 %v9917
        %10632 = vmatprep.subr.bf16.mxu0 %v9926
        %10633 = vmatpush1.bf16.msra.mxu0 %v9925
        %10634 = vmatprep.subr.bf16.mxu0 %v9934
        %10635 = vmatpush1.bf16.msra.mxu0 %v9933
        %10636 = vmatprep.subr.bf16.mxu0 %v9942
        %10637 = vmatpush1.bf16.msra.mxu0 %v9941
        %10638 = vmatprep.subr.bf16.mxu0 %v9950
        %10639 = vmatpush1.bf16.msra.mxu0 %v9949
        %10640 = vmatprep.subr.bf16.mxu0 %v9958
        %10641 = vmatpush1.bf16.msra.mxu0 %v9957
        %10642 = vmatprep.subr.bf16.mxu0 %v9966
        %10643 = vmatpush1.bf16.msra.mxu0 %v9965
        %10644 = vmatprep.subr.bf16.mxu0 %v9974
        %10645 = vmatpush1.bf16.msra.mxu0 %v9973
        %10646 = vmatprep.subr.bf16.mxu0 %v9982
        %10647 = vmatpush1.bf16.msra.mxu0 %v9981
        %10648 = vmatprep.subr.bf16.mxu0 %v9990
        %10649 = vmatpush1.bf16.msra.mxu0 %v9989
        %10650 = vmatprep.subr.bf16.mxu0 %v9998
        %10651 = vmatpush1.bf16.msra.mxu0 %v9997
        %10652 = vmatprep.subr.bf16.mxu0 %v10006
        %10653 = vmatpush1.bf16.msra.mxu0 %v10005
        %10654 = vmatprep.subr.bf16.mxu0 %v10014
        %10655 = vmatpush1.bf16.msra.mxu0 %v10013
        %10656 = vmatprep.subr.bf16.mxu0 %v10022
        %10657 = vmatpush1.bf16.msra.mxu0 %v10021
        %10658 = vmatprep.mubr.bf16.mxu0 %v8061
        %10659 = vmatmul.mubr.bf16.gmra.mrb[0].mxu0 %v8060
        %v10660 = vpop.f32.mrb[0].mxu0
        %v10661 = vadd.f32 %v10618, %v10660
        %v10662 = vpop.f32.mrb[0].mxu0
        %v10663 = vadd.f32 %v10620, %v10662
        %v10664 = vpop.f32.mrb[0].mxu0
        %v10665 = vadd.f32 %v10622, %v10664
        %v10666 = vpop.f32.mrb[0].mxu0
        %v10667 = vadd.f32 %v10624, %v10666
        %10668 = vdwg.mxu0
        %10669 = vmatprep.subr.bf16.mxu0 %v9648
        %10670 = vmatpush1.bf16.msra.mxu0 %v9647
        %10671 = vmatprep.subr.bf16.mxu0 %v9656
        %10672 = vmatpush1.bf16.msra.mxu0 %v9655
        %10673 = vmatprep.subr.bf16.mxu0 %v9664
        %10674 = vmatpush1.bf16.msra.mxu0 %v9663
        %10675 = vmatprep.subr.bf16.mxu0 %v9672
        %10676 = vmatpush1.bf16.msra.mxu0 %v9671
        %10677 = vmatprep.subr.bf16.mxu0 %v9680
        %10678 = vmatpush1.bf16.msra.mxu0 %v9679
        %10679 = vmatprep.subr.bf16.mxu0 %v9688
        %10680 = vmatpush1.bf16.msra.mxu0 %v9687
        %10681 = vmatprep.subr.bf16.mxu0 %v9696
        %10682 = vmatpush1.bf16.msra.mxu0 %v9695
        %10683 = vmatprep.subr.bf16.mxu0 %v9704
        %10684 = vmatpush1.bf16.msra.mxu0 %v9703
        %10685 = vmatprep.subr.bf16.mxu0 %v9712
        %10686 = vmatpush1.bf16.msra.mxu0 %v9711
        %10687 = vmatprep.subr.bf16.mxu0 %v9720
        %10688 = vmatpush1.bf16.msra.mxu0 %v9719
        %10689 = vmatprep.subr.bf16.mxu0 %v9728
        %10690 = vmatpush1.bf16.msra.mxu0 %v9727
        %10691 = vmatprep.subr.bf16.mxu0 %v9736
        %10692 = vmatpush1.bf16.msra.mxu0 %v9735
        %10693 = vmatprep.subr.bf16.mxu0 %v9744
        %10694 = vmatpush1.bf16.msra.mxu0 %v9743
        %10695 = vmatprep.subr.bf16.mxu0 %v9752
        %10696 = vmatpush1.bf16.msra.mxu0 %v9751
        %10697 = vmatprep.subr.bf16.mxu0 %v9760
        %10698 = vmatpush1.bf16.msra.mxu0 %v9759
        %10699 = vmatprep.subr.bf16.mxu0 %v9768
        %10700 = vmatpush1.bf16.msra.mxu0 %v9767
        %10701 = vmatprep.mubr.bf16.mxu0 %v8057
        %10702 = vmatmul.mubr.bf16.gmra.mrb[0].mxu0 %v8056
        %v10703 = vpop.f32.mrb[0].mxu0
        %v10704 = vadd.f32 %v8470, %v10703
        %v10705 = vpop.f32.mrb[0].mxu0
        %v10706 = vadd.f32 %v8474, %v10705
        %v10707 = vpop.f32.mrb[0].mxu0
        %v10708 = vadd.f32 %v8470, %v10707
        %v10709 = vpop.f32.mrb[0].mxu0
        %v10710 = vadd.f32 %v8474, %v10709
        %10711 = vdwg.mxu0
        %10712 = vmatprep.subr.bf16.mxu0 %v9776
        %10713 = vmatpush1.bf16.msra.mxu0 %v9775
        %10714 = vmatprep.subr.bf16.mxu0 %v9784
        %10715 = vmatpush1.bf16.msra.mxu0 %v9783
        %10716 = vmatprep.subr.bf16.mxu0 %v9792
        %10717 = vmatpush1.bf16.msra.mxu0 %v9791
        %10718 = vmatprep.subr.bf16.mxu0 %v9800
        %10719 = vmatpush1.bf16.msra.mxu0 %v9799
        %10720 = vmatprep.subr.bf16.mxu0 %v9808
        %10721 = vmatpush1.bf16.msra.mxu0 %v9807
        %10722 = vmatprep.subr.bf16.mxu0 %v9816
        %10723 = vmatpush1.bf16.msra.mxu0 %v9815
        %10724 = vmatprep.subr.bf16.mxu0 %v9824
        %10725 = vmatpush1.bf16.msra.mxu0 %v9823
        %10726 = vmatprep.subr.bf16.mxu0 %v9832
        %10727 = vmatpush1.bf16.msra.mxu0 %v9831
        %10728 = vmatprep.subr.bf16.mxu0 %v9840
        %10729 = vmatpush1.bf16.msra.mxu0 %v9839
        %10730 = vmatprep.subr.bf16.mxu0 %v9848
        %10731 = vmatpush1.bf16.msra.mxu0 %v9847
        %10732 = vmatprep.subr.bf16.mxu0 %v9856
        %10733 = vmatpush1.bf16.msra.mxu0 %v9855
        %10734 = vmatprep.subr.bf16.mxu0 %v9864
        %10735 = vmatpush1.bf16.msra.mxu0 %v9863
        %10736 = vmatprep.subr.bf16.mxu0 %v9872
        %10737 = vmatpush1.bf16.msra.mxu0 %v9871
        %10738 = vmatprep.subr.bf16.mxu0 %v9880
        %10739 = vmatpush1.bf16.msra.mxu0 %v9879
        %10740 = vmatprep.subr.bf16.mxu0 %v9888
        %10741 = vmatpush1.bf16.msra.mxu0 %v9887
        %10742 = vmatprep.subr.bf16.mxu0 %v9896
        %10743 = vmatpush1.bf16.msra.mxu0 %v9895
        %10744 = vmatprep.mubr.bf16.mxu0 %v8059
        %10745 = vmatmul.mubr.bf16.gmra.mrb[0].mxu0 %v8058
        %v10746 = vpop.f32.mrb[0].mxu0
        %v10747 = vadd.f32 %v10704, %v10746
        %v10748 = vpop.f32.mrb[0].mxu0
        %v10749 = vadd.f32 %v10706, %v10748
        %v10750 = vpop.f32.mrb[0].mxu0
        %v10751 = vadd.f32 %v10708, %v10750
        %v10752 = vpop.f32.mrb[0].mxu0
        %v10753 = vadd.f32 %v10710, %v10752
        %10754 = vdwg.mxu0
        %10755 = vmatprep.subr.bf16.mxu0 %v9904
        %10756 = vmatpush1.bf16.msra.mxu0 %v9903
        %10757 = vmatprep.subr.bf16.mxu0 %v9912
        %10758 = vmatpush1.bf16.msra.mxu0 %v9911
        %10759 = vmatprep.subr.bf16.mxu0 %v9920
        %10760 = vmatpush1.bf16.msra.mxu0 %v9919
        %10761 = vmatprep.subr.bf16.mxu0 %v9928
        %10762 = vmatpush1.bf16.msra.mxu0 %v9927
        %10763 = vmatprep.subr.bf16.mxu0 %v9936
        %10764 = vmatpush1.bf16.msra.mxu0 %v9935
        %10765 = vmatprep.subr.bf16.mxu0 %v9944
        %10766 = vmatpush1.bf16.msra.mxu0 %v9943
        %10767 = vmatprep.subr.bf16.mxu0 %v9952
        %10768 = vmatpush1.bf16.msra.mxu0 %v9951
        %10769 = vmatprep.subr.bf16.mxu0 %v9960
        %10770 = vmatpush1.bf16.msra.mxu0 %v9959
        %10771 = vmatprep.subr.bf16.mxu0 %v9968
        %10772 = vmatpush1.bf16.msra.mxu0 %v9967
        %10773 = vmatprep.subr.bf16.mxu0 %v9976
        %10774 = vmatpush1.bf16.msra.mxu0 %v9975
        %10775 = vmatprep.subr.bf16.mxu0 %v9984
        %10776 = vmatpush1.bf16.msra.mxu0 %v9983
        %10777 = vmatprep.subr.bf16.mxu0 %v9992
        %10778 = vmatpush1.bf16.msra.mxu0 %v9991
        %10779 = vmatprep.subr.bf16.mxu0 %v10000
        %10780 = vmatpush1.bf16.msra.mxu0 %v9999
        %10781 = vmatprep.subr.bf16.mxu0 %v10008
        %10782 = vmatpush1.bf16.msra.mxu0 %v10007
        %10783 = vmatprep.subr.bf16.mxu0 %v10016
        %10784 = vmatpush1.bf16.msra.mxu0 %v10015
        %10785 = vmatprep.subr.bf16.mxu0 %v10024
        %10786 = vmatpush1.bf16.msra.mxu0 %v10023
        %10787 = vmatprep.mubr.bf16.mxu0 %v8061
        %10788 = vmatmul.mubr.bf16.gmra.mrb[0].mxu0 %v8060
        %v10789 = vpop.f32.mrb[0].mxu0
        %v10790 = vadd.f32 %v10747, %v10789
        %v10791 = vpop.f32.mrb[0].mxu0
        %v10792 = vadd.f32 %v10749, %v10791
        %v10793 = vpop.f32.mrb[0].mxu0
        %v10794 = vadd.f32 %v10751, %v10793
        %v10795 = vpop.f32.mrb[0].mxu0
        %v10796 = vadd.f32 %v10753, %v10795
        %10797 = vdwg.mxu0
        %10798 = vmatprep.subr.bf16.mxu0 %v9650
        %10799 = vmatpush1.bf16.msra.mxu0 %v9649
        %10800 = vmatprep.subr.bf16.mxu0 %v9658
        %10801 = vmatpush1.bf16.msra.mxu0 %v9657
        %10802 = vmatprep.subr.bf16.mxu0 %v9666
        %10803 = vmatpush1.bf16.msra.mxu0 %v9665
        %10804 = vmatprep.subr.bf16.mxu0 %v9674
        %10805 = vmatpush1.bf16.msra.mxu0 %v9673
        %10806 = vmatprep.subr.bf16.mxu0 %v9682
        %10807 = vmatpush1.bf16.msra.mxu0 %v9681
        %10808 = vmatprep.subr.bf16.mxu0 %v9690
        %10809 = vmatpush1.bf16.msra.mxu0 %v9689
        %10810 = vmatprep.subr.bf16.mxu0 %v9698
        %10811 = vmatpush1.bf16.msra.mxu0 %v9697
        %10812 = vmatprep.subr.bf16.mxu0 %v9706
        %10813 = vmatpush1.bf16.msra.mxu0 %v9705
        %10814 = vmatprep.subr.bf16.mxu0 %v9714
        %10815 = vmatpush1.bf16.msra.mxu0 %v9713
        %10816 = vmatprep.subr.bf16.mxu0 %v9722
        %10817 = vmatpush1.bf16.msra.mxu0 %v9721
        %10818 = vmatprep.subr.bf16.mxu0 %v9730
        %10819 = vmatpush1.bf16.msra.mxu0 %v9729
        %10820 = vmatprep.subr.bf16.mxu0 %v9738
        %10821 = vmatpush1.bf16.msra.mxu0 %v9737
        %10822 = vmatprep.subr.bf16.mxu0 %v9746
        %10823 = vmatpush1.bf16.msra.mxu0 %v9745
        %10824 = vmatprep.subr.bf16.mxu0 %v9754
        %10825 = vmatpush1.bf16.msra.mxu0 %v9753
        %10826 = vmatprep.subr.bf16.mxu0 %v9762
        %10827 = vmatpush1.bf16.msra.mxu0 %v9761
        %10828 = vmatprep.subr.bf16.mxu0 %v9770
        %10829 = vmatpush1.bf16.msra.mxu0 %v9769
        %10830 = vmatprep.mubr.bf16.mxu0 %v8057
        %10831 = vmatmul.mubr.bf16.gmra.mrb[0].mxu0 %v8056
        %v10832 = vpop.f32.mrb[0].mxu0
        %v10833 = vadd.f32 %v8478, %v10832
        %v10834 = vpop.f32.mrb[0].mxu0
        %v10835 = vadd.f32 %v8482, %v10834
        %v10836 = vpop.f32.mrb[0].mxu0
        %v10837 = vadd.f32 %v8478, %v10836
        %v10838 = vpop.f32.mrb[0].mxu0
        %v10839 = vadd.f32 %v8482, %v10838
        %10840 = vdwg.mxu0
        %10841 = vmatprep.subr.bf16.mxu0 %v9778
        %10842 = vmatpush1.bf16.msra.mxu0 %v9777
        %10843 = vmatprep.subr.bf16.mxu0 %v9786
        %10844 = vmatpush1.bf16.msra.mxu0 %v9785
        %10845 = vmatprep.subr.bf16.mxu0 %v9794
        %10846 = vmatpush1.bf16.msra.mxu0 %v9793
        %10847 = vmatprep.subr.bf16.mxu0 %v9802
        %10848 = vmatpush1.bf16.msra.mxu0 %v9801
        %10849 = vmatprep.subr.bf16.mxu0 %v9810
        %10850 = vmatpush1.bf16.msra.mxu0 %v9809
        %10851 = vmatprep.subr.bf16.mxu0 %v9818
        %10852 = vmatpush1.bf16.msra.mxu0 %v9817
        %10853 = vmatprep.subr.bf16.mxu0 %v9826
        %10854 = vmatpush1.bf16.msra.mxu0 %v9825
        %10855 = vmatprep.subr.bf16.mxu0 %v9834
        %10856 = vmatpush1.bf16.msra.mxu0 %v9833
        %10857 = vmatprep.subr.bf16.mxu0 %v9842
        %10858 = vmatpush1.bf16.msra.mxu0 %v9841
        %10859 = vmatprep.subr.bf16.mxu0 %v9850
        %10860 = vmatpush1.bf16.msra.mxu0 %v9849
        %10861 = vmatprep.subr.bf16.mxu0 %v9858
        %10862 = vmatpush1.bf16.msra.mxu0 %v9857
        %10863 = vmatprep.subr.bf16.mxu0 %v9866
        %10864 = vmatpush1.bf16.msra.mxu0 %v9865
        %10865 = vmatprep.subr.bf16.mxu0 %v9874
        %10866 = vmatpush1.bf16.msra.mxu0 %v9873
        %10867 = vmatprep.subr.bf16.mxu0 %v9882
        %10868 = vmatpush1.bf16.msra.mxu0 %v9881
        %10869 = vmatprep.subr.bf16.mxu0 %v9890
        %10870 = vmatpush1.bf16.msra.mxu0 %v9889
        %10871 = vmatprep.subr.bf16.mxu0 %v9898
        %10872 = vmatpush1.bf16.msra.mxu0 %v9897
        %10873 = vmatprep.mubr.bf16.mxu0 %v8059
        %10874 = vmatmul.mubr.bf16.gmra.mrb[0].mxu0 %v8058
        %v10875 = vpop.f32.mrb[0].mxu0
        %v10876 = vadd.f32 %v10833, %v10875
        %v10877 = vpop.f32.mrb[0].mxu0
        %v10878 = vadd.f32 %v10835, %v10877
        %v10879 = vpop.f32.mrb[0].mxu0
        %v10880 = vadd.f32 %v10837, %v10879
        %v10881 = vpop.f32.mrb[0].mxu0
        %v10882 = vadd.f32 %v10839, %v10881
        %10883 = vdwg.mxu0
        %10884 = vmatprep.subr.bf16.mxu0 %v9906
        %10885 = vmatpush1.bf16.msra.mxu0 %v9905
        %10886 = vmatprep.subr.bf16.mxu0 %v9914
        %10887 = vmatpush1.bf16.msra.mxu0 %v9913
        %10888 = vmatprep.subr.bf16.mxu0 %v9922
        %10889 = vmatpush1.bf16.msra.mxu0 %v9921
        %10890 = vmatprep.subr.bf16.mxu0 %v9930
        %10891 = vmatpush1.bf16.msra.mxu0 %v9929
        %10892 = vmatprep.subr.bf16.mxu0 %v9938
        %10893 = vmatpush1.bf16.msra.mxu0 %v9937
        %10894 = vmatprep.subr.bf16.mxu0 %v9946
        %10895 = vmatpush1.bf16.msra.mxu0 %v9945
        %10896 = vmatprep.subr.bf16.mxu0 %v9954
        %10897 = vmatpush1.bf16.msra.mxu0 %v9953
        %10898 = vmatprep.subr.bf16.mxu0 %v9962
        %10899 = vmatpush1.bf16.msra.mxu0 %v9961
        %10900 = vmatprep.subr.bf16.mxu0 %v9970
        %10901 = vmatpush1.bf16.msra.mxu0 %v9969
        %10902 = vmatprep.subr.bf16.mxu0 %v9978
        %10903 = vmatpush1.bf16.msra.mxu0 %v9977
        %10904 = vmatprep.subr.bf16.mxu0 %v9986
        %10905 = vmatpush1.bf16.msra.mxu0 %v9985
        %10906 = vmatprep.subr.bf16.mxu0 %v9994
        %10907 = vmatpush1.bf16.msra.mxu0 %v9993
        %10908 = vmatprep.subr.bf16.mxu0 %v10002
        %10909 = vmatpush1.bf16.msra.mxu0 %v10001
        %10910 = vmatprep.subr.bf16.mxu0 %v10010
        %10911 = vmatpush1.bf16.msra.mxu0 %v10009
        %10912 = vmatprep.subr.bf16.mxu0 %v10018
        %10913 = vmatpush1.bf16.msra.mxu0 %v10017
        %10914 = vmatprep.subr.bf16.mxu0 %v10026
        %10915 = vmatpush1.bf16.msra.mxu0 %v10025
        %10916 = vmatprep.mubr.bf16.mxu0 %v8061
        %10917 = vmatmul.mubr.bf16.gmra.mrb[0].mxu0 %v8060
        %v10918 = vpop.f32.mrb[0].mxu0
        %v10919 = vadd.f32 %v10876, %v10918
        %v10920 = vpop.f32.mrb[0].mxu0
        %v10921 = vadd.f32 %v10878, %v10920
        %v10922 = vpop.f32.mrb[0].mxu0
        %v10923 = vadd.f32 %v10880, %v10922
        %v10924 = vpop.f32.mrb[0].mxu0
        %v10925 = vadd.f32 %v10882, %v10924
        %10926 = vdwg.mxu0
        %v10927 = vxor.u32 %v10532, 2147483648
        %v10928 = vxor.u32 %v10534, 2147483648
        %v10929 = vxor.u32 %v10661, 2147483648
        %v10930 = vxor.u32 %v10663, 2147483648
        %v10931 = vxor.u32 %v10790, 2147483648
        %v10932 = vxor.u32 %v10792, 2147483648
        %v10933 = vxor.u32 %v10919, 2147483648
        %v10934 = vxor.u32 %v10921, 2147483648
        %v10935 = vxor.u32 %v10536, 2147483648
        %v10936 = vxor.u32 %v10538, 2147483648
        %v10937 = vxor.u32 %v10665, 2147483648
        %v10938 = vxor.u32 %v10667, 2147483648
        %v10939 = vxor.u32 %v10794, 2147483648
        %v10940 = vxor.u32 %v10796, 2147483648
        %v10941 = vxor.u32 %v10923, 2147483648
        %v10942 = vxor.u32 %v10925, 2147483648
        %v10943 = vmul.f32 %v10927, 1.442695
        %v10944 = vpow.pop %v10943
        %v10945 = vmul.f32 %v10928, 1.442695
        %v10946 = vpow.pop %v10945
        %v10947 = vmul.f32 %v10929, 1.442695
        %v10948 = vpow.pop %v10947
        %v10949 = vmul.f32 %v10930, 1.442695
        %v10950 = vpow.pop %v10949
        %v10951 = vmul.f32 %v10931, 1.442695
        %v10952 = vpow.pop %v10951
        %v10953 = vmul.f32 %v10932, 1.442695
        %v10954 = vpow.pop %v10953
        %v10955 = vmul.f32 %v10933, 1.442695
        %v10956 = vpow.pop %v10955
        %v10957 = vmul.f32 %v10934, 1.442695
        %v10958 = vpow.pop %v10957
        %v10959 = vmul.f32 %v10935, 1.442695
        %v10960 = vpow.pop %v10959
        %v10961 = vmul.f32 %v10936, 1.442695
        %v10962 = vpow.pop %v10961
        %v10963 = vmul.f32 %v10937, 1.442695
        %v10964 = vpow.pop %v10963
        %v10965 = vmul.f32 %v10938, 1.442695
        %v10966 = vpow.pop %v10965
        %v10967 = vmul.f32 %v10939, 1.442695
        %v10968 = vpow.pop %v10967
        %v10969 = vmul.f32 %v10940, 1.442695
        %v10970 = vpow.pop %v10969
        %v10971 = vmul.f32 %v10941, 1.442695
        %v10972 = vpow.pop %v10971
        %v10973 = vmul.f32 %v10942, 1.442695
        %v10974 = vpow.pop %v10973
        %v10975 = vadd.f32 %v10944, 1.0
        %v10976 = vadd.f32 %v10946, 1.0
        %v10977 = vadd.f32 %v10948, 1.0
        %v10978 = vadd.f32 %v10950, 1.0
        %v10979 = vadd.f32 %v10952, 1.0
        %v10980 = vadd.f32 %v10954, 1.0
        %v10981 = vadd.f32 %v10956, 1.0
        %v10982 = vadd.f32 %v10958, 1.0
        %v10983 = vadd.f32 %v10960, 1.0
        %v10984 = vadd.f32 %v10962, 1.0
        %v10985 = vadd.f32 %v10964, 1.0
        %v10986 = vadd.f32 %v10966, 1.0
        %v10987 = vadd.f32 %v10968, 1.0
        %v10988 = vadd.f32 %v10970, 1.0
        %v10989 = vadd.f32 %v10972, 1.0
        %v10990 = vadd.f32 %v10974, 1.0
        %v10991 = vrcp.pop %v10975
        %v10992 = vmul.f32 1.0, %v10991
        %v10993 = vrcp.pop %v10976
        %v10994 = vmul.f32 1.0, %v10993
        %v10995 = vrcp.pop %v10977
        %v10996 = vmul.f32 1.0, %v10995
        %v10997 = vrcp.pop %v10978
        %v10998 = vmul.f32 1.0, %v10997
        %v10999 = vrcp.pop %v10979
        %v11000 = vmul.f32 1.0, %v10999
        %v11001 = vrcp.pop %v10980
        %v11002 = vmul.f32 1.0, %v11001
        %v11003 = vrcp.pop %v10981
        %v11004 = vmul.f32 1.0, %v11003
        %v11005 = vrcp.pop %v10982
        %v11006 = vmul.f32 1.0, %v11005
        %v11007 = vrcp.pop %v10983
        %v11008 = vmul.f32 1.0, %v11007
        %v11009 = vrcp.pop %v10984
        %v11010 = vmul.f32 1.0, %v11009
        %v11011 = vrcp.pop %v10985
        %v11012 = vmul.f32 1.0, %v11011
        %v11013 = vrcp.pop %v10986
        %v11014 = vmul.f32 1.0, %v11013
        %v11015 = vrcp.pop %v10987
        %v11016 = vmul.f32 1.0, %v11015
        %v11017 = vrcp.pop %v10988
        %v11018 = vmul.f32 1.0, %v11017
        %v11019 = vrcp.pop %v10989
        %v11020 = vmul.f32 1.0, %v11019
        %v11021 = vrcp.pop %v10990
        %v11022 = vmul.f32 1.0, %v11021
        %11023 = vst [vmem:[%s580] sm:$0xff] %v10992
        %11024 = vst [vmem:[%s580 + $0x8] sm:$0xff] %v10994
        %11025 = vst [vmem:[%s580 + $0x10] sm:$0xff] %v10996
        %11026 = vst [vmem:[%s580 + $0x18] sm:$0xff] %v10998
        %11027 = vst [vmem:[%s580 + $0x20] sm:$0xff] %v11000
        %11028 = vst [vmem:[%s580 + $0x28] sm:$0xff] %v11002
        %11029 = vst [vmem:[%s580 + $0x30] sm:$0xff] %v11004
        %11030 = vst [vmem:[%s580 + $0x38] sm:$0xff] %v11006
        %11031 = vst [vmem:[%s580 + $0x40] sm:$0xff] %v11008
        %11032 = vst [vmem:[%s580 + $0x48] sm:$0xff] %v11010
        %11033 = vst [vmem:[%s580 + $0x50] sm:$0xff] %v11012
        %11034 = vst [vmem:[%s580 + $0x58] sm:$0xff] %v11014
        %11035 = vst [vmem:[%s580 + $0x60] sm:$0xff] %v11016
        %11036 = vst [vmem:[%s580 + $0x68] sm:$0xff] %v11018
        %11037 = vst [vmem:[%s580 + $0x70] sm:$0xff] %v11020
        %11038 = vst [vmem:[%s580 + $0x78] sm:$0xff] %v11022
        %s11039 = smul.u32 2, %s29
        %p11040 = scmp.lt.s32.totalorder %s11039, 3
        %s11041 = scalar_select %p11040, %s11039, 3
        %s11042 = smul.addr %s11041, 8
        %s11043 = smul.addr %s11042, 8
        %s11044 = scalar_lea.vmem %s12, %s11043
        // Predicated region
        $region113: #{vanilla_ae_forward.1} parent=67 // pred_check
          %p11045 = pneg %p304
        $region114: #{vanilla_ae_forward.1} parent=67 // pred_check_branch
          %11047 = sbr.rel (%p11045) target = $region116
        $region115: #{vanilla_ae_forward.1} parent=67 // pred_region
          %s11048 = smul.u32 2, %s29
        $region116: #{vanilla_ae_forward.1} parent=67 // pred_fallthru
          _
      $region68: #{vanilla_ae_forward.1} parent=5 // pred_fallthru
        _
      %p11049 = scmp.le.s32.totalorder 2, %s24
      // Predicated region
      $region117: #{vanilla_ae_forward.1} parent=5 // pred_check
        %p11050 = pneg %p11049
      $region118: #{vanilla_ae_forward.1} parent=5 // pred_check_branch
        %11052 = sbr.rel (%p11050) target = $region120
      $region119: #{vanilla_ae_forward.1} parent=5 // pred_region
        %s11053 = ssub.s32 %s24, 2
        // Predicated region
        $region121: #{vanilla_ae_forward.1} parent=119 // pred_check
          %p11054 = pneg %p310
        $region122: #{vanilla_ae_forward.1} parent=119 // pred_check_branch
          %11056 = sbr.rel (%p11054) target = $region124
        $region123: #{vanilla_ae_forward.1} parent=119 // pred_region
          %s11057 = smul.u32 2, %s30
          %p11058 = scmp.lt.s32.totalorder %s11057, 3
          %s11059 = scalar_select %p11058, %s11057, 3
          %s11060 = smul.addr %s11059, 8
          %s11061 = smul.addr %s11060, 8
          %s11062 = scalar_lea.vmem %s12, %s11061
        $region124: #{vanilla_ae_forward.1} parent=119 // pred_fallthru
          _
      $region120: #{vanilla_ae_forward.1} parent=5 // pred_fallthru
        _
    $region6: #{vanilla_ae_forward.1} parent=1 // loop_footer
      %s28 = sadd.s32 1, %s24
    $region7: #{vanilla_ae_forward.1} parent=1 // loop_footer_branch
      %23 = sbr.rel target = $region3
    $region8: #{vanilla_ae_forward.1} parent=1 // loop_exit
      _
    %11063 = vsyncpa [#allocation3], 1
    %s11064 = scalar_lea.sflag [#allocation3], 1
    %11065 = vsyncpa %s11064, 1
    %11066 = vsyncpa [#allocation5], 1
    %11067 = vsyncpa [#allocation8], 1
    %11068 = vsyncpa [#allocation11], 1
    %11069 = vsyncpa [#allocation14], 1
    %11070 = vsyncpa [#allocation17], 1

</llo_original>
